<compile_context>
chip_gen: v7x
topology: tpu7x:2x2x1
jax: 0.10.0
libtpu: 0.0.40
codegen_flags: <defaults>
</compile_context>

<pallas_src>
import functools

import jax
import jax.numpy as jnp
import numpy as np
from jax.experimental import pallas as pl
from jax.experimental.pallas import tpu as pltpu


def _compiler_params():
    return pltpu.CompilerParams(
        dimension_semantics=("parallel", "parallel"),
        vmem_limit_bytes=48 * 1024 * 1024,
    )


# ----------------------------- in-kernel helpers -----------------------------

def _bn_relu_cm(y, s_ref, b_ref):
    # y: (C, tn) f32; s/b: (C, 1) f32 (broadcast along lanes).
    return jnp.maximum(y * s_ref[...] + b_ref[...], 0.0)


def _relpos_mlp1_k(xyz, n_k, yc, w7t_ref, s1_ref, b1_ref):
    """relative_pos_encoding + mlp1 for one neighbour slot k (channel-major).

    xyz: (3, tn) f32, n_k: (3, tn) f32, yc: (C1, tn) f32 xyz-center term
    (shared over K).  Returns (C1, tn) f32.
    PyTorch feature order is [dis, rel, xyz_tile, nxyz]; w7t holds the
    transposed rows [0:1, 1:4, 7:10] and yc carries rows [4:7].
    """
    rel = xyz - n_k                                                  # (3, tn)
    dis = jnp.sqrt(jnp.sum(rel * rel, axis=0, keepdims=True))        # (1, tn)
    feat7 = jnp.concatenate([dis, rel, n_k], axis=0).astype(jnp.bfloat16)
    y = jnp.dot(w7t_ref[...], feat7,
                preferred_element_type=jnp.float32) + yc             # (C1, tn)
    return _bn_relu_cm(y, s1_ref, b1_ref)


def _att_pool_cm(fn_ref, fx_list, wfct_ref, wmt_ref, s_ref, b_ref):
    """Att_pooling, channel-major.

    fn_ref: (1, C1, K, tn) bf16 gathered neighbour features.
    fx_list: K entries of (C1, tn) f32 (the mlp'd relpos features).
    Returns (Cout, tn) f32.
    """
    k_total = len(fx_list)
    c1 = fx_list[0].shape[0]

    att_list = []
    for k in range(k_total):
        fn_k = fn_ref[0, :, k, :]                                    # (C1, tn) bf16
        fs_k = jnp.concatenate([fn_k, fx_list[k].astype(jnp.bfloat16)],
                               axis=0)                               # (2C1, tn)
        att_list.append(jnp.dot(wfct_ref[...], fs_k,
                                preferred_element_type=jnp.float32))  # (2C1, tn)

    # softmax over K: K-1 elementwise maxes/adds on lane-dense (2C1, tn) tiles.
    m = functools.reduce(jnp.maximum, att_list)
    e_list = [jnp.exp(a - m) for a in att_list]
    inv = pl.reciprocal(functools.reduce(jnp.add, e_list), approx=True)

    agg_n = jnp.zeros_like(fx_list[0])                               # (C1, tn) f32
    agg_x = jnp.zeros_like(fx_list[0])
    for k in range(k_total):
        sc_k = e_list[k] * inv                                       # (2C1, tn)
        agg_n = agg_n + fn_ref[0, :, k, :].astype(jnp.float32) * sc_k[:c1]
        agg_x = agg_x + fx_list[k] * sc_k[c1:]

    agg = jnp.concatenate([agg_n, agg_x], axis=0).astype(jnp.bfloat16)  # (2C1, tn)
    y = jnp.dot(wmt_ref[...], agg, preferred_element_type=jnp.float32)  # (Cout, tn)
    return _bn_relu_cm(y, s_ref, b_ref)


# ----------------------------- Pallas kernels -----------------------------

def _block1_kernel(xyz_ref, nxyz_ref, fn_ref,
                   w7t_ref, wct_ref, s1_ref, b1_ref,
                   wfc_ref, wm_ref, sa_ref, ba_ref,
                   out_ref):
    # relpos -> mlp1 -> att_pooling_1, fully fused; f_xyz never leaves VMEM.
    xyz = xyz_ref[0]                                                 # (3, tn) f32
    yc = jnp.dot(wct_ref[...], xyz.astype(jnp.bfloat16),
                 preferred_element_type=jnp.float32)                 # (C1, tn)
    k_total = nxyz_ref.shape[2]
    fx_list = [
        _relpos_mlp1_k(xyz, nxyz_ref[0, :, k, :], yc, w7t_ref, s1_ref, b1_ref)
        for k in range(k_total)
    ]
    out = _att_pool_cm(fn_ref, fx_list, wfc_ref, wm_ref, sa_ref, ba_ref)
    out_ref[0] = out.astype(out_ref.dtype)


def _block2_kernel(xyz_ref, nxyz_ref, fn2_ref,
                   w7t_ref, wct_ref, s1_ref, b1_ref,
                   w2t_ref, s2_ref, b2_ref,
                   wfc_ref, wm_ref, sa_ref, ba_ref,
                   out_ref):
    # Recompute relpos+mlp1 (cheap MXU work) instead of a K-expanded HBM round
    # trip of f_xyz, then mlp2 -> att_pooling_2, fused.
    xyz = xyz_ref[0]                                                 # (3, tn) f32
    yc = jnp.dot(wct_ref[...], xyz.astype(jnp.bfloat16),
                 preferred_element_type=jnp.float32)                 # (C1, tn)
    k_total = nxyz_ref.shape[2]
    fx2_list = []
    for k in range(k_total):
        f1_k = _relpos_mlp1_k(xyz, nxyz_ref[0, :, k, :], yc,
                              w7t_ref, s1_ref, b1_ref)               # (C1, tn)
        y2 = jnp.dot(w2t_ref[...], f1_k.astype(jnp.bfloat16),
                     preferred_element_type=jnp.float32)             # (C1, tn)
        fx2_list.append(_bn_relu_cm(y2, s2_ref, b2_ref))
    out = _att_pool_cm(fn2_ref, fx2_list, wfc_ref, wm_ref, sa_ref, ba_ref)
    out_ref[0] = out.astype(out_ref.dtype)


# ----------------------------- Pallas wrappers -----------------------------

def _weight_specs(weights):
    # All weights are small 2-D arrays; fetch them whole every grid step.
    return [pl.BlockSpec(w.shape, lambda b, n: (0, 0)) for w in weights]


def _run_block1(xyz_cm, nxyz, f_neigh, wp, tn):
    B, _, npad = xyz_cm.shape
    K = nxyz.shape[2]
    C1 = wp["s1"].shape[0]
    weights = (wp["w7t"], wp["wct"], wp["s1"], wp["b1"],
               wp["wfc1t"], wp["wm1t"], wp["sa1"], wp["ba1"])
    return pl.pallas_call(
        _block1_kernel,
        out_shape=jax.ShapeDtypeStruct((B, C1, npad), jnp.bfloat16),
        grid=(B, npad // tn),
        in_specs=[
            pl.BlockSpec((1, 3, tn), lambda b, n: (b, 0, n)),
            pl.BlockSpec((1, 3, K, tn), lambda b, n: (b, 0, 0, n)),
            pl.BlockSpec((1, C1, K, tn), lambda b, n: (b, 0, 0, n)),
        ] + _weight_specs(weights),
        out_specs=pl.BlockSpec((1, C1, tn), lambda b, n: (b, 0, n)),
        compiler_params=_compiler_params(),
    )(xyz_cm, nxyz, f_neigh, *weights)


def _run_block2(xyz_cm, nxyz, f_neigh2, wp, tn):
    B, _, npad = xyz_cm.shape
    K = nxyz.shape[2]
    C1 = wp["s1"].shape[0]
    d_out = wp["sa2"].shape[0]
    weights = (wp["w7t"], wp["wct"], wp["s1"], wp["b1"],
               wp["w2t"], wp["s2"], wp["b2"],
               wp["wfc2t"], wp["wm2t"], wp["sa2"], wp["ba2"])
    return pl.pallas_call(
        _block2_kernel,
        out_shape=jax.ShapeDtypeStruct((B, d_out, npad), jnp.float32),
        grid=(B, npad // tn),
        in_specs=[
            pl.BlockSpec((1, 3, tn), lambda b, n: (b, 0, n)),
            pl.BlockSpec((1, 3, K, tn), lambda b, n: (b, 0, 0, n)),
            pl.BlockSpec((1, C1, K, tn), lambda b, n: (b, 0, 0, n)),
        ] + _weight_specs(weights),
        out_specs=pl.BlockSpec((1, d_out, tn), lambda b, n: (b, 0, n)),
        compiler_params=_compiler_params(),
    )(xyz_cm, nxyz, f_neigh2, *weights)


# ----------------------------- JAX glue -----------------------------

def _choose_tile(n, k, c1, cout, cap=512, budget_bytes=32 * 1024 * 1024):
    # Rows (points) per grid step, from an explicit VMEM budget that accounts
    # for K, C1, dtypes, double-buffered I/O blocks and the live per-K f32
    # intermediates of the (bigger) block2 kernel.  tn is a multiple of 128.
    ksub = max(k, 8)
    io = 2 * (8 * 4                       # xyz block (3 -> 8 sublanes) f32
              + 3 * ksub * 4              # nxyz block f32
              + c1 * ksub * 2)            # gathered features bf16
    io += 2 * cout * 4                    # output block
    work = (k * (2 * c1) * 4 * 2          # att / exp lists
            + k * c1 * 4                  # fx list
            + 16 * c1 * 4)                # misc temporaries
    per_row = max(io + work, 1)
    tn = budget_bytes // per_row
    n128 = ((max(n, 1) + 127) // 128) * 128
    tn = max(128, min(cap, (tn // 128) * 128, n128))
    npad = ((max(n, 1) + tn - 1) // tn) * tn
    return tn, npad


def _pad_last(x, npad):
    n = x.shape[-1]
    if n == npad:
        return x
    pad = [(0, 0)] * x.ndim
    pad[-1] = (0, npad - n)
    return jnp.pad(x, pad)


def _prep_params(p):
    # Channel-major (Cout, Cin) weights, bf16 MXU operands, BN folded to
    # per-channel (C, 1) scale/bias, mlp1 weight split into the fused 7-wide
    # [dis, rel, nxyz] part plus the per-point xyz-center part.
    bf = jnp.bfloat16
    w1 = p["w1"]                                        # (10, C1), rows:
    # [0]=dis, [1:4]=rel, [4:7]=xyz_tile, [7:10]=nxyz
    w7 = jnp.concatenate([w1[0:1], w1[1:4], w1[7:10]], axis=0)    # (7, C1)

    def cm(s):                                          # (1, C) -> (C, 1)
        return jnp.transpose(s, (1, 0))

    return dict(
        w7t=jnp.transpose(w7).astype(bf),               # (C1, 7)
        wct=jnp.transpose(w1[4:7]).astype(bf),          # (C1, 3)
        s1=cm(p["s1"]), b1=cm(p["b1"]),
        wfc1t=jnp.transpose(p["wfc1"]).astype(bf),      # (2C1, 2C1)
        wm1t=jnp.transpose(p["wm1"]).astype(bf),        # (C1, 2C1)
        sa1=cm(p["s_ap1"]), ba1=cm(p["b_ap1"]),
        w2t=jnp.transpose(p["w2"]).astype(bf),          # (C1, C1)
        s2=cm(p["s2"]), b2=cm(p["b2"]),
        wfc2t=jnp.transpose(p["wfc2"]).astype(bf),      # (2C1, 2C1)
        wm2t=jnp.transpose(p["wm2"]).astype(bf),        # (d_out, 2C1)
        sa2=cm(p["s_ap2"]), ba2=cm(p["b_ap2"]),
    )


def building_block_forward(params, xyz, feature, neigh_idx):
    # xyz: (B, N, 3); feature: (B, d_out//2, N, 1) NCHW; neigh_idx: (B, N, K)
    B, N, _ = xyz.shape
    K = neigh_idx.shape[2]
    C1 = params["s1"].shape[1]
    d_out = params["s_ap2"].shape[1]
    tn, npad = _choose_tile(N, K, C1, d_out)
    wp = _prep_params(params)

    xyz_cm = jnp.transpose(xyz, (0, 2, 1))                        # (B, 3, N)
    feat_cm = feature[..., 0].astype(jnp.bfloat16)                # (B, C1, N)
    idx_t = jnp.transpose(neigh_idx, (0, 2, 1)).astype(jnp.int32)  # (B, K, N)
    idx_p = _pad_last(idx_t, npad)                                # (B, K, Np)
    xyz_p = _pad_last(xyz_cm, npad)                               # (B, 3, Np)

    # Channel-major K-NN gathers: produce (B, C, K, Np) directly, no transposes
    # of the K-expanded tensors.
    # TODO(synk): move these data-dependent gathers in-kernel (resident feature
    # table + index DMA) to remove the K-expanded HBM round trips entirely.
    def gather_cm(src):
        return jnp.take_along_axis(src[:, :, None, :],
                                   idx_p[:, None, :, :], axis=3)

    nxyz = gather_cm(xyz_cm)                                      # (B,3,K,Np) f32
    f_neigh = gather_cm(feat_cm)                                  # (B,C1,K,Np) bf16

    f_pc_agg = _run_block1(xyz_p, nxyz, f_neigh, wp, tn)          # (B,C1,Np) bf16
    f_neigh2 = gather_cm(f_pc_agg)                                # (B,C1,K,Np) bf16
    out = _run_block2(xyz_p, nxyz, f_neigh2, wp, tn)              # (B,d_out,Np) f32

    return out[:, :, :N, None]                                    # (B,d_out,N,1)


# ----------------------------- pure-JAX f32 reference -----------------------------

def gather_neighbour(pc, neighbor_idx):
    # pc: (B, N, d), neighbor_idx: (B, M, K) -> (B, M, K, d)
    B, M, K = neighbor_idx.shape
    flat = neighbor_idx.reshape(B, M * K)
    g = jnp.take_along_axis(pc, flat[..., None], axis=1)
    return g.reshape(B, M, K, pc.shape[-1])


def building_block_ref(params, xyz, feature, neigh_idx):
    def mlp(x, w, s, b):
        y = jnp.einsum("...i,io->...o", x, w)
        return jnp.maximum(y * s[0] + b[0], 0.0)

    def att_pool_ref(fs, wfc, wm, s, b):
        att = jnp.einsum("bnki,io->bnko", fs, wfc)
        scores = jax.nn.softmax(att, axis=2)
        agg = jnp.sum(fs * scores, axis=2)
        return mlp(agg, wm, s, b)

    nxyz = gather_neighbour(xyz, neigh_idx)
    xyz_tile = jnp.broadcast_to(xyz[:, :, None, :], nxyz.shape)
    rel = xyz_tile - nxyz
    dis = jnp.sqrt(jnp.sum(rel * rel, axis=-1, keepdims=True))
    f10 = jnp.concatenate([dis, rel, xyz_tile, nxyz], axis=-1)
    f_xyz = mlp(f10, params["w1"], params["s1"], params["b1"])

    feat_nld = jnp.transpose(feature[..., 0], (0, 2, 1))
    f_neigh = gather_neighbour(feat_nld, neigh_idx)
    fs1 = jnp.concatenate([f_neigh, f_xyz], axis=-1)
    f_pc_agg = att_pool_ref(fs1, params["wfc1"], params["wm1"],
                            params["s_ap1"], params["b_ap1"])

    f_xyz2 = mlp(f_xyz, params["w2"], params["s2"], params["b2"])
    f_neigh2 = gather_neighbour(f_pc_agg, neigh_idx)
    fs2 = jnp.concatenate([f_neigh2, f_xyz2], axis=-1)
    out = att_pool_ref(fs2, params["wfc2"], params["wm2"],
                       params["s_ap2"], params["b_ap2"])
    return jnp.transpose(out, (0, 2, 1))[..., None]


# ----------------------------- params -----------------------------

def init_params(key, d_out):
    C1 = d_out // 2
    ks = jax.random.split(key, 10)

    def w(k, cin, cout):
        return 0.1 * jax.random.normal(k, (cin, cout), jnp.float32)

    def bn(k, c):
        k1, k2, k3, k4 = jax.random.split(k, 4)
        gamma = 1.0 + 0.1 * jax.random.normal(k1, (c,), jnp.float32)
        beta = 0.1 * jax.random.normal(k2, (c,), jnp.float32)
        mean = 0.1 * jax.random.normal(k3, (c,), jnp.float32)
        var = 1.0 + 0.1 * jax.random.uniform(k4, (c,), jnp.float32)
        scale = gamma / jnp.sqrt(var + 1e-5)
        bias = beta - mean * scale
        return scale.reshape(1, c), bias.reshape(1, c)

    s1, b1 = bn(ks[0], C1)
    s2, b2 = bn(ks[1], C1)
    sa1, ba1 = bn(ks[2], C1)
    sa2, ba2 = bn(ks[3], d_out)
    return dict(
        w1=w(ks[4], 10, C1), s1=s1, b1=b1,
        wfc1=w(ks[5], d_out, d_out), wm1=w(ks[6], d_out, C1),
        s_ap1=sa1, b_ap1=ba1,
        w2=w(ks[7], C1, C1), s2=s2, b2=b2,
        wfc2=w(ks[8], d_out, d_out), wm2=w(ks[9], d_out, d_out),
        s_ap2=sa2, b_ap2=ba2,
    )


# ----------------------------- main -----------------------------

if __name__ == "__main__":
    d_out = 32
    C1 = d_out // 2
    key = jax.random.PRNGKey(0)
    k_par, k_data = jax.random.split(key)
    params = init_params(k_par, d_out)

    fwd = jax.jit(building_block_forward)

    # Case 1: small N (single padded tile).  Case 2: ragged N (exercises padding).
    for (B, N, K) in [(2, 16, 8), (2, 20, 8)]:
        k_xyz, k_feat, k_idx, k_data = jax.random.split(k_data, 4)
        xyz = jax.random.normal(k_xyz, (B, N, 3), jnp.float32)
        feature = jax.random.normal(k_feat, (B, C1, N, 1), jnp.float32)
        neigh_idx = jax.random.randint(k_idx, (B, N, K), 0, N, dtype=jnp.int32)

        out = jax.block_until_ready(fwd(params, xyz, feature, neigh_idx))
        assert out.shape == (B, d_out, N, 1)

        ref = building_block_ref(params, xyz, feature, neigh_idx)
        # bf16 MXU operands, bf16 f_pc_agg round trip and approx reciprocal in
        # the softmax deviate slightly from the f32 reference -> loose tolerance.
        np.testing.assert_allclose(np.asarray(out, dtype=np.float32),
                                   np.asarray(ref, dtype=np.float32),
                                   rtol=3e-2, atol=3e-2)

    print("KERNEL_OK")
</pallas_src>

<mosaic_0001>
module attributes {stable_mosaic.version = 11 : i64} {
  func.func @_block1_kernel(%arg0: i32, %arg1: i32, %arg2: memref<1x3x128xf32, #tpu.memory_space<vmem>>, %arg3: memref<1x3x8x128xf32, #tpu.memory_space<vmem>>, %arg4: memref<1x16x8x128xbf16, #tpu.memory_space<vmem>>, %arg5: memref<16x7xbf16, #tpu.memory_space<vmem>>, %arg6: memref<16x3xbf16, #tpu.memory_space<vmem>>, %arg7: memref<16x1xf32, #tpu.memory_space<vmem>>, %arg8: memref<16x1xf32, #tpu.memory_space<vmem>>, %arg9: memref<32x32xbf16, #tpu.memory_space<vmem>>, %arg10: memref<16x32xbf16, #tpu.memory_space<vmem>>, %arg11: memref<16x1xf32, #tpu.memory_space<vmem>>, %arg12: memref<16x1xf32, #tpu.memory_space<vmem>>, %arg13: memref<1x16x128xbf16, #tpu.memory_space<vmem>>) attributes {dimension_semantics = [#tpu.dimension_semantics<parallel>, #tpu.dimension_semantics<parallel>], iteration_bounds = array<i64: 2, 1>, scalar_prefetch = 0 : i64, scratch_operands = 0 : i64, tpu.core_type = #tpu.core_type<tc>, window_params = [{transform_indices = @transform_0, window_bounds = array<i64: 1, 3, 128>}, {transform_indices = @transform_1, window_bounds = array<i64: 1, 3, 8, 128>}, {transform_indices = @transform_2, window_bounds = array<i64: 1, 16, 8, 128>}, {pipeline_mode = #tpu.pipeline_mode<synchronous>, transform_indices = @transform_3, window_bounds = array<i64: 16, 7>}, {pipeline_mode = #tpu.pipeline_mode<synchronous>, transform_indices = @transform_4, window_bounds = array<i64: 16, 3>}, {pipeline_mode = #tpu.pipeline_mode<synchronous>, transform_indices = @transform_5, window_bounds = array<i64: 16, 1>}, {pipeline_mode = #tpu.pipeline_mode<synchronous>, transform_indices = @transform_6, window_bounds = array<i64: 16, 1>}, {pipeline_mode = #tpu.pipeline_mode<synchronous>, transform_indices = @transform_7, window_bounds = array<i64: 32, 32>}, {pipeline_mode = #tpu.pipeline_mode<synchronous>, transform_indices = @transform_8, window_bounds = array<i64: 16, 32>}, {pipeline_mode = #tpu.pipeline_mode<synchronous>, transform_indices = @transform_9, window_bounds = array<i64: 16, 1>}, {pipeline_mode = #tpu.pipeline_mode<synchronous>, transform_indices = @transform_10, window_bounds = array<i64: 16, 1>}, {transform_indices = @transform_11, window_bounds = array<i64: 1, 16, 128>}]} {
    %c0 = arith.constant 0 : index
    %c0_0 = arith.constant 0 : index
    %c0_1 = arith.constant 0 : index
    %0 = vector.load %arg2[%c0, %c0_0, %c0_1] : memref<1x3x128xf32, #tpu.memory_space<vmem>>, vector<1x3x128xf32>
    %1 = vector.shape_cast %0 : vector<1x3x128xf32> to vector<3x128xf32>
    %c0_2 = arith.constant 0 : index
    %c0_3 = arith.constant 0 : index
    %2 = vector.load %arg6[%c0_2, %c0_3] : memref<16x3xbf16, #tpu.memory_space<vmem>>, vector<16x3xbf16>
    %3 = arith.truncf %1 : vector<3x128xf32> to vector<3x128xbf16>
    %cst = arith.constant dense<0.000000e+00> : vector<16x128xf32>
    %4 = tpu.matmul %2, %3, %cst {dimension_numbers = #tpu.dot_dimension_numbers<[1], [0], [0], [1], [0, 0, 1, 1], [], []>} : vector<16x3xbf16>, vector<3x128xbf16>, vector<16x128xf32> -> vector<16x128xf32>
    %c0_4 = arith.constant 0 : index
    %c0_5 = arith.constant 0 : index
    %c0_6 = arith.constant 0 : index
    %c0_7 = arith.constant 0 : index
    %5 = vector.load %arg3[%c0_4, %c0_5, %c0_6, %c0_7] : memref<1x3x8x128xf32, #tpu.memory_space<vmem>>, vector<1x3x1x128xf32>
    %6 = vector.shape_cast %5 : vector<1x3x1x128xf32> to vector<3x128xf32>
    %7 = arith.subf %1, %6 : vector<3x128xf32>
    %8 = arith.mulf %7, %7 : vector<3x128xf32>
    %cst_8 = arith.constant dense<0.000000e+00> : vector<128xf32>
    %9 = vector.multi_reduction <add>, %8, %cst_8 [0] : vector<3x128xf32> to vector<128xf32>
    %10 = vector.shape_cast %9 : vector<128xf32> to vector<1x128xf32>
    %11 = math.sqrt %10 : vector<1x128xf32>
    %12 = tpu.concatenate %11, %7, %6 in 0 : vector<1x128xf32>, vector<3x128xf32>, vector<3x128xf32> -> vector<7x128xf32>
    %13 = arith.truncf %12 : vector<7x128xf32> to vector<7x128xbf16>
    %c0_9 = arith.constant 0 : index
    %c0_10 = arith.constant 0 : index
    %14 = vector.load %arg5[%c0_9, %c0_10] : memref<16x7xbf16, #tpu.memory_space<vmem>>, vector<16x7xbf16>
    %cst_11 = arith.constant dense<0.000000e+00> : vector<16x128xf32>
    %15 = tpu.matmul %14, %13, %cst_11 {dimension_numbers = #tpu.dot_dimension_numbers<[1], [0], [0], [1], [0, 0, 1, 1], [], []>} : vector<16x7xbf16>, vector<7x128xbf16>, vector<16x128xf32> -> vector<16x128xf32>
    %16 = arith.addf %15, %4 : vector<16x128xf32>
    %c0_12 = arith.constant 0 : index
    %c0_13 = arith.constant 0 : index
    %17 = vector.load %arg7[%c0_12, %c0_13] : memref<16x1xf32, #tpu.memory_space<vmem>>, vector<16x1xf32>
    %18 = vector.broadcast %17 : vector<16x1xf32> to vector<16x128xf32>
    %19 = arith.mulf %16, %18 : vector<16x128xf32>
    %c0_14 = arith.constant 0 : index
    %c0_15 = arith.constant 0 : index
    %20 = vector.load %arg8[%c0_14, %c0_15] : memref<16x1xf32, #tpu.memory_space<vmem>>, vector<16x1xf32>
    %21 = vector.broadcast %20 : vector<16x1xf32> to vector<16x128xf32>
    %22 = arith.addf %19, %21 : vector<16x128xf32>
    %cst_16 = arith.constant 0.000000e+00 : f32
    %23 = vector.broadcast %cst_16 : f32 to vector<16x128xf32>
    %24 = arith.maximumf %22, %23 : vector<16x128xf32>
    %c0_17 = arith.constant 0 : index
    %c0_18 = arith.constant 0 : index
    %c1 = arith.constant 1 : index
    %c0_19 = arith.constant 0 : index
    %25 = vector.load %arg3[%c0_17, %c0_18, %c1, %c0_19] : memref<1x3x8x128xf32, #tpu.memory_space<vmem>>, vector<1x3x1x128xf32>
    %26 = vector.shape_cast %25 : vector<1x3x1x128xf32> to vector<3x128xf32>
    %27 = arith.subf %1, %26 : vector<3x128xf32>
    %28 = arith.mulf %27, %27 : vector<3x128xf32>
    %cst_20 = arith.constant dense<0.000000e+00> : vector<128xf32>
    %29 = vector.multi_reduction <add>, %28, %cst_20 [0] : vector<3x128xf32> to vector<128xf32>
    %30 = vector.shape_cast %29 : vector<128xf32> to vector<1x128xf32>
    %31 = math.sqrt %30 : vector<1x128xf32>
    %32 = tpu.concatenate %31, %27, %26 in 0 : vector<1x128xf32>, vector<3x128xf32>, vector<3x128xf32> -> vector<7x128xf32>
    %33 = arith.truncf %32 : vector<7x128xf32> to vector<7x128xbf16>
    %c0_21 = arith.constant 0 : index
    %c0_22 = arith.constant 0 : index
    %34 = vector.load %arg5[%c0_21, %c0_22] : memref<16x7xbf16, #tpu.memory_space<vmem>>, vector<16x7xbf16>
    %cst_23 = arith.constant dense<0.000000e+00> : vector<16x128xf32>
    %35 = tpu.matmul %34, %33, %cst_23 {dimension_numbers = #tpu.dot_dimension_numbers<[1], [0], [0], [1], [0, 0, 1, 1], [], []>} : vector<16x7xbf16>, vector<7x128xbf16>, vector<16x128xf32> -> vector<16x128xf32>
    %36 = arith.addf %35, %4 : vector<16x128xf32>
    %c0_24 = arith.constant 0 : index
    %c0_25 = arith.constant 0 : index
    %37 = vector.load %arg7[%c0_24, %c0_25] : memref<16x1xf32, #tpu.memory_space<vmem>>, vector<16x1xf32>
    %38 = vector.broadcast %37 : vector<16x1xf32> to vector<16x128xf32>
    %39 = arith.mulf %36, %38 : vector<16x128xf32>
    %c0_26 = arith.constant 0 : index
    %c0_27 = arith.constant 0 : index
    %40 = vector.load %arg8[%c0_26, %c0_27] : memref<16x1xf32, #tpu.memory_space<vmem>>, vector<16x1xf32>
    %41 = vector.broadcast %40 : vector<16x1xf32> to vector<16x128xf32>
    %42 = arith.addf %39, %41 : vector<16x128xf32>
    %cst_28 = arith.constant 0.000000e+00 : f32
    %43 = vector.broadcast %cst_28 : f32 to vector<16x128xf32>
    %44 = arith.maximumf %42, %43 : vector<16x128xf32>
    %c0_29 = arith.constant 0 : index
    %c0_30 = arith.constant 0 : index
    %c2 = arith.constant 2 : index
    %c0_31 = arith.constant 0 : index
    %45 = vector.load %arg3[%c0_29, %c0_30, %c2, %c0_31] : memref<1x3x8x128xf32, #tpu.memory_space<vmem>>, vector<1x3x1x128xf32>
    %46 = vector.shape_cast %45 : vector<1x3x1x128xf32> to vector<3x128xf32>
    %47 = arith.subf %1, %46 : vector<3x128xf32>
    %48 = arith.mulf %47, %47 : vector<3x128xf32>
    %cst_32 = arith.constant dense<0.000000e+00> : vector<128xf32>
    %49 = vector.multi_reduction <add>, %48, %cst_32 [0] : vector<3x128xf32> to vector<128xf32>
    %50 = vector.shape_cast %49 : vector<128xf32> to vector<1x128xf32>
    %51 = math.sqrt %50 : vector<1x128xf32>
    %52 = tpu.concatenate %51, %47, %46 in 0 : vector<1x128xf32>, vector<3x128xf32>, vector<3x128xf32> -> vector<7x128xf32>
    %53 = arith.truncf %52 : vector<7x128xf32> to vector<7x128xbf16>
    %c0_33 = arith.constant 0 : index
    %c0_34 = arith.constant 0 : index
    %54 = vector.load %arg5[%c0_33, %c0_34] : memref<16x7xbf16, #tpu.memory_space<vmem>>, vector<16x7xbf16>
    %cst_35 = arith.constant dense<0.000000e+00> : vector<16x128xf32>
    %55 = tpu.matmul %54, %53, %cst_35 {dimension_numbers = #tpu.dot_dimension_numbers<[1], [0], [0], [1], [0, 0, 1, 1], [], []>} : vector<16x7xbf16>, vector<7x128xbf16>, vector<16x128xf32> -> vector<16x128xf32>
    %56 = arith.addf %55, %4 : vector<16x128xf32>
    %c0_36 = arith.constant 0 : index
    %c0_37 = arith.constant 0 : index
    %57 = vector.load %arg7[%c0_36, %c0_37] : memref<16x1xf32, #tpu.memory_space<vmem>>, vector<16x1xf32>
    %58 = vector.broadcast %57 : vector<16x1xf32> to vector<16x128xf32>
    %59 = arith.mulf %56, %58 : vector<16x128xf32>
    %c0_38 = arith.constant 0 : index
    %c0_39 = arith.constant 0 : index
    %60 = vector.load %arg8[%c0_38, %c0_39] : memref<16x1xf32, #tpu.memory_space<vmem>>, vector<16x1xf32>
    %61 = vector.broadcast %60 : vector<16x1xf32> to vector<16x128xf32>
    %62 = arith.addf %59, %61 : vector<16x128xf32>
    %cst_40 = arith.constant 0.000000e+00 : f32
    %63 = vector.broadcast %cst_40 : f32 to vector<16x128xf32>
    %64 = arith.maximumf %62, %63 : vector<16x128xf32>
    %c0_41 = arith.constant 0 : index
    %c0_42 = arith.constant 0 : index
    %c3 = arith.constant 3 : index
    %c0_43 = arith.constant 0 : index
    %65 = vector.load %arg3[%c0_41, %c0_42, %c3, %c0_43] : memref<1x3x8x128xf32, #tpu.memory_space<vmem>>, vector<1x3x1x128xf32>
    %66 = vector.shape_cast %65 : vector<1x3x1x128xf32> to vector<3x128xf32>
    %67 = arith.subf %1, %66 : vector<3x128xf32>
    %68 = arith.mulf %67, %67 : vector<3x128xf32>
    %cst_44 = arith.constant dense<0.000000e+00> : vector<128xf32>
    %69 = vector.multi_reduction <add>, %68, %cst_44 [0] : vector<3x128xf32> to vector<128xf32>
    %70 = vector.shape_cast %69 : vector<128xf32> to vector<1x128xf32>
    %71 = math.sqrt %70 : vector<1x128xf32>
    %72 = tpu.concatenate %71, %67, %66 in 0 : vector<1x128xf32>, vector<3x128xf32>, vector<3x128xf32> -> vector<7x128xf32>
    %73 = arith.truncf %72 : vector<7x128xf32> to vector<7x128xbf16>
    %c0_45 = arith.constant 0 : index
    %c0_46 = arith.constant 0 : index
    %74 = vector.load %arg5[%c0_45, %c0_46] : memref<16x7xbf16, #tpu.memory_space<vmem>>, vector<16x7xbf16>
    %cst_47 = arith.constant dense<0.000000e+00> : vector<16x128xf32>
    %75 = tpu.matmul %74, %73, %cst_47 {dimension_numbers = #tpu.dot_dimension_numbers<[1], [0], [0], [1], [0, 0, 1, 1], [], []>} : vector<16x7xbf16>, vector<7x128xbf16>, vector<16x128xf32> -> vector<16x128xf32>
    %76 = arith.addf %75, %4 : vector<16x128xf32>
    %c0_48 = arith.constant 0 : index
    %c0_49 = arith.constant 0 : index
    %77 = vector.load %arg7[%c0_48, %c0_49] : memref<16x1xf32, #tpu.memory_space<vmem>>, vector<16x1xf32>
    %78 = vector.broadcast %77 : vector<16x1xf32> to vector<16x128xf32>
    %79 = arith.mulf %76, %78 : vector<16x128xf32>
    %c0_50 = arith.constant 0 : index
    %c0_51 = arith.constant 0 : index
    %80 = vector.load %arg8[%c0_50, %c0_51] : memref<16x1xf32, #tpu.memory_space<vmem>>, vector<16x1xf32>
    %81 = vector.broadcast %80 : vector<16x1xf32> to vector<16x128xf32>
    %82 = arith.addf %79, %81 : vector<16x128xf32>
    %cst_52 = arith.constant 0.000000e+00 : f32
    %83 = vector.broadcast %cst_52 : f32 to vector<16x128xf32>
    %84 = arith.maximumf %82, %83 : vector<16x128xf32>
    %c0_53 = arith.constant 0 : index
    %c0_54 = arith.constant 0 : index
    %c4 = arith.constant 4 : index
    %c0_55 = arith.constant 0 : index
    %85 = vector.load %arg3[%c0_53, %c0_54, %c4, %c0_55] : memref<1x3x8x128xf32, #tpu.memory_space<vmem>>, vector<1x3x1x128xf32>
    %86 = vector.shape_cast %85 : vector<1x3x1x128xf32> to vector<3x128xf32>
    %87 = arith.subf %1, %86 : vector<3x128xf32>
    %88 = arith.mulf %87, %87 : vector<3x128xf32>
    %cst_56 = arith.constant dense<0.000000e+00> : vector<128xf32>
    %89 = vector.multi_reduction <add>, %88, %cst_56 [0] : vector<3x128xf32> to vector<128xf32>
    %90 = vector.shape_cast %89 : vector<128xf32> to vector<1x128xf32>
    %91 = math.sqrt %90 : vector<1x128xf32>
    %92 = tpu.concatenate %91, %87, %86 in 0 : vector<1x128xf32>, vector<3x128xf32>, vector<3x128xf32> -> vector<7x128xf32>
    %93 = arith.truncf %92 : vector<7x128xf32> to vector<7x128xbf16>
    %c0_57 = arith.constant 0 : index
    %c0_58 = arith.constant 0 : index
    %94 = vector.load %arg5[%c0_57, %c0_58] : memref<16x7xbf16, #tpu.memory_space<vmem>>, vector<16x7xbf16>
    %cst_59 = arith.constant dense<0.000000e+00> : vector<16x128xf32>
    %95 = tpu.matmul %94, %93, %cst_59 {dimension_numbers = #tpu.dot_dimension_numbers<[1], [0], [0], [1], [0, 0, 1, 1], [], []>} : vector<16x7xbf16>, vector<7x128xbf16>, vector<16x128xf32> -> vector<16x128xf32>
    %96 = arith.addf %95, %4 : vector<16x128xf32>
    %c0_60 = arith.constant 0 : index
    %c0_61 = arith.constant 0 : index
    %97 = vector.load %arg7[%c0_60, %c0_61] : memref<16x1xf32, #tpu.memory_space<vmem>>, vector<16x1xf32>
    %98 = vector.broadcast %97 : vector<16x1xf32> to vector<16x128xf32>
    %99 = arith.mulf %96, %98 : vector<16x128xf32>
    %c0_62 = arith.constant 0 : index
    %c0_63 = arith.constant 0 : index
    %100 = vector.load %arg8[%c0_62, %c0_63] : memref<16x1xf32, #tpu.memory_space<vmem>>, vector<16x1xf32>
    %101 = vector.broadcast %100 : vector<16x1xf32> to vector<16x128xf32>
    %102 = arith.addf %99, %101 : vector<16x128xf32>
    %cst_64 = arith.constant 0.000000e+00 : f32
    %103 = vector.broadcast %cst_64 : f32 to vector<16x128xf32>
    %104 = arith.maximumf %102, %103 : vector<16x128xf32>
    %c0_65 = arith.constant 0 : index
    %c0_66 = arith.constant 0 : index
    %c5 = arith.constant 5 : index
    %c0_67 = arith.constant 0 : index
    %105 = vector.load %arg3[%c0_65, %c0_66, %c5, %c0_67] : memref<1x3x8x128xf32, #tpu.memory_space<vmem>>, vector<1x3x1x128xf32>
    %106 = vector.shape_cast %105 : vector<1x3x1x128xf32> to vector<3x128xf32>
    %107 = arith.subf %1, %106 : vector<3x128xf32>
    %108 = arith.mulf %107, %107 : vector<3x128xf32>
    %cst_68 = arith.constant dense<0.000000e+00> : vector<128xf32>
    %109 = vector.multi_reduction <add>, %108, %cst_68 [0] : vector<3x128xf32> to vector<128xf32>
    %110 = vector.shape_cast %109 : vector<128xf32> to vector<1x128xf32>
    %111 = math.sqrt %110 : vector<1x128xf32>
    %112 = tpu.concatenate %111, %107, %106 in 0 : vector<1x128xf32>, vector<3x128xf32>, vector<3x128xf32> -> vector<7x128xf32>
    %113 = arith.truncf %112 : vector<7x128xf32> to vector<7x128xbf16>
    %c0_69 = arith.constant 0 : index
    %c0_70 = arith.constant 0 : index
    %114 = vector.load %arg5[%c0_69, %c0_70] : memref<16x7xbf16, #tpu.memory_space<vmem>>, vector<16x7xbf16>
    %cst_71 = arith.constant dense<0.000000e+00> : vector<16x128xf32>
    %115 = tpu.matmul %114, %113, %cst_71 {dimension_numbers = #tpu.dot_dimension_numbers<[1], [0], [0], [1], [0, 0, 1, 1], [], []>} : vector<16x7xbf16>, vector<7x128xbf16>, vector<16x128xf32> -> vector<16x128xf32>
    %116 = arith.addf %115, %4 : vector<16x128xf32>
    %c0_72 = arith.constant 0 : index
    %c0_73 = arith.constant 0 : index
    %117 = vector.load %arg7[%c0_72, %c0_73] : memref<16x1xf32, #tpu.memory_space<vmem>>, vector<16x1xf32>
    %118 = vector.broadcast %117 : vector<16x1xf32> to vector<16x128xf32>
    %119 = arith.mulf %116, %118 : vector<16x128xf32>
    %c0_74 = arith.constant 0 : index
    %c0_75 = arith.constant 0 : index
    %120 = vector.load %arg8[%c0_74, %c0_75] : memref<16x1xf32, #tpu.memory_space<vmem>>, vector<16x1xf32>
    %121 = vector.broadcast %120 : vector<16x1xf32> to vector<16x128xf32>
    %122 = arith.addf %119, %121 : vector<16x128xf32>
    %cst_76 = arith.constant 0.000000e+00 : f32
    %123 = vector.broadcast %cst_76 : f32 to vector<16x128xf32>
    %124 = arith.maximumf %122, %123 : vector<16x128xf32>
    %c0_77 = arith.constant 0 : index
    %c0_78 = arith.constant 0 : index
    %c6 = arith.constant 6 : index
    %c0_79 = arith.constant 0 : index
    %125 = vector.load %arg3[%c0_77, %c0_78, %c6, %c0_79] : memref<1x3x8x128xf32, #tpu.memory_space<vmem>>, vector<1x3x1x128xf32>
    %126 = vector.shape_cast %125 : vector<1x3x1x128xf32> to vector<3x128xf32>
    %127 = arith.subf %1, %126 : vector<3x128xf32>
    %128 = arith.mulf %127, %127 : vector<3x128xf32>
    %cst_80 = arith.constant dense<0.000000e+00> : vector<128xf32>
    %129 = vector.multi_reduction <add>, %128, %cst_80 [0] : vector<3x128xf32> to vector<128xf32>
    %130 = vector.shape_cast %129 : vector<128xf32> to vector<1x128xf32>
    %131 = math.sqrt %130 : vector<1x128xf32>
    %132 = tpu.concatenate %131, %127, %126 in 0 : vector<1x128xf32>, vector<3x128xf32>, vector<3x128xf32> -> vector<7x128xf32>
    %133 = arith.truncf %132 : vector<7x128xf32> to vector<7x128xbf16>
    %c0_81 = arith.constant 0 : index
    %c0_82 = arith.constant 0 : index
    %134 = vector.load %arg5[%c0_81, %c0_82] : memref<16x7xbf16, #tpu.memory_space<vmem>>, vector<16x7xbf16>
    %cst_83 = arith.constant dense<0.000000e+00> : vector<16x128xf32>
    %135 = tpu.matmul %134, %133, %cst_83 {dimension_numbers = #tpu.dot_dimension_numbers<[1], [0], [0], [1], [0, 0, 1, 1], [], []>} : vector<16x7xbf16>, vector<7x128xbf16>, vector<16x128xf32> -> vector<16x128xf32>
    %136 = arith.addf %135, %4 : vector<16x128xf32>
    %c0_84 = arith.constant 0 : index
    %c0_85 = arith.constant 0 : index
    %137 = vector.load %arg7[%c0_84, %c0_85] : memref<16x1xf32, #tpu.memory_space<vmem>>, vector<16x1xf32>
    %138 = vector.broadcast %137 : vector<16x1xf32> to vector<16x128xf32>
    %139 = arith.mulf %136, %138 : vector<16x128xf32>
    %c0_86 = arith.constant 0 : index
    %c0_87 = arith.constant 0 : index
    %140 = vector.load %arg8[%c0_86, %c0_87] : memref<16x1xf32, #tpu.memory_space<vmem>>, vector<16x1xf32>
    %141 = vector.broadcast %140 : vector<16x1xf32> to vector<16x128xf32>
    %142 = arith.addf %139, %141 : vector<16x128xf32>
    %cst_88 = arith.constant 0.000000e+00 : f32
    %143 = vector.broadcast %cst_88 : f32 to vector<16x128xf32>
    %144 = arith.maximumf %142, %143 : vector<16x128xf32>
    %c0_89 = arith.constant 0 : index
    %c0_90 = arith.constant 0 : index
    %c7 = arith.constant 7 : index
    %c0_91 = arith.constant 0 : index
    %145 = vector.load %arg3[%c0_89, %c0_90, %c7, %c0_91] : memref<1x3x8x128xf32, #tpu.memory_space<vmem>>, vector<1x3x1x128xf32>
    %146 = vector.shape_cast %145 : vector<1x3x1x128xf32> to vector<3x128xf32>
    %147 = arith.subf %1, %146 : vector<3x128xf32>
    %148 = arith.mulf %147, %147 : vector<3x128xf32>
    %cst_92 = arith.constant dense<0.000000e+00> : vector<128xf32>
    %149 = vector.multi_reduction <add>, %148, %cst_92 [0] : vector<3x128xf32> to vector<128xf32>
    %150 = vector.shape_cast %149 : vector<128xf32> to vector<1x128xf32>
    %151 = math.sqrt %150 : vector<1x128xf32>
    %152 = tpu.concatenate %151, %147, %146 in 0 : vector<1x128xf32>, vector<3x128xf32>, vector<3x128xf32> -> vector<7x128xf32>
    %153 = arith.truncf %152 : vector<7x128xf32> to vector<7x128xbf16>
    %c0_93 = arith.constant 0 : index
    %c0_94 = arith.constant 0 : index
    %154 = vector.load %arg5[%c0_93, %c0_94] : memref<16x7xbf16, #tpu.memory_space<vmem>>, vector<16x7xbf16>
    %cst_95 = arith.constant dense<0.000000e+00> : vector<16x128xf32>
    %155 = tpu.matmul %154, %153, %cst_95 {dimension_numbers = #tpu.dot_dimension_numbers<[1], [0], [0], [1], [0, 0, 1, 1], [], []>} : vector<16x7xbf16>, vector<7x128xbf16>, vector<16x128xf32> -> vector<16x128xf32>
    %156 = arith.addf %155, %4 : vector<16x128xf32>
    %c0_96 = arith.constant 0 : index
    %c0_97 = arith.constant 0 : index
    %157 = vector.load %arg7[%c0_96, %c0_97] : memref<16x1xf32, #tpu.memory_space<vmem>>, vector<16x1xf32>
    %158 = vector.broadcast %157 : vector<16x1xf32> to vector<16x128xf32>
    %159 = arith.mulf %156, %158 : vector<16x128xf32>
    %c0_98 = arith.constant 0 : index
    %c0_99 = arith.constant 0 : index
    %160 = vector.load %arg8[%c0_98, %c0_99] : memref<16x1xf32, #tpu.memory_space<vmem>>, vector<16x1xf32>
    %161 = vector.broadcast %160 : vector<16x1xf32> to vector<16x128xf32>
    %162 = arith.addf %159, %161 : vector<16x128xf32>
    %cst_100 = arith.constant 0.000000e+00 : f32
    %163 = vector.broadcast %cst_100 : f32 to vector<16x128xf32>
    %164 = arith.maximumf %162, %163 : vector<16x128xf32>
    %c0_101 = arith.constant 0 : index
    %c0_102 = arith.constant 0 : index
    %c0_103 = arith.constant 0 : index
    %c0_104 = arith.constant 0 : index
    %165 = vector.load %arg4[%c0_101, %c0_102, %c0_103, %c0_104] : memref<1x16x8x128xbf16, #tpu.memory_space<vmem>>, vector<1x16x1x128xbf16>
    %166 = vector.shape_cast %165 : vector<1x16x1x128xbf16> to vector<16x128xbf16>
    %167 = arith.truncf %24 : vector<16x128xf32> to vector<16x128xbf16>
    %168 = tpu.concatenate %166, %167 in 0 : vector<16x128xbf16>, vector<16x128xbf16> -> vector<32x128xbf16>
    %c0_105 = arith.constant 0 : index
    %c0_106 = arith.constant 0 : index
    %169 = vector.load %arg9[%c0_105, %c0_106] : memref<32x32xbf16, #tpu.memory_space<vmem>>, vector<32x32xbf16>
    %cst_107 = arith.constant dense<0.000000e+00> : vector<32x128xf32>
    %170 = tpu.matmul %169, %168, %cst_107 {dimension_numbers = #tpu.dot_dimension_numbers<[1], [0], [0], [1], [0, 0, 1, 1], [], []>} : vector<32x32xbf16>, vector<32x128xbf16>, vector<32x128xf32> -> vector<32x128xf32>
    %c0_108 = arith.constant 0 : index
    %c0_109 = arith.constant 0 : index
    %c1_110 = arith.constant 1 : index
    %c0_111 = arith.constant 0 : index
    %171 = vector.load %arg4[%c0_108, %c0_109, %c1_110, %c0_111] : memref<1x16x8x128xbf16, #tpu.memory_space<vmem>>, vector<1x16x1x128xbf16>
    %172 = vector.shape_cast %171 : vector<1x16x1x128xbf16> to vector<16x128xbf16>
    %173 = arith.truncf %44 : vector<16x128xf32> to vector<16x128xbf16>
    %174 = tpu.concatenate %172, %173 in 0 : vector<16x128xbf16>, vector<16x128xbf16> -> vector<32x128xbf16>
    %c0_112 = arith.constant 0 : index
    %c0_113 = arith.constant 0 : index
    %175 = vector.load %arg9[%c0_112, %c0_113] : memref<32x32xbf16, #tpu.memory_space<vmem>>, vector<32x32xbf16>
    %cst_114 = arith.constant dense<0.000000e+00> : vector<32x128xf32>
    %176 = tpu.matmul %175, %174, %cst_114 {dimension_numbers = #tpu.dot_dimension_numbers<[1], [0], [0], [1], [0, 0, 1, 1], [], []>} : vector<32x32xbf16>, vector<32x128xbf16>, vector<32x128xf32> -> vector<32x128xf32>
    %c0_115 = arith.constant 0 : index
    %c0_116 = arith.constant 0 : index
    %c2_117 = arith.constant 2 : index
    %c0_118 = arith.constant 0 : index
    %177 = vector.load %arg4[%c0_115, %c0_116, %c2_117, %c0_118] : memref<1x16x8x128xbf16, #tpu.memory_space<vmem>>, vector<1x16x1x128xbf16>
    %178 = vector.shape_cast %177 : vector<1x16x1x128xbf16> to vector<16x128xbf16>
    %179 = arith.truncf %64 : vector<16x128xf32> to vector<16x128xbf16>
    %180 = tpu.concatenate %178, %179 in 0 : vector<16x128xbf16>, vector<16x128xbf16> -> vector<32x128xbf16>
    %c0_119 = arith.constant 0 : index
    %c0_120 = arith.constant 0 : index
    %181 = vector.load %arg9[%c0_119, %c0_120] : memref<32x32xbf16, #tpu.memory_space<vmem>>, vector<32x32xbf16>
    %cst_121 = arith.constant dense<0.000000e+00> : vector<32x128xf32>
    %182 = tpu.matmul %181, %180, %cst_121 {dimension_numbers = #tpu.dot_dimension_numbers<[1], [0], [0], [1], [0, 0, 1, 1], [], []>} : vector<32x32xbf16>, vector<32x128xbf16>, vector<32x128xf32> -> vector<32x128xf32>
    %c0_122 = arith.constant 0 : index
    %c0_123 = arith.constant 0 : index
    %c3_124 = arith.constant 3 : index
    %c0_125 = arith.constant 0 : index
    %183 = vector.load %arg4[%c0_122, %c0_123, %c3_124, %c0_125] : memref<1x16x8x128xbf16, #tpu.memory_space<vmem>>, vector<1x16x1x128xbf16>
    %184 = vector.shape_cast %183 : vector<1x16x1x128xbf16> to vector<16x128xbf16>
    %185 = arith.truncf %84 : vector<16x128xf32> to vector<16x128xbf16>
    %186 = tpu.concatenate %184, %185 in 0 : vector<16x128xbf16>, vector<16x128xbf16> -> vector<32x128xbf16>
    %c0_126 = arith.constant 0 : index
    %c0_127 = arith.constant 0 : index
    %187 = vector.load %arg9[%c0_126, %c0_127] : memref<32x32xbf16, #tpu.memory_space<vmem>>, vector<32x32xbf16>
    %cst_128 = arith.constant dense<0.000000e+00> : vector<32x128xf32>
    %188 = tpu.matmul %187, %186, %cst_128 {dimension_numbers = #tpu.dot_dimension_numbers<[1], [0], [0], [1], [0, 0, 1, 1], [], []>} : vector<32x32xbf16>, vector<32x128xbf16>, vector<32x128xf32> -> vector<32x128xf32>
    %c0_129 = arith.constant 0 : index
    %c0_130 = arith.constant 0 : index
    %c4_131 = arith.constant 4 : index
    %c0_132 = arith.constant 0 : index
    %189 = vector.load %arg4[%c0_129, %c0_130, %c4_131, %c0_132] : memref<1x16x8x128xbf16, #tpu.memory_space<vmem>>, vector<1x16x1x128xbf16>
    %190 = vector.shape_cast %189 : vector<1x16x1x128xbf16> to vector<16x128xbf16>
    %191 = arith.truncf %104 : vector<16x128xf32> to vector<16x128xbf16>
    %192 = tpu.concatenate %190, %191 in 0 : vector<16x128xbf16>, vector<16x128xbf16> -> vector<32x128xbf16>
    %c0_133 = arith.constant 0 : index
    %c0_134 = arith.constant 0 : index
    %193 = vector.load %arg9[%c0_133, %c0_134] : memref<32x32xbf16, #tpu.memory_space<vmem>>, vector<32x32xbf16>
    %cst_135 = arith.constant dense<0.000000e+00> : vector<32x128xf32>
    %194 = tpu.matmul %193, %192, %cst_135 {dimension_numbers = #tpu.dot_dimension_numbers<[1], [0], [0], [1], [0, 0, 1, 1], [], []>} : vector<32x32xbf16>, vector<32x128xbf16>, vector<32x128xf32> -> vector<32x128xf32>
    %c0_136 = arith.constant 0 : index
    %c0_137 = arith.constant 0 : index
    %c5_138 = arith.constant 5 : index
    %c0_139 = arith.constant 0 : index
    %195 = vector.load %arg4[%c0_136, %c0_137, %c5_138, %c0_139] : memref<1x16x8x128xbf16, #tpu.memory_space<vmem>>, vector<1x16x1x128xbf16>
    %196 = vector.shape_cast %195 : vector<1x16x1x128xbf16> to vector<16x128xbf16>
    %197 = arith.truncf %124 : vector<16x128xf32> to vector<16x128xbf16>
    %198 = tpu.concatenate %196, %197 in 0 : vector<16x128xbf16>, vector<16x128xbf16> -> vector<32x128xbf16>
    %c0_140 = arith.constant 0 : index
    %c0_141 = arith.constant 0 : index
    %199 = vector.load %arg9[%c0_140, %c0_141] : memref<32x32xbf16, #tpu.memory_space<vmem>>, vector<32x32xbf16>
    %cst_142 = arith.constant dense<0.000000e+00> : vector<32x128xf32>
    %200 = tpu.matmul %199, %198, %cst_142 {dimension_numbers = #tpu.dot_dimension_numbers<[1], [0], [0], [1], [0, 0, 1, 1], [], []>} : vector<32x32xbf16>, vector<32x128xbf16>, vector<32x128xf32> -> vector<32x128xf32>
    %c0_143 = arith.constant 0 : index
    %c0_144 = arith.constant 0 : index
    %c6_145 = arith.constant 6 : index
    %c0_146 = arith.constant 0 : index
    %201 = vector.load %arg4[%c0_143, %c0_144, %c6_145, %c0_146] : memref<1x16x8x128xbf16, #tpu.memory_space<vmem>>, vector<1x16x1x128xbf16>
    %202 = vector.shape_cast %201 : vector<1x16x1x128xbf16> to vector<16x128xbf16>
    %203 = arith.truncf %144 : vector<16x128xf32> to vector<16x128xbf16>
    %204 = tpu.concatenate %202, %203 in 0 : vector<16x128xbf16>, vector<16x128xbf16> -> vector<32x128xbf16>
    %c0_147 = arith.constant 0 : index
    %c0_148 = arith.constant 0 : index
    %205 = vector.load %arg9[%c0_147, %c0_148] : memref<32x32xbf16, #tpu.memory_space<vmem>>, vector<32x32xbf16>
    %cst_149 = arith.constant dense<0.000000e+00> : vector<32x128xf32>
    %206 = tpu.matmul %205, %204, %cst_149 {dimension_numbers = #tpu.dot_dimension_numbers<[1], [0], [0], [1], [0, 0, 1, 1], [], []>} : vector<32x32xbf16>, vector<32x128xbf16>, vector<32x128xf32> -> vector<32x128xf32>
    %c0_150 = arith.constant 0 : index
    %c0_151 = arith.constant 0 : index
    %c7_152 = arith.constant 7 : index
    %c0_153 = arith.constant 0 : index
    %207 = vector.load %arg4[%c0_150, %c0_151, %c7_152, %c0_153] : memref<1x16x8x128xbf16, #tpu.memory_space<vmem>>, vector<1x16x1x128xbf16>
    %208 = vector.shape_cast %207 : vector<1x16x1x128xbf16> to vector<16x128xbf16>
    %209 = arith.truncf %164 : vector<16x128xf32> to vector<16x128xbf16>
    %210 = tpu.concatenate %208, %209 in 0 : vector<16x128xbf16>, vector<16x128xbf16> -> vector<32x128xbf16>
    %c0_154 = arith.constant 0 : index
    %c0_155 = arith.constant 0 : index
    %211 = vector.load %arg9[%c0_154, %c0_155] : memref<32x32xbf16, #tpu.memory_space<vmem>>, vector<32x32xbf16>
    %cst_156 = arith.constant dense<0.000000e+00> : vector<32x128xf32>
    %212 = tpu.matmul %211, %210, %cst_156 {dimension_numbers = #tpu.dot_dimension_numbers<[1], [0], [0], [1], [0, 0, 1, 1], [], []>} : vector<32x32xbf16>, vector<32x128xbf16>, vector<32x128xf32> -> vector<32x128xf32>
    %213 = arith.maximumf %170, %176 : vector<32x128xf32>
    %214 = arith.maximumf %213, %182 : vector<32x128xf32>
    %215 = arith.maximumf %214, %188 : vector<32x128xf32>
    %216 = arith.maximumf %215, %194 : vector<32x128xf32>
    %217 = arith.maximumf %216, %200 : vector<32x128xf32>
    %218 = arith.maximumf %217, %206 : vector<32x128xf32>
    %219 = arith.maximumf %218, %212 : vector<32x128xf32>
    %220 = arith.subf %170, %219 : vector<32x128xf32>
    %221 = math.exp %220 : vector<32x128xf32>
    %222 = arith.subf %176, %219 : vector<32x128xf32>
    %223 = math.exp %222 : vector<32x128xf32>
    %224 = arith.subf %182, %219 : vector<32x128xf32>
    %225 = math.exp %224 : vector<32x128xf32>
    %226 = arith.subf %188, %219 : vector<32x128xf32>
    %227 = math.exp %226 : vector<32x128xf32>
    %228 = arith.subf %194, %219 : vector<32x128xf32>
    %229 = math.exp %228 : vector<32x128xf32>
    %230 = arith.subf %200, %219 : vector<32x128xf32>
    %231 = math.exp %230 : vector<32x128xf32>
    %232 = arith.subf %206, %219 : vector<32x128xf32>
    %233 = math.exp %232 : vector<32x128xf32>
    %234 = arith.subf %212, %219 : vector<32x128xf32>
    %235 = math.exp %234 : vector<32x128xf32>
    %236 = arith.addf %221, %223 : vector<32x128xf32>
    %237 = arith.addf %236, %225 : vector<32x128xf32>
    %238 = arith.addf %237, %227 : vector<32x128xf32>
    %239 = arith.addf %238, %229 : vector<32x128xf32>
    %240 = arith.addf %239, %231 : vector<32x128xf32>
    %241 = arith.addf %240, %233 : vector<32x128xf32>
    %242 = arith.addf %241, %235 : vector<32x128xf32>
    %243 = tpu.reciprocal %242 {approx = true} : vector<32x128xf32> -> vector<32x128xf32>
    %cst_157 = arith.constant 0.000000e+00 : f32
    %244 = vector.broadcast %cst_157 : f32 to vector<16x128xf32>
    %cst_158 = arith.constant 0.000000e+00 : f32
    %245 = vector.broadcast %cst_158 : f32 to vector<16x128xf32>
    %246 = arith.mulf %221, %243 : vector<32x128xf32>
    %c0_159 = arith.constant 0 : index
    %c0_160 = arith.constant 0 : index
    %c0_161 = arith.constant 0 : index
    %c0_162 = arith.constant 0 : index
    %247 = vector.load %arg4[%c0_159, %c0_160, %c0_161, %c0_162] : memref<1x16x8x128xbf16, #tpu.memory_space<vmem>>, vector<1x16x1x128xbf16>
    %248 = vector.shape_cast %247 : vector<1x16x1x128xbf16> to vector<16x128xbf16>
    %249 = arith.extf %248 : vector<16x128xbf16> to vector<16x128xf32>
    %250 = vector.extract_strided_slice %246 {offsets = [0, 0], sizes = [16, 128], strides = [1, 1]} : vector<32x128xf32> to vector<16x128xf32>
    %251 = arith.mulf %249, %250 : vector<16x128xf32>
    %252 = arith.addf %244, %251 : vector<16x128xf32>
    %253 = vector.extract_strided_slice %246 {offsets = [16, 0], sizes = [16, 128], strides = [1, 1]} : vector<32x128xf32> to vector<16x128xf32>
    %254 = arith.mulf %24, %253 : vector<16x128xf32>
    %255 = arith.addf %245, %254 : vector<16x128xf32>
    %256 = arith.mulf %223, %243 : vector<32x128xf32>
    %c0_163 = arith.constant 0 : index
    %c0_164 = arith.constant 0 : index
    %c1_165 = arith.constant 1 : index
    %c0_166 = arith.constant 0 : index
    %257 = vector.load %arg4[%c0_163, %c0_164, %c1_165, %c0_166] : memref<1x16x8x128xbf16, #tpu.memory_space<vmem>>, vector<1x16x1x128xbf16>
    %258 = vector.shape_cast %257 : vector<1x16x1x128xbf16> to vector<16x128xbf16>
    %259 = arith.extf %258 : vector<16x128xbf16> to vector<16x128xf32>
    %260 = vector.extract_strided_slice %256 {offsets = [0, 0], sizes = [16, 128], strides = [1, 1]} : vector<32x128xf32> to vector<16x128xf32>
    %261 = arith.mulf %259, %260 : vector<16x128xf32>
    %262 = arith.addf %252, %261 : vector<16x128xf32>
    %263 = vector.extract_strided_slice %256 {offsets = [16, 0], sizes = [16, 128], strides = [1, 1]} : vector<32x128xf32> to vector<16x128xf32>
    %264 = arith.mulf %44, %263 : vector<16x128xf32>
    %265 = arith.addf %255, %264 : vector<16x128xf32>
    %266 = arith.mulf %225, %243 : vector<32x128xf32>
    %c0_167 = arith.constant 0 : index
    %c0_168 = arith.constant 0 : index
    %c2_169 = arith.constant 2 : index
    %c0_170 = arith.constant 0 : index
    %267 = vector.load %arg4[%c0_167, %c0_168, %c2_169, %c0_170] : memref<1x16x8x128xbf16, #tpu.memory_space<vmem>>, vector<1x16x1x128xbf16>
    %268 = vector.shape_cast %267 : vector<1x16x1x128xbf16> to vector<16x128xbf16>
    %269 = arith.extf %268 : vector<16x128xbf16> to vector<16x128xf32>
    %270 = vector.extract_strided_slice %266 {offsets = [0, 0], sizes = [16, 128], strides = [1, 1]} : vector<32x128xf32> to vector<16x128xf32>
    %271 = arith.mulf %269, %270 : vector<16x128xf32>
    %272 = arith.addf %262, %271 : vector<16x128xf32>
    %273 = vector.extract_strided_slice %266 {offsets = [16, 0], sizes = [16, 128], strides = [1, 1]} : vector<32x128xf32> to vector<16x128xf32>
    %274 = arith.mulf %64, %273 : vector<16x128xf32>
    %275 = arith.addf %265, %274 : vector<16x128xf32>
    %276 = arith.mulf %227, %243 : vector<32x128xf32>
    %c0_171 = arith.constant 0 : index
    %c0_172 = arith.constant 0 : index
    %c3_173 = arith.constant 3 : index
    %c0_174 = arith.constant 0 : index
    %277 = vector.load %arg4[%c0_171, %c0_172, %c3_173, %c0_174] : memref<1x16x8x128xbf16, #tpu.memory_space<vmem>>, vector<1x16x1x128xbf16>
    %278 = vector.shape_cast %277 : vector<1x16x1x128xbf16> to vector<16x128xbf16>
    %279 = arith.extf %278 : vector<16x128xbf16> to vector<16x128xf32>
    %280 = vector.extract_strided_slice %276 {offsets = [0, 0], sizes = [16, 128], strides = [1, 1]} : vector<32x128xf32> to vector<16x128xf32>
    %281 = arith.mulf %279, %280 : vector<16x128xf32>
    %282 = arith.addf %272, %281 : vector<16x128xf32>
    %283 = vector.extract_strided_slice %276 {offsets = [16, 0], sizes = [16, 128], strides = [1, 1]} : vector<32x128xf32> to vector<16x128xf32>
    %284 = arith.mulf %84, %283 : vector<16x128xf32>
    %285 = arith.addf %275, %284 : vector<16x128xf32>
    %286 = arith.mulf %229, %243 : vector<32x128xf32>
    %c0_175 = arith.constant 0 : index
    %c0_176 = arith.constant 0 : index
    %c4_177 = arith.constant 4 : index
    %c0_178 = arith.constant 0 : index
    %287 = vector.load %arg4[%c0_175, %c0_176, %c4_177, %c0_178] : memref<1x16x8x128xbf16, #tpu.memory_space<vmem>>, vector<1x16x1x128xbf16>
    %288 = vector.shape_cast %287 : vector<1x16x1x128xbf16> to vector<16x128xbf16>
    %289 = arith.extf %288 : vector<16x128xbf16> to vector<16x128xf32>
    %290 = vector.extract_strided_slice %286 {offsets = [0, 0], sizes = [16, 128], strides = [1, 1]} : vector<32x128xf32> to vector<16x128xf32>
    %291 = arith.mulf %289, %290 : vector<16x128xf32>
    %292 = arith.addf %282, %291 : vector<16x128xf32>
    %293 = vector.extract_strided_slice %286 {offsets = [16, 0], sizes = [16, 128], strides = [1, 1]} : vector<32x128xf32> to vector<16x128xf32>
    %294 = arith.mulf %104, %293 : vector<16x128xf32>
    %295 = arith.addf %285, %294 : vector<16x128xf32>
    %296 = arith.mulf %231, %243 : vector<32x128xf32>
    %c0_179 = arith.constant 0 : index
    %c0_180 = arith.constant 0 : index
    %c5_181 = arith.constant 5 : index
    %c0_182 = arith.constant 0 : index
    %297 = vector.load %arg4[%c0_179, %c0_180, %c5_181, %c0_182] : memref<1x16x8x128xbf16, #tpu.memory_space<vmem>>, vector<1x16x1x128xbf16>
    %298 = vector.shape_cast %297 : vector<1x16x1x128xbf16> to vector<16x128xbf16>
    %299 = arith.extf %298 : vector<16x128xbf16> to vector<16x128xf32>
    %300 = vector.extract_strided_slice %296 {offsets = [0, 0], sizes = [16, 128], strides = [1, 1]} : vector<32x128xf32> to vector<16x128xf32>
    %301 = arith.mulf %299, %300 : vector<16x128xf32>
    %302 = arith.addf %292, %301 : vector<16x128xf32>
    %303 = vector.extract_strided_slice %296 {offsets = [16, 0], sizes = [16, 128], strides = [1, 1]} : vector<32x128xf32> to vector<16x128xf32>
    %304 = arith.mulf %124, %303 : vector<16x128xf32>
    %305 = arith.addf %295, %304 : vector<16x128xf32>
    %306 = arith.mulf %233, %243 : vector<32x128xf32>
    %c0_183 = arith.constant 0 : index
    %c0_184 = arith.constant 0 : index
    %c6_185 = arith.constant 6 : index
    %c0_186 = arith.constant 0 : index
    %307 = vector.load %arg4[%c0_183, %c0_184, %c6_185, %c0_186] : memref<1x16x8x128xbf16, #tpu.memory_space<vmem>>, vector<1x16x1x128xbf16>
    %308 = vector.shape_cast %307 : vector<1x16x1x128xbf16> to vector<16x128xbf16>
    %309 = arith.extf %308 : vector<16x128xbf16> to vector<16x128xf32>
    %310 = vector.extract_strided_slice %306 {offsets = [0, 0], sizes = [16, 128], strides = [1, 1]} : vector<32x128xf32> to vector<16x128xf32>
    %311 = arith.mulf %309, %310 : vector<16x128xf32>
    %312 = arith.addf %302, %311 : vector<16x128xf32>
    %313 = vector.extract_strided_slice %306 {offsets = [16, 0], sizes = [16, 128], strides = [1, 1]} : vector<32x128xf32> to vector<16x128xf32>
    %314 = arith.mulf %144, %313 : vector<16x128xf32>
    %315 = arith.addf %305, %314 : vector<16x128xf32>
    %316 = arith.mulf %235, %243 : vector<32x128xf32>
    %c0_187 = arith.constant 0 : index
    %c0_188 = arith.constant 0 : index
    %c7_189 = arith.constant 7 : index
    %c0_190 = arith.constant 0 : index
    %317 = vector.load %arg4[%c0_187, %c0_188, %c7_189, %c0_190] : memref<1x16x8x128xbf16, #tpu.memory_space<vmem>>, vector<1x16x1x128xbf16>
    %318 = vector.shape_cast %317 : vector<1x16x1x128xbf16> to vector<16x128xbf16>
    %319 = arith.extf %318 : vector<16x128xbf16> to vector<16x128xf32>
    %320 = vector.extract_strided_slice %316 {offsets = [0, 0], sizes = [16, 128], strides = [1, 1]} : vector<32x128xf32> to vector<16x128xf32>
    %321 = arith.mulf %319, %320 : vector<16x128xf32>
    %322 = arith.addf %312, %321 : vector<16x128xf32>
    %323 = vector.extract_strided_slice %316 {offsets = [16, 0], sizes = [16, 128], strides = [1, 1]} : vector<32x128xf32> to vector<16x128xf32>
    %324 = arith.mulf %164, %323 : vector<16x128xf32>
    %325 = arith.addf %315, %324 : vector<16x128xf32>
    %326 = tpu.concatenate %322, %325 in 0 : vector<16x128xf32>, vector<16x128xf32> -> vector<32x128xf32>
    %327 = arith.truncf %326 : vector<32x128xf32> to vector<32x128xbf16>
    %c0_191 = arith.constant 0 : index
    %c0_192 = arith.constant 0 : index
    %328 = vector.load %arg10[%c0_191, %c0_192] : memref<16x32xbf16, #tpu.memory_space<vmem>>, vector<16x32xbf16>
    %cst_193 = arith.constant dense<0.000000e+00> : vector<16x128xf32>
    %329 = tpu.matmul %328, %327, %cst_193 {dimension_numbers = #tpu.dot_dimension_numbers<[1], [0], [0], [1], [0, 0, 1, 1], [], []>} : vector<16x32xbf16>, vector<32x128xbf16>, vector<16x128xf32> -> vector<16x128xf32>
    %c0_194 = arith.constant 0 : index
    %c0_195 = arith.constant 0 : index
    %330 = vector.load %arg11[%c0_194, %c0_195] : memref<16x1xf32, #tpu.memory_space<vmem>>, vector<16x1xf32>
    %331 = vector.broadcast %330 : vector<16x1xf32> to vector<16x128xf32>
    %332 = arith.mulf %329, %331 : vector<16x128xf32>
    %c0_196 = arith.constant 0 : index
    %c0_197 = arith.constant 0 : index
    %333 = vector.load %arg12[%c0_196, %c0_197] : memref<16x1xf32, #tpu.memory_space<vmem>>, vector<16x1xf32>
    %334 = vector.broadcast %333 : vector<16x1xf32> to vector<16x128xf32>
    %335 = arith.addf %332, %334 : vector<16x128xf32>
    %cst_198 = arith.constant 0.000000e+00 : f32
    %336 = vector.broadcast %cst_198 : f32 to vector<16x128xf32>
    %337 = arith.maximumf %335, %336 : vector<16x128xf32>
    %338 = arith.truncf %337 : vector<16x128xf32> to vector<16x128xbf16>
    %c0_199 = arith.constant 0 : index
    %c0_200 = arith.constant 0 : index
    %c0_201 = arith.constant 0 : index
    %339 = vector.load %arg13[%c0_199, %c0_200, %c0_201] : memref<1x16x128xbf16, #tpu.memory_space<vmem>>, vector<1x16x128xbf16>
    %340 = vector.shape_cast %339 : vector<1x16x128xbf16> to vector<16x128xbf16>
    %341 = vector.shape_cast %338 : vector<16x128xbf16> to vector<1x16x128xbf16>
    tpu.vector_store %arg13[%c0_199, %c0_200, %c0_201], %341 {strides = array<i32>} : memref<1x16x128xbf16, #tpu.memory_space<vmem>>, vector<1x16x128xbf16>,
    return
  }
  func.func @transform_0(%arg0: i32, %arg1: i32) -> (i32, i32, i32) {
    %c0_i32 = arith.constant 0 : i32
    %c0_i32_0 = arith.constant 0 : i32
    return %arg0, %c0_i32, %arg1 : i32, i32, i32
  }
  func.func @transform_1(%arg0: i32, %arg1: i32) -> (i32, i32, i32, i32) {
    %c0_i32 = arith.constant 0 : i32
    %c0_i32_0 = arith.constant 0 : i32
    %c0_i32_1 = arith.constant 0 : i32
    return %arg0, %c0_i32, %c0_i32_0, %arg1 : i32, i32, i32, i32
  }
  func.func @transform_2(%arg0: i32, %arg1: i32) -> (i32, i32, i32, i32) {
    %c0_i32 = arith.constant 0 : i32
    %c0_i32_0 = arith.constant 0 : i32
    %c0_i32_1 = arith.constant 0 : i32
    return %arg0, %c0_i32, %c0_i32_0, %arg1 : i32, i32, i32, i32
  }
  func.func @transform_3(%arg0: i32, %arg1: i32) -> (i32, i32) {
    %c0_i32 = arith.constant 0 : i32
    %c0_i32_0 = arith.constant 0 : i32
    %c0_i32_1 = arith.constant 0 : i32
    return %c0_i32, %c0_i32_0 : i32, i32
  }
  func.func @transform_4(%arg0: i32, %arg1: i32) -> (i32, i32) {
    %c0_i32 = arith.constant 0 : i32
    %c0_i32_0 = arith.constant 0 : i32
    %c0_i32_1 = arith.constant 0 : i32
    return %c0_i32, %c0_i32_0 : i32, i32
  }
  func.func @transform_5(%arg0: i32, %arg1: i32) -> (i32, i32) {
    %c0_i32 = arith.constant 0 : i32
    %c0_i32_0 = arith.constant 0 : i32
    %c0_i32_1 = arith.constant 0 : i32
    return %c0_i32, %c0_i32_0 : i32, i32
  }
  func.func @transform_6(%arg0: i32, %arg1: i32) -> (i32, i32) {
    %c0_i32 = arith.constant 0 : i32
    %c0_i32_0 = arith.constant 0 : i32
    %c0_i32_1 = arith.constant 0 : i32
    return %c0_i32, %c0_i32_0 : i32, i32
  }
  func.func @transform_7(%arg0: i32, %arg1: i32) -> (i32, i32) {
    %c0_i32 = arith.constant 0 : i32
    %c0_i32_0 = arith.constant 0 : i32
    %c0_i32_1 = arith.constant 0 : i32
    return %c0_i32, %c0_i32_0 : i32, i32
  }
  func.func @transform_8(%arg0: i32, %arg1: i32) -> (i32, i32) {
    %c0_i32 = arith.constant 0 : i32
    %c0_i32_0 = arith.constant 0 : i32
    %c0_i32_1 = arith.constant 0 : i32
    return %c0_i32, %c0_i32_0 : i32, i32
  }
  func.func @transform_9(%arg0: i32, %arg1: i32) -> (i32, i32) {
    %c0_i32 = arith.constant 0 : i32
    %c0_i32_0 = arith.constant 0 : i32
    %c0_i32_1 = arith.constant 0 : i32
    return %c0_i32, %c0_i32_0 : i32, i32
  }
  func.func @transform_10(%arg0: i32, %arg1: i32) -> (i32, i32) {
    %c0_i32 = arith.constant 0 : i32
    %c0_i32_0 = arith.constant 0 : i32
    %c0_i32_1 = arith.constant 0 : i32
    return %c0_i32, %c0_i32_0 : i32, i32
  }
  func.func @transform_11(%arg0: i32, %arg1: i32) -> (i32, i32, i32) {
    %c0_i32 = arith.constant 0 : i32
    %c0_i32_0 = arith.constant 0 : i32
    return %arg0, %c0_i32, %arg1 : i32, i32, i32
  }
}

module attributes {stable_mosaic.version = 11 : i64} {
  func.func @_block2_kernel(%arg0: i32, %arg1: i32, %arg2: memref<1x3x128xf32, #tpu.memory_space<vmem>>, %arg3: memref<1x3x8x128xf32, #tpu.memory_space<vmem>>, %arg4: memref<1x16x8x128xbf16, #tpu.memory_space<vmem>>, %arg5: memref<16x7xbf16, #tpu.memory_space<vmem>>, %arg6: memref<16x3xbf16, #tpu.memory_space<vmem>>, %arg7: memref<16x1xf32, #tpu.memory_space<vmem>>, %arg8: memref<16x1xf32, #tpu.memory_space<vmem>>, %arg9: memref<16x16xbf16, #tpu.memory_space<vmem>>, %arg10: memref<16x1xf32, #tpu.memory_space<vmem>>, %arg11: memref<16x1xf32, #tpu.memory_space<vmem>>, %arg12: memref<32x32xbf16, #tpu.memory_space<vmem>>, %arg13: memref<32x32xbf16, #tpu.memory_space<vmem>>, %arg14: memref<32x1xf32, #tpu.memory_space<vmem>>, %arg15: memref<32x1xf32, #tpu.memory_space<vmem>>, %arg16: memref<1x32x128xf32, #tpu.memory_space<vmem>>) attributes {dimension_semantics = [#tpu.dimension_semantics<parallel>, #tpu.dimension_semantics<parallel>], iteration_bounds = array<i64: 2, 1>, scalar_prefetch = 0 : i64, scratch_operands = 0 : i64, tpu.core_type = #tpu.core_type<tc>, window_params = [{transform_indices = @transform_0, window_bounds = array<i64: 1, 3, 128>}, {transform_indices = @transform_1, window_bounds = array<i64: 1, 3, 8, 128>}, {transform_indices = @transform_2, window_bounds = array<i64: 1, 16, 8, 128>}, {pipeline_mode = #tpu.pipeline_mode<synchronous>, transform_indices = @transform_3, window_bounds = array<i64: 16, 7>}, {pipeline_mode = #tpu.pipeline_mode<synchronous>, transform_indices = @transform_4, window_bounds = array<i64: 16, 3>}, {pipeline_mode = #tpu.pipeline_mode<synchronous>, transform_indices = @transform_5, window_bounds = array<i64: 16, 1>}, {pipeline_mode = #tpu.pipeline_mode<synchronous>, transform_indices = @transform_6, window_bounds = array<i64: 16, 1>}, {pipeline_mode = #tpu.pipeline_mode<synchronous>, transform_indices = @transform_7, window_bounds = array<i64: 16, 16>}, {pipeline_mode = #tpu.pipeline_mode<synchronous>, transform_indices = @transform_8, window_bounds = array<i64: 16, 1>}, {pipeline_mode = #tpu.pipeline_mode<synchronous>, transform_indices = @transform_9, window_bounds = array<i64: 16, 1>}, {pipeline_mode = #tpu.pipeline_mode<synchronous>, transform_indices = @transform_10, window_bounds = array<i64: 32, 32>}, {pipeline_mode = #tpu.pipeline_mode<synchronous>, transform_indices = @transform_11, window_bounds = array<i64: 32, 32>}, {pipeline_mode = #tpu.pipeline_mode<synchronous>, transform_indices = @transform_12, window_bounds = array<i64: 32, 1>}, {pipeline_mode = #tpu.pipeline_mode<synchronous>, transform_indices = @transform_13, window_bounds = array<i64: 32, 1>}, {transform_indices = @transform_14, window_bounds = array<i64: 1, 32, 128>}]} {
    %c0 = arith.constant 0 : index
    %c0_0 = arith.constant 0 : index
    %c0_1 = arith.constant 0 : index
    %0 = vector.load %arg2[%c0, %c0_0, %c0_1] : memref<1x3x128xf32, #tpu.memory_space<vmem>>, vector<1x3x128xf32>
    %1 = vector.shape_cast %0 : vector<1x3x128xf32> to vector<3x128xf32>
    %c0_2 = arith.constant 0 : index
    %c0_3 = arith.constant 0 : index
    %2 = vector.load %arg6[%c0_2, %c0_3] : memref<16x3xbf16, #tpu.memory_space<vmem>>, vector<16x3xbf16>
    %3 = arith.truncf %1 : vector<3x128xf32> to vector<3x128xbf16>
    %cst = arith.constant dense<0.000000e+00> : vector<16x128xf32>
    %4 = tpu.matmul %2, %3, %cst {dimension_numbers = #tpu.dot_dimension_numbers<[1], [0], [0], [1], [0, 0, 1, 1], [], []>} : vector<16x3xbf16>, vector<3x128xbf16>, vector<16x128xf32> -> vector<16x128xf32>
    %c0_4 = arith.constant 0 : index
    %c0_5 = arith.constant 0 : index
    %c0_6 = arith.constant 0 : index
    %c0_7 = arith.constant 0 : index
    %5 = vector.load %arg3[%c0_4, %c0_5, %c0_6, %c0_7] : memref<1x3x8x128xf32, #tpu.memory_space<vmem>>, vector<1x3x1x128xf32>
    %6 = vector.shape_cast %5 : vector<1x3x1x128xf32> to vector<3x128xf32>
    %7 = arith.subf %1, %6 : vector<3x128xf32>
    %8 = arith.mulf %7, %7 : vector<3x128xf32>
    %cst_8 = arith.constant dense<0.000000e+00> : vector<128xf32>
    %9 = vector.multi_reduction <add>, %8, %cst_8 [0] : vector<3x128xf32> to vector<128xf32>
    %10 = vector.shape_cast %9 : vector<128xf32> to vector<1x128xf32>
    %11 = math.sqrt %10 : vector<1x128xf32>
    %12 = tpu.concatenate %11, %7, %6 in 0 : vector<1x128xf32>, vector<3x128xf32>, vector<3x128xf32> -> vector<7x128xf32>
    %13 = arith.truncf %12 : vector<7x128xf32> to vector<7x128xbf16>
    %c0_9 = arith.constant 0 : index
    %c0_10 = arith.constant 0 : index
    %14 = vector.load %arg5[%c0_9, %c0_10] : memref<16x7xbf16, #tpu.memory_space<vmem>>, vector<16x7xbf16>
    %cst_11 = arith.constant dense<0.000000e+00> : vector<16x128xf32>
    %15 = tpu.matmul %14, %13, %cst_11 {dimension_numbers = #tpu.dot_dimension_numbers<[1], [0], [0], [1], [0, 0, 1, 1], [], []>} : vector<16x7xbf16>, vector<7x128xbf16>, vector<16x128xf32> -> vector<16x128xf32>
    %16 = arith.addf %15, %4 : vector<16x128xf32>
    %c0_12 = arith.constant 0 : index
    %c0_13 = arith.constant 0 : index
    %17 = vector.load %arg7[%c0_12, %c0_13] : memref<16x1xf32, #tpu.memory_space<vmem>>, vector<16x1xf32>
    %18 = vector.broadcast %17 : vector<16x1xf32> to vector<16x128xf32>
    %19 = arith.mulf %16, %18 : vector<16x128xf32>
    %c0_14 = arith.constant 0 : index
    %c0_15 = arith.constant 0 : index
    %20 = vector.load %arg8[%c0_14, %c0_15] : memref<16x1xf32, #tpu.memory_space<vmem>>, vector<16x1xf32>
    %21 = vector.broadcast %20 : vector<16x1xf32> to vector<16x128xf32>
    %22 = arith.addf %19, %21 : vector<16x128xf32>
    %cst_16 = arith.constant 0.000000e+00 : f32
    %23 = vector.broadcast %cst_16 : f32 to vector<16x128xf32>
    %24 = arith.maximumf %22, %23 : vector<16x128xf32>
    %c0_17 = arith.constant 0 : index
    %c0_18 = arith.constant 0 : index
    %25 = vector.load %arg9[%c0_17, %c0_18] : memref<16x16xbf16, #tpu.memory_space<vmem>>, vector<16x16xbf16>
    %26 = arith.truncf %24 : vector<16x128xf32> to vector<16x128xbf16>
    %cst_19 = arith.constant dense<0.000000e+00> : vector<16x128xf32>
    %27 = tpu.matmul %25, %26, %cst_19 {dimension_numbers = #tpu.dot_dimension_numbers<[1], [0], [0], [1], [0, 0, 1, 1], [], []>} : vector<16x16xbf16>, vector<16x128xbf16>, vector<16x128xf32> -> vector<16x128xf32>
    %c0_20 = arith.constant 0 : index
    %c0_21 = arith.constant 0 : index
    %28 = vector.load %arg10[%c0_20, %c0_21] : memref<16x1xf32, #tpu.memory_space<vmem>>, vector<16x1xf32>
    %29 = vector.broadcast %28 : vector<16x1xf32> to vector<16x128xf32>
    %30 = arith.mulf %27, %29 : vector<16x128xf32>
    %c0_22 = arith.constant 0 : index
    %c0_23 = arith.constant 0 : index
    %31 = vector.load %arg11[%c0_22, %c0_23] : memref<16x1xf32, #tpu.memory_space<vmem>>, vector<16x1xf32>
    %32 = vector.broadcast %31 : vector<16x1xf32> to vector<16x128xf32>
    %33 = arith.addf %30, %32 : vector<16x128xf32>
    %cst_24 = arith.constant 0.000000e+00 : f32
    %34 = vector.broadcast %cst_24 : f32 to vector<16x128xf32>
    %35 = arith.maximumf %33, %34 : vector<16x128xf32>
    %c0_25 = arith.constant 0 : index
    %c0_26 = arith.constant 0 : index
    %c1 = arith.constant 1 : index
    %c0_27 = arith.constant 0 : index
    %36 = vector.load %arg3[%c0_25, %c0_26, %c1, %c0_27] : memref<1x3x8x128xf32, #tpu.memory_space<vmem>>, vector<1x3x1x128xf32>
    %37 = vector.shape_cast %36 : vector<1x3x1x128xf32> to vector<3x128xf32>
    %38 = arith.subf %1, %37 : vector<3x128xf32>
    %39 = arith.mulf %38, %38 : vector<3x128xf32>
    %cst_28 = arith.constant dense<0.000000e+00> : vector<128xf32>
    %40 = vector.multi_reduction <add>, %39, %cst_28 [0] : vector<3x128xf32> to vector<128xf32>
    %41 = vector.shape_cast %40 : vector<128xf32> to vector<1x128xf32>
    %42 = math.sqrt %41 : vector<1x128xf32>
    %43 = tpu.concatenate %42, %38, %37 in 0 : vector<1x128xf32>, vector<3x128xf32>, vector<3x128xf32> -> vector<7x128xf32>
    %44 = arith.truncf %43 : vector<7x128xf32> to vector<7x128xbf16>
    %c0_29 = arith.constant 0 : index
    %c0_30 = arith.constant 0 : index
    %45 = vector.load %arg5[%c0_29, %c0_30] : memref<16x7xbf16, #tpu.memory_space<vmem>>, vector<16x7xbf16>
    %cst_31 = arith.constant dense<0.000000e+00> : vector<16x128xf32>
    %46 = tpu.matmul %45, %44, %cst_31 {dimension_numbers = #tpu.dot_dimension_numbers<[1], [0], [0], [1], [0, 0, 1, 1], [], []>} : vector<16x7xbf16>, vector<7x128xbf16>, vector<16x128xf32> -> vector<16x128xf32>
    %47 = arith.addf %46, %4 : vector<16x128xf32>
    %c0_32 = arith.constant 0 : index
    %c0_33 = arith.constant 0 : index
    %48 = vector.load %arg7[%c0_32, %c0_33] : memref<16x1xf32, #tpu.memory_space<vmem>>, vector<16x1xf32>
    %49 = vector.broadcast %48 : vector<16x1xf32> to vector<16x128xf32>
    %50 = arith.mulf %47, %49 : vector<16x128xf32>
    %c0_34 = arith.constant 0 : index
    %c0_35 = arith.constant 0 : index
    %51 = vector.load %arg8[%c0_34, %c0_35] : memref<16x1xf32, #tpu.memory_space<vmem>>, vector<16x1xf32>
    %52 = vector.broadcast %51 : vector<16x1xf32> to vector<16x128xf32>
    %53 = arith.addf %50, %52 : vector<16x128xf32>
    %cst_36 = arith.constant 0.000000e+00 : f32
    %54 = vector.broadcast %cst_36 : f32 to vector<16x128xf32>
    %55 = arith.maximumf %53, %54 : vector<16x128xf32>
    %c0_37 = arith.constant 0 : index
    %c0_38 = arith.constant 0 : index
    %56 = vector.load %arg9[%c0_37, %c0_38] : memref<16x16xbf16, #tpu.memory_space<vmem>>, vector<16x16xbf16>
    %57 = arith.truncf %55 : vector<16x128xf32> to vector<16x128xbf16>
    %cst_39 = arith.constant dense<0.000000e+00> : vector<16x128xf32>
    %58 = tpu.matmul %56, %57, %cst_39 {dimension_numbers = #tpu.dot_dimension_numbers<[1], [0], [0], [1], [0, 0, 1, 1], [], []>} : vector<16x16xbf16>, vector<16x128xbf16>, vector<16x128xf32> -> vector<16x128xf32>
    %c0_40 = arith.constant 0 : index
    %c0_41 = arith.constant 0 : index
    %59 = vector.load %arg10[%c0_40, %c0_41] : memref<16x1xf32, #tpu.memory_space<vmem>>, vector<16x1xf32>
    %60 = vector.broadcast %59 : vector<16x1xf32> to vector<16x128xf32>
    %61 = arith.mulf %58, %60 : vector<16x128xf32>
    %c0_42 = arith.constant 0 : index
    %c0_43 = arith.constant 0 : index
    %62 = vector.load %arg11[%c0_42, %c0_43] : memref<16x1xf32, #tpu.memory_space<vmem>>, vector<16x1xf32>
    %63 = vector.broadcast %62 : vector<16x1xf32> to vector<16x128xf32>
    %64 = arith.addf %61, %63 : vector<16x128xf32>
    %cst_44 = arith.constant 0.000000e+00 : f32
    %65 = vector.broadcast %cst_44 : f32 to vector<16x128xf32>
    %66 = arith.maximumf %64, %65 : vector<16x128xf32>
    %c0_45 = arith.constant 0 : index
    %c0_46 = arith.constant 0 : index
    %c2 = arith.constant 2 : index
    %c0_47 = arith.constant 0 : index
    %67 = vector.load %arg3[%c0_45, %c0_46, %c2, %c0_47] : memref<1x3x8x128xf32, #tpu.memory_space<vmem>>, vector<1x3x1x128xf32>
    %68 = vector.shape_cast %67 : vector<1x3x1x128xf32> to vector<3x128xf32>
    %69 = arith.subf %1, %68 : vector<3x128xf32>
    %70 = arith.mulf %69, %69 : vector<3x128xf32>
    %cst_48 = arith.constant dense<0.000000e+00> : vector<128xf32>
    %71 = vector.multi_reduction <add>, %70, %cst_48 [0] : vector<3x128xf32> to vector<128xf32>
    %72 = vector.shape_cast %71 : vector<128xf32> to vector<1x128xf32>
    %73 = math.sqrt %72 : vector<1x128xf32>
    %74 = tpu.concatenate %73, %69, %68 in 0 : vector<1x128xf32>, vector<3x128xf32>, vector<3x128xf32> -> vector<7x128xf32>
    %75 = arith.truncf %74 : vector<7x128xf32> to vector<7x128xbf16>
    %c0_49 = arith.constant 0 : index
    %c0_50 = arith.constant 0 : index
    %76 = vector.load %arg5[%c0_49, %c0_50] : memref<16x7xbf16, #tpu.memory_space<vmem>>, vector<16x7xbf16>
    %cst_51 = arith.constant dense<0.000000e+00> : vector<16x128xf32>
    %77 = tpu.matmul %76, %75, %cst_51 {dimension_numbers = #tpu.dot_dimension_numbers<[1], [0], [0], [1], [0, 0, 1, 1], [], []>} : vector<16x7xbf16>, vector<7x128xbf16>, vector<16x128xf32> -> vector<16x128xf32>
    %78 = arith.addf %77, %4 : vector<16x128xf32>
    %c0_52 = arith.constant 0 : index
    %c0_53 = arith.constant 0 : index
    %79 = vector.load %arg7[%c0_52, %c0_53] : memref<16x1xf32, #tpu.memory_space<vmem>>, vector<16x1xf32>
    %80 = vector.broadcast %79 : vector<16x1xf32> to vector<16x128xf32>
    %81 = arith.mulf %78, %80 : vector<16x128xf32>
    %c0_54 = arith.constant 0 : index
    %c0_55 = arith.constant 0 : index
    %82 = vector.load %arg8[%c0_54, %c0_55] : memref<16x1xf32, #tpu.memory_space<vmem>>, vector<16x1xf32>
    %83 = vector.broadcast %82 : vector<16x1xf32> to vector<16x128xf32>
    %84 = arith.addf %81, %83 : vector<16x128xf32>
    %cst_56 = arith.constant 0.000000e+00 : f32
    %85 = vector.broadcast %cst_56 : f32 to vector<16x128xf32>
    %86 = arith.maximumf %84, %85 : vector<16x128xf32>
    %c0_57 = arith.constant 0 : index
    %c0_58 = arith.constant 0 : index
    %87 = vector.load %arg9[%c0_57, %c0_58] : memref<16x16xbf16, #tpu.memory_space<vmem>>, vector<16x16xbf16>
    %88 = arith.truncf %86 : vector<16x128xf32> to vector<16x128xbf16>
    %cst_59 = arith.constant dense<0.000000e+00> : vector<16x128xf32>
    %89 = tpu.matmul %87, %88, %cst_59 {dimension_numbers = #tpu.dot_dimension_numbers<[1], [0], [0], [1], [0, 0, 1, 1], [], []>} : vector<16x16xbf16>, vector<16x128xbf16>, vector<16x128xf32> -> vector<16x128xf32>
    %c0_60 = arith.constant 0 : index
    %c0_61 = arith.constant 0 : index
    %90 = vector.load %arg10[%c0_60, %c0_61] : memref<16x1xf32, #tpu.memory_space<vmem>>, vector<16x1xf32>
    %91 = vector.broadcast %90 : vector<16x1xf32> to vector<16x128xf32>
    %92 = arith.mulf %89, %91 : vector<16x128xf32>
    %c0_62 = arith.constant 0 : index
    %c0_63 = arith.constant 0 : index
    %93 = vector.load %arg11[%c0_62, %c0_63] : memref<16x1xf32, #tpu.memory_space<vmem>>, vector<16x1xf32>
    %94 = vector.broadcast %93 : vector<16x1xf32> to vector<16x128xf32>
    %95 = arith.addf %92, %94 : vector<16x128xf32>
    %cst_64 = arith.constant 0.000000e+00 : f32
    %96 = vector.broadcast %cst_64 : f32 to vector<16x128xf32>
    %97 = arith.maximumf %95, %96 : vector<16x128xf32>
    %c0_65 = arith.constant 0 : index
    %c0_66 = arith.constant 0 : index
    %c3 = arith.constant 3 : index
    %c0_67 = arith.constant 0 : index
    %98 = vector.load %arg3[%c0_65, %c0_66, %c3, %c0_67] : memref<1x3x8x128xf32, #tpu.memory_space<vmem>>, vector<1x3x1x128xf32>
    %99 = vector.shape_cast %98 : vector<1x3x1x128xf32> to vector<3x128xf32>
    %100 = arith.subf %1, %99 : vector<3x128xf32>
    %101 = arith.mulf %100, %100 : vector<3x128xf32>
    %cst_68 = arith.constant dense<0.000000e+00> : vector<128xf32>
    %102 = vector.multi_reduction <add>, %101, %cst_68 [0] : vector<3x128xf32> to vector<128xf32>
    %103 = vector.shape_cast %102 : vector<128xf32> to vector<1x128xf32>
    %104 = math.sqrt %103 : vector<1x128xf32>
    %105 = tpu.concatenate %104, %100, %99 in 0 : vector<1x128xf32>, vector<3x128xf32>, vector<3x128xf32> -> vector<7x128xf32>
    %106 = arith.truncf %105 : vector<7x128xf32> to vector<7x128xbf16>
    %c0_69 = arith.constant 0 : index
    %c0_70 = arith.constant 0 : index
    %107 = vector.load %arg5[%c0_69, %c0_70] : memref<16x7xbf16, #tpu.memory_space<vmem>>, vector<16x7xbf16>
    %cst_71 = arith.constant dense<0.000000e+00> : vector<16x128xf32>
    %108 = tpu.matmul %107, %106, %cst_71 {dimension_numbers = #tpu.dot_dimension_numbers<[1], [0], [0], [1], [0, 0, 1, 1], [], []>} : vector<16x7xbf16>, vector<7x128xbf16>, vector<16x128xf32> -> vector<16x128xf32>
    %109 = arith.addf %108, %4 : vector<16x128xf32>
    %c0_72 = arith.constant 0 : index
    %c0_73 = arith.constant 0 : index
    %110 = vector.load %arg7[%c0_72, %c0_73] : memref<16x1xf32, #tpu.memory_space<vmem>>, vector<16x1xf32>
    %111 = vector.broadcast %110 : vector<16x1xf32> to vector<16x128xf32>
    %112 = arith.mulf %109, %111 : vector<16x128xf32>
    %c0_74 = arith.constant 0 : index
    %c0_75 = arith.constant 0 : index
    %113 = vector.load %arg8[%c0_74, %c0_75] : memref<16x1xf32, #tpu.memory_space<vmem>>, vector<16x1xf32>
    %114 = vector.broadcast %113 : vector<16x1xf32> to vector<16x128xf32>
    %115 = arith.addf %112, %114 : vector<16x128xf32>
    %cst_76 = arith.constant 0.000000e+00 : f32
    %116 = vector.broadcast %cst_76 : f32 to vector<16x128xf32>
    %117 = arith.maximumf %115, %116 : vector<16x128xf32>
    %c0_77 = arith.constant 0 : index
    %c0_78 = arith.constant 0 : index
    %118 = vector.load %arg9[%c0_77, %c0_78] : memref<16x16xbf16, #tpu.memory_space<vmem>>, vector<16x16xbf16>
    %119 = arith.truncf %117 : vector<16x128xf32> to vector<16x128xbf16>
    %cst_79 = arith.constant dense<0.000000e+00> : vector<16x128xf32>
    %120 = tpu.matmul %118, %119, %cst_79 {dimension_numbers = #tpu.dot_dimension_numbers<[1], [0], [0], [1], [0, 0, 1, 1], [], []>} : vector<16x16xbf16>, vector<16x128xbf16>, vector<16x128xf32> -> vector<16x128xf32>
    %c0_80 = arith.constant 0 : index
    %c0_81 = arith.constant 0 : index
    %121 = vector.load %arg10[%c0_80, %c0_81] : memref<16x1xf32, #tpu.memory_space<vmem>>, vector<16x1xf32>
    %122 = vector.broadcast %121 : vector<16x1xf32> to vector<16x128xf32>
    %123 = arith.mulf %120, %122 : vector<16x128xf32>
    %c0_82 = arith.constant 0 : index
    %c0_83 = arith.constant 0 : index
    %124 = vector.load %arg11[%c0_82, %c0_83] : memref<16x1xf32, #tpu.memory_space<vmem>>, vector<16x1xf32>
    %125 = vector.broadcast %124 : vector<16x1xf32> to vector<16x128xf32>
    %126 = arith.addf %123, %125 : vector<16x128xf32>
    %cst_84 = arith.constant 0.000000e+00 : f32
    %127 = vector.broadcast %cst_84 : f32 to vector<16x128xf32>
    %128 = arith.maximumf %126, %127 : vector<16x128xf32>
    %c0_85 = arith.constant 0 : index
    %c0_86 = arith.constant 0 : index
    %c4 = arith.constant 4 : index
    %c0_87 = arith.constant 0 : index
    %129 = vector.load %arg3[%c0_85, %c0_86, %c4, %c0_87] : memref<1x3x8x128xf32, #tpu.memory_space<vmem>>, vector<1x3x1x128xf32>
    %130 = vector.shape_cast %129 : vector<1x3x1x128xf32> to vector<3x128xf32>
    %131 = arith.subf %1, %130 : vector<3x128xf32>
    %132 = arith.mulf %131, %131 : vector<3x128xf32>
    %cst_88 = arith.constant dense<0.000000e+00> : vector<128xf32>
    %133 = vector.multi_reduction <add>, %132, %cst_88 [0] : vector<3x128xf32> to vector<128xf32>
    %134 = vector.shape_cast %133 : vector<128xf32> to vector<1x128xf32>
    %135 = math.sqrt %134 : vector<1x128xf32>
    %136 = tpu.concatenate %135, %131, %130 in 0 : vector<1x128xf32>, vector<3x128xf32>, vector<3x128xf32> -> vector<7x128xf32>
    %137 = arith.truncf %136 : vector<7x128xf32> to vector<7x128xbf16>
    %c0_89 = arith.constant 0 : index
    %c0_90 = arith.constant 0 : index
    %138 = vector.load %arg5[%c0_89, %c0_90] : memref<16x7xbf16, #tpu.memory_space<vmem>>, vector<16x7xbf16>
    %cst_91 = arith.constant dense<0.000000e+00> : vector<16x128xf32>
    %139 = tpu.matmul %138, %137, %cst_91 {dimension_numbers = #tpu.dot_dimension_numbers<[1], [0], [0], [1], [0, 0, 1, 1], [], []>} : vector<16x7xbf16>, vector<7x128xbf16>, vector<16x128xf32> -> vector<16x128xf32>
    %140 = arith.addf %139, %4 : vector<16x128xf32>
    %c0_92 = arith.constant 0 : index
    %c0_93 = arith.constant 0 : index
    %141 = vector.load %arg7[%c0_92, %c0_93] : memref<16x1xf32, #tpu.memory_space<vmem>>, vector<16x1xf32>
    %142 = vector.broadcast %141 : vector<16x1xf32> to vector<16x128xf32>
    %143 = arith.mulf %140, %142 : vector<16x128xf32>
    %c0_94 = arith.constant 0 : index
    %c0_95 = arith.constant 0 : index
    %144 = vector.load %arg8[%c0_94, %c0_95] : memref<16x1xf32, #tpu.memory_space<vmem>>, vector<16x1xf32>
    %145 = vector.broadcast %144 : vector<16x1xf32> to vector<16x128xf32>
    %146 = arith.addf %143, %145 : vector<16x128xf32>
    %cst_96 = arith.constant 0.000000e+00 : f32
    %147 = vector.broadcast %cst_96 : f32 to vector<16x128xf32>
    %148 = arith.maximumf %146, %147 : vector<16x128xf32>
    %c0_97 = arith.constant 0 : index
    %c0_98 = arith.constant 0 : index
    %149 = vector.load %arg9[%c0_97, %c0_98] : memref<16x16xbf16, #tpu.memory_space<vmem>>, vector<16x16xbf16>
    %150 = arith.truncf %148 : vector<16x128xf32> to vector<16x128xbf16>
    %cst_99 = arith.constant dense<0.000000e+00> : vector<16x128xf32>
    %151 = tpu.matmul %149, %150, %cst_99 {dimension_numbers = #tpu.dot_dimension_numbers<[1], [0], [0], [1], [0, 0, 1, 1], [], []>} : vector<16x16xbf16>, vector<16x128xbf16>, vector<16x128xf32> -> vector<16x128xf32>
    %c0_100 = arith.constant 0 : index
    %c0_101 = arith.constant 0 : index
    %152 = vector.load %arg10[%c0_100, %c0_101] : memref<16x1xf32, #tpu.memory_space<vmem>>, vector<16x1xf32>
    %153 = vector.broadcast %152 : vector<16x1xf32> to vector<16x128xf32>
    %154 = arith.mulf %151, %153 : vector<16x128xf32>
    %c0_102 = arith.constant 0 : index
    %c0_103 = arith.constant 0 : index
    %155 = vector.load %arg11[%c0_102, %c0_103] : memref<16x1xf32, #tpu.memory_space<vmem>>, vector<16x1xf32>
    %156 = vector.broadcast %155 : vector<16x1xf32> to vector<16x128xf32>
    %157 = arith.addf %154, %156 : vector<16x128xf32>
    %cst_104 = arith.constant 0.000000e+00 : f32
    %158 = vector.broadcast %cst_104 : f32 to vector<16x128xf32>
    %159 = arith.maximumf %157, %158 : vector<16x128xf32>
    %c0_105 = arith.constant 0 : index
    %c0_106 = arith.constant 0 : index
    %c5 = arith.constant 5 : index
    %c0_107 = arith.constant 0 : index
    %160 = vector.load %arg3[%c0_105, %c0_106, %c5, %c0_107] : memref<1x3x8x128xf32, #tpu.memory_space<vmem>>, vector<1x3x1x128xf32>
    %161 = vector.shape_cast %160 : vector<1x3x1x128xf32> to vector<3x128xf32>
    %162 = arith.subf %1, %161 : vector<3x128xf32>
    %163 = arith.mulf %162, %162 : vector<3x128xf32>
    %cst_108 = arith.constant dense<0.000000e+00> : vector<128xf32>
    %164 = vector.multi_reduction <add>, %163, %cst_108 [0] : vector<3x128xf32> to vector<128xf32>
    %165 = vector.shape_cast %164 : vector<128xf32> to vector<1x128xf32>
    %166 = math.sqrt %165 : vector<1x128xf32>
    %167 = tpu.concatenate %166, %162, %161 in 0 : vector<1x128xf32>, vector<3x128xf32>, vector<3x128xf32> -> vector<7x128xf32>
    %168 = arith.truncf %167 : vector<7x128xf32> to vector<7x128xbf16>
    %c0_109 = arith.constant 0 : index
    %c0_110 = arith.constant 0 : index
    %169 = vector.load %arg5[%c0_109, %c0_110] : memref<16x7xbf16, #tpu.memory_space<vmem>>, vector<16x7xbf16>
    %cst_111 = arith.constant dense<0.000000e+00> : vector<16x128xf32>
    %170 = tpu.matmul %169, %168, %cst_111 {dimension_numbers = #tpu.dot_dimension_numbers<[1], [0], [0], [1], [0, 0, 1, 1], [], []>} : vector<16x7xbf16>, vector<7x128xbf16>, vector<16x128xf32> -> vector<16x128xf32>
    %171 = arith.addf %170, %4 : vector<16x128xf32>
    %c0_112 = arith.constant 0 : index
    %c0_113 = arith.constant 0 : index
    %172 = vector.load %arg7[%c0_112, %c0_113] : memref<16x1xf32, #tpu.memory_space<vmem>>, vector<16x1xf32>
    %173 = vector.broadcast %172 : vector<16x1xf32> to vector<16x128xf32>
    %174 = arith.mulf %171, %173 : vector<16x128xf32>
    %c0_114 = arith.constant 0 : index
    %c0_115 = arith.constant 0 : index
    %175 = vector.load %arg8[%c0_114, %c0_115] : memref<16x1xf32, #tpu.memory_space<vmem>>, vector<16x1xf32>
    %176 = vector.broadcast %175 : vector<16x1xf32> to vector<16x128xf32>
    %177 = arith.addf %174, %176 : vector<16x128xf32>
    %cst_116 = arith.constant 0.000000e+00 : f32
    %178 = vector.broadcast %cst_116 : f32 to vector<16x128xf32>
    %179 = arith.maximumf %177, %178 : vector<16x128xf32>
    %c0_117 = arith.constant 0 : index
    %c0_118 = arith.constant 0 : index
    %180 = vector.load %arg9[%c0_117, %c0_118] : memref<16x16xbf16, #tpu.memory_space<vmem>>, vector<16x16xbf16>
    %181 = arith.truncf %179 : vector<16x128xf32> to vector<16x128xbf16>
    %cst_119 = arith.constant dense<0.000000e+00> : vector<16x128xf32>
    %182 = tpu.matmul %180, %181, %cst_119 {dimension_numbers = #tpu.dot_dimension_numbers<[1], [0], [0], [1], [0, 0, 1, 1], [], []>} : vector<16x16xbf16>, vector<16x128xbf16>, vector<16x128xf32> -> vector<16x128xf32>
    %c0_120 = arith.constant 0 : index
    %c0_121 = arith.constant 0 : index
    %183 = vector.load %arg10[%c0_120, %c0_121] : memref<16x1xf32, #tpu.memory_space<vmem>>, vector<16x1xf32>
    %184 = vector.broadcast %183 : vector<16x1xf32> to vector<16x128xf32>
    %185 = arith.mulf %182, %184 : vector<16x128xf32>
    %c0_122 = arith.constant 0 : index
    %c0_123 = arith.constant 0 : index
    %186 = vector.load %arg11[%c0_122, %c0_123] : memref<16x1xf32, #tpu.memory_space<vmem>>, vector<16x1xf32>
    %187 = vector.broadcast %186 : vector<16x1xf32> to vector<16x128xf32>
    %188 = arith.addf %185, %187 : vector<16x128xf32>
    %cst_124 = arith.constant 0.000000e+00 : f32
    %189 = vector.broadcast %cst_124 : f32 to vector<16x128xf32>
    %190 = arith.maximumf %188, %189 : vector<16x128xf32>
    %c0_125 = arith.constant 0 : index
    %c0_126 = arith.constant 0 : index
    %c6 = arith.constant 6 : index
    %c0_127 = arith.constant 0 : index
    %191 = vector.load %arg3[%c0_125, %c0_126, %c6, %c0_127] : memref<1x3x8x128xf32, #tpu.memory_space<vmem>>, vector<1x3x1x128xf32>
    %192 = vector.shape_cast %191 : vector<1x3x1x128xf32> to vector<3x128xf32>
    %193 = arith.subf %1, %192 : vector<3x128xf32>
    %194 = arith.mulf %193, %193 : vector<3x128xf32>
    %cst_128 = arith.constant dense<0.000000e+00> : vector<128xf32>
    %195 = vector.multi_reduction <add>, %194, %cst_128 [0] : vector<3x128xf32> to vector<128xf32>
    %196 = vector.shape_cast %195 : vector<128xf32> to vector<1x128xf32>
    %197 = math.sqrt %196 : vector<1x128xf32>
    %198 = tpu.concatenate %197, %193, %192 in 0 : vector<1x128xf32>, vector<3x128xf32>, vector<3x128xf32> -> vector<7x128xf32>
    %199 = arith.truncf %198 : vector<7x128xf32> to vector<7x128xbf16>
    %c0_129 = arith.constant 0 : index
    %c0_130 = arith.constant 0 : index
    %200 = vector.load %arg5[%c0_129, %c0_130] : memref<16x7xbf16, #tpu.memory_space<vmem>>, vector<16x7xbf16>
    %cst_131 = arith.constant dense<0.000000e+00> : vector<16x128xf32>
    %201 = tpu.matmul %200, %199, %cst_131 {dimension_numbers = #tpu.dot_dimension_numbers<[1], [0], [0], [1], [0, 0, 1, 1], [], []>} : vector<16x7xbf16>, vector<7x128xbf16>, vector<16x128xf32> -> vector<16x128xf32>
    %202 = arith.addf %201, %4 : vector<16x128xf32>
    %c0_132 = arith.constant 0 : index
    %c0_133 = arith.constant 0 : index
    %203 = vector.load %arg7[%c0_132, %c0_133] : memref<16x1xf32, #tpu.memory_space<vmem>>, vector<16x1xf32>
    %204 = vector.broadcast %203 : vector<16x1xf32> to vector<16x128xf32>
    %205 = arith.mulf %202, %204 : vector<16x128xf32>
    %c0_134 = arith.constant 0 : index
    %c0_135 = arith.constant 0 : index
    %206 = vector.load %arg8[%c0_134, %c0_135] : memref<16x1xf32, #tpu.memory_space<vmem>>, vector<16x1xf32>
    %207 = vector.broadcast %206 : vector<16x1xf32> to vector<16x128xf32>
    %208 = arith.addf %205, %207 : vector<16x128xf32>
    %cst_136 = arith.constant 0.000000e+00 : f32
    %209 = vector.broadcast %cst_136 : f32 to vector<16x128xf32>
    %210 = arith.maximumf %208, %209 : vector<16x128xf32>
    %c0_137 = arith.constant 0 : index
    %c0_138 = arith.constant 0 : index
    %211 = vector.load %arg9[%c0_137, %c0_138] : memref<16x16xbf16, #tpu.memory_space<vmem>>, vector<16x16xbf16>
    %212 = arith.truncf %210 : vector<16x128xf32> to vector<16x128xbf16>
    %cst_139 = arith.constant dense<0.000000e+00> : vector<16x128xf32>
    %213 = tpu.matmul %211, %212, %cst_139 {dimension_numbers = #tpu.dot_dimension_numbers<[1], [0], [0], [1], [0, 0, 1, 1], [], []>} : vector<16x16xbf16>, vector<16x128xbf16>, vector<16x128xf32> -> vector<16x128xf32>
    %c0_140 = arith.constant 0 : index
    %c0_141 = arith.constant 0 : index
    %214 = vector.load %arg10[%c0_140, %c0_141] : memref<16x1xf32, #tpu.memory_space<vmem>>, vector<16x1xf32>
    %215 = vector.broadcast %214 : vector<16x1xf32> to vector<16x128xf32>
    %216 = arith.mulf %213, %215 : vector<16x128xf32>
    %c0_142 = arith.constant 0 : index
    %c0_143 = arith.constant 0 : index
    %217 = vector.load %arg11[%c0_142, %c0_143] : memref<16x1xf32, #tpu.memory_space<vmem>>, vector<16x1xf32>
    %218 = vector.broadcast %217 : vector<16x1xf32> to vector<16x128xf32>
    %219 = arith.addf %216, %218 : vector<16x128xf32>
    %cst_144 = arith.constant 0.000000e+00 : f32
    %220 = vector.broadcast %cst_144 : f32 to vector<16x128xf32>
    %221 = arith.maximumf %219, %220 : vector<16x128xf32>
    %c0_145 = arith.constant 0 : index
    %c0_146 = arith.constant 0 : index
    %c7 = arith.constant 7 : index
    %c0_147 = arith.constant 0 : index
    %222 = vector.load %arg3[%c0_145, %c0_146, %c7, %c0_147] : memref<1x3x8x128xf32, #tpu.memory_space<vmem>>, vector<1x3x1x128xf32>
    %223 = vector.shape_cast %222 : vector<1x3x1x128xf32> to vector<3x128xf32>
    %224 = arith.subf %1, %223 : vector<3x128xf32>
    %225 = arith.mulf %224, %224 : vector<3x128xf32>
    %cst_148 = arith.constant dense<0.000000e+00> : vector<128xf32>
    %226 = vector.multi_reduction <add>, %225, %cst_148 [0] : vector<3x128xf32> to vector<128xf32>
    %227 = vector.shape_cast %226 : vector<128xf32> to vector<1x128xf32>
    %228 = math.sqrt %227 : vector<1x128xf32>
    %229 = tpu.concatenate %228, %224, %223 in 0 : vector<1x128xf32>, vector<3x128xf32>, vector<3x128xf32> -> vector<7x128xf32>
    %230 = arith.truncf %229 : vector<7x128xf32> to vector<7x128xbf16>
    %c0_149 = arith.constant 0 : index
    %c0_150 = arith.constant 0 : index
    %231 = vector.load %arg5[%c0_149, %c0_150] : memref<16x7xbf16, #tpu.memory_space<vmem>>, vector<16x7xbf16>
    %cst_151 = arith.constant dense<0.000000e+00> : vector<16x128xf32>
    %232 = tpu.matmul %231, %230, %cst_151 {dimension_numbers = #tpu.dot_dimension_numbers<[1], [0], [0], [1], [0, 0, 1, 1], [], []>} : vector<16x7xbf16>, vector<7x128xbf16>, vector<16x128xf32> -> vector<16x128xf32>
    %233 = arith.addf %232, %4 : vector<16x128xf32>
    %c0_152 = arith.constant 0 : index
    %c0_153 = arith.constant 0 : index
    %234 = vector.load %arg7[%c0_152, %c0_153] : memref<16x1xf32, #tpu.memory_space<vmem>>, vector<16x1xf32>
    %235 = vector.broadcast %234 : vector<16x1xf32> to vector<16x128xf32>
    %236 = arith.mulf %233, %235 : vector<16x128xf32>
    %c0_154 = arith.constant 0 : index
    %c0_155 = arith.constant 0 : index
    %237 = vector.load %arg8[%c0_154, %c0_155] : memref<16x1xf32, #tpu.memory_space<vmem>>, vector<16x1xf32>
    %238 = vector.broadcast %237 : vector<16x1xf32> to vector<16x128xf32>
    %239 = arith.addf %236, %238 : vector<16x128xf32>
    %cst_156 = arith.constant 0.000000e+00 : f32
    %240 = vector.broadcast %cst_156 : f32 to vector<16x128xf32>
    %241 = arith.maximumf %239, %240 : vector<16x128xf32>
    %c0_157 = arith.constant 0 : index
    %c0_158 = arith.constant 0 : index
    %242 = vector.load %arg9[%c0_157, %c0_158] : memref<16x16xbf16, #tpu.memory_space<vmem>>, vector<16x16xbf16>
    %243 = arith.truncf %241 : vector<16x128xf32> to vector<16x128xbf16>
    %cst_159 = arith.constant dense<0.000000e+00> : vector<16x128xf32>
    %244 = tpu.matmul %242, %243, %cst_159 {dimension_numbers = #tpu.dot_dimension_numbers<[1], [0], [0], [1], [0, 0, 1, 1], [], []>} : vector<16x16xbf16>, vector<16x128xbf16>, vector<16x128xf32> -> vector<16x128xf32>
    %c0_160 = arith.constant 0 : index
    %c0_161 = arith.constant 0 : index
    %245 = vector.load %arg10[%c0_160, %c0_161] : memref<16x1xf32, #tpu.memory_space<vmem>>, vector<16x1xf32>
    %246 = vector.broadcast %245 : vector<16x1xf32> to vector<16x128xf32>
    %247 = arith.mulf %244, %246 : vector<16x128xf32>
    %c0_162 = arith.constant 0 : index
    %c0_163 = arith.constant 0 : index
    %248 = vector.load %arg11[%c0_162, %c0_163] : memref<16x1xf32, #tpu.memory_space<vmem>>, vector<16x1xf32>
    %249 = vector.broadcast %248 : vector<16x1xf32> to vector<16x128xf32>
    %250 = arith.addf %247, %249 : vector<16x128xf32>
    %cst_164 = arith.constant 0.000000e+00 : f32
    %251 = vector.broadcast %cst_164 : f32 to vector<16x128xf32>
    %252 = arith.maximumf %250, %251 : vector<16x128xf32>
    %c0_165 = arith.constant 0 : index
    %c0_166 = arith.constant 0 : index
    %c0_167 = arith.constant 0 : index
    %c0_168 = arith.constant 0 : index
    %253 = vector.load %arg4[%c0_165, %c0_166, %c0_167, %c0_168] : memref<1x16x8x128xbf16, #tpu.memory_space<vmem>>, vector<1x16x1x128xbf16>
    %254 = vector.shape_cast %253 : vector<1x16x1x128xbf16> to vector<16x128xbf16>
    %255 = arith.truncf %35 : vector<16x128xf32> to vector<16x128xbf16>
    %256 = tpu.concatenate %254, %255 in 0 : vector<16x128xbf16>, vector<16x128xbf16> -> vector<32x128xbf16>
    %c0_169 = arith.constant 0 : index
    %c0_170 = arith.constant 0 : index
    %257 = vector.load %arg12[%c0_169, %c0_170] : memref<32x32xbf16, #tpu.memory_space<vmem>>, vector<32x32xbf16>
    %cst_171 = arith.constant dense<0.000000e+00> : vector<32x128xf32>
    %258 = tpu.matmul %257, %256, %cst_171 {dimension_numbers = #tpu.dot_dimension_numbers<[1], [0], [0], [1], [0, 0, 1, 1], [], []>} : vector<32x32xbf16>, vector<32x128xbf16>, vector<32x128xf32> -> vector<32x128xf32>
    %c0_172 = arith.constant 0 : index
    %c0_173 = arith.constant 0 : index
    %c1_174 = arith.constant 1 : index
    %c0_175 = arith.constant 0 : index
    %259 = vector.load %arg4[%c0_172, %c0_173, %c1_174, %c0_175] : memref<1x16x8x128xbf16, #tpu.memory_space<vmem>>, vector<1x16x1x128xbf16>
    %260 = vector.shape_cast %259 : vector<1x16x1x128xbf16> to vector<16x128xbf16>
    %261 = arith.truncf %66 : vector<16x128xf32> to vector<16x128xbf16>
    %262 = tpu.concatenate %260, %261 in 0 : vector<16x128xbf16>, vector<16x128xbf16> -> vector<32x128xbf16>
    %c0_176 = arith.constant 0 : index
    %c0_177 = arith.constant 0 : index
    %263 = vector.load %arg12[%c0_176, %c0_177] : memref<32x32xbf16, #tpu.memory_space<vmem>>, vector<32x32xbf16>
    %cst_178 = arith.constant dense<0.000000e+00> : vector<32x128xf32>
    %264 = tpu.matmul %263, %262, %cst_178 {dimension_numbers = #tpu.dot_dimension_numbers<[1], [0], [0], [1], [0, 0, 1, 1], [], []>} : vector<32x32xbf16>, vector<32x128xbf16>, vector<32x128xf32> -> vector<32x128xf32>
    %c0_179 = arith.constant 0 : index
    %c0_180 = arith.constant 0 : index
    %c2_181 = arith.constant 2 : index
    %c0_182 = arith.constant 0 : index
    %265 = vector.load %arg4[%c0_179, %c0_180, %c2_181, %c0_182] : memref<1x16x8x128xbf16, #tpu.memory_space<vmem>>, vector<1x16x1x128xbf16>
    %266 = vector.shape_cast %265 : vector<1x16x1x128xbf16> to vector<16x128xbf16>
    %267 = arith.truncf %97 : vector<16x128xf32> to vector<16x128xbf16>
    %268 = tpu.concatenate %266, %267 in 0 : vector<16x128xbf16>, vector<16x128xbf16> -> vector<32x128xbf16>
    %c0_183 = arith.constant 0 : index
    %c0_184 = arith.constant 0 : index
    %269 = vector.load %arg12[%c0_183, %c0_184] : memref<32x32xbf16, #tpu.memory_space<vmem>>, vector<32x32xbf16>
    %cst_185 = arith.constant dense<0.000000e+00> : vector<32x128xf32>
    %270 = tpu.matmul %269, %268, %cst_185 {dimension_numbers = #tpu.dot_dimension_numbers<[1], [0], [0], [1], [0, 0, 1, 1], [], []>} : vector<32x32xbf16>, vector<32x128xbf16>, vector<32x128xf32> -> vector<32x128xf32>
    %c0_186 = arith.constant 0 : index
    %c0_187 = arith.constant 0 : index
    %c3_188 = arith.constant 3 : index
    %c0_189 = arith.constant 0 : index
    %271 = vector.load %arg4[%c0_186, %c0_187, %c3_188, %c0_189] : memref<1x16x8x128xbf16, #tpu.memory_space<vmem>>, vector<1x16x1x128xbf16>
    %272 = vector.shape_cast %271 : vector<1x16x1x128xbf16> to vector<16x128xbf16>
    %273 = arith.truncf %128 : vector<16x128xf32> to vector<16x128xbf16>
    %274 = tpu.concatenate %272, %273 in 0 : vector<16x128xbf16>, vector<16x128xbf16> -> vector<32x128xbf16>
    %c0_190 = arith.constant 0 : index
    %c0_191 = arith.constant 0 : index
    %275 = vector.load %arg12[%c0_190, %c0_191] : memref<32x32xbf16, #tpu.memory_space<vmem>>, vector<32x32xbf16>
    %cst_192 = arith.constant dense<0.000000e+00> : vector<32x128xf32>
    %276 = tpu.matmul %275, %274, %cst_192 {dimension_numbers = #tpu.dot_dimension_numbers<[1], [0], [0], [1], [0, 0, 1, 1], [], []>} : vector<32x32xbf16>, vector<32x128xbf16>, vector<32x128xf32> -> vector<32x128xf32>
    %c0_193 = arith.constant 0 : index
    %c0_194 = arith.constant 0 : index
    %c4_195 = arith.constant 4 : index
    %c0_196 = arith.constant 0 : index
    %277 = vector.load %arg4[%c0_193, %c0_194, %c4_195, %c0_196] : memref<1x16x8x128xbf16, #tpu.memory_space<vmem>>, vector<1x16x1x128xbf16>
    %278 = vector.shape_cast %277 : vector<1x16x1x128xbf16> to vector<16x128xbf16>
    %279 = arith.truncf %159 : vector<16x128xf32> to vector<16x128xbf16>
    %280 = tpu.concatenate %278, %279 in 0 : vector<16x128xbf16>, vector<16x128xbf16> -> vector<32x128xbf16>
    %c0_197 = arith.constant 0 : index
    %c0_198 = arith.constant 0 : index
    %281 = vector.load %arg12[%c0_197, %c0_198] : memref<32x32xbf16, #tpu.memory_space<vmem>>, vector<32x32xbf16>
    %cst_199 = arith.constant dense<0.000000e+00> : vector<32x128xf32>
    %282 = tpu.matmul %281, %280, %cst_199 {dimension_numbers = #tpu.dot_dimension_numbers<[1], [0], [0], [1], [0, 0, 1, 1], [], []>} : vector<32x32xbf16>, vector<32x128xbf16>, vector<32x128xf32> -> vector<32x128xf32>
    %c0_200 = arith.constant 0 : index
    %c0_201 = arith.constant 0 : index
    %c5_202 = arith.constant 5 : index
    %c0_203 = arith.constant 0 : index
    %283 = vector.load %arg4[%c0_200, %c0_201, %c5_202, %c0_203] : memref<1x16x8x128xbf16, #tpu.memory_space<vmem>>, vector<1x16x1x128xbf16>
    %284 = vector.shape_cast %283 : vector<1x16x1x128xbf16> to vector<16x128xbf16>
    %285 = arith.truncf %190 : vector<16x128xf32> to vector<16x128xbf16>
    %286 = tpu.concatenate %284, %285 in 0 : vector<16x128xbf16>, vector<16x128xbf16> -> vector<32x128xbf16>
    %c0_204 = arith.constant 0 : index
    %c0_205 = arith.constant 0 : index
    %287 = vector.load %arg12[%c0_204, %c0_205] : memref<32x32xbf16, #tpu.memory_space<vmem>>, vector<32x32xbf16>
    %cst_206 = arith.constant dense<0.000000e+00> : vector<32x128xf32>
    %288 = tpu.matmul %287, %286, %cst_206 {dimension_numbers = #tpu.dot_dimension_numbers<[1], [0], [0], [1], [0, 0, 1, 1], [], []>} : vector<32x32xbf16>, vector<32x128xbf16>, vector<32x128xf32> -> vector<32x128xf32>
    %c0_207 = arith.constant 0 : index
    %c0_208 = arith.constant 0 : index
    %c6_209 = arith.constant 6 : index
    %c0_210 = arith.constant 0 : index
    %289 = vector.load %arg4[%c0_207, %c0_208, %c6_209, %c0_210] : memref<1x16x8x128xbf16, #tpu.memory_space<vmem>>, vector<1x16x1x128xbf16>
    %290 = vector.shape_cast %289 : vector<1x16x1x128xbf16> to vector<16x128xbf16>
    %291 = arith.truncf %221 : vector<16x128xf32> to vector<16x128xbf16>
    %292 = tpu.concatenate %290, %291 in 0 : vector<16x128xbf16>, vector<16x128xbf16> -> vector<32x128xbf16>
    %c0_211 = arith.constant 0 : index
    %c0_212 = arith.constant 0 : index
    %293 = vector.load %arg12[%c0_211, %c0_212] : memref<32x32xbf16, #tpu.memory_space<vmem>>, vector<32x32xbf16>
    %cst_213 = arith.constant dense<0.000000e+00> : vector<32x128xf32>
    %294 = tpu.matmul %293, %292, %cst_213 {dimension_numbers = #tpu.dot_dimension_numbers<[1], [0], [0], [1], [0, 0, 1, 1], [], []>} : vector<32x32xbf16>, vector<32x128xbf16>, vector<32x128xf32> -> vector<32x128xf32>
    %c0_214 = arith.constant 0 : index
    %c0_215 = arith.constant 0 : index
    %c7_216 = arith.constant 7 : index
    %c0_217 = arith.constant 0 : index
    %295 = vector.load %arg4[%c0_214, %c0_215, %c7_216, %c0_217] : memref<1x16x8x128xbf16, #tpu.memory_space<vmem>>, vector<1x16x1x128xbf16>
    %296 = vector.shape_cast %295 : vector<1x16x1x128xbf16> to vector<16x128xbf16>
    %297 = arith.truncf %252 : vector<16x128xf32> to vector<16x128xbf16>
    %298 = tpu.concatenate %296, %297 in 0 : vector<16x128xbf16>, vector<16x128xbf16> -> vector<32x128xbf16>
    %c0_218 = arith.constant 0 : index
    %c0_219 = arith.constant 0 : index
    %299 = vector.load %arg12[%c0_218, %c0_219] : memref<32x32xbf16, #tpu.memory_space<vmem>>, vector<32x32xbf16>
    %cst_220 = arith.constant dense<0.000000e+00> : vector<32x128xf32>
    %300 = tpu.matmul %299, %298, %cst_220 {dimension_numbers = #tpu.dot_dimension_numbers<[1], [0], [0], [1], [0, 0, 1, 1], [], []>} : vector<32x32xbf16>, vector<32x128xbf16>, vector<32x128xf32> -> vector<32x128xf32>
    %301 = arith.maximumf %258, %264 : vector<32x128xf32>
    %302 = arith.maximumf %301, %270 : vector<32x128xf32>
    %303 = arith.maximumf %302, %276 : vector<32x128xf32>
    %304 = arith.maximumf %303, %282 : vector<32x128xf32>
    %305 = arith.maximumf %304, %288 : vector<32x128xf32>
    %306 = arith.maximumf %305, %294 : vector<32x128xf32>
    %307 = arith.maximumf %306, %300 : vector<32x128xf32>
    %308 = arith.subf %258, %307 : vector<32x128xf32>
    %309 = math.exp %308 : vector<32x128xf32>
    %310 = arith.subf %264, %307 : vector<32x128xf32>
    %311 = math.exp %310 : vector<32x128xf32>
    %312 = arith.subf %270, %307 : vector<32x128xf32>
    %313 = math.exp %312 : vector<32x128xf32>
    %314 = arith.subf %276, %307 : vector<32x128xf32>
    %315 = math.exp %314 : vector<32x128xf32>
    %316 = arith.subf %282, %307 : vector<32x128xf32>
    %317 = math.exp %316 : vector<32x128xf32>
    %318 = arith.subf %288, %307 : vector<32x128xf32>
    %319 = math.exp %318 : vector<32x128xf32>
    %320 = arith.subf %294, %307 : vector<32x128xf32>
    %321 = math.exp %320 : vector<32x128xf32>
    %322 = arith.subf %300, %307 : vector<32x128xf32>
    %323 = math.exp %322 : vector<32x128xf32>
    %324 = arith.addf %309, %311 : vector<32x128xf32>
    %325 = arith.addf %324, %313 : vector<32x128xf32>
    %326 = arith.addf %325, %315 : vector<32x128xf32>
    %327 = arith.addf %326, %317 : vector<32x128xf32>
    %328 = arith.addf %327, %319 : vector<32x128xf32>
    %329 = arith.addf %328, %321 : vector<32x128xf32>
    %330 = arith.addf %329, %323 : vector<32x128xf32>
    %331 = tpu.reciprocal %330 {approx = true} : vector<32x128xf32> -> vector<32x128xf32>
    %cst_221 = arith.constant 0.000000e+00 : f32
    %332 = vector.broadcast %cst_221 : f32 to vector<16x128xf32>
    %cst_222 = arith.constant 0.000000e+00 : f32
    %333 = vector.broadcast %cst_222 : f32 to vector<16x128xf32>
    %334 = arith.mulf %309, %331 : vector<32x128xf32>
    %c0_223 = arith.constant 0 : index
    %c0_224 = arith.constant 0 : index
    %c0_225 = arith.constant 0 : index
    %c0_226 = arith.constant 0 : index
    %335 = vector.load %arg4[%c0_223, %c0_224, %c0_225, %c0_226] : memref<1x16x8x128xbf16, #tpu.memory_space<vmem>>, vector<1x16x1x128xbf16>
    %336 = vector.shape_cast %335 : vector<1x16x1x128xbf16> to vector<16x128xbf16>
    %337 = arith.extf %336 : vector<16x128xbf16> to vector<16x128xf32>
    %338 = vector.extract_strided_slice %334 {offsets = [0, 0], sizes = [16, 128], strides = [1, 1]} : vector<32x128xf32> to vector<16x128xf32>
    %339 = arith.mulf %337, %338 : vector<16x128xf32>
    %340 = arith.addf %332, %339 : vector<16x128xf32>
    %341 = vector.extract_strided_slice %334 {offsets = [16, 0], sizes = [16, 128], strides = [1, 1]} : vector<32x128xf32> to vector<16x128xf32>
    %342 = arith.mulf %35, %341 : vector<16x128xf32>
    %343 = arith.addf %333, %342 : vector<16x128xf32>
    %344 = arith.mulf %311, %331 : vector<32x128xf32>
    %c0_227 = arith.constant 0 : index
    %c0_228 = arith.constant 0 : index
    %c1_229 = arith.constant 1 : index
    %c0_230 = arith.constant 0 : index
    %345 = vector.load %arg4[%c0_227, %c0_228, %c1_229, %c0_230] : memref<1x16x8x128xbf16, #tpu.memory_space<vmem>>, vector<1x16x1x128xbf16>
    %346 = vector.shape_cast %345 : vector<1x16x1x128xbf16> to vector<16x128xbf16>
    %347 = arith.extf %346 : vector<16x128xbf16> to vector<16x128xf32>
    %348 = vector.extract_strided_slice %344 {offsets = [0, 0], sizes = [16, 128], strides = [1, 1]} : vector<32x128xf32> to vector<16x128xf32>
    %349 = arith.mulf %347, %348 : vector<16x128xf32>
    %350 = arith.addf %340, %349 : vector<16x128xf32>
    %351 = vector.extract_strided_slice %344 {offsets = [16, 0], sizes = [16, 128], strides = [1, 1]} : vector<32x128xf32> to vector<16x128xf32>
    %352 = arith.mulf %66, %351 : vector<16x128xf32>
    %353 = arith.addf %343, %352 : vector<16x128xf32>
    %354 = arith.mulf %313, %331 : vector<32x128xf32>
    %c0_231 = arith.constant 0 : index
    %c0_232 = arith.constant 0 : index
    %c2_233 = arith.constant 2 : index
    %c0_234 = arith.constant 0 : index
    %355 = vector.load %arg4[%c0_231, %c0_232, %c2_233, %c0_234] : memref<1x16x8x128xbf16, #tpu.memory_space<vmem>>, vector<1x16x1x128xbf16>
    %356 = vector.shape_cast %355 : vector<1x16x1x128xbf16> to vector<16x128xbf16>
    %357 = arith.extf %356 : vector<16x128xbf16> to vector<16x128xf32>
    %358 = vector.extract_strided_slice %354 {offsets = [0, 0], sizes = [16, 128], strides = [1, 1]} : vector<32x128xf32> to vector<16x128xf32>
    %359 = arith.mulf %357, %358 : vector<16x128xf32>
    %360 = arith.addf %350, %359 : vector<16x128xf32>
    %361 = vector.extract_strided_slice %354 {offsets = [16, 0], sizes = [16, 128], strides = [1, 1]} : vector<32x128xf32> to vector<16x128xf32>
    %362 = arith.mulf %97, %361 : vector<16x128xf32>
    %363 = arith.addf %353, %362 : vector<16x128xf32>
    %364 = arith.mulf %315, %331 : vector<32x128xf32>
    %c0_235 = arith.constant 0 : index
    %c0_236 = arith.constant 0 : index
    %c3_237 = arith.constant 3 : index
    %c0_238 = arith.constant 0 : index
    %365 = vector.load %arg4[%c0_235, %c0_236, %c3_237, %c0_238] : memref<1x16x8x128xbf16, #tpu.memory_space<vmem>>, vector<1x16x1x128xbf16>
    %366 = vector.shape_cast %365 : vector<1x16x1x128xbf16> to vector<16x128xbf16>
    %367 = arith.extf %366 : vector<16x128xbf16> to vector<16x128xf32>
    %368 = vector.extract_strided_slice %364 {offsets = [0, 0], sizes = [16, 128], strides = [1, 1]} : vector<32x128xf32> to vector<16x128xf32>
    %369 = arith.mulf %367, %368 : vector<16x128xf32>
    %370 = arith.addf %360, %369 : vector<16x128xf32>
    %371 = vector.extract_strided_slice %364 {offsets = [16, 0], sizes = [16, 128], strides = [1, 1]} : vector<32x128xf32> to vector<16x128xf32>
    %372 = arith.mulf %128, %371 : vector<16x128xf32>
    %373 = arith.addf %363, %372 : vector<16x128xf32>
    %374 = arith.mulf %317, %331 : vector<32x128xf32>
    %c0_239 = arith.constant 0 : index
    %c0_240 = arith.constant 0 : index
    %c4_241 = arith.constant 4 : index
    %c0_242 = arith.constant 0 : index
    %375 = vector.load %arg4[%c0_239, %c0_240, %c4_241, %c0_242] : memref<1x16x8x128xbf16, #tpu.memory_space<vmem>>, vector<1x16x1x128xbf16>
    %376 = vector.shape_cast %375 : vector<1x16x1x128xbf16> to vector<16x128xbf16>
    %377 = arith.extf %376 : vector<16x128xbf16> to vector<16x128xf32>
    %378 = vector.extract_strided_slice %374 {offsets = [0, 0], sizes = [16, 128], strides = [1, 1]} : vector<32x128xf32> to vector<16x128xf32>
    %379 = arith.mulf %377, %378 : vector<16x128xf32>
    %380 = arith.addf %370, %379 : vector<16x128xf32>
    %381 = vector.extract_strided_slice %374 {offsets = [16, 0], sizes = [16, 128], strides = [1, 1]} : vector<32x128xf32> to vector<16x128xf32>
    %382 = arith.mulf %159, %381 : vector<16x128xf32>
    %383 = arith.addf %373, %382 : vector<16x128xf32>
    %384 = arith.mulf %319, %331 : vector<32x128xf32>
    %c0_243 = arith.constant 0 : index
    %c0_244 = arith.constant 0 : index
    %c5_245 = arith.constant 5 : index
    %c0_246 = arith.constant 0 : index
    %385 = vector.load %arg4[%c0_243, %c0_244, %c5_245, %c0_246] : memref<1x16x8x128xbf16, #tpu.memory_space<vmem>>, vector<1x16x1x128xbf16>
    %386 = vector.shape_cast %385 : vector<1x16x1x128xbf16> to vector<16x128xbf16>
    %387 = arith.extf %386 : vector<16x128xbf16> to vector<16x128xf32>
    %388 = vector.extract_strided_slice %384 {offsets = [0, 0], sizes = [16, 128], strides = [1, 1]} : vector<32x128xf32> to vector<16x128xf32>
    %389 = arith.mulf %387, %388 : vector<16x128xf32>
    %390 = arith.addf %380, %389 : vector<16x128xf32>
    %391 = vector.extract_strided_slice %384 {offsets = [16, 0], sizes = [16, 128], strides = [1, 1]} : vector<32x128xf32> to vector<16x128xf32>
    %392 = arith.mulf %190, %391 : vector<16x128xf32>
    %393 = arith.addf %383, %392 : vector<16x128xf32>
    %394 = arith.mulf %321, %331 : vector<32x128xf32>
    %c0_247 = arith.constant 0 : index
    %c0_248 = arith.constant 0 : index
    %c6_249 = arith.constant 6 : index
    %c0_250 = arith.constant 0 : index
    %395 = vector.load %arg4[%c0_247, %c0_248, %c6_249, %c0_250] : memref<1x16x8x128xbf16, #tpu.memory_space<vmem>>, vector<1x16x1x128xbf16>
    %396 = vector.shape_cast %395 : vector<1x16x1x128xbf16> to vector<16x128xbf16>
    %397 = arith.extf %396 : vector<16x128xbf16> to vector<16x128xf32>
    %398 = vector.extract_strided_slice %394 {offsets = [0, 0], sizes = [16, 128], strides = [1, 1]} : vector<32x128xf32> to vector<16x128xf32>
    %399 = arith.mulf %397, %398 : vector<16x128xf32>
    %400 = arith.addf %390, %399 : vector<16x128xf32>
    %401 = vector.extract_strided_slice %394 {offsets = [16, 0], sizes = [16, 128], strides = [1, 1]} : vector<32x128xf32> to vector<16x128xf32>
    %402 = arith.mulf %221, %401 : vector<16x128xf32>
    %403 = arith.addf %393, %402 : vector<16x128xf32>
    %404 = arith.mulf %323, %331 : vector<32x128xf32>
    %c0_251 = arith.constant 0 : index
    %c0_252 = arith.constant 0 : index
    %c7_253 = arith.constant 7 : index
    %c0_254 = arith.constant 0 : index
    %405 = vector.load %arg4[%c0_251, %c0_252, %c7_253, %c0_254] : memref<1x16x8x128xbf16, #tpu.memory_space<vmem>>, vector<1x16x1x128xbf16>
    %406 = vector.shape_cast %405 : vector<1x16x1x128xbf16> to vector<16x128xbf16>
    %407 = arith.extf %406 : vector<16x128xbf16> to vector<16x128xf32>
    %408 = vector.extract_strided_slice %404 {offsets = [0, 0], sizes = [16, 128], strides = [1, 1]} : vector<32x128xf32> to vector<16x128xf32>
    %409 = arith.mulf %407, %408 : vector<16x128xf32>
    %410 = arith.addf %400, %409 : vector<16x128xf32>
    %411 = vector.extract_strided_slice %404 {offsets = [16, 0], sizes = [16, 128], strides = [1, 1]} : vector<32x128xf32> to vector<16x128xf32>
    %412 = arith.mulf %252, %411 : vector<16x128xf32>
    %413 = arith.addf %403, %412 : vector<16x128xf32>
    %414 = tpu.concatenate %410, %413 in 0 : vector<16x128xf32>, vector<16x128xf32> -> vector<32x128xf32>
    %415 = arith.truncf %414 : vector<32x128xf32> to vector<32x128xbf16>
    %c0_255 = arith.constant 0 : index
    %c0_256 = arith.constant 0 : index
    %416 = vector.load %arg13[%c0_255, %c0_256] : memref<32x32xbf16, #tpu.memory_space<vmem>>, vector<32x32xbf16>
    %cst_257 = arith.constant dense<0.000000e+00> : vector<32x128xf32>
    %417 = tpu.matmul %416, %415, %cst_257 {dimension_numbers = #tpu.dot_dimension_numbers<[1], [0], [0], [1], [0, 0, 1, 1], [], []>} : vector<32x32xbf16>, vector<32x128xbf16>, vector<32x128xf32> -> vector<32x128xf32>
    %c0_258 = arith.constant 0 : index
    %c0_259 = arith.constant 0 : index
    %418 = vector.load %arg14[%c0_258, %c0_259] : memref<32x1xf32, #tpu.memory_space<vmem>>, vector<32x1xf32>
    %419 = vector.broadcast %418 : vector<32x1xf32> to vector<32x128xf32>
    %420 = arith.mulf %417, %419 : vector<32x128xf32>
    %c0_260 = arith.constant 0 : index
    %c0_261 = arith.constant 0 : index
    %421 = vector.load %arg15[%c0_260, %c0_261] : memref<32x1xf32, #tpu.memory_space<vmem>>, vector<32x1xf32>
    %422 = vector.broadcast %421 : vector<32x1xf32> to vector<32x128xf32>
    %423 = arith.addf %420, %422 : vector<32x128xf32>
    %cst_262 = arith.constant 0.000000e+00 : f32
    %424 = vector.broadcast %cst_262 : f32 to vector<32x128xf32>
    %425 = arith.maximumf %423, %424 : vector<32x128xf32>
    %c0_263 = arith.constant 0 : index
    %c0_264 = arith.constant 0 : index
    %c0_265 = arith.constant 0 : index
    %426 = vector.load %arg16[%c0_263, %c0_264, %c0_265] : memref<1x32x128xf32, #tpu.memory_space<vmem>>, vector<1x32x128xf32>
    %427 = vector.shape_cast %426 : vector<1x32x128xf32> to vector<32x128xf32>
    %428 = vector.shape_cast %425 : vector<32x128xf32> to vector<1x32x128xf32>
    tpu.vector_store %arg16[%c0_263, %c0_264, %c0_265], %428 {strides = array<i32>} : memref<1x32x128xf32, #tpu.memory_space<vmem>>, vector<1x32x128xf32>,
    return
  }
  func.func @transform_0(%arg0: i32, %arg1: i32) -> (i32, i32, i32) {
    %c0_i32 = arith.constant 0 : i32
    %c0_i32_0 = arith.constant 0 : i32
    return %arg0, %c0_i32, %arg1 : i32, i32, i32
  }
  func.func @transform_1(%arg0: i32, %arg1: i32) -> (i32, i32, i32, i32) {
    %c0_i32 = arith.constant 0 : i32
    %c0_i32_0 = arith.constant 0 : i32
    %c0_i32_1 = arith.constant 0 : i32
    return %arg0, %c0_i32, %c0_i32_0, %arg1 : i32, i32, i32, i32
  }
  func.func @transform_2(%arg0: i32, %arg1: i32) -> (i32, i32, i32, i32) {
    %c0_i32 = arith.constant 0 : i32
    %c0_i32_0 = arith.constant 0 : i32
    %c0_i32_1 = arith.constant 0 : i32
    return %arg0, %c0_i32, %c0_i32_0, %arg1 : i32, i32, i32, i32
  }
  func.func @transform_3(%arg0: i32, %arg1: i32) -> (i32, i32) {
    %c0_i32 = arith.constant 0 : i32
    %c0_i32_0 = arith.constant 0 : i32
    %c0_i32_1 = arith.constant 0 : i32
    return %c0_i32, %c0_i32_0 : i32, i32
  }
  func.func @transform_4(%arg0: i32, %arg1: i32) -> (i32, i32) {
    %c0_i32 = arith.constant 0 : i32
    %c0_i32_0 = arith.constant 0 : i32
    %c0_i32_1 = arith.constant 0 : i32
    return %c0_i32, %c0_i32_0 : i32, i32
  }
  func.func @transform_5(%arg0: i32, %arg1: i32) -> (i32, i32) {
    %c0_i32 = arith.constant 0 : i32
    %c0_i32_0 = arith.constant 0 : i32
    %c0_i32_1 = arith.constant 0 : i32
    return %c0_i32, %c0_i32_0 : i32, i32
  }
  func.func @transform_6(%arg0: i32, %arg1: i32) -> (i32, i32) {
    %c0_i32 = arith.constant 0 : i32
    %c0_i32_0 = arith.constant 0 : i32
    %c0_i32_1 = arith.constant 0 : i32
    return %c0_i32, %c0_i32_0 : i32, i32
  }
  func.func @transform_7(%arg0: i32, %arg1: i32) -> (i32, i32) {
    %c0_i32 = arith.constant 0 : i32
    %c0_i32_0 = arith.constant 0 : i32
    %c0_i32_1 = arith.constant 0 : i32
    return %c0_i32, %c0_i32_0 : i32, i32
  }
  func.func @transform_8(%arg0: i32, %arg1: i32) -> (i32, i32) {
    %c0_i32 = arith.constant 0 : i32
    %c0_i32_0 = arith.constant 0 : i32
    %c0_i32_1 = arith.constant 0 : i32
    return %c0_i32, %c0_i32_0 : i32, i32
  }
  func.func @transform_9(%arg0: i32, %arg1: i32) -> (i32, i32) {
    %c0_i32 = arith.constant 0 : i32
    %c0_i32_0 = arith.constant 0 : i32
    %c0_i32_1 = arith.constant 0 : i32
    return %c0_i32, %c0_i32_0 : i32, i32
  }
  func.func @transform_10(%arg0: i32, %arg1: i32) -> (i32, i32) {
    %c0_i32 = arith.constant 0 : i32
    %c0_i32_0 = arith.constant 0 : i32
    %c0_i32_1 = arith.constant 0 : i32
    return %c0_i32, %c0_i32_0 : i32, i32
  }
  func.func @transform_11(%arg0: i32, %arg1: i32) -> (i32, i32) {
    %c0_i32 = arith.constant 0 : i32
    %c0_i32_0 = arith.constant 0 : i32
    %c0_i32_1 = arith.constant 0 : i32
    return %c0_i32, %c0_i32_0 : i32, i32
  }
  func.func @transform_12(%arg0: i32, %arg1: i32) -> (i32, i32) {
    %c0_i32 = arith.constant 0 : i32
    %c0_i32_0 = arith.constant 0 : i32
    %c0_i32_1 = arith.constant 0 : i32
    return %c0_i32, %c0_i32_0 : i32, i32
  }
  func.func @transform_13(%arg0: i32, %arg1: i32) -> (i32, i32) {
    %c0_i32 = arith.constant 0 : i32
    %c0_i32_0 = arith.constant 0 : i32
    %c0_i32_1 = arith.constant 0 : i32
    return %c0_i32, %c0_i32_0 : i32, i32
  }
  func.func @transform_14(%arg0: i32, %arg1: i32) -> (i32, i32, i32) {
    %c0_i32 = arith.constant 0 : i32
    %c0_i32_0 = arith.constant 0 : i32
    return %arg0, %c0_i32, %arg1 : i32, i32, i32
  }
}

</mosaic_0001>

<llo_original>
// kernel: building_block_forward.2
$region0: #{building_block_forward.2}
  #allocation0 [shape = 'u32[]', space=smem, size = 0x4, offset = 0x4, fixed_abs, tag = 'smem constant byte address 0x4 - core index']
  #allocation1 [shape = 'u32[144,128]{1,0:T(1,128)}', space=vmem, size = 0x12000, scoped, tag = 'internal scratch']
  %s0 = inlined_call_operand.vmem [shape: f32[2,3,128], index: 0, kind: input, shape index: {}]
  %s1 = inlined_call_operand.vmem [shape: f32[2,3,8,128], index: 1, kind: input, shape index: {}]
  %s2 = inlined_call_operand.vmem [shape: bf16[2,16,8,128], index: 2, kind: input, shape index: {}]
  %s3 = inlined_call_operand.vmem [shape: bf16[16,7], index: 3, kind: input, shape index: {}]
  %s4 = inlined_call_operand.vmem [shape: bf16[16,3], index: 4, kind: input, shape index: {}]
  %s5 = inlined_call_operand.vmem [shape: f32[16,1], index: 5, kind: input, shape index: {}]
  %s6 = inlined_call_operand.vmem [shape: f32[16,1], index: 6, kind: input, shape index: {}]
  %s7 = inlined_call_operand.vmem [shape: bf16[32,32], index: 7, kind: input, shape index: {}]
  %s8 = inlined_call_operand.vmem [shape: bf16[16,32], index: 8, kind: input, shape index: {}]
  %s9 = inlined_call_operand.vmem [shape: f32[16,1], index: 9, kind: input, shape index: {}]
  %s10 = inlined_call_operand.vmem [shape: f32[16,1], index: 10, kind: input, shape index: {}]
  %s11 = inlined_call_operand.vmem [shape: bf16[2,16,128], index: 11, kind: output, shape index: {}]
  %s12 = sld [smem:[#allocation0]]
  $region77: #{building_block_forward.2} parent=0
    _
  %s14 = ssub.s32 1, %s12
  %s15 = scalar_select 0, %s14, %s12
  loop: start=0, step=1, limit=4
  $region2: #{building_block_forward.2} parent=0 // loop_pre_header
    _
  $region3: #{building_block_forward.2} parent=0 // loop_header
    %s17 = sphi 0, %s21
    %p18 = scmp.ge.s32.totalorder %s17, 4
    %s24 = sphi 0, %s36
    %s25 = sphi 0, %s32
    %s26 = sphi 0, %s24
    %s27 = sphi 0, %s25
    %s28 = sphi 0, %s26
    %s29 = sphi 0, %s27
    %s41 = sphi 0, %s43
    %s44 = sphi 0, %s41
    %s45 = sphi 0, %s44
    %s61 = sphi 0, %s45
    %s69 = sphi 0, %s71
    %s72 = sphi 0, %s69
    %s73 = sphi 0, %s72
    %s89 = sphi 0, %s73
    %s97 = sphi 0, %s99
    %s100 = sphi 0, %s97
    %s101 = sphi 0, %s100
    %s117 = sphi 0, %s101
    %s121 = sphi 0, %s121
    %s123 = sphi 0, %s121
    %s124 = sphi 0, %s123
    %s138 = sphi 0, %s124
    %s142 = sphi 0, %s142
    %s144 = sphi 0, %s142
    %s145 = sphi 0, %s144
    %s159 = sphi 0, %s145
    %s163 = sphi 0, %s163
    %s165 = sphi 0, %s163
    %s166 = sphi 0, %s165
    %s180 = sphi 0, %s166
    %s184 = sphi 0, %s184
    %s186 = sphi 0, %s184
    %s187 = sphi 0, %s186
    %s201 = sphi 0, %s187
    %s205 = sphi 0, %s205
    %s207 = sphi 0, %s205
    %s208 = sphi 0, %s207
    %s222 = sphi 0, %s208
    %s226 = sphi 0, %s226
    %s228 = sphi 0, %s226
    %s229 = sphi 0, %s228
    %s243 = sphi 0, %s229
    %s247 = sphi 0, %s247
    %s249 = sphi 0, %s247
    %s250 = sphi 0, %s249
    %s264 = sphi 0, %s250
    %s268 = sphi 0, %s268
    %s270 = sphi 0, %s268
    %s271 = sphi 0, %s270
    %s285 = sphi 0, %s271
    %s293 = sphi 0, %s295
    %s296 = sphi 0, %s293
    %s297 = sphi 0, %s296
    %s313 = sphi 0, %s297
  $region4: #{building_block_forward.2} parent=0 // loop_header_branch
    %20 = sbr.rel (%p18) target = $region8
  $region5: #{building_block_forward.2} parent=0 // loop_body
    %s22 = ssub.s32 %s17, 1
    %s23 = ssub.s32 %s17, 2
    %s30 = sadd.s32 1, %s25
    %p31 = scmp.ge.s32.totalorder %s30, 1
    %s32 = scalar_select %p31, 0, %s30
    %s33 = sadd.s32 1, %s24
    %s34 = scalar_select %p31, %s33, %s24
    %p35 = scmp.ge.s32.totalorder %s34, 2
    %s36 = scalar_select %p35, 0, %s34
    %s37 = ssub.s32 %s24, %s36
    %s38 = ssub.s32 %s25, %s32
    %s39 = sor.u32 %s37, %s38
    %p40 = scmp.eq.s32.totalorder %s39, 0
    %s42 = sadd.s32 %s41, 1
    %s43 = scalar_select %p40, %s41, %s42
    %p46 = pneg %p40
    %p47 = scmp.eq.s32.totalorder %s17, 1
    %p48 = por %p46, %p47
    %p49 = scmp.ne.s32.totalorder %s41, %s44
    %p50 = scmp.eq.s32.totalorder %s17, 0
    %p51 = por %p49, %p50
    %p52 = scmp.ne.s32.totalorder %s41, %s44
    %p53 = scmp.eq.s32.totalorder %s22, 1
    %p54 = por %p52, %p53
    %p55 = scmp.ne.s32.totalorder %s44, %s45
    %p56 = scmp.eq.s32.totalorder %s22, 0
    %p57 = por %p55, %p56
    %p58 = scmp.ne.s32.totalorder %s44, %s45
    %p59 = scmp.eq.s32.totalorder %s23, 1
    %p60 = por %p58, %p59
    %p62 = scmp.ne.s32.totalorder %s45, %s61
    %p63 = scmp.eq.s32.totalorder %s23, 0
    %p64 = por %p62, %p63
    %s65 = ssub.s32 %s24, %s36
    %s66 = ssub.s32 %s25, %s32
    %s67 = sor.u32 %s65, %s66
    %p68 = scmp.eq.s32.totalorder %s67, 0
    %s70 = sadd.s32 %s69, 1
    %s71 = scalar_select %p68, %s69, %s70
    %p74 = pneg %p68
    %p75 = scmp.eq.s32.totalorder %s17, 1
    %p76 = por %p74, %p75
    %p77 = scmp.ne.s32.totalorder %s69, %s72
    %p78 = scmp.eq.s32.totalorder %s17, 0
    %p79 = por %p77, %p78
    %p80 = scmp.ne.s32.totalorder %s69, %s72
    %p81 = scmp.eq.s32.totalorder %s22, 1
    %p82 = por %p80, %p81
    %p83 = scmp.ne.s32.totalorder %s72, %s73
    %p84 = scmp.eq.s32.totalorder %s22, 0
    %p85 = por %p83, %p84
    %p86 = scmp.ne.s32.totalorder %s72, %s73
    %p87 = scmp.eq.s32.totalorder %s23, 1
    %p88 = por %p86, %p87
    %p90 = scmp.ne.s32.totalorder %s73, %s89
    %p91 = scmp.eq.s32.totalorder %s23, 0
    %p92 = por %p90, %p91
    %s93 = ssub.s32 %s24, %s36
    %s94 = ssub.s32 %s25, %s32
    %s95 = sor.u32 %s93, %s94
    %p96 = scmp.eq.s32.totalorder %s95, 0
    %s98 = sadd.s32 %s97, 1
    %s99 = scalar_select %p96, %s97, %s98
    %p102 = pneg %p96
    %p103 = scmp.eq.s32.totalorder %s17, 1
    %p104 = por %p102, %p103
    %p105 = scmp.ne.s32.totalorder %s97, %s100
    %p106 = scmp.eq.s32.totalorder %s17, 0
    %p107 = por %p105, %p106
    %p108 = scmp.ne.s32.totalorder %s97, %s100
    %p109 = scmp.eq.s32.totalorder %s22, 1
    %p110 = por %p108, %p109
    %p111 = scmp.ne.s32.totalorder %s100, %s101
    %p112 = scmp.eq.s32.totalorder %s22, 0
    %p113 = por %p111, %p112
    %p114 = scmp.ne.s32.totalorder %s100, %s101
    %p115 = scmp.eq.s32.totalorder %s23, 1
    %p116 = por %p114, %p115
    %p118 = scmp.ne.s32.totalorder %s101, %s117
    %p119 = scmp.eq.s32.totalorder %s23, 0
    %p120 = por %p118, %p119
    %s122 = sadd.s32 %s121, 1
    %p125 = scmp.eq.s32.totalorder %s17, 1
    %p126 = scmp.ne.s32.totalorder %s121, %s123
    %p127 = scmp.eq.s32.totalorder %s17, 0
    %p128 = por %p126, %p127
    %p129 = scmp.ne.s32.totalorder %s121, %s123
    %p130 = scmp.eq.s32.totalorder %s22, 1
    %p131 = por %p129, %p130
    %p132 = scmp.ne.s32.totalorder %s123, %s124
    %p133 = scmp.eq.s32.totalorder %s22, 0
    %p134 = por %p132, %p133
    %p135 = scmp.ne.s32.totalorder %s123, %s124
    %p136 = scmp.eq.s32.totalorder %s23, 1
    %p137 = por %p135, %p136
    %p139 = scmp.ne.s32.totalorder %s124, %s138
    %p140 = scmp.eq.s32.totalorder %s23, 0
    %p141 = por %p139, %p140
    %s143 = sadd.s32 %s142, 1
    %p146 = scmp.eq.s32.totalorder %s17, 1
    %p147 = scmp.ne.s32.totalorder %s142, %s144
    %p148 = scmp.eq.s32.totalorder %s17, 0
    %p149 = por %p147, %p148
    %p150 = scmp.ne.s32.totalorder %s142, %s144
    %p151 = scmp.eq.s32.totalorder %s22, 1
    %p152 = por %p150, %p151
    %p153 = scmp.ne.s32.totalorder %s144, %s145
    %p154 = scmp.eq.s32.totalorder %s22, 0
    %p155 = por %p153, %p154
    %p156 = scmp.ne.s32.totalorder %s144, %s145
    %p157 = scmp.eq.s32.totalorder %s23, 1
    %p158 = por %p156, %p157
    %p160 = scmp.ne.s32.totalorder %s145, %s159
    %p161 = scmp.eq.s32.totalorder %s23, 0
    %p162 = por %p160, %p161
    %s164 = sadd.s32 %s163, 1
    %p167 = scmp.eq.s32.totalorder %s17, 1
    %p168 = scmp.ne.s32.totalorder %s163, %s165
    %p169 = scmp.eq.s32.totalorder %s17, 0
    %p170 = por %p168, %p169
    %p171 = scmp.ne.s32.totalorder %s163, %s165
    %p172 = scmp.eq.s32.totalorder %s22, 1
    %p173 = por %p171, %p172
    %p174 = scmp.ne.s32.totalorder %s165, %s166
    %p175 = scmp.eq.s32.totalorder %s22, 0
    %p176 = por %p174, %p175
    %p177 = scmp.ne.s32.totalorder %s165, %s166
    %p178 = scmp.eq.s32.totalorder %s23, 1
    %p179 = por %p177, %p178
    %p181 = scmp.ne.s32.totalorder %s166, %s180
    %p182 = scmp.eq.s32.totalorder %s23, 0
    %p183 = por %p181, %p182
    %s185 = sadd.s32 %s184, 1
    %p188 = scmp.eq.s32.totalorder %s17, 1
    %p189 = scmp.ne.s32.totalorder %s184, %s186
    %p190 = scmp.eq.s32.totalorder %s17, 0
    %p191 = por %p189, %p190
    %p192 = scmp.ne.s32.totalorder %s184, %s186
    %p193 = scmp.eq.s32.totalorder %s22, 1
    %p194 = por %p192, %p193
    %p195 = scmp.ne.s32.totalorder %s186, %s187
    %p196 = scmp.eq.s32.totalorder %s22, 0
    %p197 = por %p195, %p196
    %p198 = scmp.ne.s32.totalorder %s186, %s187
    %p199 = scmp.eq.s32.totalorder %s23, 1
    %p200 = por %p198, %p199
    %p202 = scmp.ne.s32.totalorder %s187, %s201
    %p203 = scmp.eq.s32.totalorder %s23, 0
    %p204 = por %p202, %p203
    %s206 = sadd.s32 %s205, 1
    %p209 = scmp.eq.s32.totalorder %s17, 1
    %p210 = scmp.ne.s32.totalorder %s205, %s207
    %p211 = scmp.eq.s32.totalorder %s17, 0
    %p212 = por %p210, %p211
    %p213 = scmp.ne.s32.totalorder %s205, %s207
    %p214 = scmp.eq.s32.totalorder %s22, 1
    %p215 = por %p213, %p214
    %p216 = scmp.ne.s32.totalorder %s207, %s208
    %p217 = scmp.eq.s32.totalorder %s22, 0
    %p218 = por %p216, %p217
    %p219 = scmp.ne.s32.totalorder %s207, %s208
    %p220 = scmp.eq.s32.totalorder %s23, 1
    %p221 = por %p219, %p220
    %p223 = scmp.ne.s32.totalorder %s208, %s222
    %p224 = scmp.eq.s32.totalorder %s23, 0
    %p225 = por %p223, %p224
    %s227 = sadd.s32 %s226, 1
    %p230 = scmp.eq.s32.totalorder %s17, 1
    %p231 = scmp.ne.s32.totalorder %s226, %s228
    %p232 = scmp.eq.s32.totalorder %s17, 0
    %p233 = por %p231, %p232
    %p234 = scmp.ne.s32.totalorder %s226, %s228
    %p235 = scmp.eq.s32.totalorder %s22, 1
    %p236 = por %p234, %p235
    %p237 = scmp.ne.s32.totalorder %s228, %s229
    %p238 = scmp.eq.s32.totalorder %s22, 0
    %p239 = por %p237, %p238
    %p240 = scmp.ne.s32.totalorder %s228, %s229
    %p241 = scmp.eq.s32.totalorder %s23, 1
    %p242 = por %p240, %p241
    %p244 = scmp.ne.s32.totalorder %s229, %s243
    %p245 = scmp.eq.s32.totalorder %s23, 0
    %p246 = por %p244, %p245
    %s248 = sadd.s32 %s247, 1
    %p251 = scmp.eq.s32.totalorder %s17, 1
    %p252 = scmp.ne.s32.totalorder %s247, %s249
    %p253 = scmp.eq.s32.totalorder %s17, 0
    %p254 = por %p252, %p253
    %p255 = scmp.ne.s32.totalorder %s247, %s249
    %p256 = scmp.eq.s32.totalorder %s22, 1
    %p257 = por %p255, %p256
    %p258 = scmp.ne.s32.totalorder %s249, %s250
    %p259 = scmp.eq.s32.totalorder %s22, 0
    %p260 = por %p258, %p259
    %p261 = scmp.ne.s32.totalorder %s249, %s250
    %p262 = scmp.eq.s32.totalorder %s23, 1
    %p263 = por %p261, %p262
    %p265 = scmp.ne.s32.totalorder %s250, %s264
    %p266 = scmp.eq.s32.totalorder %s23, 0
    %p267 = por %p265, %p266
    %s269 = sadd.s32 %s268, 1
    %p272 = scmp.eq.s32.totalorder %s17, 1
    %p273 = scmp.ne.s32.totalorder %s268, %s270
    %p274 = scmp.eq.s32.totalorder %s17, 0
    %p275 = por %p273, %p274
    %p276 = scmp.ne.s32.totalorder %s268, %s270
    %p277 = scmp.eq.s32.totalorder %s22, 1
    %p278 = por %p276, %p277
    %p279 = scmp.ne.s32.totalorder %s270, %s271
    %p280 = scmp.eq.s32.totalorder %s22, 0
    %p281 = por %p279, %p280
    %p282 = scmp.ne.s32.totalorder %s270, %s271
    %p283 = scmp.eq.s32.totalorder %s23, 1
    %p284 = por %p282, %p283
    %p286 = scmp.ne.s32.totalorder %s271, %s285
    %p287 = scmp.eq.s32.totalorder %s23, 0
    %p288 = por %p286, %p287
    %s289 = ssub.s32 %s24, %s36
    %s290 = ssub.s32 %s25, %s32
    %s291 = sor.u32 %s289, %s290
    %p292 = scmp.eq.s32.totalorder %s291, 0
    %s294 = sadd.s32 %s293, 1
    %s295 = scalar_select %p292, %s293, %s294
    %p298 = pneg %p292
    %p299 = scmp.eq.s32.totalorder %s17, 1
    %p300 = por %p298, %p299
    %p301 = scmp.ne.s32.totalorder %s293, %s296
    %p302 = scmp.eq.s32.totalorder %s17, 0
    %p303 = por %p301, %p302
    %p304 = scmp.ne.s32.totalorder %s293, %s296
    %p305 = scmp.eq.s32.totalorder %s22, 1
    %p306 = por %p304, %p305
    %p307 = scmp.ne.s32.totalorder %s296, %s297
    %p308 = scmp.eq.s32.totalorder %s22, 0
    %p309 = por %p307, %p308
    %p310 = scmp.ne.s32.totalorder %s296, %s297
    %p311 = scmp.eq.s32.totalorder %s23, 1
    %p312 = por %p310, %p311
    %p314 = scmp.ne.s32.totalorder %s297, %s313
    %p315 = scmp.eq.s32.totalorder %s23, 0
    %p316 = por %p314, %p315
    %p317 = scmp.le.s32.totalorder 1, %s17
    %p318 = scmp.lt.s32.totalorder %s17, 3
    %p319 = pnand %p317, %p318
    %p320 = pneg %p319
    // Predicated region
    $region9: #{building_block_forward.2} parent=5 // pred_check
      _
    $region10: #{building_block_forward.2} parent=5 // pred_check_branch
      %322 = sbr.rel (%p319) target = $region12
    $region11: #{building_block_forward.2} parent=5 // pred_region
      %s323 = ssub.s32 %s17, 1
      // Predicated region
      $region13: #{building_block_forward.2} parent=11 // pred_check
        %p324 = pneg %p134
      $region14: #{building_block_forward.2} parent=11 // pred_check_branch
        %326 = sbr.rel (%p324) target = $region16
      $region15: #{building_block_forward.2} parent=11 // pred_region
        _
      $region16: #{building_block_forward.2} parent=11 // pred_fallthru
        _
      // Predicated region
      $region17: #{building_block_forward.2} parent=11 // pred_check
        %p327 = pneg %p155
      $region18: #{building_block_forward.2} parent=11 // pred_check_branch
        %329 = sbr.rel (%p327) target = $region20
      $region19: #{building_block_forward.2} parent=11 // pred_region
        _
      $region20: #{building_block_forward.2} parent=11 // pred_fallthru
        _
      // Predicated region
      $region21: #{building_block_forward.2} parent=11 // pred_check
        %p330 = pneg %p176
      $region22: #{building_block_forward.2} parent=11 // pred_check_branch
        %332 = sbr.rel (%p330) target = $region24
      $region23: #{building_block_forward.2} parent=11 // pred_region
        _
      $region24: #{building_block_forward.2} parent=11 // pred_fallthru
        _
      // Predicated region
      $region25: #{building_block_forward.2} parent=11 // pred_check
        %p333 = pneg %p197
      $region26: #{building_block_forward.2} parent=11 // pred_check_branch
        %335 = sbr.rel (%p333) target = $region28
      $region27: #{building_block_forward.2} parent=11 // pred_region
        _
      $region28: #{building_block_forward.2} parent=11 // pred_fallthru
        _
      // Predicated region
      $region29: #{building_block_forward.2} parent=11 // pred_check
        %p336 = pneg %p218
      $region30: #{building_block_forward.2} parent=11 // pred_check_branch
        %338 = sbr.rel (%p336) target = $region32
      $region31: #{building_block_forward.2} parent=11 // pred_region
        _
      $region32: #{building_block_forward.2} parent=11 // pred_fallthru
        _
      // Predicated region
      $region33: #{building_block_forward.2} parent=11 // pred_check
        %p339 = pneg %p239
      $region34: #{building_block_forward.2} parent=11 // pred_check_branch
        %341 = sbr.rel (%p339) target = $region36
      $region35: #{building_block_forward.2} parent=11 // pred_region
        _
      $region36: #{building_block_forward.2} parent=11 // pred_fallthru
        _
      // Predicated region
      $region37: #{building_block_forward.2} parent=11 // pred_check
        %p342 = pneg %p260
      $region38: #{building_block_forward.2} parent=11 // pred_check_branch
        %344 = sbr.rel (%p342) target = $region40
      $region39: #{building_block_forward.2} parent=11 // pred_region
        _
      $region40: #{building_block_forward.2} parent=11 // pred_fallthru
        _
      // Predicated region
      $region41: #{building_block_forward.2} parent=11 // pred_check
        %p345 = pneg %p281
      $region42: #{building_block_forward.2} parent=11 // pred_check_branch
        %347 = sbr.rel (%p345) target = $region44
      $region43: #{building_block_forward.2} parent=11 // pred_region
        _
      $region44: #{building_block_forward.2} parent=11 // pred_fallthru
        _
    $region12: #{building_block_forward.2} parent=5 // pred_fallthru
      _
    %p348 = scmp.lt.s32.totalorder %s17, 2
    // Predicated region
    $region45: #{building_block_forward.2} parent=5 // pred_check
      %p349 = pneg %p348
    $region46: #{building_block_forward.2} parent=5 // pred_check_branch
      %351 = sbr.rel (%p349) target = $region48
    $region47: #{building_block_forward.2} parent=5 // pred_region
      // Predicated region
      $region49: #{building_block_forward.2} parent=47 // pred_check
        %p352 = pneg %p51
      $region50: #{building_block_forward.2} parent=47 // pred_check_branch
        %354 = sbr.rel (%p352) target = $region52
      $region51: #{building_block_forward.2} parent=47 // pred_region
        %p355 = scmp.lt.s32.totalorder %s24, 1
        %s356 = scalar_select %p355, %s24, 1
        %p357 = scmp.lt.s32.totalorder %s25, 0
        %s358 = scalar_select %p357, %s25, 0
        %s359 = sadd.s32 %s358, %s356
        %s360 = smul.addr %s359, 4
        %s361 = scalar_lea.vmem %s0, %s360
      $region52: #{building_block_forward.2} parent=47 // pred_fallthru
        _
      // Predicated region
      $region53: #{building_block_forward.2} parent=47 // pred_check
        %p362 = pneg %p79
      $region54: #{building_block_forward.2} parent=47 // pred_check_branch
        %364 = sbr.rel (%p362) target = $region56
      $region55: #{building_block_forward.2} parent=47 // pred_region
        %p365 = scmp.lt.s32.totalorder %s24, 1
        %s366 = scalar_select %p365, %s24, 1
        %p367 = scmp.lt.s32.totalorder %s25, 0
        %s368 = scalar_select %p367, %s25, 0
        %s369 = smul.addr %s366, 3
        %s370 = sadd.s32 %s368, %s369
        %s371 = smul.addr %s370, 8
        %s372 = scalar_lea.vmem %s1, %s371
      $region56: #{building_block_forward.2} parent=47 // pred_fallthru
        _
      // Predicated region
      $region57: #{building_block_forward.2} parent=47 // pred_check
        %p373 = pneg %p107
      $region58: #{building_block_forward.2} parent=47 // pred_check_branch
        %375 = sbr.rel (%p373) target = $region60
      $region59: #{building_block_forward.2} parent=47 // pred_region
        %p376 = scmp.lt.s32.totalorder %s24, 1
        %s377 = scalar_select %p376, %s24, 1
        %p378 = scmp.lt.s32.totalorder %s25, 0
        %s379 = scalar_select %p378, %s25, 0
        %s380 = smul.addr %s377, 16
        %s381 = sadd.s32 %s379, %s380
        %s382 = smul.addr %s381, 4
        %s383 = scalar_lea.vmem %s2, %s382
      $region60: #{building_block_forward.2} parent=47 // pred_fallthru
        _
    $region48: #{building_block_forward.2} parent=5 // pred_fallthru
      _
    %p384 = scmp.le.s32.totalorder 1, %s17
    %p385 = scmp.lt.s32.totalorder %s17, 3
    %p386 = pnand %p384, %p385
    %p387 = pneg %p386
    // Predicated region
    $region61: #{building_block_forward.2} parent=5 // pred_check
      _
    $region62: #{building_block_forward.2} parent=5 // pred_check_branch
      %389 = sbr.rel (%p386) target = $region64
    $region63: #{building_block_forward.2} parent=5 // pred_region
      %s390 = ssub.s32 %s17, 1
      %p391 = scmp.lt.s32.totalorder %s26, 1
      %s392 = scalar_select %p391, %s26, 1
      %p393 = scmp.lt.s32.totalorder %s27, 0
      %s394 = scalar_select %p393, %s27, 0
      %s395 = sadd.s32 %s394, %s392
      %s396 = smul.addr %s395, 4
      %s397 = scalar_lea.vmem %s0, %s396
      %p398 = pneg %p57
      %p399 = pneg %p54
      %p400 = scmp.lt.s32.totalorder %s26, 1
      %s401 = scalar_select %p400, %s26, 1
      %p402 = scmp.lt.s32.totalorder %s27, 0
      %s403 = scalar_select %p402, %s27, 0
      %s404 = smul.addr %s401, 3
      %s405 = sadd.s32 %s403, %s404
      %s406 = smul.addr %s405, 8
      %s407 = scalar_lea.vmem %s1, %s406
      %p408 = pneg %p85
      %p409 = pneg %p82
      %p410 = scmp.lt.s32.totalorder %s26, 1
      %s411 = scalar_select %p410, %s26, 1
      %p412 = scmp.lt.s32.totalorder %s27, 0
      %s413 = scalar_select %p412, %s27, 0
      %s414 = smul.addr %s411, 16
      %s415 = sadd.s32 %s413, %s414
      %s416 = smul.addr %s415, 4
      %s417 = scalar_lea.vmem %s2, %s416
      %p418 = pneg %p113
      %p419 = pneg %p110
      %p420 = pneg %p134
      %p421 = pneg %p131
      %p422 = pneg %p155
      %p423 = pneg %p152
      %p424 = pneg %p176
      %p425 = pneg %p173
      %p426 = pneg %p197
      %p427 = pneg %p194
      %p428 = pneg %p218
      %p429 = pneg %p215
      %p430 = pneg %p239
      %p431 = pneg %p236
      %p432 = pneg %p260
      %p433 = pneg %p257
      %p434 = pneg %p281
      %p435 = pneg %p278
      %p436 = pneg %p309
      %p437 = pneg %p306
      %p438 = scmp.lt.s32.totalorder %s26, 1
      %s439 = scalar_select %p438, %s26, 1
      %p440 = scmp.lt.s32.totalorder %s27, 0
      %s441 = scalar_select %p440, %s27, 0
      %s442 = smul.addr %s439, 2
      %s443 = sadd.s32 %s441, %s442
      %s444 = smul.addr %s443, 4
      %s445 = scalar_lea.vmem %s11, %s444
      %p446 = scmp.lt.s32.totalorder %s26, 1
      %s447 = scalar_select %p446, %s26, 1
      %p448 = scmp.lt.s32.totalorder %s27, 0
      %s449 = scalar_select %p448, %s27, 0
      %s450 = sadd.s32 %s449, %s447
      %s451 = smul.addr %s450, 4
      %s452 = scalar_lea.vmem %s0, %s451
      %p453 = scmp.lt.s32.totalorder %s26, 1
      %s454 = scalar_select %p453, %s26, 1
      %p455 = scmp.lt.s32.totalorder %s27, 0
      %s456 = scalar_select %p455, %s27, 0
      %s457 = smul.addr %s454, 3
      %s458 = sadd.s32 %s456, %s457
      %s459 = smul.addr %s458, 8
      %s460 = scalar_lea.vmem %s1, %s459
      %p461 = scmp.lt.s32.totalorder %s26, 1
      %s462 = scalar_select %p461, %s26, 1
      %p463 = scmp.lt.s32.totalorder %s27, 0
      %s464 = scalar_select %p463, %s27, 0
      %s465 = smul.addr %s462, 16
      %s466 = sadd.s32 %s464, %s465
      %s467 = smul.addr %s466, 4
      %s468 = scalar_lea.vmem %s2, %s467
      %p469 = scmp.lt.s32.totalorder %s26, 1
      %s470 = scalar_select %p469, %s26, 1
      %p471 = scmp.lt.s32.totalorder %s27, 0
      %s472 = scalar_select %p471, %s27, 0
      %s473 = smul.addr %s470, 2
      %s474 = sadd.s32 %s472, %s473
      %s475 = smul.addr %s474, 4
      %s476 = scalar_lea.vmem %s11, %s475
      %v478 = vld [vmem:[%s452] sm:$0x7]
      %v479 = vld [vmem:[%s4] sm:$0xf]
      %v480 = vld [vmem:[%s4 + $0x4] sm:$0xf]
      %v481 = vpack.c.bf16 %v478, %v478
      %v484 = vunpack.c.l.b16 %v479
      %v485 = vunpack.c.l.b16 %v480
      %v486 = vpack.c.b16 %v485, %v484
      %vm487 = vcmask 23552
      %v489 = vsel %vm487, %v486, 0
      %vm491 = vcmask 1040384
      %vm492 = vcmask 1041408
      %v493 = vsel %vm491, 4294967295, 65535
      %v494 = vsel %vm492, %v493, 0
      %v496 = vand.u32 %v481, %v494
      %498 = vmatprep.subr.bf16.mxu0 0
      %499 = vmatpush1.bf16.msra.mxu0 %v496
      %500 = vmatprep.subr.bf16.mxu0 0
      %501 = vmatpush1.bf16.msra.mxu0 0
      %502 = vmatprep.subr.bf16.mxu0 0
      %503 = vmatpush1.bf16.msra.mxu0 0
      %504 = vmatprep.subr.bf16.mxu0 0
      %505 = vmatpush1.bf16.msra.mxu0 0
      %506 = vmatprep.subr.bf16.mxu0 0
      %507 = vmatpush1.bf16.msra.mxu0 0
      %508 = vmatprep.subr.bf16.mxu0 0
      %509 = vmatpush1.bf16.msra.mxu0 0
      %510 = vmatprep.subr.bf16.mxu0 0
      %511 = vmatpush1.bf16.msra.mxu0 0
      %512 = vmatprep.subr.bf16.mxu0 0
      %513 = vmatpush1.bf16.msra.mxu0 0
      %514 = vmatprep.subr.bf16.mxu0 0
      %515 = vmatpush1.bf16.msra.mxu0 0
      %516 = vmatprep.subr.bf16.mxu0 0
      %517 = vmatpush1.bf16.msra.mxu0 0
      %518 = vmatprep.subr.bf16.mxu0 0
      %519 = vmatpush1.bf16.msra.mxu0 0
      %520 = vmatprep.subr.bf16.mxu0 0
      %521 = vmatpush1.bf16.msra.mxu0 0
      %522 = vmatprep.subr.bf16.mxu0 0
      %523 = vmatpush1.bf16.msra.mxu0 0
      %524 = vmatprep.subr.bf16.mxu0 0
      %525 = vmatpush1.bf16.msra.mxu0 0
      %526 = vmatprep.subr.bf16.mxu0 0
      %527 = vmatpush1.bf16.msra.mxu0 0
      %528 = vmatprep.subr.bf16.mxu0 0
      %529 = vmatpush1.bf16.msra.mxu0 0
      %530 = vmatprep.mubr.bf16.mxu0 0
      %531 = vmatmul.mubr.bf16.gmra.mrb[0].mxu0 %v489
      %v532 = vpop.f32.mrb[0].mxu0
      %v533 = vadd.f32 0.0, %v532
      %v534 = vpop.f32.mrb[0].mxu0
      %v535 = vpop.f32.mrb[0].mxu0
      %v536 = vadd.f32 0.0, %v535
      %v537 = vpop.f32.mrb[0].mxu0
      %538 = vdwg.mxu0
      %v539 = vld [vmem:[%s460] sm:$0x1]
      %v540 = vld [vmem:[%s460 + $0x8] sm:$0x1]
      %v541 = vld [vmem:[%s460 + $0x10] sm:$0x1]
      %v545 = vrot.slane %v540, 7
      %vm546 = vcmask 1041409
      %v547 = vsel %vm546, %v545, %v539
      %v548 = vrot.slane %v541, 6
      %vm549 = vcmask 1042434
      %v550 = vsel %vm549, %v548, %v547
      %v552 = vsub.f32 %v478, %v550
      %v553 = vmul.f32 %v552, %v552
      %vm554 = vcmask 1042432
      %v555 = vsel %vm554, %v553, 0.0
      %v556 = vrot.slane %v555, 4
      %v557 = vadd.f32 %v555, %v556
      %v558 = vrot.slane %v557, 2
      %v559 = vadd.f32 %v557, %v558
      %v560 = vrot.slane %v559, 1
      %v561 = vadd.f32 %v559, %v560
      %v562 = vrsqrt.pop %v561
      %v563 = vmul.f32 %v561, %v562
      %vm564 = vcmp.eq.f32.partialorder %v561, inf
      %v565 = vsel %vm564, %v561, %v563
      %vm566 = vcmp.eq.f32.partialorder %v561, 0.0
      %v567 = vand.u32 %v561, 2147483648
      %v568 = vsel %vm566, %v567, %v565
      %v570 = vrot.slane %v552, 7
      %v572 = vrot.slane %v539, 4
      %v573 = vrot.slane %v540, 3
      %vm574 = vcmask 1045509
      %v575 = vsel %vm574, %v573, %v572
      %v576 = vrot.slane %v541, 2
      %vm577 = vcmask 1046534
      %v578 = vsel %vm577, %v576, %v575
      %v580 = vsel %vm491, %v568, %v570
      %vm581 = vcmask 1043456
      %v582 = vsel %vm581, %v580, %v578
      %v583 = vpack.c.bf16 %v582, %v582
      %v584 = vld [vmem:[%s3] sm:$0xf]
      %v585 = vld [vmem:[%s3 + $0x4] sm:$0xf]
      %v588 = vunpack.c.l.b16 %v584
      %v589 = vunpack.c.l.b16 %v585
      %v590 = vpack.c.b16 %v589, %v588
      %vm591 = vcmask 56320
      %v593 = vsel %vm591, %v590, 0
      %v595 = vsel %vm554, 4294967295, 65535
      %v596 = vsel %vm581, %v595, 0
      %v598 = vand.u32 %v583, %v596
      %600 = vmatprep.subr.bf16.mxu0 0
      %601 = vmatpush1.bf16.msra.mxu0 %v598
      %602 = vmatprep.subr.bf16.mxu0 0
      %603 = vmatpush1.bf16.msra.mxu0 0
      %604 = vmatprep.subr.bf16.mxu0 0
      %605 = vmatpush1.bf16.msra.mxu0 0
      %606 = vmatprep.subr.bf16.mxu0 0
      %607 = vmatpush1.bf16.msra.mxu0 0
      %608 = vmatprep.subr.bf16.mxu0 0
      %609 = vmatpush1.bf16.msra.mxu0 0
      %610 = vmatprep.subr.bf16.mxu0 0
      %611 = vmatpush1.bf16.msra.mxu0 0
      %612 = vmatprep.subr.bf16.mxu0 0
      %613 = vmatpush1.bf16.msra.mxu0 0
      %614 = vmatprep.subr.bf16.mxu0 0
      %615 = vmatpush1.bf16.msra.mxu0 0
      %616 = vmatprep.subr.bf16.mxu0 0
      %617 = vmatpush1.bf16.msra.mxu0 0
      %618 = vmatprep.subr.bf16.mxu0 0
      %619 = vmatpush1.bf16.msra.mxu0 0
      %620 = vmatprep.subr.bf16.mxu0 0
      %621 = vmatpush1.bf16.msra.mxu0 0
      %622 = vmatprep.subr.bf16.mxu0 0
      %623 = vmatpush1.bf16.msra.mxu0 0
      %624 = vmatprep.subr.bf16.mxu0 0
      %625 = vmatpush1.bf16.msra.mxu0 0
      %626 = vmatprep.subr.bf16.mxu0 0
      %627 = vmatpush1.bf16.msra.mxu0 0
      %628 = vmatprep.subr.bf16.mxu0 0
      %629 = vmatpush1.bf16.msra.mxu0 0
      %630 = vmatprep.subr.bf16.mxu0 0
      %631 = vmatpush1.bf16.msra.mxu0 0
      %632 = vmatprep.mubr.bf16.mxu0 0
      %633 = vmatmul.mubr.bf16.gmra.mrb[0].mxu0 %v593
      %v634 = vpop.f32.mrb[0].mxu0
      %v635 = vadd.f32 %v533, %v634
      %v636 = vpop.f32.mrb[0].mxu0
      %v637 = vpop.f32.mrb[0].mxu0
      %v638 = vadd.f32 %v536, %v637
      %v639 = vpop.f32.mrb[0].mxu0
      %640 = vdwg.mxu0
      %v641 = vld [vmem:[%s5] sm:$0xff]
      %v642 = vld [vmem:[%s5 + $0x8] sm:$0xff]
      %644 = vset.pattern.permute.xlu0 0
      %645 = vperm.xlu0 %644, %v641
      %v646 = vpop.permute.xlu0 %645
      %649 = vset.pattern.permute.xlu0 0
      %650 = vperm.xlu0 %649, %v642
      %v651 = vpop.permute.xlu0 %650
      %v653 = vmul.f32 %v635, %v646
      %v654 = vmul.f32 %v638, %v651
      %v655 = vld [vmem:[%s6] sm:$0xff]
      %v656 = vld [vmem:[%s6 + $0x8] sm:$0xff]
      %658 = vset.pattern.permute.xlu0 0
      %659 = vperm.xlu0 %658, %v655
      %v660 = vpop.permute.xlu0 %659
      %663 = vset.pattern.permute.xlu0 0
      %664 = vperm.xlu0 %663, %v656
      %v665 = vpop.permute.xlu0 %664
      %v667 = vadd.f32 %v653, %v660
      %v668 = vadd.f32 %v654, %v665
      %v669 = vmax.f32 %v667, 0.0
      %v670 = vmax.f32 %v668, 0.0
      %v671 = vld [vmem:[%s460 + $0x1] sm:$0x1]
      %v672 = vld [vmem:[%s460 + $0x9] sm:$0x1]
      %v673 = vld [vmem:[%s460 + $0x11] sm:$0x1]
      %v677 = vrot.slane %v672, 7
      %v678 = vsel %vm546, %v677, %v671
      %v679 = vrot.slane %v673, 6
      %v680 = vsel %vm549, %v679, %v678
      %v682 = vsub.f32 %v478, %v680
      %v683 = vmul.f32 %v682, %v682
      %v684 = vsel %vm554, %v683, 0.0
      %v685 = vrot.slane %v684, 4
      %v686 = vadd.f32 %v684, %v685
      %v687 = vrot.slane %v686, 2
      %v688 = vadd.f32 %v686, %v687
      %v689 = vrot.slane %v688, 1
      %v690 = vadd.f32 %v688, %v689
      %v691 = vrsqrt.pop %v690
      %v692 = vmul.f32 %v690, %v691
      %vm693 = vcmp.eq.f32.partialorder %v690, inf
      %v694 = vsel %vm693, %v690, %v692
      %vm695 = vcmp.eq.f32.partialorder %v690, 0.0
      %v696 = vand.u32 %v690, 2147483648
      %v697 = vsel %vm695, %v696, %v694
      %v699 = vrot.slane %v682, 7
      %v701 = vrot.slane %v671, 4
      %v702 = vrot.slane %v672, 3
      %v703 = vsel %vm574, %v702, %v701
      %v704 = vrot.slane %v673, 2
      %v705 = vsel %vm577, %v704, %v703
      %v707 = vsel %vm491, %v697, %v699
      %v708 = vsel %vm581, %v707, %v705
      %v709 = vpack.c.bf16 %v708, %v708
      %v711 = vand.u32 %v709, %v596
      %713 = vmatprep.subr.bf16.mxu0 0
      %714 = vmatpush1.bf16.msra.mxu0 %v711
      %715 = vmatprep.subr.bf16.mxu0 0
      %716 = vmatpush1.bf16.msra.mxu0 0
      %717 = vmatprep.subr.bf16.mxu0 0
      %718 = vmatpush1.bf16.msra.mxu0 0
      %719 = vmatprep.subr.bf16.mxu0 0
      %720 = vmatpush1.bf16.msra.mxu0 0
      %721 = vmatprep.subr.bf16.mxu0 0
      %722 = vmatpush1.bf16.msra.mxu0 0
      %723 = vmatprep.subr.bf16.mxu0 0
      %724 = vmatpush1.bf16.msra.mxu0 0
      %725 = vmatprep.subr.bf16.mxu0 0
      %726 = vmatpush1.bf16.msra.mxu0 0
      %727 = vmatprep.subr.bf16.mxu0 0
      %728 = vmatpush1.bf16.msra.mxu0 0
      %729 = vmatprep.subr.bf16.mxu0 0
      %730 = vmatpush1.bf16.msra.mxu0 0
      %731 = vmatprep.subr.bf16.mxu0 0
      %732 = vmatpush1.bf16.msra.mxu0 0
      %733 = vmatprep.subr.bf16.mxu0 0
      %734 = vmatpush1.bf16.msra.mxu0 0
      %735 = vmatprep.subr.bf16.mxu0 0
      %736 = vmatpush1.bf16.msra.mxu0 0
      %737 = vmatprep.subr.bf16.mxu0 0
      %738 = vmatpush1.bf16.msra.mxu0 0
      %739 = vmatprep.subr.bf16.mxu0 0
      %740 = vmatpush1.bf16.msra.mxu0 0
      %741 = vmatprep.subr.bf16.mxu0 0
      %742 = vmatpush1.bf16.msra.mxu0 0
      %743 = vmatprep.subr.bf16.mxu0 0
      %744 = vmatpush1.bf16.msra.mxu0 0
      %745 = vmatprep.mubr.bf16.mxu0 0
      %746 = vmatmul.mubr.bf16.gmra.mrb[0].mxu0 %v593
      %v747 = vpop.f32.mrb[0].mxu0
      %v748 = vadd.f32 %v533, %v747
      %v749 = vpop.f32.mrb[0].mxu0
      %v750 = vpop.f32.mrb[0].mxu0
      %v751 = vadd.f32 %v536, %v750
      %v752 = vpop.f32.mrb[0].mxu0
      %753 = vdwg.mxu0
      %v754 = vmul.f32 %v748, %v646
      %v755 = vmul.f32 %v751, %v651
      %v756 = vadd.f32 %v754, %v660
      %v757 = vadd.f32 %v755, %v665
      %v758 = vmax.f32 %v756, 0.0
      %v759 = vmax.f32 %v757, 0.0
      %v760 = vld [vmem:[%s460 + $0x2] sm:$0x1]
      %v761 = vld [vmem:[%s460 + $0xa] sm:$0x1]
      %v762 = vld [vmem:[%s460 + $0x12] sm:$0x1]
      %v766 = vrot.slane %v761, 7
      %v767 = vsel %vm546, %v766, %v760
      %v768 = vrot.slane %v762, 6
      %v769 = vsel %vm549, %v768, %v767
      %v771 = vsub.f32 %v478, %v769
      %v772 = vmul.f32 %v771, %v771
      %v773 = vsel %vm554, %v772, 0.0
      %v774 = vrot.slane %v773, 4
      %v775 = vadd.f32 %v773, %v774
      %v776 = vrot.slane %v775, 2
      %v777 = vadd.f32 %v775, %v776
      %v778 = vrot.slane %v777, 1
      %v779 = vadd.f32 %v777, %v778
      %v780 = vrsqrt.pop %v779
      %v781 = vmul.f32 %v779, %v780
      %vm782 = vcmp.eq.f32.partialorder %v779, inf
      %v783 = vsel %vm782, %v779, %v781
      %vm784 = vcmp.eq.f32.partialorder %v779, 0.0
      %v785 = vand.u32 %v779, 2147483648
      %v786 = vsel %vm784, %v785, %v783
      %v788 = vrot.slane %v771, 7
      %v790 = vrot.slane %v760, 4
      %v791 = vrot.slane %v761, 3
      %v792 = vsel %vm574, %v791, %v790
      %v793 = vrot.slane %v762, 2
      %v794 = vsel %vm577, %v793, %v792
      %v796 = vsel %vm491, %v786, %v788
      %v797 = vsel %vm581, %v796, %v794
      %v798 = vpack.c.bf16 %v797, %v797
      %v800 = vand.u32 %v798, %v596
      %802 = vmatprep.subr.bf16.mxu0 0
      %803 = vmatpush1.bf16.msra.mxu0 %v800
      %804 = vmatprep.subr.bf16.mxu0 0
      %805 = vmatpush1.bf16.msra.mxu0 0
      %806 = vmatprep.subr.bf16.mxu0 0
      %807 = vmatpush1.bf16.msra.mxu0 0
      %808 = vmatprep.subr.bf16.mxu0 0
      %809 = vmatpush1.bf16.msra.mxu0 0
      %810 = vmatprep.subr.bf16.mxu0 0
      %811 = vmatpush1.bf16.msra.mxu0 0
      %812 = vmatprep.subr.bf16.mxu0 0
      %813 = vmatpush1.bf16.msra.mxu0 0
      %814 = vmatprep.subr.bf16.mxu0 0
      %815 = vmatpush1.bf16.msra.mxu0 0
      %816 = vmatprep.subr.bf16.mxu0 0
      %817 = vmatpush1.bf16.msra.mxu0 0
      %818 = vmatprep.subr.bf16.mxu0 0
      %819 = vmatpush1.bf16.msra.mxu0 0
      %820 = vmatprep.subr.bf16.mxu0 0
      %821 = vmatpush1.bf16.msra.mxu0 0
      %822 = vmatprep.subr.bf16.mxu0 0
      %823 = vmatpush1.bf16.msra.mxu0 0
      %824 = vmatprep.subr.bf16.mxu0 0
      %825 = vmatpush1.bf16.msra.mxu0 0
      %826 = vmatprep.subr.bf16.mxu0 0
      %827 = vmatpush1.bf16.msra.mxu0 0
      %828 = vmatprep.subr.bf16.mxu0 0
      %829 = vmatpush1.bf16.msra.mxu0 0
      %830 = vmatprep.subr.bf16.mxu0 0
      %831 = vmatpush1.bf16.msra.mxu0 0
      %832 = vmatprep.subr.bf16.mxu0 0
      %833 = vmatpush1.bf16.msra.mxu0 0
      %834 = vmatprep.mubr.bf16.mxu0 0
      %835 = vmatmul.mubr.bf16.gmra.mrb[0].mxu0 %v593
      %v836 = vpop.f32.mrb[0].mxu0
      %v837 = vadd.f32 %v533, %v836
      %v838 = vpop.f32.mrb[0].mxu0
      %v839 = vpop.f32.mrb[0].mxu0
      %v840 = vadd.f32 %v536, %v839
      %v841 = vpop.f32.mrb[0].mxu0
      %842 = vdwg.mxu0
      %v843 = vmul.f32 %v837, %v646
      %v844 = vmul.f32 %v840, %v651
      %v845 = vadd.f32 %v843, %v660
      %v846 = vadd.f32 %v844, %v665
      %v847 = vmax.f32 %v845, 0.0
      %v848 = vmax.f32 %v846, 0.0
      %v849 = vld [vmem:[%s460 + $0x3] sm:$0x1]
      %v850 = vld [vmem:[%s460 + $0xb] sm:$0x1]
      %v851 = vld [vmem:[%s460 + $0x13] sm:$0x1]
      %v855 = vrot.slane %v850, 7
      %v856 = vsel %vm546, %v855, %v849
      %v857 = vrot.slane %v851, 6
      %v858 = vsel %vm549, %v857, %v856
      %v860 = vsub.f32 %v478, %v858
      %v861 = vmul.f32 %v860, %v860
      %v862 = vsel %vm554, %v861, 0.0
      %v863 = vrot.slane %v862, 4
      %v864 = vadd.f32 %v862, %v863
      %v865 = vrot.slane %v864, 2
      %v866 = vadd.f32 %v864, %v865
      %v867 = vrot.slane %v866, 1
      %v868 = vadd.f32 %v866, %v867
      %v869 = vrsqrt.pop %v868
      %v870 = vmul.f32 %v868, %v869
      %vm871 = vcmp.eq.f32.partialorder %v868, inf
      %v872 = vsel %vm871, %v868, %v870
      %vm873 = vcmp.eq.f32.partialorder %v868, 0.0
      %v874 = vand.u32 %v868, 2147483648
      %v875 = vsel %vm873, %v874, %v872
      %v877 = vrot.slane %v860, 7
      %v879 = vrot.slane %v849, 4
      %v880 = vrot.slane %v850, 3
      %v881 = vsel %vm574, %v880, %v879
      %v882 = vrot.slane %v851, 2
      %v883 = vsel %vm577, %v882, %v881
      %v885 = vsel %vm491, %v875, %v877
      %v886 = vsel %vm581, %v885, %v883
      %v887 = vpack.c.bf16 %v886, %v886
      %v889 = vand.u32 %v887, %v596
      %891 = vmatprep.subr.bf16.mxu0 0
      %892 = vmatpush1.bf16.msra.mxu0 %v889
      %893 = vmatprep.subr.bf16.mxu0 0
      %894 = vmatpush1.bf16.msra.mxu0 0
      %895 = vmatprep.subr.bf16.mxu0 0
      %896 = vmatpush1.bf16.msra.mxu0 0
      %897 = vmatprep.subr.bf16.mxu0 0
      %898 = vmatpush1.bf16.msra.mxu0 0
      %899 = vmatprep.subr.bf16.mxu0 0
      %900 = vmatpush1.bf16.msra.mxu0 0
      %901 = vmatprep.subr.bf16.mxu0 0
      %902 = vmatpush1.bf16.msra.mxu0 0
      %903 = vmatprep.subr.bf16.mxu0 0
      %904 = vmatpush1.bf16.msra.mxu0 0
      %905 = vmatprep.subr.bf16.mxu0 0
      %906 = vmatpush1.bf16.msra.mxu0 0
      %907 = vmatprep.subr.bf16.mxu0 0
      %908 = vmatpush1.bf16.msra.mxu0 0
      %909 = vmatprep.subr.bf16.mxu0 0
      %910 = vmatpush1.bf16.msra.mxu0 0
      %911 = vmatprep.subr.bf16.mxu0 0
      %912 = vmatpush1.bf16.msra.mxu0 0
      %913 = vmatprep.subr.bf16.mxu0 0
      %914 = vmatpush1.bf16.msra.mxu0 0
      %915 = vmatprep.subr.bf16.mxu0 0
      %916 = vmatpush1.bf16.msra.mxu0 0
      %917 = vmatprep.subr.bf16.mxu0 0
      %918 = vmatpush1.bf16.msra.mxu0 0
      %919 = vmatprep.subr.bf16.mxu0 0
      %920 = vmatpush1.bf16.msra.mxu0 0
      %921 = vmatprep.subr.bf16.mxu0 0
      %922 = vmatpush1.bf16.msra.mxu0 0
      %923 = vmatprep.mubr.bf16.mxu0 0
      %924 = vmatmul.mubr.bf16.gmra.mrb[0].mxu0 %v593
      %v925 = vpop.f32.mrb[0].mxu0
      %v926 = vadd.f32 %v533, %v925
      %v927 = vpop.f32.mrb[0].mxu0
      %v928 = vpop.f32.mrb[0].mxu0
      %v929 = vadd.f32 %v536, %v928
      %v930 = vpop.f32.mrb[0].mxu0
      %931 = vdwg.mxu0
      %v932 = vmul.f32 %v926, %v646
      %v933 = vmul.f32 %v929, %v651
      %v934 = vadd.f32 %v932, %v660
      %v935 = vadd.f32 %v933, %v665
      %v936 = vmax.f32 %v934, 0.0
      %v937 = vmax.f32 %v935, 0.0
      %v938 = vld [vmem:[%s460 + $0x4] sm:$0x1]
      %v939 = vld [vmem:[%s460 + $0xc] sm:$0x1]
      %v940 = vld [vmem:[%s460 + $0x14] sm:$0x1]
      %v944 = vrot.slane %v939, 7
      %v945 = vsel %vm546, %v944, %v938
      %v946 = vrot.slane %v940, 6
      %v947 = vsel %vm549, %v946, %v945
      %v949 = vsub.f32 %v478, %v947
      %v950 = vmul.f32 %v949, %v949
      %v951 = vsel %vm554, %v950, 0.0
      %v952 = vrot.slane %v951, 4
      %v953 = vadd.f32 %v951, %v952
      %v954 = vrot.slane %v953, 2
      %v955 = vadd.f32 %v953, %v954
      %v956 = vrot.slane %v955, 1
      %v957 = vadd.f32 %v955, %v956
      %v958 = vrsqrt.pop %v957
      %v959 = vmul.f32 %v957, %v958
      %vm960 = vcmp.eq.f32.partialorder %v957, inf
      %v961 = vsel %vm960, %v957, %v959
      %vm962 = vcmp.eq.f32.partialorder %v957, 0.0
      %v963 = vand.u32 %v957, 2147483648
      %v964 = vsel %vm962, %v963, %v961
      %v966 = vrot.slane %v949, 7
      %v968 = vrot.slane %v938, 4
      %v969 = vrot.slane %v939, 3
      %v970 = vsel %vm574, %v969, %v968
      %v971 = vrot.slane %v940, 2
      %v972 = vsel %vm577, %v971, %v970
      %v974 = vsel %vm491, %v964, %v966
      %v975 = vsel %vm581, %v974, %v972
      %v976 = vpack.c.bf16 %v975, %v975
      %v978 = vand.u32 %v976, %v596
      %980 = vmatprep.subr.bf16.mxu0 0
      %981 = vmatpush1.bf16.msra.mxu0 %v978
      %982 = vmatprep.subr.bf16.mxu0 0
      %983 = vmatpush1.bf16.msra.mxu0 0
      %984 = vmatprep.subr.bf16.mxu0 0
      %985 = vmatpush1.bf16.msra.mxu0 0
      %986 = vmatprep.subr.bf16.mxu0 0
      %987 = vmatpush1.bf16.msra.mxu0 0
      %988 = vmatprep.subr.bf16.mxu0 0
      %989 = vmatpush1.bf16.msra.mxu0 0
      %990 = vmatprep.subr.bf16.mxu0 0
      %991 = vmatpush1.bf16.msra.mxu0 0
      %992 = vmatprep.subr.bf16.mxu0 0
      %993 = vmatpush1.bf16.msra.mxu0 0
      %994 = vmatprep.subr.bf16.mxu0 0
      %995 = vmatpush1.bf16.msra.mxu0 0
      %996 = vmatprep.subr.bf16.mxu0 0
      %997 = vmatpush1.bf16.msra.mxu0 0
      %998 = vmatprep.subr.bf16.mxu0 0
      %999 = vmatpush1.bf16.msra.mxu0 0
      %1000 = vmatprep.subr.bf16.mxu0 0
      %1001 = vmatpush1.bf16.msra.mxu0 0
      %1002 = vmatprep.subr.bf16.mxu0 0
      %1003 = vmatpush1.bf16.msra.mxu0 0
      %1004 = vmatprep.subr.bf16.mxu0 0
      %1005 = vmatpush1.bf16.msra.mxu0 0
      %1006 = vmatprep.subr.bf16.mxu0 0
      %1007 = vmatpush1.bf16.msra.mxu0 0
      %1008 = vmatprep.subr.bf16.mxu0 0
      %1009 = vmatpush1.bf16.msra.mxu0 0
      %1010 = vmatprep.subr.bf16.mxu0 0
      %1011 = vmatpush1.bf16.msra.mxu0 0
      %1012 = vmatprep.mubr.bf16.mxu0 0
      %1013 = vmatmul.mubr.bf16.gmra.mrb[0].mxu0 %v593
      %v1014 = vpop.f32.mrb[0].mxu0
      %v1015 = vadd.f32 %v533, %v1014
      %v1016 = vpop.f32.mrb[0].mxu0
      %v1017 = vpop.f32.mrb[0].mxu0
      %v1018 = vadd.f32 %v536, %v1017
      %v1019 = vpop.f32.mrb[0].mxu0
      %1020 = vdwg.mxu0
      %v1021 = vmul.f32 %v1015, %v646
      %v1022 = vmul.f32 %v1018, %v651
      %v1023 = vadd.f32 %v1021, %v660
      %v1024 = vadd.f32 %v1022, %v665
      %v1025 = vmax.f32 %v1023, 0.0
      %v1026 = vmax.f32 %v1024, 0.0
      %v1027 = vld [vmem:[%s460 + $0x5] sm:$0x1]
      %v1028 = vld [vmem:[%s460 + $0xd] sm:$0x1]
      %v1029 = vld [vmem:[%s460 + $0x15] sm:$0x1]
      %v1033 = vrot.slane %v1028, 7
      %v1034 = vsel %vm546, %v1033, %v1027
      %v1035 = vrot.slane %v1029, 6
      %v1036 = vsel %vm549, %v1035, %v1034
      %v1038 = vsub.f32 %v478, %v1036
      %v1039 = vmul.f32 %v1038, %v1038
      %v1040 = vsel %vm554, %v1039, 0.0
      %v1041 = vrot.slane %v1040, 4
      %v1042 = vadd.f32 %v1040, %v1041
      %v1043 = vrot.slane %v1042, 2
      %v1044 = vadd.f32 %v1042, %v1043
      %v1045 = vrot.slane %v1044, 1
      %v1046 = vadd.f32 %v1044, %v1045
      %v1047 = vrsqrt.pop %v1046
      %v1048 = vmul.f32 %v1046, %v1047
      %vm1049 = vcmp.eq.f32.partialorder %v1046, inf
      %v1050 = vsel %vm1049, %v1046, %v1048
      %vm1051 = vcmp.eq.f32.partialorder %v1046, 0.0
      %v1052 = vand.u32 %v1046, 2147483648
      %v1053 = vsel %vm1051, %v1052, %v1050
      %v1055 = vrot.slane %v1038, 7
      %v1057 = vrot.slane %v1027, 4
      %v1058 = vrot.slane %v1028, 3
      %v1059 = vsel %vm574, %v1058, %v1057
      %v1060 = vrot.slane %v1029, 2
      %v1061 = vsel %vm577, %v1060, %v1059
      %v1063 = vsel %vm491, %v1053, %v1055
      %v1064 = vsel %vm581, %v1063, %v1061
      %v1065 = vpack.c.bf16 %v1064, %v1064
      %v1067 = vand.u32 %v1065, %v596
      %1069 = vmatprep.subr.bf16.mxu0 0
      %1070 = vmatpush1.bf16.msra.mxu0 %v1067
      %1071 = vmatprep.subr.bf16.mxu0 0
      %1072 = vmatpush1.bf16.msra.mxu0 0
      %1073 = vmatprep.subr.bf16.mxu0 0
      %1074 = vmatpush1.bf16.msra.mxu0 0
      %1075 = vmatprep.subr.bf16.mxu0 0
      %1076 = vmatpush1.bf16.msra.mxu0 0
      %1077 = vmatprep.subr.bf16.mxu0 0
      %1078 = vmatpush1.bf16.msra.mxu0 0
      %1079 = vmatprep.subr.bf16.mxu0 0
      %1080 = vmatpush1.bf16.msra.mxu0 0
      %1081 = vmatprep.subr.bf16.mxu0 0
      %1082 = vmatpush1.bf16.msra.mxu0 0
      %1083 = vmatprep.subr.bf16.mxu0 0
      %1084 = vmatpush1.bf16.msra.mxu0 0
      %1085 = vmatprep.subr.bf16.mxu0 0
      %1086 = vmatpush1.bf16.msra.mxu0 0
      %1087 = vmatprep.subr.bf16.mxu0 0
      %1088 = vmatpush1.bf16.msra.mxu0 0
      %1089 = vmatprep.subr.bf16.mxu0 0
      %1090 = vmatpush1.bf16.msra.mxu0 0
      %1091 = vmatprep.subr.bf16.mxu0 0
      %1092 = vmatpush1.bf16.msra.mxu0 0
      %1093 = vmatprep.subr.bf16.mxu0 0
      %1094 = vmatpush1.bf16.msra.mxu0 0
      %1095 = vmatprep.subr.bf16.mxu0 0
      %1096 = vmatpush1.bf16.msra.mxu0 0
      %1097 = vmatprep.subr.bf16.mxu0 0
      %1098 = vmatpush1.bf16.msra.mxu0 0
      %1099 = vmatprep.subr.bf16.mxu0 0
      %1100 = vmatpush1.bf16.msra.mxu0 0
      %1101 = vmatprep.mubr.bf16.mxu0 0
      %1102 = vmatmul.mubr.bf16.gmra.mrb[0].mxu0 %v593
      %v1103 = vpop.f32.mrb[0].mxu0
      %v1104 = vadd.f32 %v533, %v1103
      %v1105 = vpop.f32.mrb[0].mxu0
      %v1106 = vpop.f32.mrb[0].mxu0
      %v1107 = vadd.f32 %v536, %v1106
      %v1108 = vpop.f32.mrb[0].mxu0
      %1109 = vdwg.mxu0
      %v1110 = vmul.f32 %v1104, %v646
      %v1111 = vmul.f32 %v1107, %v651
      %v1112 = vadd.f32 %v1110, %v660
      %v1113 = vadd.f32 %v1111, %v665
      %v1114 = vmax.f32 %v1112, 0.0
      %v1115 = vmax.f32 %v1113, 0.0
      %v1116 = vld [vmem:[%s460 + $0x6] sm:$0x1]
      %v1117 = vld [vmem:[%s460 + $0xe] sm:$0x1]
      %v1118 = vld [vmem:[%s460 + $0x16] sm:$0x1]
      %v1122 = vrot.slane %v1117, 7
      %v1123 = vsel %vm546, %v1122, %v1116
      %v1124 = vrot.slane %v1118, 6
      %v1125 = vsel %vm549, %v1124, %v1123
      %v1127 = vsub.f32 %v478, %v1125
      %v1128 = vmul.f32 %v1127, %v1127
      %v1129 = vsel %vm554, %v1128, 0.0
      %v1130 = vrot.slane %v1129, 4
      %v1131 = vadd.f32 %v1129, %v1130
      %v1132 = vrot.slane %v1131, 2
      %v1133 = vadd.f32 %v1131, %v1132
      %v1134 = vrot.slane %v1133, 1
      %v1135 = vadd.f32 %v1133, %v1134
      %v1136 = vrsqrt.pop %v1135
      %v1137 = vmul.f32 %v1135, %v1136
      %vm1138 = vcmp.eq.f32.partialorder %v1135, inf
      %v1139 = vsel %vm1138, %v1135, %v1137
      %vm1140 = vcmp.eq.f32.partialorder %v1135, 0.0
      %v1141 = vand.u32 %v1135, 2147483648
      %v1142 = vsel %vm1140, %v1141, %v1139
      %v1144 = vrot.slane %v1127, 7
      %v1146 = vrot.slane %v1116, 4
      %v1147 = vrot.slane %v1117, 3
      %v1148 = vsel %vm574, %v1147, %v1146
      %v1149 = vrot.slane %v1118, 2
      %v1150 = vsel %vm577, %v1149, %v1148
      %v1152 = vsel %vm491, %v1142, %v1144
      %v1153 = vsel %vm581, %v1152, %v1150
      %v1154 = vpack.c.bf16 %v1153, %v1153
      %v1156 = vand.u32 %v1154, %v596
      %1158 = vmatprep.subr.bf16.mxu0 0
      %1159 = vmatpush1.bf16.msra.mxu0 %v1156
      %1160 = vmatprep.subr.bf16.mxu0 0
      %1161 = vmatpush1.bf16.msra.mxu0 0
      %1162 = vmatprep.subr.bf16.mxu0 0
      %1163 = vmatpush1.bf16.msra.mxu0 0
      %1164 = vmatprep.subr.bf16.mxu0 0
      %1165 = vmatpush1.bf16.msra.mxu0 0
      %1166 = vmatprep.subr.bf16.mxu0 0
      %1167 = vmatpush1.bf16.msra.mxu0 0
      %1168 = vmatprep.subr.bf16.mxu0 0
      %1169 = vmatpush1.bf16.msra.mxu0 0
      %1170 = vmatprep.subr.bf16.mxu0 0
      %1171 = vmatpush1.bf16.msra.mxu0 0
      %1172 = vmatprep.subr.bf16.mxu0 0
      %1173 = vmatpush1.bf16.msra.mxu0 0
      %1174 = vmatprep.subr.bf16.mxu0 0
      %1175 = vmatpush1.bf16.msra.mxu0 0
      %1176 = vmatprep.subr.bf16.mxu0 0
      %1177 = vmatpush1.bf16.msra.mxu0 0
      %1178 = vmatprep.subr.bf16.mxu0 0
      %1179 = vmatpush1.bf16.msra.mxu0 0
      %1180 = vmatprep.subr.bf16.mxu0 0
      %1181 = vmatpush1.bf16.msra.mxu0 0
      %1182 = vmatprep.subr.bf16.mxu0 0
      %1183 = vmatpush1.bf16.msra.mxu0 0
      %1184 = vmatprep.subr.bf16.mxu0 0
      %1185 = vmatpush1.bf16.msra.mxu0 0
      %1186 = vmatprep.subr.bf16.mxu0 0
      %1187 = vmatpush1.bf16.msra.mxu0 0
      %1188 = vmatprep.subr.bf16.mxu0 0
      %1189 = vmatpush1.bf16.msra.mxu0 0
      %1190 = vmatprep.mubr.bf16.mxu0 0
      %1191 = vmatmul.mubr.bf16.gmra.mrb[0].mxu0 %v593
      %v1192 = vpop.f32.mrb[0].mxu0
      %v1193 = vadd.f32 %v533, %v1192
      %v1194 = vpop.f32.mrb[0].mxu0
      %v1195 = vpop.f32.mrb[0].mxu0
      %v1196 = vadd.f32 %v536, %v1195
      %v1197 = vpop.f32.mrb[0].mxu0
      %1198 = vdwg.mxu0
      %v1199 = vmul.f32 %v1193, %v646
      %v1200 = vmul.f32 %v1196, %v651
      %v1201 = vadd.f32 %v1199, %v660
      %v1202 = vadd.f32 %v1200, %v665
      %v1203 = vmax.f32 %v1201, 0.0
      %v1204 = vmax.f32 %v1202, 0.0
      %v1205 = vld [vmem:[%s460 + $0x7] sm:$0x1]
      %v1206 = vld [vmem:[%s460 + $0xf] sm:$0x1]
      %v1207 = vld [vmem:[%s460 + $0x17] sm:$0x1]
      %v1211 = vrot.slane %v1206, 7
      %v1212 = vsel %vm546, %v1211, %v1205
      %v1213 = vrot.slane %v1207, 6
      %v1214 = vsel %vm549, %v1213, %v1212
      %v1216 = vsub.f32 %v478, %v1214
      %v1217 = vmul.f32 %v1216, %v1216
      %v1218 = vsel %vm554, %v1217, 0.0
      %v1219 = vrot.slane %v1218, 4
      %v1220 = vadd.f32 %v1218, %v1219
      %v1221 = vrot.slane %v1220, 2
      %v1222 = vadd.f32 %v1220, %v1221
      %v1223 = vrot.slane %v1222, 1
      %v1224 = vadd.f32 %v1222, %v1223
      %v1225 = vrsqrt.pop %v1224
      %v1226 = vmul.f32 %v1224, %v1225
      %vm1227 = vcmp.eq.f32.partialorder %v1224, inf
      %v1228 = vsel %vm1227, %v1224, %v1226
      %vm1229 = vcmp.eq.f32.partialorder %v1224, 0.0
      %v1230 = vand.u32 %v1224, 2147483648
      %v1231 = vsel %vm1229, %v1230, %v1228
      %v1233 = vrot.slane %v1216, 7
      %v1235 = vrot.slane %v1205, 4
      %v1236 = vrot.slane %v1206, 3
      %v1237 = vsel %vm574, %v1236, %v1235
      %v1238 = vrot.slane %v1207, 2
      %v1239 = vsel %vm577, %v1238, %v1237
      %v1241 = vsel %vm491, %v1231, %v1233
      %v1242 = vsel %vm581, %v1241, %v1239
      %v1243 = vpack.c.bf16 %v1242, %v1242
      %v1245 = vand.u32 %v1243, %v596
      %1247 = vmatprep.subr.bf16.mxu0 0
      %1248 = vmatpush1.bf16.msra.mxu0 %v1245
      %1249 = vmatprep.subr.bf16.mxu0 0
      %1250 = vmatpush1.bf16.msra.mxu0 0
      %1251 = vmatprep.subr.bf16.mxu0 0
      %1252 = vmatpush1.bf16.msra.mxu0 0
      %1253 = vmatprep.subr.bf16.mxu0 0
      %1254 = vmatpush1.bf16.msra.mxu0 0
      %1255 = vmatprep.subr.bf16.mxu0 0
      %1256 = vmatpush1.bf16.msra.mxu0 0
      %1257 = vmatprep.subr.bf16.mxu0 0
      %1258 = vmatpush1.bf16.msra.mxu0 0
      %1259 = vmatprep.subr.bf16.mxu0 0
      %1260 = vmatpush1.bf16.msra.mxu0 0
      %1261 = vmatprep.subr.bf16.mxu0 0
      %1262 = vmatpush1.bf16.msra.mxu0 0
      %1263 = vmatprep.subr.bf16.mxu0 0
      %1264 = vmatpush1.bf16.msra.mxu0 0
      %1265 = vmatprep.subr.bf16.mxu0 0
      %1266 = vmatpush1.bf16.msra.mxu0 0
      %1267 = vmatprep.subr.bf16.mxu0 0
      %1268 = vmatpush1.bf16.msra.mxu0 0
      %1269 = vmatprep.subr.bf16.mxu0 0
      %1270 = vmatpush1.bf16.msra.mxu0 0
      %1271 = vmatprep.subr.bf16.mxu0 0
      %1272 = vmatpush1.bf16.msra.mxu0 0
      %1273 = vmatprep.subr.bf16.mxu0 0
      %1274 = vmatpush1.bf16.msra.mxu0 0
      %1275 = vmatprep.subr.bf16.mxu0 0
      %1276 = vmatpush1.bf16.msra.mxu0 0
      %1277 = vmatprep.subr.bf16.mxu0 0
      %1278 = vmatpush1.bf16.msra.mxu0 0
      %1279 = vmatprep.mubr.bf16.mxu0 0
      %1280 = vmatmul.mubr.bf16.gmra.mrb[0].mxu0 %v593
      %v1281 = vpop.f32.mrb[0].mxu0
      %v1282 = vadd.f32 %v533, %v1281
      %v1283 = vpop.f32.mrb[0].mxu0
      %v1284 = vpop.f32.mrb[0].mxu0
      %v1285 = vadd.f32 %v536, %v1284
      %v1286 = vpop.f32.mrb[0].mxu0
      %1287 = vdwg.mxu0
      %v1288 = vmul.f32 %v1282, %v646
      %v1289 = vmul.f32 %v1285, %v651
      %v1290 = vadd.f32 %v1288, %v660
      %v1291 = vadd.f32 %v1289, %v665
      %v1292 = vmax.f32 %v1290, 0.0
      %v1293 = vmax.f32 %v1291, 0.0
      %v1294 = vld [vmem:[%s468] sm:$0x1]
      %v1295 = vld [vmem:[%s468 + $0x4] sm:$0x1]
      %v1296 = vld [vmem:[%s468 + $0x8] sm:$0x1]
      %v1297 = vld [vmem:[%s468 + $0xc] sm:$0x1]
      %v1298 = vld [vmem:[%s468 + $0x10] sm:$0x1]
      %v1299 = vld [vmem:[%s468 + $0x14] sm:$0x1]
      %v1300 = vld [vmem:[%s468 + $0x18] sm:$0x1]
      %v1301 = vld [vmem:[%s468 + $0x1c] sm:$0x1]
      %v1302 = vld [vmem:[%s468 + $0x20] sm:$0x1]
      %v1303 = vld [vmem:[%s468 + $0x24] sm:$0x1]
      %v1304 = vld [vmem:[%s468 + $0x28] sm:$0x1]
      %v1305 = vld [vmem:[%s468 + $0x2c] sm:$0x1]
      %v1306 = vld [vmem:[%s468 + $0x30] sm:$0x1]
      %v1307 = vld [vmem:[%s468 + $0x34] sm:$0x1]
      %v1308 = vld [vmem:[%s468 + $0x38] sm:$0x1]
      %v1309 = vld [vmem:[%s468 + $0x3c] sm:$0x1]
      %v1310 = vpack.c.bf16 %v670, %v669
      %v1327 = vunpack.c.l.b16 %v1294
      %v1328 = vunpack.c.l.b16 %v1295
      %v1329 = vunpack.c.l.b16 %v1296
      %v1330 = vunpack.c.l.b16 %v1297
      %v1331 = vunpack.c.l.b16 %v1298
      %v1332 = vunpack.c.l.b16 %v1299
      %v1333 = vunpack.c.l.b16 %v1300
      %v1334 = vunpack.c.l.b16 %v1301
      %v1335 = vunpack.c.l.b16 %v1302
      %v1336 = vunpack.c.l.b16 %v1303
      %v1337 = vunpack.c.l.b16 %v1304
      %v1338 = vunpack.c.l.b16 %v1305
      %v1339 = vunpack.c.l.b16 %v1306
      %v1340 = vunpack.c.l.b16 %v1307
      %v1341 = vunpack.c.l.b16 %v1308
      %v1342 = vunpack.c.l.b16 %v1309
      %v1343 = vpack.c.b16 %v1327, %v1327
      %v1344 = vpack.c.b16 %v1328, %v1328
      %v1345 = vpack.c.b16 %v1329, %v1329
      %v1346 = vpack.c.b16 %v1330, %v1330
      %v1347 = vpack.c.b16 %v1331, %v1331
      %v1348 = vpack.c.b16 %v1332, %v1332
      %v1349 = vpack.c.b16 %v1333, %v1333
      %v1350 = vpack.c.b16 %v1334, %v1334
      %v1351 = vpack.c.b16 %v1335, %v1335
      %v1352 = vpack.c.b16 %v1336, %v1336
      %v1353 = vpack.c.b16 %v1337, %v1337
      %v1354 = vpack.c.b16 %v1338, %v1338
      %v1355 = vpack.c.b16 %v1339, %v1339
      %v1356 = vpack.c.b16 %v1340, %v1340
      %v1357 = vpack.c.b16 %v1341, %v1341
      %v1358 = vpack.c.b16 %v1342, %v1342
      %v1359 = vunpack.c.l.b16 %v1343
      %v1360 = vunpack.c.l.b16 %v1344
      %v1361 = vunpack.c.l.b16 %v1345
      %v1362 = vunpack.c.l.b16 %v1346
      %v1363 = vunpack.c.l.b16 %v1347
      %v1364 = vunpack.c.l.b16 %v1348
      %v1365 = vunpack.c.l.b16 %v1349
      %v1366 = vunpack.c.l.b16 %v1350
      %v1367 = vunpack.c.l.b16 %v1351
      %v1368 = vunpack.c.l.b16 %v1352
      %v1369 = vunpack.c.l.b16 %v1353
      %v1370 = vunpack.c.l.b16 %v1354
      %v1371 = vunpack.c.l.b16 %v1355
      %v1372 = vunpack.c.l.b16 %v1356
      %v1373 = vunpack.c.l.b16 %v1357
      %v1374 = vunpack.c.l.b16 %v1358
      %v1375 = vrot.slane %v1360, 7
      %v1376 = vsel %vm546, %v1375, %v1359
      %v1377 = vrot.slane %v1361, 6
      %v1378 = vsel %vm549, %v1377, %v1376
      %v1379 = vrot.slane %v1362, 5
      %vm1380 = vcmask 1043459
      %v1381 = vsel %vm1380, %v1379, %v1378
      %v1382 = vrot.slane %v1363, 4
      %vm1383 = vcmask 1044484
      %v1384 = vsel %vm1383, %v1382, %v1381
      %v1385 = vrot.slane %v1364, 3
      %v1386 = vsel %vm574, %v1385, %v1384
      %v1387 = vrot.slane %v1365, 2
      %v1388 = vsel %vm577, %v1387, %v1386
      %v1389 = vrot.slane %v1366, 1
      %vm1390 = vcmask 1047559
      %v1391 = vsel %vm1390, %v1389, %v1388
      %v1392 = vrot.slane %v1368, 7
      %v1393 = vsel %vm546, %v1392, %v1367
      %v1394 = vrot.slane %v1369, 6
      %v1395 = vsel %vm549, %v1394, %v1393
      %v1396 = vrot.slane %v1370, 5
      %v1397 = vsel %vm1380, %v1396, %v1395
      %v1398 = vrot.slane %v1371, 4
      %v1399 = vsel %vm1383, %v1398, %v1397
      %v1400 = vrot.slane %v1372, 3
      %v1401 = vsel %vm574, %v1400, %v1399
      %v1402 = vrot.slane %v1373, 2
      %v1403 = vsel %vm577, %v1402, %v1401
      %v1404 = vrot.slane %v1374, 1
      %v1405 = vsel %vm1390, %v1404, %v1403
      %v1406 = vpack.c.b16 %v1405, %v1391
      %v1408 = vld [vmem:[%s7] sm:$0xf]
      %v1409 = vld [vmem:[%s7 + $0x4] sm:$0xf]
      %v1410 = vld [vmem:[%s7 + $0x8] sm:$0xf]
      %v1411 = vld [vmem:[%s7 + $0xc] sm:$0xf]
      %v1416 = vunpack.c.l.b16 %v1408
      %v1417 = vunpack.c.l.b16 %v1409
      %v1418 = vunpack.c.l.b16 %v1410
      %v1419 = vunpack.c.l.b16 %v1411
      %v1420 = vpack.c.b16 %v1417, %v1416
      %v1421 = vpack.c.b16 %v1419, %v1418
      %vm1422 = vcmask 261120
      %v1424 = vsel %vm1422, %v1420, 0
      %v1427 = vsel %vm1422, %v1421, 0
      %1429 = vmatprep.subr.bf16.mxu0 0
      %1430 = vmatpush1.bf16.msra.mxu0 %v1406
      %1431 = vmatprep.subr.bf16.mxu0 0
      %1432 = vmatpush1.bf16.msra.mxu0 %v1310
      %1433 = vmatprep.subr.bf16.mxu0 0
      %1434 = vmatpush1.bf16.msra.mxu0 0
      %1435 = vmatprep.subr.bf16.mxu0 0
      %1436 = vmatpush1.bf16.msra.mxu0 0
      %1437 = vmatprep.subr.bf16.mxu0 0
      %1438 = vmatpush1.bf16.msra.mxu0 0
      %1439 = vmatprep.subr.bf16.mxu0 0
      %1440 = vmatpush1.bf16.msra.mxu0 0
      %1441 = vmatprep.subr.bf16.mxu0 0
      %1442 = vmatpush1.bf16.msra.mxu0 0
      %1443 = vmatprep.subr.bf16.mxu0 0
      %1444 = vmatpush1.bf16.msra.mxu0 0
      %1445 = vmatprep.subr.bf16.mxu0 0
      %1446 = vmatpush1.bf16.msra.mxu0 0
      %1447 = vmatprep.subr.bf16.mxu0 0
      %1448 = vmatpush1.bf16.msra.mxu0 0
      %1449 = vmatprep.subr.bf16.mxu0 0
      %1450 = vmatpush1.bf16.msra.mxu0 0
      %1451 = vmatprep.subr.bf16.mxu0 0
      %1452 = vmatpush1.bf16.msra.mxu0 0
      %1453 = vmatprep.subr.bf16.mxu0 0
      %1454 = vmatpush1.bf16.msra.mxu0 0
      %1455 = vmatprep.subr.bf16.mxu0 0
      %1456 = vmatpush1.bf16.msra.mxu0 0
      %1457 = vmatprep.subr.bf16.mxu0 0
      %1458 = vmatpush1.bf16.msra.mxu0 0
      %1459 = vmatprep.subr.bf16.mxu0 0
      %1460 = vmatpush1.bf16.msra.mxu0 0
      %1461 = vmatprep.mubr.bf16.mxu0 0
      %1462 = vmatmul.mubr.bf16.gmra.mrb[0].mxu0 %v1424
      %v1463 = vpop.f32.mrb[0].mxu0
      %v1464 = vadd.f32 0.0, %v1463
      %v1465 = vpop.f32.mrb[0].mxu0
      %v1466 = vpop.f32.mrb[0].mxu0
      %v1467 = vadd.f32 0.0, %v1466
      %v1468 = vpop.f32.mrb[0].mxu0
      %1469 = vmatprep.mubr.bf16.mxu0 0
      %1470 = vmatmul.mubr.bf16.gmra.mrb[0].mxu0 %v1427
      %v1471 = vpop.f32.mrb[0].mxu0
      %v1472 = vadd.f32 0.0, %v1471
      %v1473 = vpop.f32.mrb[0].mxu0
      %v1474 = vpop.f32.mrb[0].mxu0
      %v1475 = vadd.f32 0.0, %v1474
      %v1476 = vpop.f32.mrb[0].mxu0
      %1477 = vdwg.mxu0
      %v1478 = vpack.c.bf16 %v759, %v758
      %v1479 = vrot.slane %v1359, 1
      %v1480 = vsel %vm546, %v1360, %v1479
      %v1481 = vrot.slane %v1361, 7
      %v1482 = vsel %vm549, %v1481, %v1480
      %v1483 = vrot.slane %v1362, 6
      %v1484 = vsel %vm1380, %v1483, %v1482
      %v1485 = vrot.slane %v1363, 5
      %v1486 = vsel %vm1383, %v1485, %v1484
      %v1487 = vrot.slane %v1364, 4
      %v1488 = vsel %vm574, %v1487, %v1486
      %v1489 = vrot.slane %v1365, 3
      %v1490 = vsel %vm577, %v1489, %v1488
      %v1491 = vrot.slane %v1366, 2
      %v1492 = vsel %vm1390, %v1491, %v1490
      %v1493 = vrot.slane %v1367, 1
      %v1494 = vsel %vm546, %v1368, %v1493
      %v1495 = vrot.slane %v1369, 7
      %v1496 = vsel %vm549, %v1495, %v1494
      %v1497 = vrot.slane %v1370, 6
      %v1498 = vsel %vm1380, %v1497, %v1496
      %v1499 = vrot.slane %v1371, 5
      %v1500 = vsel %vm1383, %v1499, %v1498
      %v1501 = vrot.slane %v1372, 4
      %v1502 = vsel %vm574, %v1501, %v1500
      %v1503 = vrot.slane %v1373, 3
      %v1504 = vsel %vm577, %v1503, %v1502
      %v1505 = vrot.slane %v1374, 2
      %v1506 = vsel %vm1390, %v1505, %v1504
      %v1507 = vpack.c.b16 %v1506, %v1492
      %1509 = vmatprep.subr.bf16.mxu0 0
      %1510 = vmatpush1.bf16.msra.mxu0 %v1507
      %1511 = vmatprep.subr.bf16.mxu0 0
      %1512 = vmatpush1.bf16.msra.mxu0 %v1478
      %1513 = vmatprep.subr.bf16.mxu0 0
      %1514 = vmatpush1.bf16.msra.mxu0 0
      %1515 = vmatprep.subr.bf16.mxu0 0
      %1516 = vmatpush1.bf16.msra.mxu0 0
      %1517 = vmatprep.subr.bf16.mxu0 0
      %1518 = vmatpush1.bf16.msra.mxu0 0
      %1519 = vmatprep.subr.bf16.mxu0 0
      %1520 = vmatpush1.bf16.msra.mxu0 0
      %1521 = vmatprep.subr.bf16.mxu0 0
      %1522 = vmatpush1.bf16.msra.mxu0 0
      %1523 = vmatprep.subr.bf16.mxu0 0
      %1524 = vmatpush1.bf16.msra.mxu0 0
      %1525 = vmatprep.subr.bf16.mxu0 0
      %1526 = vmatpush1.bf16.msra.mxu0 0
      %1527 = vmatprep.subr.bf16.mxu0 0
      %1528 = vmatpush1.bf16.msra.mxu0 0
      %1529 = vmatprep.subr.bf16.mxu0 0
      %1530 = vmatpush1.bf16.msra.mxu0 0
      %1531 = vmatprep.subr.bf16.mxu0 0
      %1532 = vmatpush1.bf16.msra.mxu0 0
      %1533 = vmatprep.subr.bf16.mxu0 0
      %1534 = vmatpush1.bf16.msra.mxu0 0
      %1535 = vmatprep.subr.bf16.mxu0 0
      %1536 = vmatpush1.bf16.msra.mxu0 0
      %1537 = vmatprep.subr.bf16.mxu0 0
      %1538 = vmatpush1.bf16.msra.mxu0 0
      %1539 = vmatprep.subr.bf16.mxu0 0
      %1540 = vmatpush1.bf16.msra.mxu0 0
      %1541 = vmatprep.mubr.bf16.mxu0 0
      %1542 = vmatmul.mubr.bf16.gmra.mrb[0].mxu0 %v1424
      %v1543 = vpop.f32.mrb[0].mxu0
      %v1544 = vadd.f32 0.0, %v1543
      %v1545 = vpop.f32.mrb[0].mxu0
      %v1546 = vpop.f32.mrb[0].mxu0
      %v1547 = vadd.f32 0.0, %v1546
      %v1548 = vpop.f32.mrb[0].mxu0
      %1549 = vmatprep.mubr.bf16.mxu0 0
      %1550 = vmatmul.mubr.bf16.gmra.mrb[0].mxu0 %v1427
      %v1551 = vpop.f32.mrb[0].mxu0
      %v1552 = vadd.f32 0.0, %v1551
      %v1553 = vpop.f32.mrb[0].mxu0
      %v1554 = vpop.f32.mrb[0].mxu0
      %v1555 = vadd.f32 0.0, %v1554
      %v1556 = vpop.f32.mrb[0].mxu0
      %1557 = vdwg.mxu0
      %v1558 = vld [vmem:[%s468] sm:$0x2]
      %v1559 = vld [vmem:[%s468 + $0x4] sm:$0x2]
      %v1560 = vld [vmem:[%s468 + $0x8] sm:$0x2]
      %v1561 = vld [vmem:[%s468 + $0xc] sm:$0x2]
      %v1562 = vld [vmem:[%s468 + $0x10] sm:$0x2]
      %v1563 = vld [vmem:[%s468 + $0x14] sm:$0x2]
      %v1564 = vld [vmem:[%s468 + $0x18] sm:$0x2]
      %v1565 = vld [vmem:[%s468 + $0x1c] sm:$0x2]
      %v1566 = vld [vmem:[%s468 + $0x20] sm:$0x2]
      %v1567 = vld [vmem:[%s468 + $0x24] sm:$0x2]
      %v1568 = vld [vmem:[%s468 + $0x28] sm:$0x2]
      %v1569 = vld [vmem:[%s468 + $0x2c] sm:$0x2]
      %v1570 = vld [vmem:[%s468 + $0x30] sm:$0x2]
      %v1571 = vld [vmem:[%s468 + $0x34] sm:$0x2]
      %v1572 = vld [vmem:[%s468 + $0x38] sm:$0x2]
      %v1573 = vld [vmem:[%s468 + $0x3c] sm:$0x2]
      %v1574 = vpack.c.bf16 %v848, %v847
      %v1591 = vunpack.c.l.b16 %v1558
      %v1592 = vunpack.c.l.b16 %v1559
      %v1593 = vunpack.c.l.b16 %v1560
      %v1594 = vunpack.c.l.b16 %v1561
      %v1595 = vunpack.c.l.b16 %v1562
      %v1596 = vunpack.c.l.b16 %v1563
      %v1597 = vunpack.c.l.b16 %v1564
      %v1598 = vunpack.c.l.b16 %v1565
      %v1599 = vunpack.c.l.b16 %v1566
      %v1600 = vunpack.c.l.b16 %v1567
      %v1601 = vunpack.c.l.b16 %v1568
      %v1602 = vunpack.c.l.b16 %v1569
      %v1603 = vunpack.c.l.b16 %v1570
      %v1604 = vunpack.c.l.b16 %v1571
      %v1605 = vunpack.c.l.b16 %v1572
      %v1606 = vunpack.c.l.b16 %v1573
      %v1607 = vpack.c.b16 %v1591, %v1591
      %v1608 = vpack.c.b16 %v1592, %v1592
      %v1609 = vpack.c.b16 %v1593, %v1593
      %v1610 = vpack.c.b16 %v1594, %v1594
      %v1611 = vpack.c.b16 %v1595, %v1595
      %v1612 = vpack.c.b16 %v1596, %v1596
      %v1613 = vpack.c.b16 %v1597, %v1597
      %v1614 = vpack.c.b16 %v1598, %v1598
      %v1615 = vpack.c.b16 %v1599, %v1599
      %v1616 = vpack.c.b16 %v1600, %v1600
      %v1617 = vpack.c.b16 %v1601, %v1601
      %v1618 = vpack.c.b16 %v1602, %v1602
      %v1619 = vpack.c.b16 %v1603, %v1603
      %v1620 = vpack.c.b16 %v1604, %v1604
      %v1621 = vpack.c.b16 %v1605, %v1605
      %v1622 = vpack.c.b16 %v1606, %v1606
      %v1623 = vunpack.c.l.b16 %v1607
      %v1624 = vunpack.c.l.b16 %v1608
      %v1625 = vunpack.c.l.b16 %v1609
      %v1626 = vunpack.c.l.b16 %v1610
      %v1627 = vunpack.c.l.b16 %v1611
      %v1628 = vunpack.c.l.b16 %v1612
      %v1629 = vunpack.c.l.b16 %v1613
      %v1630 = vunpack.c.l.b16 %v1614
      %v1631 = vunpack.c.l.b16 %v1615
      %v1632 = vunpack.c.l.b16 %v1616
      %v1633 = vunpack.c.l.b16 %v1617
      %v1634 = vunpack.c.l.b16 %v1618
      %v1635 = vunpack.c.l.b16 %v1619
      %v1636 = vunpack.c.l.b16 %v1620
      %v1637 = vunpack.c.l.b16 %v1621
      %v1638 = vunpack.c.l.b16 %v1622
      %v1639 = vrot.slane %v1623, 2
      %v1640 = vrot.slane %v1624, 1
      %v1641 = vsel %vm546, %v1640, %v1639
      %v1642 = vsel %vm549, %v1625, %v1641
      %v1643 = vrot.slane %v1626, 7
      %v1644 = vsel %vm1380, %v1643, %v1642
      %v1645 = vrot.slane %v1627, 6
      %v1646 = vsel %vm1383, %v1645, %v1644
      %v1647 = vrot.slane %v1628, 5
      %v1648 = vsel %vm574, %v1647, %v1646
      %v1649 = vrot.slane %v1629, 4
      %v1650 = vsel %vm577, %v1649, %v1648
      %v1651 = vrot.slane %v1630, 3
      %v1652 = vsel %vm1390, %v1651, %v1650
      %v1653 = vrot.slane %v1631, 2
      %v1654 = vrot.slane %v1632, 1
      %v1655 = vsel %vm546, %v1654, %v1653
      %v1656 = vsel %vm549, %v1633, %v1655
      %v1657 = vrot.slane %v1634, 7
      %v1658 = vsel %vm1380, %v1657, %v1656
      %v1659 = vrot.slane %v1635, 6
      %v1660 = vsel %vm1383, %v1659, %v1658
      %v1661 = vrot.slane %v1636, 5
      %v1662 = vsel %vm574, %v1661, %v1660
      %v1663 = vrot.slane %v1637, 4
      %v1664 = vsel %vm577, %v1663, %v1662
      %v1665 = vrot.slane %v1638, 3
      %v1666 = vsel %vm1390, %v1665, %v1664
      %v1667 = vpack.c.b16 %v1666, %v1652
      %1669 = vmatprep.subr.bf16.mxu0 0
      %1670 = vmatpush1.bf16.msra.mxu0 %v1667
      %1671 = vmatprep.subr.bf16.mxu0 0
      %1672 = vmatpush1.bf16.msra.mxu0 %v1574
      %1673 = vmatprep.subr.bf16.mxu0 0
      %1674 = vmatpush1.bf16.msra.mxu0 0
      %1675 = vmatprep.subr.bf16.mxu0 0
      %1676 = vmatpush1.bf16.msra.mxu0 0
      %1677 = vmatprep.subr.bf16.mxu0 0
      %1678 = vmatpush1.bf16.msra.mxu0 0
      %1679 = vmatprep.subr.bf16.mxu0 0
      %1680 = vmatpush1.bf16.msra.mxu0 0
      %1681 = vmatprep.subr.bf16.mxu0 0
      %1682 = vmatpush1.bf16.msra.mxu0 0
      %1683 = vmatprep.subr.bf16.mxu0 0
      %1684 = vmatpush1.bf16.msra.mxu0 0
      %1685 = vmatprep.subr.bf16.mxu0 0
      %1686 = vmatpush1.bf16.msra.mxu0 0
      %1687 = vmatprep.subr.bf16.mxu0 0
      %1688 = vmatpush1.bf16.msra.mxu0 0
      %1689 = vmatprep.subr.bf16.mxu0 0
      %1690 = vmatpush1.bf16.msra.mxu0 0
      %1691 = vmatprep.subr.bf16.mxu0 0
      %1692 = vmatpush1.bf16.msra.mxu0 0
      %1693 = vmatprep.subr.bf16.mxu0 0
      %1694 = vmatpush1.bf16.msra.mxu0 0
      %1695 = vmatprep.subr.bf16.mxu0 0
      %1696 = vmatpush1.bf16.msra.mxu0 0
      %1697 = vmatprep.subr.bf16.mxu0 0
      %1698 = vmatpush1.bf16.msra.mxu0 0
      %1699 = vmatprep.subr.bf16.mxu0 0
      %1700 = vmatpush1.bf16.msra.mxu0 0
      %1701 = vmatprep.mubr.bf16.mxu0 0
      %1702 = vmatmul.mubr.bf16.gmra.mrb[0].mxu0 %v1424
      %v1703 = vpop.f32.mrb[0].mxu0
      %v1704 = vadd.f32 0.0, %v1703
      %v1705 = vpop.f32.mrb[0].mxu0
      %v1706 = vpop.f32.mrb[0].mxu0
      %v1707 = vadd.f32 0.0, %v1706
      %v1708 = vpop.f32.mrb[0].mxu0
      %1709 = vmatprep.mubr.bf16.mxu0 0
      %1710 = vmatmul.mubr.bf16.gmra.mrb[0].mxu0 %v1427
      %v1711 = vpop.f32.mrb[0].mxu0
      %v1712 = vadd.f32 0.0, %v1711
      %v1713 = vpop.f32.mrb[0].mxu0
      %v1714 = vpop.f32.mrb[0].mxu0
      %v1715 = vadd.f32 0.0, %v1714
      %v1716 = vpop.f32.mrb[0].mxu0
      %1717 = vdwg.mxu0
      %v1718 = vpack.c.bf16 %v937, %v936
      %v1719 = vrot.slane %v1623, 3
      %v1720 = vrot.slane %v1624, 2
      %v1721 = vsel %vm546, %v1720, %v1719
      %v1722 = vrot.slane %v1625, 1
      %v1723 = vsel %vm549, %v1722, %v1721
      %v1724 = vsel %vm1380, %v1626, %v1723
      %v1725 = vrot.slane %v1627, 7
      %v1726 = vsel %vm1383, %v1725, %v1724
      %v1727 = vrot.slane %v1628, 6
      %v1728 = vsel %vm574, %v1727, %v1726
      %v1729 = vrot.slane %v1629, 5
      %v1730 = vsel %vm577, %v1729, %v1728
      %v1731 = vrot.slane %v1630, 4
      %v1732 = vsel %vm1390, %v1731, %v1730
      %v1733 = vrot.slane %v1631, 3
      %v1734 = vrot.slane %v1632, 2
      %v1735 = vsel %vm546, %v1734, %v1733
      %v1736 = vrot.slane %v1633, 1
      %v1737 = vsel %vm549, %v1736, %v1735
      %v1738 = vsel %vm1380, %v1634, %v1737
      %v1739 = vrot.slane %v1635, 7
      %v1740 = vsel %vm1383, %v1739, %v1738
      %v1741 = vrot.slane %v1636, 6
      %v1742 = vsel %vm574, %v1741, %v1740
      %v1743 = vrot.slane %v1637, 5
      %v1744 = vsel %vm577, %v1743, %v1742
      %v1745 = vrot.slane %v1638, 4
      %v1746 = vsel %vm1390, %v1745, %v1744
      %v1747 = vpack.c.b16 %v1746, %v1732
      %1749 = vmatprep.subr.bf16.mxu0 0
      %1750 = vmatpush1.bf16.msra.mxu0 %v1747
      %1751 = vmatprep.subr.bf16.mxu0 0
      %1752 = vmatpush1.bf16.msra.mxu0 %v1718
      %1753 = vmatprep.subr.bf16.mxu0 0
      %1754 = vmatpush1.bf16.msra.mxu0 0
      %1755 = vmatprep.subr.bf16.mxu0 0
      %1756 = vmatpush1.bf16.msra.mxu0 0
      %1757 = vmatprep.subr.bf16.mxu0 0
      %1758 = vmatpush1.bf16.msra.mxu0 0
      %1759 = vmatprep.subr.bf16.mxu0 0
      %1760 = vmatpush1.bf16.msra.mxu0 0
      %1761 = vmatprep.subr.bf16.mxu0 0
      %1762 = vmatpush1.bf16.msra.mxu0 0
      %1763 = vmatprep.subr.bf16.mxu0 0
      %1764 = vmatpush1.bf16.msra.mxu0 0
      %1765 = vmatprep.subr.bf16.mxu0 0
      %1766 = vmatpush1.bf16.msra.mxu0 0
      %1767 = vmatprep.subr.bf16.mxu0 0
      %1768 = vmatpush1.bf16.msra.mxu0 0
      %1769 = vmatprep.subr.bf16.mxu0 0
      %1770 = vmatpush1.bf16.msra.mxu0 0
      %1771 = vmatprep.subr.bf16.mxu0 0
      %1772 = vmatpush1.bf16.msra.mxu0 0
      %1773 = vmatprep.subr.bf16.mxu0 0
      %1774 = vmatpush1.bf16.msra.mxu0 0
      %1775 = vmatprep.subr.bf16.mxu0 0
      %1776 = vmatpush1.bf16.msra.mxu0 0
      %1777 = vmatprep.subr.bf16.mxu0 0
      %1778 = vmatpush1.bf16.msra.mxu0 0
      %1779 = vmatprep.subr.bf16.mxu0 0
      %1780 = vmatpush1.bf16.msra.mxu0 0
      %1781 = vmatprep.mubr.bf16.mxu0 0
      %1782 = vmatmul.mubr.bf16.gmra.mrb[0].mxu0 %v1424
      %v1783 = vpop.f32.mrb[0].mxu0
      %v1784 = vadd.f32 0.0, %v1783
      %v1785 = vpop.f32.mrb[0].mxu0
      %v1786 = vpop.f32.mrb[0].mxu0
      %v1787 = vadd.f32 0.0, %v1786
      %v1788 = vpop.f32.mrb[0].mxu0
      %1789 = vmatprep.mubr.bf16.mxu0 0
      %1790 = vmatmul.mubr.bf16.gmra.mrb[0].mxu0 %v1427
      %v1791 = vpop.f32.mrb[0].mxu0
      %v1792 = vadd.f32 0.0, %v1791
      %v1793 = vpop.f32.mrb[0].mxu0
      %v1794 = vpop.f32.mrb[0].mxu0
      %v1795 = vadd.f32 0.0, %v1794
      %v1796 = vpop.f32.mrb[0].mxu0
      %1797 = vdwg.mxu0
      %v1798 = vld [vmem:[%s468] sm:$0x4]
      %v1799 = vld [vmem:[%s468 + $0x4] sm:$0x4]
      %v1800 = vld [vmem:[%s468 + $0x8] sm:$0x4]
      %v1801 = vld [vmem:[%s468 + $0xc] sm:$0x4]
      %v1802 = vld [vmem:[%s468 + $0x10] sm:$0x4]
      %v1803 = vld [vmem:[%s468 + $0x14] sm:$0x4]
      %v1804 = vld [vmem:[%s468 + $0x18] sm:$0x4]
      %v1805 = vld [vmem:[%s468 + $0x1c] sm:$0x4]
      %v1806 = vld [vmem:[%s468 + $0x20] sm:$0x4]
      %v1807 = vld [vmem:[%s468 + $0x24] sm:$0x4]
      %v1808 = vld [vmem:[%s468 + $0x28] sm:$0x4]
      %v1809 = vld [vmem:[%s468 + $0x2c] sm:$0x4]
      %v1810 = vld [vmem:[%s468 + $0x30] sm:$0x4]
      %v1811 = vld [vmem:[%s468 + $0x34] sm:$0x4]
      %v1812 = vld [vmem:[%s468 + $0x38] sm:$0x4]
      %v1813 = vld [vmem:[%s468 + $0x3c] sm:$0x4]
      %v1814 = vpack.c.bf16 %v1026, %v1025
      %v1831 = vunpack.c.l.b16 %v1798
      %v1832 = vunpack.c.l.b16 %v1799
      %v1833 = vunpack.c.l.b16 %v1800
      %v1834 = vunpack.c.l.b16 %v1801
      %v1835 = vunpack.c.l.b16 %v1802
      %v1836 = vunpack.c.l.b16 %v1803
      %v1837 = vunpack.c.l.b16 %v1804
      %v1838 = vunpack.c.l.b16 %v1805
      %v1839 = vunpack.c.l.b16 %v1806
      %v1840 = vunpack.c.l.b16 %v1807
      %v1841 = vunpack.c.l.b16 %v1808
      %v1842 = vunpack.c.l.b16 %v1809
      %v1843 = vunpack.c.l.b16 %v1810
      %v1844 = vunpack.c.l.b16 %v1811
      %v1845 = vunpack.c.l.b16 %v1812
      %v1846 = vunpack.c.l.b16 %v1813
      %v1847 = vpack.c.b16 %v1831, %v1831
      %v1848 = vpack.c.b16 %v1832, %v1832
      %v1849 = vpack.c.b16 %v1833, %v1833
      %v1850 = vpack.c.b16 %v1834, %v1834
      %v1851 = vpack.c.b16 %v1835, %v1835
      %v1852 = vpack.c.b16 %v1836, %v1836
      %v1853 = vpack.c.b16 %v1837, %v1837
      %v1854 = vpack.c.b16 %v1838, %v1838
      %v1855 = vpack.c.b16 %v1839, %v1839
      %v1856 = vpack.c.b16 %v1840, %v1840
      %v1857 = vpack.c.b16 %v1841, %v1841
      %v1858 = vpack.c.b16 %v1842, %v1842
      %v1859 = vpack.c.b16 %v1843, %v1843
      %v1860 = vpack.c.b16 %v1844, %v1844
      %v1861 = vpack.c.b16 %v1845, %v1845
      %v1862 = vpack.c.b16 %v1846, %v1846
      %v1863 = vunpack.c.l.b16 %v1847
      %v1864 = vunpack.c.l.b16 %v1848
      %v1865 = vunpack.c.l.b16 %v1849
      %v1866 = vunpack.c.l.b16 %v1850
      %v1867 = vunpack.c.l.b16 %v1851
      %v1868 = vunpack.c.l.b16 %v1852
      %v1869 = vunpack.c.l.b16 %v1853
      %v1870 = vunpack.c.l.b16 %v1854
      %v1871 = vunpack.c.l.b16 %v1855
      %v1872 = vunpack.c.l.b16 %v1856
      %v1873 = vunpack.c.l.b16 %v1857
      %v1874 = vunpack.c.l.b16 %v1858
      %v1875 = vunpack.c.l.b16 %v1859
      %v1876 = vunpack.c.l.b16 %v1860
      %v1877 = vunpack.c.l.b16 %v1861
      %v1878 = vunpack.c.l.b16 %v1862
      %v1879 = vrot.slane %v1863, 4
      %v1880 = vrot.slane %v1864, 3
      %v1881 = vsel %vm546, %v1880, %v1879
      %v1882 = vrot.slane %v1865, 2
      %v1883 = vsel %vm549, %v1882, %v1881
      %v1884 = vrot.slane %v1866, 1
      %v1885 = vsel %vm1380, %v1884, %v1883
      %v1886 = vsel %vm1383, %v1867, %v1885
      %v1887 = vrot.slane %v1868, 7
      %v1888 = vsel %vm574, %v1887, %v1886
      %v1889 = vrot.slane %v1869, 6
      %v1890 = vsel %vm577, %v1889, %v1888
      %v1891 = vrot.slane %v1870, 5
      %v1892 = vsel %vm1390, %v1891, %v1890
      %v1893 = vrot.slane %v1871, 4
      %v1894 = vrot.slane %v1872, 3
      %v1895 = vsel %vm546, %v1894, %v1893
      %v1896 = vrot.slane %v1873, 2
      %v1897 = vsel %vm549, %v1896, %v1895
      %v1898 = vrot.slane %v1874, 1
      %v1899 = vsel %vm1380, %v1898, %v1897
      %v1900 = vsel %vm1383, %v1875, %v1899
      %v1901 = vrot.slane %v1876, 7
      %v1902 = vsel %vm574, %v1901, %v1900
      %v1903 = vrot.slane %v1877, 6
      %v1904 = vsel %vm577, %v1903, %v1902
      %v1905 = vrot.slane %v1878, 5
      %v1906 = vsel %vm1390, %v1905, %v1904
      %v1907 = vpack.c.b16 %v1906, %v1892
      %1909 = vmatprep.subr.bf16.mxu0 0
      %1910 = vmatpush1.bf16.msra.mxu0 %v1907
      %1911 = vmatprep.subr.bf16.mxu0 0
      %1912 = vmatpush1.bf16.msra.mxu0 %v1814
      %1913 = vmatprep.subr.bf16.mxu0 0
      %1914 = vmatpush1.bf16.msra.mxu0 0
      %1915 = vmatprep.subr.bf16.mxu0 0
      %1916 = vmatpush1.bf16.msra.mxu0 0
      %1917 = vmatprep.subr.bf16.mxu0 0
      %1918 = vmatpush1.bf16.msra.mxu0 0
      %1919 = vmatprep.subr.bf16.mxu0 0
      %1920 = vmatpush1.bf16.msra.mxu0 0
      %1921 = vmatprep.subr.bf16.mxu0 0
      %1922 = vmatpush1.bf16.msra.mxu0 0
      %1923 = vmatprep.subr.bf16.mxu0 0
      %1924 = vmatpush1.bf16.msra.mxu0 0
      %1925 = vmatprep.subr.bf16.mxu0 0
      %1926 = vmatpush1.bf16.msra.mxu0 0
      %1927 = vmatprep.subr.bf16.mxu0 0
      %1928 = vmatpush1.bf16.msra.mxu0 0
      %1929 = vmatprep.subr.bf16.mxu0 0
      %1930 = vmatpush1.bf16.msra.mxu0 0
      %1931 = vmatprep.subr.bf16.mxu0 0
      %1932 = vmatpush1.bf16.msra.mxu0 0
      %1933 = vmatprep.subr.bf16.mxu0 0
      %1934 = vmatpush1.bf16.msra.mxu0 0
      %1935 = vmatprep.subr.bf16.mxu0 0
      %1936 = vmatpush1.bf16.msra.mxu0 0
      %1937 = vmatprep.subr.bf16.mxu0 0
      %1938 = vmatpush1.bf16.msra.mxu0 0
      %1939 = vmatprep.subr.bf16.mxu0 0
      %1940 = vmatpush1.bf16.msra.mxu0 0
      %1941 = vmatprep.mubr.bf16.mxu0 0
      %1942 = vmatmul.mubr.bf16.gmra.mrb[0].mxu0 %v1424
      %v1943 = vpop.f32.mrb[0].mxu0
      %v1944 = vadd.f32 0.0, %v1943
      %v1945 = vpop.f32.mrb[0].mxu0
      %v1946 = vpop.f32.mrb[0].mxu0
      %v1947 = vadd.f32 0.0, %v1946
      %v1948 = vpop.f32.mrb[0].mxu0
      %1949 = vmatprep.mubr.bf16.mxu0 0
      %1950 = vmatmul.mubr.bf16.gmra.mrb[0].mxu0 %v1427
      %v1951 = vpop.f32.mrb[0].mxu0
      %v1952 = vadd.f32 0.0, %v1951
      %v1953 = vpop.f32.mrb[0].mxu0
      %v1954 = vpop.f32.mrb[0].mxu0
      %v1955 = vadd.f32 0.0, %v1954
      %v1956 = vpop.f32.mrb[0].mxu0
      %1957 = vdwg.mxu0
      %v1958 = vpack.c.bf16 %v1115, %v1114
      %v1959 = vrot.slane %v1863, 5
      %v1960 = vrot.slane %v1864, 4
      %v1961 = vsel %vm546, %v1960, %v1959
      %v1962 = vrot.slane %v1865, 3
      %v1963 = vsel %vm549, %v1962, %v1961
      %v1964 = vrot.slane %v1866, 2
      %v1965 = vsel %vm1380, %v1964, %v1963
      %v1966 = vrot.slane %v1867, 1
      %v1967 = vsel %vm1383, %v1966, %v1965
      %v1968 = vsel %vm574, %v1868, %v1967
      %v1969 = vrot.slane %v1869, 7
      %v1970 = vsel %vm577, %v1969, %v1968
      %v1971 = vrot.slane %v1870, 6
      %v1972 = vsel %vm1390, %v1971, %v1970
      %v1973 = vrot.slane %v1871, 5
      %v1974 = vrot.slane %v1872, 4
      %v1975 = vsel %vm546, %v1974, %v1973
      %v1976 = vrot.slane %v1873, 3
      %v1977 = vsel %vm549, %v1976, %v1975
      %v1978 = vrot.slane %v1874, 2
      %v1979 = vsel %vm1380, %v1978, %v1977
      %v1980 = vrot.slane %v1875, 1
      %v1981 = vsel %vm1383, %v1980, %v1979
      %v1982 = vsel %vm574, %v1876, %v1981
      %v1983 = vrot.slane %v1877, 7
      %v1984 = vsel %vm577, %v1983, %v1982
      %v1985 = vrot.slane %v1878, 6
      %v1986 = vsel %vm1390, %v1985, %v1984
      %v1987 = vpack.c.b16 %v1986, %v1972
      %1989 = vmatprep.subr.bf16.mxu0 0
      %1990 = vmatpush1.bf16.msra.mxu0 %v1987
      %1991 = vmatprep.subr.bf16.mxu0 0
      %1992 = vmatpush1.bf16.msra.mxu0 %v1958
      %1993 = vmatprep.subr.bf16.mxu0 0
      %1994 = vmatpush1.bf16.msra.mxu0 0
      %1995 = vmatprep.subr.bf16.mxu0 0
      %1996 = vmatpush1.bf16.msra.mxu0 0
      %1997 = vmatprep.subr.bf16.mxu0 0
      %1998 = vmatpush1.bf16.msra.mxu0 0
      %1999 = vmatprep.subr.bf16.mxu0 0
      %2000 = vmatpush1.bf16.msra.mxu0 0
      %2001 = vmatprep.subr.bf16.mxu0 0
      %2002 = vmatpush1.bf16.msra.mxu0 0
      %2003 = vmatprep.subr.bf16.mxu0 0
      %2004 = vmatpush1.bf16.msra.mxu0 0
      %2005 = vmatprep.subr.bf16.mxu0 0
      %2006 = vmatpush1.bf16.msra.mxu0 0
      %2007 = vmatprep.subr.bf16.mxu0 0
      %2008 = vmatpush1.bf16.msra.mxu0 0
      %2009 = vmatprep.subr.bf16.mxu0 0
      %2010 = vmatpush1.bf16.msra.mxu0 0
      %2011 = vmatprep.subr.bf16.mxu0 0
      %2012 = vmatpush1.bf16.msra.mxu0 0
      %2013 = vmatprep.subr.bf16.mxu0 0
      %2014 = vmatpush1.bf16.msra.mxu0 0
      %2015 = vmatprep.subr.bf16.mxu0 0
      %2016 = vmatpush1.bf16.msra.mxu0 0
      %2017 = vmatprep.subr.bf16.mxu0 0
      %2018 = vmatpush1.bf16.msra.mxu0 0
      %2019 = vmatprep.subr.bf16.mxu0 0
      %2020 = vmatpush1.bf16.msra.mxu0 0
      %2021 = vmatprep.mubr.bf16.mxu0 0
      %2022 = vmatmul.mubr.bf16.gmra.mrb[0].mxu0 %v1424
      %v2023 = vpop.f32.mrb[0].mxu0
      %v2024 = vadd.f32 0.0, %v2023
      %v2025 = vpop.f32.mrb[0].mxu0
      %v2026 = vpop.f32.mrb[0].mxu0
      %v2027 = vadd.f32 0.0, %v2026
      %v2028 = vpop.f32.mrb[0].mxu0
      %2029 = vmatprep.mubr.bf16.mxu0 0
      %2030 = vmatmul.mubr.bf16.gmra.mrb[0].mxu0 %v1427
      %v2031 = vpop.f32.mrb[0].mxu0
      %v2032 = vadd.f32 0.0, %v2031
      %v2033 = vpop.f32.mrb[0].mxu0
      %v2034 = vpop.f32.mrb[0].mxu0
      %v2035 = vadd.f32 0.0, %v2034
      %v2036 = vpop.f32.mrb[0].mxu0
      %2037 = vdwg.mxu0
      %v2038 = vld [vmem:[%s468] sm:$0x8]
      %v2039 = vld [vmem:[%s468 + $0x4] sm:$0x8]
      %v2040 = vld [vmem:[%s468 + $0x8] sm:$0x8]
      %v2041 = vld [vmem:[%s468 + $0xc] sm:$0x8]
      %v2042 = vld [vmem:[%s468 + $0x10] sm:$0x8]
      %v2043 = vld [vmem:[%s468 + $0x14] sm:$0x8]
      %v2044 = vld [vmem:[%s468 + $0x18] sm:$0x8]
      %v2045 = vld [vmem:[%s468 + $0x1c] sm:$0x8]
      %v2046 = vld [vmem:[%s468 + $0x20] sm:$0x8]
      %v2047 = vld [vmem:[%s468 + $0x24] sm:$0x8]
      %v2048 = vld [vmem:[%s468 + $0x28] sm:$0x8]
      %v2049 = vld [vmem:[%s468 + $0x2c] sm:$0x8]
      %v2050 = vld [vmem:[%s468 + $0x30] sm:$0x8]
      %v2051 = vld [vmem:[%s468 + $0x34] sm:$0x8]
      %v2052 = vld [vmem:[%s468 + $0x38] sm:$0x8]
      %v2053 = vld [vmem:[%s468 + $0x3c] sm:$0x8]
      %v2054 = vpack.c.bf16 %v1204, %v1203
      %v2071 = vunpack.c.l.b16 %v2038
      %v2072 = vunpack.c.l.b16 %v2039
      %v2073 = vunpack.c.l.b16 %v2040
      %v2074 = vunpack.c.l.b16 %v2041
      %v2075 = vunpack.c.l.b16 %v2042
      %v2076 = vunpack.c.l.b16 %v2043
      %v2077 = vunpack.c.l.b16 %v2044
      %v2078 = vunpack.c.l.b16 %v2045
      %v2079 = vunpack.c.l.b16 %v2046
      %v2080 = vunpack.c.l.b16 %v2047
      %v2081 = vunpack.c.l.b16 %v2048
      %v2082 = vunpack.c.l.b16 %v2049
      %v2083 = vunpack.c.l.b16 %v2050
      %v2084 = vunpack.c.l.b16 %v2051
      %v2085 = vunpack.c.l.b16 %v2052
      %v2086 = vunpack.c.l.b16 %v2053
      %v2087 = vpack.c.b16 %v2071, %v2071
      %v2088 = vpack.c.b16 %v2072, %v2072
      %v2089 = vpack.c.b16 %v2073, %v2073
      %v2090 = vpack.c.b16 %v2074, %v2074
      %v2091 = vpack.c.b16 %v2075, %v2075
      %v2092 = vpack.c.b16 %v2076, %v2076
      %v2093 = vpack.c.b16 %v2077, %v2077
      %v2094 = vpack.c.b16 %v2078, %v2078
      %v2095 = vpack.c.b16 %v2079, %v2079
      %v2096 = vpack.c.b16 %v2080, %v2080
      %v2097 = vpack.c.b16 %v2081, %v2081
      %v2098 = vpack.c.b16 %v2082, %v2082
      %v2099 = vpack.c.b16 %v2083, %v2083
      %v2100 = vpack.c.b16 %v2084, %v2084
      %v2101 = vpack.c.b16 %v2085, %v2085
      %v2102 = vpack.c.b16 %v2086, %v2086
      %v2103 = vunpack.c.l.b16 %v2087
      %v2104 = vunpack.c.l.b16 %v2088
      %v2105 = vunpack.c.l.b16 %v2089
      %v2106 = vunpack.c.l.b16 %v2090
      %v2107 = vunpack.c.l.b16 %v2091
      %v2108 = vunpack.c.l.b16 %v2092
      %v2109 = vunpack.c.l.b16 %v2093
      %v2110 = vunpack.c.l.b16 %v2094
      %v2111 = vunpack.c.l.b16 %v2095
      %v2112 = vunpack.c.l.b16 %v2096
      %v2113 = vunpack.c.l.b16 %v2097
      %v2114 = vunpack.c.l.b16 %v2098
      %v2115 = vunpack.c.l.b16 %v2099
      %v2116 = vunpack.c.l.b16 %v2100
      %v2117 = vunpack.c.l.b16 %v2101
      %v2118 = vunpack.c.l.b16 %v2102
      %v2119 = vrot.slane %v2103, 6
      %v2120 = vrot.slane %v2104, 5
      %v2121 = vsel %vm546, %v2120, %v2119
      %v2122 = vrot.slane %v2105, 4
      %v2123 = vsel %vm549, %v2122, %v2121
      %v2124 = vrot.slane %v2106, 3
      %v2125 = vsel %vm1380, %v2124, %v2123
      %v2126 = vrot.slane %v2107, 2
      %v2127 = vsel %vm1383, %v2126, %v2125
      %v2128 = vrot.slane %v2108, 1
      %v2129 = vsel %vm574, %v2128, %v2127
      %v2130 = vsel %vm577, %v2109, %v2129
      %v2131 = vrot.slane %v2110, 7
      %v2132 = vsel %vm1390, %v2131, %v2130
      %v2133 = vrot.slane %v2111, 6
      %v2134 = vrot.slane %v2112, 5
      %v2135 = vsel %vm546, %v2134, %v2133
      %v2136 = vrot.slane %v2113, 4
      %v2137 = vsel %vm549, %v2136, %v2135
      %v2138 = vrot.slane %v2114, 3
      %v2139 = vsel %vm1380, %v2138, %v2137
      %v2140 = vrot.slane %v2115, 2
      %v2141 = vsel %vm1383, %v2140, %v2139
      %v2142 = vrot.slane %v2116, 1
      %v2143 = vsel %vm574, %v2142, %v2141
      %v2144 = vsel %vm577, %v2117, %v2143
      %v2145 = vrot.slane %v2118, 7
      %v2146 = vsel %vm1390, %v2145, %v2144
      %v2147 = vpack.c.b16 %v2146, %v2132
      %2149 = vmatprep.subr.bf16.mxu0 0
      %2150 = vmatpush1.bf16.msra.mxu0 %v2147
      %2151 = vmatprep.subr.bf16.mxu0 0
      %2152 = vmatpush1.bf16.msra.mxu0 %v2054
      %2153 = vmatprep.subr.bf16.mxu0 0
      %2154 = vmatpush1.bf16.msra.mxu0 0
      %2155 = vmatprep.subr.bf16.mxu0 0
      %2156 = vmatpush1.bf16.msra.mxu0 0
      %2157 = vmatprep.subr.bf16.mxu0 0
      %2158 = vmatpush1.bf16.msra.mxu0 0
      %2159 = vmatprep.subr.bf16.mxu0 0
      %2160 = vmatpush1.bf16.msra.mxu0 0
      %2161 = vmatprep.subr.bf16.mxu0 0
      %2162 = vmatpush1.bf16.msra.mxu0 0
      %2163 = vmatprep.subr.bf16.mxu0 0
      %2164 = vmatpush1.bf16.msra.mxu0 0
      %2165 = vmatprep.subr.bf16.mxu0 0
      %2166 = vmatpush1.bf16.msra.mxu0 0
      %2167 = vmatprep.subr.bf16.mxu0 0
      %2168 = vmatpush1.bf16.msra.mxu0 0
      %2169 = vmatprep.subr.bf16.mxu0 0
      %2170 = vmatpush1.bf16.msra.mxu0 0
      %2171 = vmatprep.subr.bf16.mxu0 0
      %2172 = vmatpush1.bf16.msra.mxu0 0
      %2173 = vmatprep.subr.bf16.mxu0 0
      %2174 = vmatpush1.bf16.msra.mxu0 0
      %2175 = vmatprep.subr.bf16.mxu0 0
      %2176 = vmatpush1.bf16.msra.mxu0 0
      %2177 = vmatprep.subr.bf16.mxu0 0
      %2178 = vmatpush1.bf16.msra.mxu0 0
      %2179 = vmatprep.subr.bf16.mxu0 0
      %2180 = vmatpush1.bf16.msra.mxu0 0
      %2181 = vmatprep.mubr.bf16.mxu0 0
      %2182 = vmatmul.mubr.bf16.gmra.mrb[0].mxu0 %v1424
      %v2183 = vpop.f32.mrb[0].mxu0
      %v2184 = vadd.f32 0.0, %v2183
      %v2185 = vpop.f32.mrb[0].mxu0
      %v2186 = vpop.f32.mrb[0].mxu0
      %v2187 = vadd.f32 0.0, %v2186
      %v2188 = vpop.f32.mrb[0].mxu0
      %2189 = vmatprep.mubr.bf16.mxu0 0
      %2190 = vmatmul.mubr.bf16.gmra.mrb[0].mxu0 %v1427
      %v2191 = vpop.f32.mrb[0].mxu0
      %v2192 = vadd.f32 0.0, %v2191
      %v2193 = vpop.f32.mrb[0].mxu0
      %v2194 = vpop.f32.mrb[0].mxu0
      %v2195 = vadd.f32 0.0, %v2194
      %v2196 = vpop.f32.mrb[0].mxu0
      %2197 = vdwg.mxu0
      %v2198 = vpack.c.bf16 %v1293, %v1292
      %v2199 = vrot.slane %v2103, 7
      %v2200 = vrot.slane %v2104, 6
      %v2201 = vsel %vm546, %v2200, %v2199
      %v2202 = vrot.slane %v2105, 5
      %v2203 = vsel %vm549, %v2202, %v2201
      %v2204 = vrot.slane %v2106, 4
      %v2205 = vsel %vm1380, %v2204, %v2203
      %v2206 = vrot.slane %v2107, 3
      %v2207 = vsel %vm1383, %v2206, %v2205
      %v2208 = vrot.slane %v2108, 2
      %v2209 = vsel %vm574, %v2208, %v2207
      %v2210 = vrot.slane %v2109, 1
      %v2211 = vsel %vm577, %v2210, %v2209
      %v2212 = vsel %vm1390, %v2110, %v2211
      %v2213 = vrot.slane %v2111, 7
      %v2214 = vrot.slane %v2112, 6
      %v2215 = vsel %vm546, %v2214, %v2213
      %v2216 = vrot.slane %v2113, 5
      %v2217 = vsel %vm549, %v2216, %v2215
      %v2218 = vrot.slane %v2114, 4
      %v2219 = vsel %vm1380, %v2218, %v2217
      %v2220 = vrot.slane %v2115, 3
      %v2221 = vsel %vm1383, %v2220, %v2219
      %v2222 = vrot.slane %v2116, 2
      %v2223 = vsel %vm574, %v2222, %v2221
      %v2224 = vrot.slane %v2117, 1
      %v2225 = vsel %vm577, %v2224, %v2223
      %v2226 = vsel %vm1390, %v2118, %v2225
      %v2227 = vpack.c.b16 %v2226, %v2212
      %2229 = vmatprep.subr.bf16.mxu0 0
      %2230 = vmatpush1.bf16.msra.mxu0 %v2227
      %2231 = vmatprep.subr.bf16.mxu0 0
      %2232 = vmatpush1.bf16.msra.mxu0 %v2198
      %2233 = vmatprep.subr.bf16.mxu0 0
      %2234 = vmatpush1.bf16.msra.mxu0 0
      %2235 = vmatprep.subr.bf16.mxu0 0
      %2236 = vmatpush1.bf16.msra.mxu0 0
      %2237 = vmatprep.subr.bf16.mxu0 0
      %2238 = vmatpush1.bf16.msra.mxu0 0
      %2239 = vmatprep.subr.bf16.mxu0 0
      %2240 = vmatpush1.bf16.msra.mxu0 0
      %2241 = vmatprep.subr.bf16.mxu0 0
      %2242 = vmatpush1.bf16.msra.mxu0 0
      %2243 = vmatprep.subr.bf16.mxu0 0
      %2244 = vmatpush1.bf16.msra.mxu0 0
      %2245 = vmatprep.subr.bf16.mxu0 0
      %2246 = vmatpush1.bf16.msra.mxu0 0
      %2247 = vmatprep.subr.bf16.mxu0 0
      %2248 = vmatpush1.bf16.msra.mxu0 0
      %2249 = vmatprep.subr.bf16.mxu0 0
      %2250 = vmatpush1.bf16.msra.mxu0 0
      %2251 = vmatprep.subr.bf16.mxu0 0
      %2252 = vmatpush1.bf16.msra.mxu0 0
      %2253 = vmatprep.subr.bf16.mxu0 0
      %2254 = vmatpush1.bf16.msra.mxu0 0
      %2255 = vmatprep.subr.bf16.mxu0 0
      %2256 = vmatpush1.bf16.msra.mxu0 0
      %2257 = vmatprep.subr.bf16.mxu0 0
      %2258 = vmatpush1.bf16.msra.mxu0 0
      %2259 = vmatprep.subr.bf16.mxu0 0
      %2260 = vmatpush1.bf16.msra.mxu0 0
      %2261 = vmatprep.mubr.bf16.mxu0 0
      %2262 = vmatmul.mubr.bf16.gmra.mrb[0].mxu0 %v1424
      %v2263 = vpop.f32.mrb[0].mxu0
      %v2264 = vadd.f32 0.0, %v2263
      %v2265 = vpop.f32.mrb[0].mxu0
      %v2266 = vpop.f32.mrb[0].mxu0
      %v2267 = vadd.f32 0.0, %v2266
      %v2268 = vpop.f32.mrb[0].mxu0
      %2269 = vmatprep.mubr.bf16.mxu0 0
      %2270 = vmatmul.mubr.bf16.gmra.mrb[0].mxu0 %v1427
      %v2271 = vpop.f32.mrb[0].mxu0
      %v2272 = vadd.f32 0.0, %v2271
      %v2273 = vpop.f32.mrb[0].mxu0
      %v2274 = vpop.f32.mrb[0].mxu0
      %v2275 = vadd.f32 0.0, %v2274
      %v2276 = vpop.f32.mrb[0].mxu0
      %2277 = vdwg.mxu0
      %v2278 = vmax.f32 %v1464, %v1544
      %v2279 = vmax.f32 %v1467, %v1547
      %v2280 = vmax.f32 %v1472, %v1552
      %v2281 = vmax.f32 %v1475, %v1555
      %v2282 = vmax.f32 %v2278, %v1704
      %v2283 = vmax.f32 %v2279, %v1707
      %v2284 = vmax.f32 %v2280, %v1712
      %v2285 = vmax.f32 %v2281, %v1715
      %v2286 = vmax.f32 %v2282, %v1784
      %v2287 = vmax.f32 %v2283, %v1787
      %v2288 = vmax.f32 %v2284, %v1792
      %v2289 = vmax.f32 %v2285, %v1795
      %v2290 = vmax.f32 %v2286, %v1944
      %v2291 = vmax.f32 %v2287, %v1947
      %v2292 = vmax.f32 %v2288, %v1952
      %v2293 = vmax.f32 %v2289, %v1955
      %v2294 = vmax.f32 %v2290, %v2024
      %v2295 = vmax.f32 %v2291, %v2027
      %v2296 = vmax.f32 %v2292, %v2032
      %v2297 = vmax.f32 %v2293, %v2035
      %v2298 = vmax.f32 %v2294, %v2184
      %v2299 = vmax.f32 %v2295, %v2187
      %v2300 = vmax.f32 %v2296, %v2192
      %v2301 = vmax.f32 %v2297, %v2195
      %v2302 = vmax.f32 %v2298, %v2264
      %v2303 = vmax.f32 %v2299, %v2267
      %v2304 = vmax.f32 %v2300, %v2272
      %v2305 = vmax.f32 %v2301, %v2275
      %v2306 = vsub.f32 %v1464, %v2302
      %v2307 = vsub.f32 %v1467, %v2303
      %v2308 = vsub.f32 %v1472, %v2304
      %v2309 = vsub.f32 %v1475, %v2305
      %v2310 = vmul.f32 %v2306, 1.442695
      %v2311 = vpow.pop %v2310
      %v2312 = vmul.f32 %v2307, 1.442695
      %v2313 = vpow.pop %v2312
      %v2314 = vmul.f32 %v2308, 1.442695
      %v2315 = vpow.pop %v2314
      %v2316 = vmul.f32 %v2309, 1.442695
      %v2317 = vpow.pop %v2316
      %v2318 = vsub.f32 %v1544, %v2302
      %v2319 = vsub.f32 %v1547, %v2303
      %v2320 = vsub.f32 %v1552, %v2304
      %v2321 = vsub.f32 %v1555, %v2305
      %v2322 = vmul.f32 %v2318, 1.442695
      %v2323 = vpow.pop %v2322
      %v2324 = vmul.f32 %v2319, 1.442695
      %v2325 = vpow.pop %v2324
      %v2326 = vmul.f32 %v2320, 1.442695
      %v2327 = vpow.pop %v2326
      %v2328 = vmul.f32 %v2321, 1.442695
      %v2329 = vpow.pop %v2328
      %v2330 = vsub.f32 %v1704, %v2302
      %v2331 = vsub.f32 %v1707, %v2303
      %v2332 = vsub.f32 %v1712, %v2304
      %v2333 = vsub.f32 %v1715, %v2305
      %v2334 = vmul.f32 %v2330, 1.442695
      %v2335 = vpow.pop %v2334
      %v2336 = vmul.f32 %v2331, 1.442695
      %v2337 = vpow.pop %v2336
      %v2338 = vmul.f32 %v2332, 1.442695
      %v2339 = vpow.pop %v2338
      %v2340 = vmul.f32 %v2333, 1.442695
      %v2341 = vpow.pop %v2340
      %v2342 = vsub.f32 %v1784, %v2302
      %v2343 = vsub.f32 %v1787, %v2303
      %v2344 = vsub.f32 %v1792, %v2304
      %v2345 = vsub.f32 %v1795, %v2305
      %v2346 = vmul.f32 %v2342, 1.442695
      %v2347 = vpow.pop %v2346
      %v2348 = vmul.f32 %v2343, 1.442695
      %v2349 = vpow.pop %v2348
      %v2350 = vmul.f32 %v2344, 1.442695
      %v2351 = vpow.pop %v2350
      %v2352 = vmul.f32 %v2345, 1.442695
      %v2353 = vpow.pop %v2352
      %v2354 = vsub.f32 %v1944, %v2302
      %v2355 = vsub.f32 %v1947, %v2303
      %v2356 = vsub.f32 %v1952, %v2304
      %v2357 = vsub.f32 %v1955, %v2305
      %v2358 = vmul.f32 %v2354, 1.442695
      %v2359 = vpow.pop %v2358
      %v2360 = vmul.f32 %v2355, 1.442695
      %v2361 = vpow.pop %v2360
      %v2362 = vmul.f32 %v2356, 1.442695
      %v2363 = vpow.pop %v2362
      %v2364 = vmul.f32 %v2357, 1.442695
      %v2365 = vpow.pop %v2364
      %v2366 = vsub.f32 %v2024, %v2302
      %v2367 = vsub.f32 %v2027, %v2303
      %v2368 = vsub.f32 %v2032, %v2304
      %v2369 = vsub.f32 %v2035, %v2305
      %v2370 = vmul.f32 %v2366, 1.442695
      %v2371 = vpow.pop %v2370
      %v2372 = vmul.f32 %v2367, 1.442695
      %v2373 = vpow.pop %v2372
      %v2374 = vmul.f32 %v2368, 1.442695
      %v2375 = vpow.pop %v2374
      %v2376 = vmul.f32 %v2369, 1.442695
      %v2377 = vpow.pop %v2376
      %v2378 = vsub.f32 %v2184, %v2302
      %v2379 = vsub.f32 %v2187, %v2303
      %v2380 = vsub.f32 %v2192, %v2304
      %v2381 = vsub.f32 %v2195, %v2305
      %v2382 = vmul.f32 %v2378, 1.442695
      %v2383 = vpow.pop %v2382
      %v2384 = vmul.f32 %v2379, 1.442695
      %v2385 = vpow.pop %v2384
      %v2386 = vmul.f32 %v2380, 1.442695
      %v2387 = vpow.pop %v2386
      %v2388 = vmul.f32 %v2381, 1.442695
      %v2389 = vpow.pop %v2388
      %v2390 = vsub.f32 %v2264, %v2302
      %v2391 = vsub.f32 %v2267, %v2303
      %v2392 = vsub.f32 %v2272, %v2304
      %v2393 = vsub.f32 %v2275, %v2305
      %v2394 = vmul.f32 %v2390, 1.442695
      %v2395 = vpow.pop %v2394
      %v2396 = vmul.f32 %v2391, 1.442695
      %v2397 = vpow.pop %v2396
      %v2398 = vmul.f32 %v2392, 1.442695
      %v2399 = vpow.pop %v2398
      %v2400 = vmul.f32 %v2393, 1.442695
      %v2401 = vpow.pop %v2400
      %v2402 = vadd.f32 %v2311, %v2323
      %v2403 = vadd.f32 %v2313, %v2325
      %v2404 = vadd.f32 %v2315, %v2327
      %v2405 = vadd.f32 %v2317, %v2329
      %v2406 = vadd.f32 %v2402, %v2335
      %v2407 = vadd.f32 %v2403, %v2337
      %v2408 = vadd.f32 %v2404, %v2339
      %v2409 = vadd.f32 %v2405, %v2341
      %v2410 = vadd.f32 %v2406, %v2347
      %v2411 = vadd.f32 %v2407, %v2349
      %v2412 = vadd.f32 %v2408, %v2351
      %v2413 = vadd.f32 %v2409, %v2353
      %v2414 = vadd.f32 %v2410, %v2359
      %v2415 = vadd.f32 %v2411, %v2361
      %v2416 = vadd.f32 %v2412, %v2363
      %v2417 = vadd.f32 %v2413, %v2365
      %v2418 = vadd.f32 %v2414, %v2371
      %v2419 = vadd.f32 %v2415, %v2373
      %v2420 = vadd.f32 %v2416, %v2375
      %v2421 = vadd.f32 %v2417, %v2377
      %v2422 = vadd.f32 %v2418, %v2383
      %v2423 = vadd.f32 %v2419, %v2385
      %v2424 = vadd.f32 %v2420, %v2387
      %v2425 = vadd.f32 %v2421, %v2389
      %v2426 = vadd.f32 %v2422, %v2395
      %v2427 = vadd.f32 %v2423, %v2397
      %v2428 = vadd.f32 %v2424, %v2399
      %v2429 = vadd.f32 %v2425, %v2401
      %v2430 = vrcp.pop %v2426
      %v2431 = vrcp.pop %v2427
      %v2432 = vrcp.pop %v2428
      %v2433 = vrcp.pop %v2429
      %v2434 = vmul.f32 %v2311, %v2430
      %v2435 = vmul.f32 %v2313, %v2431
      %v2436 = vmul.f32 %v2315, %v2432
      %v2437 = vmul.f32 %v2317, %v2433
      %v2438 = vunpack.c.l.bf16 %v1294
      %v2439 = vunpack.c.l.bf16 %v1295
      %v2440 = vunpack.c.l.bf16 %v1296
      %v2441 = vunpack.c.l.bf16 %v1297
      %v2442 = vunpack.c.l.bf16 %v1298
      %v2443 = vunpack.c.l.bf16 %v1299
      %v2444 = vunpack.c.l.bf16 %v1300
      %v2445 = vunpack.c.l.bf16 %v1301
      %v2446 = vunpack.c.l.bf16 %v1302
      %v2447 = vunpack.c.l.bf16 %v1303
      %v2448 = vunpack.c.l.bf16 %v1304
      %v2449 = vunpack.c.l.bf16 %v1305
      %v2450 = vunpack.c.l.bf16 %v1306
      %v2451 = vunpack.c.l.bf16 %v1307
      %v2452 = vunpack.c.l.bf16 %v1308
      %v2453 = vunpack.c.l.bf16 %v1309
      %v2456 = vrot.slane %v2434, 1
      %v2457 = vrot.slane %v2434, 2
      %v2458 = vrot.slane %v2434, 3
      %v2459 = vrot.slane %v2434, 4
      %v2460 = vrot.slane %v2434, 5
      %v2461 = vrot.slane %v2434, 6
      %v2462 = vrot.slane %v2434, 7
      %v2463 = vrot.slane %v2435, 1
      %v2464 = vrot.slane %v2435, 2
      %v2465 = vrot.slane %v2435, 3
      %v2466 = vrot.slane %v2435, 4
      %v2467 = vrot.slane %v2435, 5
      %v2468 = vrot.slane %v2435, 6
      %v2469 = vrot.slane %v2435, 7
      %v2486 = vmul.f32 %v2438, %v2434
      %v2487 = vmul.f32 %v2439, %v2456
      %v2488 = vmul.f32 %v2440, %v2457
      %v2489 = vmul.f32 %v2441, %v2458
      %v2490 = vmul.f32 %v2442, %v2459
      %v2491 = vmul.f32 %v2443, %v2460
      %v2492 = vmul.f32 %v2444, %v2461
      %v2493 = vmul.f32 %v2445, %v2462
      %v2494 = vmul.f32 %v2446, %v2435
      %v2495 = vmul.f32 %v2447, %v2463
      %v2496 = vmul.f32 %v2448, %v2464
      %v2497 = vmul.f32 %v2449, %v2465
      %v2498 = vmul.f32 %v2450, %v2466
      %v2499 = vmul.f32 %v2451, %v2467
      %v2500 = vmul.f32 %v2452, %v2468
      %v2501 = vmul.f32 %v2453, %v2469
      %v2502 = vadd.f32 %v2486, 0.0
      %v2503 = vadd.f32 %v2487, 0.0
      %v2504 = vadd.f32 %v2488, 0.0
      %v2505 = vadd.f32 %v2489, 0.0
      %v2506 = vadd.f32 %v2490, 0.0
      %v2507 = vadd.f32 %v2491, 0.0
      %v2508 = vadd.f32 %v2492, 0.0
      %v2509 = vadd.f32 %v2493, 0.0
      %v2510 = vadd.f32 %v2494, 0.0
      %v2511 = vadd.f32 %v2495, 0.0
      %v2512 = vadd.f32 %v2496, 0.0
      %v2513 = vadd.f32 %v2497, 0.0
      %v2514 = vadd.f32 %v2498, 0.0
      %v2515 = vadd.f32 %v2499, 0.0
      %v2516 = vadd.f32 %v2500, 0.0
      %v2517 = vadd.f32 %v2501, 0.0
      %v2518 = vmul.f32 %v669, %v2436
      %v2519 = vmul.f32 %v670, %v2437
      %v2520 = vadd.f32 %v2518, 0.0
      %v2521 = vadd.f32 %v2519, 0.0
      %v2522 = vmul.f32 %v2323, %v2430
      %v2523 = vmul.f32 %v2325, %v2431
      %v2524 = vmul.f32 %v2327, %v2432
      %v2525 = vmul.f32 %v2329, %v2433
      %v2528 = vrot.slane %v2522, 7
      %v2529 = vrot.slane %v2522, 1
      %v2530 = vrot.slane %v2522, 2
      %v2531 = vrot.slane %v2522, 3
      %v2532 = vrot.slane %v2522, 4
      %v2533 = vrot.slane %v2522, 5
      %v2534 = vrot.slane %v2522, 6
      %v2535 = vrot.slane %v2523, 7
      %v2536 = vrot.slane %v2523, 1
      %v2537 = vrot.slane %v2523, 2
      %v2538 = vrot.slane %v2523, 3
      %v2539 = vrot.slane %v2523, 4
      %v2540 = vrot.slane %v2523, 5
      %v2541 = vrot.slane %v2523, 6
      %v2558 = vmul.f32 %v2438, %v2528
      %v2559 = vmul.f32 %v2439, %v2522
      %v2560 = vmul.f32 %v2440, %v2529
      %v2561 = vmul.f32 %v2441, %v2530
      %v2562 = vmul.f32 %v2442, %v2531
      %v2563 = vmul.f32 %v2443, %v2532
      %v2564 = vmul.f32 %v2444, %v2533
      %v2565 = vmul.f32 %v2445, %v2534
      %v2566 = vmul.f32 %v2446, %v2535
      %v2567 = vmul.f32 %v2447, %v2523
      %v2568 = vmul.f32 %v2448, %v2536
      %v2569 = vmul.f32 %v2449, %v2537
      %v2570 = vmul.f32 %v2450, %v2538
      %v2571 = vmul.f32 %v2451, %v2539
      %v2572 = vmul.f32 %v2452, %v2540
      %v2573 = vmul.f32 %v2453, %v2541
      %v2590 = vrot.slane %v2558, 1
      %v2591 = vrot.slane %v2559, 1
      %v2592 = vrot.slane %v2560, 1
      %v2593 = vrot.slane %v2561, 1
      %v2594 = vrot.slane %v2562, 1
      %v2595 = vrot.slane %v2563, 1
      %v2596 = vrot.slane %v2564, 1
      %v2597 = vrot.slane %v2565, 1
      %v2598 = vrot.slane %v2566, 1
      %v2599 = vrot.slane %v2567, 1
      %v2600 = vrot.slane %v2568, 1
      %v2601 = vrot.slane %v2569, 1
      %v2602 = vrot.slane %v2570, 1
      %v2603 = vrot.slane %v2571, 1
      %v2604 = vrot.slane %v2572, 1
      %v2605 = vrot.slane %v2573, 1
      %v2622 = vadd.f32 %v2502, %v2590
      %v2623 = vadd.f32 %v2503, %v2591
      %v2624 = vadd.f32 %v2504, %v2592
      %v2625 = vadd.f32 %v2505, %v2593
      %v2626 = vadd.f32 %v2506, %v2594
      %v2627 = vadd.f32 %v2507, %v2595
      %v2628 = vadd.f32 %v2508, %v2596
      %v2629 = vadd.f32 %v2509, %v2597
      %v2630 = vadd.f32 %v2510, %v2598
      %v2631 = vadd.f32 %v2511, %v2599
      %v2632 = vadd.f32 %v2512, %v2600
      %v2633 = vadd.f32 %v2513, %v2601
      %v2634 = vadd.f32 %v2514, %v2602
      %v2635 = vadd.f32 %v2515, %v2603
      %v2636 = vadd.f32 %v2516, %v2604
      %v2637 = vadd.f32 %v2517, %v2605
      %v2638 = vmul.f32 %v758, %v2524
      %v2639 = vmul.f32 %v759, %v2525
      %v2640 = vadd.f32 %v2520, %v2638
      %v2641 = vadd.f32 %v2521, %v2639
      %v2642 = vmul.f32 %v2335, %v2430
      %v2643 = vmul.f32 %v2337, %v2431
      %v2644 = vmul.f32 %v2339, %v2432
      %v2645 = vmul.f32 %v2341, %v2433
      %v2646 = vunpack.c.l.bf16 %v1558
      %v2647 = vunpack.c.l.bf16 %v1559
      %v2648 = vunpack.c.l.bf16 %v1560
      %v2649 = vunpack.c.l.bf16 %v1561
      %v2650 = vunpack.c.l.bf16 %v1562
      %v2651 = vunpack.c.l.bf16 %v1563
      %v2652 = vunpack.c.l.bf16 %v1564
      %v2653 = vunpack.c.l.bf16 %v1565
      %v2654 = vunpack.c.l.bf16 %v1566
      %v2655 = vunpack.c.l.bf16 %v1567
      %v2656 = vunpack.c.l.bf16 %v1568
      %v2657 = vunpack.c.l.bf16 %v1569
      %v2658 = vunpack.c.l.bf16 %v1570
      %v2659 = vunpack.c.l.bf16 %v1571
      %v2660 = vunpack.c.l.bf16 %v1572
      %v2661 = vunpack.c.l.bf16 %v1573
      %v2664 = vrot.slane %v2642, 6
      %v2665 = vrot.slane %v2642, 7
      %v2666 = vrot.slane %v2642, 1
      %v2667 = vrot.slane %v2642, 2
      %v2668 = vrot.slane %v2642, 3
      %v2669 = vrot.slane %v2642, 4
      %v2670 = vrot.slane %v2642, 5
      %v2671 = vrot.slane %v2643, 6
      %v2672 = vrot.slane %v2643, 7
      %v2673 = vrot.slane %v2643, 1
      %v2674 = vrot.slane %v2643, 2
      %v2675 = vrot.slane %v2643, 3
      %v2676 = vrot.slane %v2643, 4
      %v2677 = vrot.slane %v2643, 5
      %v2694 = vmul.f32 %v2646, %v2664
      %v2695 = vmul.f32 %v2647, %v2665
      %v2696 = vmul.f32 %v2648, %v2642
      %v2697 = vmul.f32 %v2649, %v2666
      %v2698 = vmul.f32 %v2650, %v2667
      %v2699 = vmul.f32 %v2651, %v2668
      %v2700 = vmul.f32 %v2652, %v2669
      %v2701 = vmul.f32 %v2653, %v2670
      %v2702 = vmul.f32 %v2654, %v2671
      %v2703 = vmul.f32 %v2655, %v2672
      %v2704 = vmul.f32 %v2656, %v2643
      %v2705 = vmul.f32 %v2657, %v2673
      %v2706 = vmul.f32 %v2658, %v2674
      %v2707 = vmul.f32 %v2659, %v2675
      %v2708 = vmul.f32 %v2660, %v2676
      %v2709 = vmul.f32 %v2661, %v2677
      %v2726 = vrot.slane %v2694, 2
      %v2727 = vrot.slane %v2695, 2
      %v2728 = vrot.slane %v2696, 2
      %v2729 = vrot.slane %v2697, 2
      %v2730 = vrot.slane %v2698, 2
      %v2731 = vrot.slane %v2699, 2
      %v2732 = vrot.slane %v2700, 2
      %v2733 = vrot.slane %v2701, 2
      %v2734 = vrot.slane %v2702, 2
      %v2735 = vrot.slane %v2703, 2
      %v2736 = vrot.slane %v2704, 2
      %v2737 = vrot.slane %v2705, 2
      %v2738 = vrot.slane %v2706, 2
      %v2739 = vrot.slane %v2707, 2
      %v2740 = vrot.slane %v2708, 2
      %v2741 = vrot.slane %v2709, 2
      %v2758 = vadd.f32 %v2622, %v2726
      %v2759 = vadd.f32 %v2623, %v2727
      %v2760 = vadd.f32 %v2624, %v2728
      %v2761 = vadd.f32 %v2625, %v2729
      %v2762 = vadd.f32 %v2626, %v2730
      %v2763 = vadd.f32 %v2627, %v2731
      %v2764 = vadd.f32 %v2628, %v2732
      %v2765 = vadd.f32 %v2629, %v2733
      %v2766 = vadd.f32 %v2630, %v2734
      %v2767 = vadd.f32 %v2631, %v2735
      %v2768 = vadd.f32 %v2632, %v2736
      %v2769 = vadd.f32 %v2633, %v2737
      %v2770 = vadd.f32 %v2634, %v2738
      %v2771 = vadd.f32 %v2635, %v2739
      %v2772 = vadd.f32 %v2636, %v2740
      %v2773 = vadd.f32 %v2637, %v2741
      %v2774 = vmul.f32 %v847, %v2644
      %v2775 = vmul.f32 %v848, %v2645
      %v2776 = vadd.f32 %v2640, %v2774
      %v2777 = vadd.f32 %v2641, %v2775
      %v2778 = vmul.f32 %v2347, %v2430
      %v2779 = vmul.f32 %v2349, %v2431
      %v2780 = vmul.f32 %v2351, %v2432
      %v2781 = vmul.f32 %v2353, %v2433
      %v2784 = vrot.slane %v2778, 5
      %v2785 = vrot.slane %v2778, 6
      %v2786 = vrot.slane %v2778, 7
      %v2787 = vrot.slane %v2778, 1
      %v2788 = vrot.slane %v2778, 2
      %v2789 = vrot.slane %v2778, 3
      %v2790 = vrot.slane %v2778, 4
      %v2791 = vrot.slane %v2779, 5
      %v2792 = vrot.slane %v2779, 6
      %v2793 = vrot.slane %v2779, 7
      %v2794 = vrot.slane %v2779, 1
      %v2795 = vrot.slane %v2779, 2
      %v2796 = vrot.slane %v2779, 3
      %v2797 = vrot.slane %v2779, 4
      %v2814 = vmul.f32 %v2646, %v2784
      %v2815 = vmul.f32 %v2647, %v2785
      %v2816 = vmul.f32 %v2648, %v2786
      %v2817 = vmul.f32 %v2649, %v2778
      %v2818 = vmul.f32 %v2650, %v2787
      %v2819 = vmul.f32 %v2651, %v2788
      %v2820 = vmul.f32 %v2652, %v2789
      %v2821 = vmul.f32 %v2653, %v2790
      %v2822 = vmul.f32 %v2654, %v2791
      %v2823 = vmul.f32 %v2655, %v2792
      %v2824 = vmul.f32 %v2656, %v2793
      %v2825 = vmul.f32 %v2657, %v2779
      %v2826 = vmul.f32 %v2658, %v2794
      %v2827 = vmul.f32 %v2659, %v2795
      %v2828 = vmul.f32 %v2660, %v2796
      %v2829 = vmul.f32 %v2661, %v2797
      %v2846 = vrot.slane %v2814, 3
      %v2847 = vrot.slane %v2815, 3
      %v2848 = vrot.slane %v2816, 3
      %v2849 = vrot.slane %v2817, 3
      %v2850 = vrot.slane %v2818, 3
      %v2851 = vrot.slane %v2819, 3
      %v2852 = vrot.slane %v2820, 3
      %v2853 = vrot.slane %v2821, 3
      %v2854 = vrot.slane %v2822, 3
      %v2855 = vrot.slane %v2823, 3
      %v2856 = vrot.slane %v2824, 3
      %v2857 = vrot.slane %v2825, 3
      %v2858 = vrot.slane %v2826, 3
      %v2859 = vrot.slane %v2827, 3
      %v2860 = vrot.slane %v2828, 3
      %v2861 = vrot.slane %v2829, 3
      %v2878 = vadd.f32 %v2758, %v2846
      %v2879 = vadd.f32 %v2759, %v2847
      %v2880 = vadd.f32 %v2760, %v2848
      %v2881 = vadd.f32 %v2761, %v2849
      %v2882 = vadd.f32 %v2762, %v2850
      %v2883 = vadd.f32 %v2763, %v2851
      %v2884 = vadd.f32 %v2764, %v2852
      %v2885 = vadd.f32 %v2765, %v2853
      %v2886 = vadd.f32 %v2766, %v2854
      %v2887 = vadd.f32 %v2767, %v2855
      %v2888 = vadd.f32 %v2768, %v2856
      %v2889 = vadd.f32 %v2769, %v2857
      %v2890 = vadd.f32 %v2770, %v2858
      %v2891 = vadd.f32 %v2771, %v2859
      %v2892 = vadd.f32 %v2772, %v2860
      %v2893 = vadd.f32 %v2773, %v2861
      %v2894 = vmul.f32 %v936, %v2780
      %v2895 = vmul.f32 %v937, %v2781
      %v2896 = vadd.f32 %v2776, %v2894
      %v2897 = vadd.f32 %v2777, %v2895
      %v2898 = vmul.f32 %v2359, %v2430
      %v2899 = vmul.f32 %v2361, %v2431
      %v2900 = vmul.f32 %v2363, %v2432
      %v2901 = vmul.f32 %v2365, %v2433
      %v2902 = vunpack.c.l.bf16 %v1798
      %v2903 = vunpack.c.l.bf16 %v1799
      %v2904 = vunpack.c.l.bf16 %v1800
      %v2905 = vunpack.c.l.bf16 %v1801
      %v2906 = vunpack.c.l.bf16 %v1802
      %v2907 = vunpack.c.l.bf16 %v1803
      %v2908 = vunpack.c.l.bf16 %v1804
      %v2909 = vunpack.c.l.bf16 %v1805
      %v2910 = vunpack.c.l.bf16 %v1806
      %v2911 = vunpack.c.l.bf16 %v1807
      %v2912 = vunpack.c.l.bf16 %v1808
      %v2913 = vunpack.c.l.bf16 %v1809
      %v2914 = vunpack.c.l.bf16 %v1810
      %v2915 = vunpack.c.l.bf16 %v1811
      %v2916 = vunpack.c.l.bf16 %v1812
      %v2917 = vunpack.c.l.bf16 %v1813
      %v2920 = vrot.slane %v2898, 4
      %v2921 = vrot.slane %v2898, 5
      %v2922 = vrot.slane %v2898, 6
      %v2923 = vrot.slane %v2898, 7
      %v2924 = vrot.slane %v2898, 1
      %v2925 = vrot.slane %v2898, 2
      %v2926 = vrot.slane %v2898, 3
      %v2927 = vrot.slane %v2899, 4
      %v2928 = vrot.slane %v2899, 5
      %v2929 = vrot.slane %v2899, 6
      %v2930 = vrot.slane %v2899, 7
      %v2931 = vrot.slane %v2899, 1
      %v2932 = vrot.slane %v2899, 2
      %v2933 = vrot.slane %v2899, 3
      %v2950 = vmul.f32 %v2902, %v2920
      %v2951 = vmul.f32 %v2903, %v2921
      %v2952 = vmul.f32 %v2904, %v2922
      %v2953 = vmul.f32 %v2905, %v2923
      %v2954 = vmul.f32 %v2906, %v2898
      %v2955 = vmul.f32 %v2907, %v2924
      %v2956 = vmul.f32 %v2908, %v2925
      %v2957 = vmul.f32 %v2909, %v2926
      %v2958 = vmul.f32 %v2910, %v2927
      %v2959 = vmul.f32 %v2911, %v2928
      %v2960 = vmul.f32 %v2912, %v2929
      %v2961 = vmul.f32 %v2913, %v2930
      %v2962 = vmul.f32 %v2914, %v2899
      %v2963 = vmul.f32 %v2915, %v2931
      %v2964 = vmul.f32 %v2916, %v2932
      %v2965 = vmul.f32 %v2917, %v2933
      %v2982 = vrot.slane %v2950, 4
      %v2983 = vrot.slane %v2951, 4
      %v2984 = vrot.slane %v2952, 4
      %v2985 = vrot.slane %v2953, 4
      %v2986 = vrot.slane %v2954, 4
      %v2987 = vrot.slane %v2955, 4
      %v2988 = vrot.slane %v2956, 4
      %v2989 = vrot.slane %v2957, 4
      %v2990 = vrot.slane %v2958, 4
      %v2991 = vrot.slane %v2959, 4
      %v2992 = vrot.slane %v2960, 4
      %v2993 = vrot.slane %v2961, 4
      %v2994 = vrot.slane %v2962, 4
      %v2995 = vrot.slane %v2963, 4
      %v2996 = vrot.slane %v2964, 4
      %v2997 = vrot.slane %v2965, 4
      %v3014 = vadd.f32 %v2878, %v2982
      %v3015 = vadd.f32 %v2879, %v2983
      %v3016 = vadd.f32 %v2880, %v2984
      %v3017 = vadd.f32 %v2881, %v2985
      %v3018 = vadd.f32 %v2882, %v2986
      %v3019 = vadd.f32 %v2883, %v2987
      %v3020 = vadd.f32 %v2884, %v2988
      %v3021 = vadd.f32 %v2885, %v2989
      %v3022 = vadd.f32 %v2886, %v2990
      %v3023 = vadd.f32 %v2887, %v2991
      %v3024 = vadd.f32 %v2888, %v2992
      %v3025 = vadd.f32 %v2889, %v2993
      %v3026 = vadd.f32 %v2890, %v2994
      %v3027 = vadd.f32 %v2891, %v2995
      %v3028 = vadd.f32 %v2892, %v2996
      %v3029 = vadd.f32 %v2893, %v2997
      %v3030 = vmul.f32 %v1025, %v2900
      %v3031 = vmul.f32 %v1026, %v2901
      %v3032 = vadd.f32 %v2896, %v3030
      %v3033 = vadd.f32 %v2897, %v3031
      %v3034 = vmul.f32 %v2371, %v2430
      %v3035 = vmul.f32 %v2373, %v2431
      %v3036 = vmul.f32 %v2375, %v2432
      %v3037 = vmul.f32 %v2377, %v2433
      %v3040 = vrot.slane %v3034, 3
      %v3041 = vrot.slane %v3034, 4
      %v3042 = vrot.slane %v3034, 5
      %v3043 = vrot.slane %v3034, 6
      %v3044 = vrot.slane %v3034, 7
      %v3045 = vrot.slane %v3034, 1
      %v3046 = vrot.slane %v3034, 2
      %v3047 = vrot.slane %v3035, 3
      %v3048 = vrot.slane %v3035, 4
      %v3049 = vrot.slane %v3035, 5
      %v3050 = vrot.slane %v3035, 6
      %v3051 = vrot.slane %v3035, 7
      %v3052 = vrot.slane %v3035, 1
      %v3053 = vrot.slane %v3035, 2
      %v3070 = vmul.f32 %v2902, %v3040
      %v3071 = vmul.f32 %v2903, %v3041
      %v3072 = vmul.f32 %v2904, %v3042
      %v3073 = vmul.f32 %v2905, %v3043
      %v3074 = vmul.f32 %v2906, %v3044
      %v3075 = vmul.f32 %v2907, %v3034
      %v3076 = vmul.f32 %v2908, %v3045
      %v3077 = vmul.f32 %v2909, %v3046
      %v3078 = vmul.f32 %v2910, %v3047
      %v3079 = vmul.f32 %v2911, %v3048
      %v3080 = vmul.f32 %v2912, %v3049
      %v3081 = vmul.f32 %v2913, %v3050
      %v3082 = vmul.f32 %v2914, %v3051
      %v3083 = vmul.f32 %v2915, %v3035
      %v3084 = vmul.f32 %v2916, %v3052
      %v3085 = vmul.f32 %v2917, %v3053
      %v3102 = vrot.slane %v3070, 5
      %v3103 = vrot.slane %v3071, 5
      %v3104 = vrot.slane %v3072, 5
      %v3105 = vrot.slane %v3073, 5
      %v3106 = vrot.slane %v3074, 5
      %v3107 = vrot.slane %v3075, 5
      %v3108 = vrot.slane %v3076, 5
      %v3109 = vrot.slane %v3077, 5
      %v3110 = vrot.slane %v3078, 5
      %v3111 = vrot.slane %v3079, 5
      %v3112 = vrot.slane %v3080, 5
      %v3113 = vrot.slane %v3081, 5
      %v3114 = vrot.slane %v3082, 5
      %v3115 = vrot.slane %v3083, 5
      %v3116 = vrot.slane %v3084, 5
      %v3117 = vrot.slane %v3085, 5
      %v3134 = vadd.f32 %v3014, %v3102
      %v3135 = vadd.f32 %v3015, %v3103
      %v3136 = vadd.f32 %v3016, %v3104
      %v3137 = vadd.f32 %v3017, %v3105
      %v3138 = vadd.f32 %v3018, %v3106
      %v3139 = vadd.f32 %v3019, %v3107
      %v3140 = vadd.f32 %v3020, %v3108
      %v3141 = vadd.f32 %v3021, %v3109
      %v3142 = vadd.f32 %v3022, %v3110
      %v3143 = vadd.f32 %v3023, %v3111
      %v3144 = vadd.f32 %v3024, %v3112
      %v3145 = vadd.f32 %v3025, %v3113
      %v3146 = vadd.f32 %v3026, %v3114
      %v3147 = vadd.f32 %v3027, %v3115
      %v3148 = vadd.f32 %v3028, %v3116
      %v3149 = vadd.f32 %v3029, %v3117
      %v3150 = vmul.f32 %v1114, %v3036
      %v3151 = vmul.f32 %v1115, %v3037
      %v3152 = vadd.f32 %v3032, %v3150
      %v3153 = vadd.f32 %v3033, %v3151
      %v3154 = vmul.f32 %v2383, %v2430
      %v3155 = vmul.f32 %v2385, %v2431
      %v3156 = vmul.f32 %v2387, %v2432
      %v3157 = vmul.f32 %v2389, %v2433
      %v3158 = vunpack.c.l.bf16 %v2038
      %v3159 = vunpack.c.l.bf16 %v2039
      %v3160 = vunpack.c.l.bf16 %v2040
      %v3161 = vunpack.c.l.bf16 %v2041
      %v3162 = vunpack.c.l.bf16 %v2042
      %v3163 = vunpack.c.l.bf16 %v2043
      %v3164 = vunpack.c.l.bf16 %v2044
      %v3165 = vunpack.c.l.bf16 %v2045
      %v3166 = vunpack.c.l.bf16 %v2046
      %v3167 = vunpack.c.l.bf16 %v2047
      %v3168 = vunpack.c.l.bf16 %v2048
      %v3169 = vunpack.c.l.bf16 %v2049
      %v3170 = vunpack.c.l.bf16 %v2050
      %v3171 = vunpack.c.l.bf16 %v2051
      %v3172 = vunpack.c.l.bf16 %v2052
      %v3173 = vunpack.c.l.bf16 %v2053
      %v3176 = vrot.slane %v3154, 2
      %v3177 = vrot.slane %v3154, 3
      %v3178 = vrot.slane %v3154, 4
      %v3179 = vrot.slane %v3154, 5
      %v3180 = vrot.slane %v3154, 6
      %v3181 = vrot.slane %v3154, 7
      %v3182 = vrot.slane %v3154, 1
      %v3183 = vrot.slane %v3155, 2
      %v3184 = vrot.slane %v3155, 3
      %v3185 = vrot.slane %v3155, 4
      %v3186 = vrot.slane %v3155, 5
      %v3187 = vrot.slane %v3155, 6
      %v3188 = vrot.slane %v3155, 7
      %v3189 = vrot.slane %v3155, 1
      %v3206 = vmul.f32 %v3158, %v3176
      %v3207 = vmul.f32 %v3159, %v3177
      %v3208 = vmul.f32 %v3160, %v3178
      %v3209 = vmul.f32 %v3161, %v3179
      %v3210 = vmul.f32 %v3162, %v3180
      %v3211 = vmul.f32 %v3163, %v3181
      %v3212 = vmul.f32 %v3164, %v3154
      %v3213 = vmul.f32 %v3165, %v3182
      %v3214 = vmul.f32 %v3166, %v3183
      %v3215 = vmul.f32 %v3167, %v3184
      %v3216 = vmul.f32 %v3168, %v3185
      %v3217 = vmul.f32 %v3169, %v3186
      %v3218 = vmul.f32 %v3170, %v3187
      %v3219 = vmul.f32 %v3171, %v3188
      %v3220 = vmul.f32 %v3172, %v3155
      %v3221 = vmul.f32 %v3173, %v3189
      %v3238 = vrot.slane %v3206, 6
      %v3239 = vrot.slane %v3207, 6
      %v3240 = vrot.slane %v3208, 6
      %v3241 = vrot.slane %v3209, 6
      %v3242 = vrot.slane %v3210, 6
      %v3243 = vrot.slane %v3211, 6
      %v3244 = vrot.slane %v3212, 6
      %v3245 = vrot.slane %v3213, 6
      %v3246 = vrot.slane %v3214, 6
      %v3247 = vrot.slane %v3215, 6
      %v3248 = vrot.slane %v3216, 6
      %v3249 = vrot.slane %v3217, 6
      %v3250 = vrot.slane %v3218, 6
      %v3251 = vrot.slane %v3219, 6
      %v3252 = vrot.slane %v3220, 6
      %v3253 = vrot.slane %v3221, 6
      %v3270 = vadd.f32 %v3134, %v3238
      %v3271 = vadd.f32 %v3135, %v3239
      %v3272 = vadd.f32 %v3136, %v3240
      %v3273 = vadd.f32 %v3137, %v3241
      %v3274 = vadd.f32 %v3138, %v3242
      %v3275 = vadd.f32 %v3139, %v3243
      %v3276 = vadd.f32 %v3140, %v3244
      %v3277 = vadd.f32 %v3141, %v3245
      %v3278 = vadd.f32 %v3142, %v3246
      %v3279 = vadd.f32 %v3143, %v3247
      %v3280 = vadd.f32 %v3144, %v3248
      %v3281 = vadd.f32 %v3145, %v3249
      %v3282 = vadd.f32 %v3146, %v3250
      %v3283 = vadd.f32 %v3147, %v3251
      %v3284 = vadd.f32 %v3148, %v3252
      %v3285 = vadd.f32 %v3149, %v3253
      %v3286 = vmul.f32 %v1203, %v3156
      %v3287 = vmul.f32 %v1204, %v3157
      %v3288 = vadd.f32 %v3152, %v3286
      %v3289 = vadd.f32 %v3153, %v3287
      %v3290 = vmul.f32 %v2395, %v2430
      %v3291 = vmul.f32 %v2397, %v2431
      %v3292 = vmul.f32 %v2399, %v2432
      %v3293 = vmul.f32 %v2401, %v2433
      %v3296 = vrot.slane %v3290, 1
      %v3297 = vrot.slane %v3290, 2
      %v3298 = vrot.slane %v3290, 3
      %v3299 = vrot.slane %v3290, 4
      %v3300 = vrot.slane %v3290, 5
      %v3301 = vrot.slane %v3290, 6
      %v3302 = vrot.slane %v3290, 7
      %v3303 = vrot.slane %v3291, 1
      %v3304 = vrot.slane %v3291, 2
      %v3305 = vrot.slane %v3291, 3
      %v3306 = vrot.slane %v3291, 4
      %v3307 = vrot.slane %v3291, 5
      %v3308 = vrot.slane %v3291, 6
      %v3309 = vrot.slane %v3291, 7
      %v3326 = vmul.f32 %v3158, %v3296
      %v3327 = vmul.f32 %v3159, %v3297
      %v3328 = vmul.f32 %v3160, %v3298
      %v3329 = vmul.f32 %v3161, %v3299
      %v3330 = vmul.f32 %v3162, %v3300
      %v3331 = vmul.f32 %v3163, %v3301
      %v3332 = vmul.f32 %v3164, %v3302
      %v3333 = vmul.f32 %v3165, %v3290
      %v3334 = vmul.f32 %v3166, %v3303
      %v3335 = vmul.f32 %v3167, %v3304
      %v3336 = vmul.f32 %v3168, %v3305
      %v3337 = vmul.f32 %v3169, %v3306
      %v3338 = vmul.f32 %v3170, %v3307
      %v3339 = vmul.f32 %v3171, %v3308
      %v3340 = vmul.f32 %v3172, %v3309
      %v3341 = vmul.f32 %v3173, %v3291
      %v3358 = vrot.slane %v3326, 7
      %v3359 = vrot.slane %v3327, 7
      %v3360 = vrot.slane %v3328, 7
      %v3361 = vrot.slane %v3329, 7
      %v3362 = vrot.slane %v3330, 7
      %v3363 = vrot.slane %v3331, 7
      %v3364 = vrot.slane %v3332, 7
      %v3365 = vrot.slane %v3333, 7
      %v3366 = vrot.slane %v3334, 7
      %v3367 = vrot.slane %v3335, 7
      %v3368 = vrot.slane %v3336, 7
      %v3369 = vrot.slane %v3337, 7
      %v3370 = vrot.slane %v3338, 7
      %v3371 = vrot.slane %v3339, 7
      %v3372 = vrot.slane %v3340, 7
      %v3373 = vrot.slane %v3341, 7
      %v3390 = vadd.f32 %v3270, %v3358
      %v3391 = vadd.f32 %v3271, %v3359
      %v3392 = vadd.f32 %v3272, %v3360
      %v3393 = vadd.f32 %v3273, %v3361
      %v3394 = vadd.f32 %v3274, %v3362
      %v3395 = vadd.f32 %v3275, %v3363
      %v3396 = vadd.f32 %v3276, %v3364
      %v3397 = vadd.f32 %v3277, %v3365
      %v3398 = vadd.f32 %v3278, %v3366
      %v3399 = vadd.f32 %v3279, %v3367
      %v3400 = vadd.f32 %v3280, %v3368
      %v3401 = vadd.f32 %v3281, %v3369
      %v3402 = vadd.f32 %v3282, %v3370
      %v3403 = vadd.f32 %v3283, %v3371
      %v3404 = vadd.f32 %v3284, %v3372
      %v3405 = vadd.f32 %v3285, %v3373
      %v3406 = vmul.f32 %v1292, %v3292
      %v3407 = vmul.f32 %v1293, %v3293
      %v3408 = vadd.f32 %v3288, %v3406
      %v3409 = vadd.f32 %v3289, %v3407
      %v3426 = vrot.slane %v3391, 7
      %v3427 = vsel %vm546, %v3426, %v3390
      %v3428 = vrot.slane %v3392, 6
      %v3429 = vsel %vm549, %v3428, %v3427
      %v3430 = vrot.slane %v3393, 5
      %v3431 = vsel %vm1380, %v3430, %v3429
      %v3432 = vrot.slane %v3394, 4
      %v3433 = vsel %vm1383, %v3432, %v3431
      %v3434 = vrot.slane %v3395, 3
      %v3435 = vsel %vm574, %v3434, %v3433
      %v3436 = vrot.slane %v3396, 2
      %v3437 = vsel %vm577, %v3436, %v3435
      %v3438 = vrot.slane %v3397, 1
      %v3439 = vsel %vm1390, %v3438, %v3437
      %v3440 = vrot.slane %v3399, 7
      %v3441 = vsel %vm546, %v3440, %v3398
      %v3442 = vrot.slane %v3400, 6
      %v3443 = vsel %vm549, %v3442, %v3441
      %v3444 = vrot.slane %v3401, 5
      %v3445 = vsel %vm1380, %v3444, %v3443
      %v3446 = vrot.slane %v3402, 4
      %v3447 = vsel %vm1383, %v3446, %v3445
      %v3448 = vrot.slane %v3403, 3
      %v3449 = vsel %vm574, %v3448, %v3447
      %v3450 = vrot.slane %v3404, 2
      %v3451 = vsel %vm577, %v3450, %v3449
      %v3452 = vrot.slane %v3405, 1
      %v3453 = vsel %vm1390, %v3452, %v3451
      %v3456 = vpack.c.bf16 %v3453, %v3439
      %v3457 = vpack.c.bf16 %v3409, %v3408
      %v3458 = vld [vmem:[%s8] sm:$0xf]
      %v3459 = vld [vmem:[%s8 + $0x4] sm:$0xf]
      %v3462 = vunpack.c.l.b16 %v3458
      %v3463 = vunpack.c.l.b16 %v3459
      %v3464 = vpack.c.b16 %v3463, %v3462
      %v3466 = vsel %vm1422, %v3464, 0
      %3468 = vmatprep.subr.bf16.mxu0 0
      %3469 = vmatpush1.bf16.msra.mxu0 %v3456
      %3470 = vmatprep.subr.bf16.mxu0 0
      %3471 = vmatpush1.bf16.msra.mxu0 %v3457
      %3472 = vmatprep.subr.bf16.mxu0 0
      %3473 = vmatpush1.bf16.msra.mxu0 0
      %3474 = vmatprep.subr.bf16.mxu0 0
      %3475 = vmatpush1.bf16.msra.mxu0 0
      %3476 = vmatprep.subr.bf16.mxu0 0
      %3477 = vmatpush1.bf16.msra.mxu0 0
      %3478 = vmatprep.subr.bf16.mxu0 0
      %3479 = vmatpush1.bf16.msra.mxu0 0
      %3480 = vmatprep.subr.bf16.mxu0 0
      %3481 = vmatpush1.bf16.msra.mxu0 0
      %3482 = vmatprep.subr.bf16.mxu0 0
      %3483 = vmatpush1.bf16.msra.mxu0 0
      %3484 = vmatprep.subr.bf16.mxu0 0
      %3485 = vmatpush1.bf16.msra.mxu0 0
      %3486 = vmatprep.subr.bf16.mxu0 0
      %3487 = vmatpush1.bf16.msra.mxu0 0
      %3488 = vmatprep.subr.bf16.mxu0 0
      %3489 = vmatpush1.bf16.msra.mxu0 0
      %3490 = vmatprep.subr.bf16.mxu0 0
      %3491 = vmatpush1.bf16.msra.mxu0 0
      %3492 = vmatprep.subr.bf16.mxu0 0
      %3493 = vmatpush1.bf16.msra.mxu0 0
      %3494 = vmatprep.subr.bf16.mxu0 0
      %3495 = vmatpush1.bf16.msra.mxu0 0
      %3496 = vmatprep.subr.bf16.mxu0 0
      %3497 = vmatpush1.bf16.msra.mxu0 0
      %3498 = vmatprep.subr.bf16.mxu0 0
      %3499 = vmatpush1.bf16.msra.mxu0 0
      %3500 = vmatprep.mubr.bf16.mxu0 0
      %3501 = vmatmul.mubr.bf16.gmra.mrb[0].mxu0 %v3466
      %v3502 = vpop.f32.mrb[0].mxu0
      %v3503 = vadd.f32 0.0, %v3502
      %v3504 = vpop.f32.mrb[0].mxu0
      %v3505 = vpop.f32.mrb[0].mxu0
      %v3506 = vadd.f32 0.0, %v3505
      %v3507 = vpop.f32.mrb[0].mxu0
      %3508 = vdwg.mxu0
      %v3509 = vld [vmem:[%s9] sm:$0xff]
      %v3510 = vld [vmem:[%s9 + $0x8] sm:$0xff]
      %3512 = vset.pattern.permute.xlu0 0
      %3513 = vperm.xlu0 %3512, %v3509
      %v3514 = vpop.permute.xlu0 %3513
      %3517 = vset.pattern.permute.xlu0 0
      %3518 = vperm.xlu0 %3517, %v3510
      %v3519 = vpop.permute.xlu0 %3518
      %v3521 = vmul.f32 %v3503, %v3514
      %v3522 = vmul.f32 %v3506, %v3519
      %v3523 = vld [vmem:[%s10] sm:$0xff]
      %v3524 = vld [vmem:[%s10 + $0x8] sm:$0xff]
      %3526 = vset.pattern.permute.xlu0 0
      %3527 = vperm.xlu0 %3526, %v3523
      %v3528 = vpop.permute.xlu0 %3527
      %3531 = vset.pattern.permute.xlu0 0
      %3532 = vperm.xlu0 %3531, %v3524
      %v3533 = vpop.permute.xlu0 %3532
      %v3535 = vadd.f32 %v3521, %v3528
      %v3536 = vadd.f32 %v3522, %v3533
      %v3537 = vmax.f32 %v3535, 0.0
      %v3538 = vmax.f32 %v3536, 0.0
      %v3539 = vpack.c.bf16 %v3538, %v3537
      %v3541 = vunpack.c.l.b16 %v3539
      %v3542 = vunpack.c.h.b16 %v3539
      %v3543 = vpack.c.b16 %v3541, %v3541
      %v3544 = vpack.c.b16 %v3542, %v3542
      %3547 = vst [vmem:[%s476] sm:$0xf] %v3543
      %3548 = vst [vmem:[%s476 + $0x4] sm:$0xf] %v3544
      %p3549 = scmp.lt.s32.totalorder %s26, 1
      %s3550 = scalar_select %p3549, %s26, 1
      %p3551 = scmp.lt.s32.totalorder %s27, 0
      %s3552 = scalar_select %p3551, %s27, 0
      %s3553 = smul.addr %s3550, 2
      %s3554 = sadd.s32 %s3552, %s3553
      %s3555 = smul.addr %s3554, 4
      %s3556 = scalar_lea.vmem %s11, %s3555
      // Predicated region
      $region65: #{building_block_forward.2} parent=63 // pred_check
        %p3557 = pneg %p306
      $region66: #{building_block_forward.2} parent=63 // pred_check_branch
        %3559 = sbr.rel (%p3557) target = $region68
      $region67: #{building_block_forward.2} parent=63 // pred_region
        _
      $region68: #{building_block_forward.2} parent=63 // pred_fallthru
        _
    $region64: #{building_block_forward.2} parent=5 // pred_fallthru
      _
    %p3560 = scmp.le.s32.totalorder 2, %s17
    // Predicated region
    $region69: #{building_block_forward.2} parent=5 // pred_check
      %p3561 = pneg %p3560
    $region70: #{building_block_forward.2} parent=5 // pred_check_branch
      %3563 = sbr.rel (%p3561) target = $region72
    $region71: #{building_block_forward.2} parent=5 // pred_region
      %s3564 = ssub.s32 %s17, 2
      // Predicated region
      $region73: #{building_block_forward.2} parent=71 // pred_check
        %p3565 = pneg %p312
      $region74: #{building_block_forward.2} parent=71 // pred_check_branch
        %3567 = sbr.rel (%p3565) target = $region76
      $region75: #{building_block_forward.2} parent=71 // pred_region
        %p3568 = scmp.lt.s32.totalorder %s28, 1
        %s3569 = scalar_select %p3568, %s28, 1
        %p3570 = scmp.lt.s32.totalorder %s29, 0
        %s3571 = scalar_select %p3570, %s29, 0
        %s3572 = smul.addr %s3569, 2
        %s3573 = sadd.s32 %s3571, %s3572
        %s3574 = smul.addr %s3573, 4
        %s3575 = scalar_lea.vmem %s11, %s3574
      $region76: #{building_block_forward.2} parent=71 // pred_fallthru
        _
    $region72: #{building_block_forward.2} parent=5 // pred_fallthru
      _
  $region6: #{building_block_forward.2} parent=0 // loop_footer
    %s21 = sadd.s32 1, %s17
  $region7: #{building_block_forward.2} parent=0 // loop_footer_branch
    %16 = sbr.rel target = $region3
  $region8: #{building_block_forward.2} parent=0 // loop_exit
    _

// kernel: building_block_forward.3
$region0: #{building_block_forward.3}
  #allocation0 [shape = 'u32[]', space=smem, size = 0x4, offset = 0x4, fixed_abs, tag = 'smem constant byte address 0x4 - core index']
  #allocation1 [shape = 'u32[144,128]{1,0:T(1,128)}', space=vmem, size = 0x12000, scoped, tag = 'internal scratch']
  %s0 = inlined_call_operand.vmem [shape: f32[2,3,128], index: 0, kind: input, shape index: {}]
  %s1 = inlined_call_operand.vmem [shape: f32[2,3,8,128], index: 1, kind: input, shape index: {}]
  %s2 = inlined_call_operand.vmem [shape: bf16[2,16,8,128], index: 2, kind: input, shape index: {}]
  %s3 = inlined_call_operand.vmem [shape: bf16[16,7], index: 3, kind: input, shape index: {}]
  %s4 = inlined_call_operand.vmem [shape: bf16[16,3], index: 4, kind: input, shape index: {}]
  %s5 = inlined_call_operand.vmem [shape: f32[16,1], index: 5, kind: input, shape index: {}]
  %s6 = inlined_call_operand.vmem [shape: f32[16,1], index: 6, kind: input, shape index: {}]
  %s7 = inlined_call_operand.vmem [shape: bf16[16,16], index: 7, kind: input, shape index: {}]
  %s8 = inlined_call_operand.vmem [shape: f32[16,1], index: 8, kind: input, shape index: {}]
  %s9 = inlined_call_operand.vmem [shape: f32[16,1], index: 9, kind: input, shape index: {}]
  %s10 = inlined_call_operand.vmem [shape: bf16[32,32], index: 10, kind: input, shape index: {}]
  %s11 = inlined_call_operand.vmem [shape: bf16[32,32], index: 11, kind: input, shape index: {}]
  %s12 = inlined_call_operand.vmem [shape: f32[32,1], index: 12, kind: input, shape index: {}]
  %s13 = inlined_call_operand.vmem [shape: f32[32,1], index: 13, kind: input, shape index: {}]
  %s14 = inlined_call_operand.vmem [shape: f32[2,32,128], index: 14, kind: output, shape index: {}]
  %s15 = sld [smem:[#allocation0]]
  $region89: #{building_block_forward.3} parent=0
    _
  %s17 = ssub.s32 1, %s15
  %s18 = scalar_select 0, %s17, %s15
  loop: start=0, step=1, limit=4
  $region2: #{building_block_forward.3} parent=0 // loop_pre_header
    _
  $region3: #{building_block_forward.3} parent=0 // loop_header
    %s20 = sphi 0, %s24
    %p21 = scmp.ge.s32.totalorder %s20, 4
    %s27 = sphi 0, %s39
    %s28 = sphi 0, %s35
    %s29 = sphi 0, %s27
    %s30 = sphi 0, %s28
    %s31 = sphi 0, %s29
    %s32 = sphi 0, %s30
    %s44 = sphi 0, %s46
    %s47 = sphi 0, %s44
    %s48 = sphi 0, %s47
    %s64 = sphi 0, %s48
    %s72 = sphi 0, %s74
    %s75 = sphi 0, %s72
    %s76 = sphi 0, %s75
    %s92 = sphi 0, %s76
    %s100 = sphi 0, %s102
    %s103 = sphi 0, %s100
    %s104 = sphi 0, %s103
    %s120 = sphi 0, %s104
    %s124 = sphi 0, %s124
    %s126 = sphi 0, %s124
    %s127 = sphi 0, %s126
    %s141 = sphi 0, %s127
    %s145 = sphi 0, %s145
    %s147 = sphi 0, %s145
    %s148 = sphi 0, %s147
    %s162 = sphi 0, %s148
    %s166 = sphi 0, %s166
    %s168 = sphi 0, %s166
    %s169 = sphi 0, %s168
    %s183 = sphi 0, %s169
    %s187 = sphi 0, %s187
    %s189 = sphi 0, %s187
    %s190 = sphi 0, %s189
    %s204 = sphi 0, %s190
    %s208 = sphi 0, %s208
    %s210 = sphi 0, %s208
    %s211 = sphi 0, %s210
    %s225 = sphi 0, %s211
    %s229 = sphi 0, %s229
    %s231 = sphi 0, %s229
    %s232 = sphi 0, %s231
    %s246 = sphi 0, %s232
    %s250 = sphi 0, %s250
    %s252 = sphi 0, %s250
    %s253 = sphi 0, %s252
    %s267 = sphi 0, %s253
    %s271 = sphi 0, %s271
    %s273 = sphi 0, %s271
    %s274 = sphi 0, %s273
    %s288 = sphi 0, %s274
    %s292 = sphi 0, %s292
    %s294 = sphi 0, %s292
    %s295 = sphi 0, %s294
    %s309 = sphi 0, %s295
    %s313 = sphi 0, %s313
    %s315 = sphi 0, %s313
    %s316 = sphi 0, %s315
    %s330 = sphi 0, %s316
    %s334 = sphi 0, %s334
    %s336 = sphi 0, %s334
    %s337 = sphi 0, %s336
    %s351 = sphi 0, %s337
    %s359 = sphi 0, %s361
    %s362 = sphi 0, %s359
    %s363 = sphi 0, %s362
    %s379 = sphi 0, %s363
  $region4: #{building_block_forward.3} parent=0 // loop_header_branch
    %23 = sbr.rel (%p21) target = $region8
  $region5: #{building_block_forward.3} parent=0 // loop_body
    %s25 = ssub.s32 %s20, 1
    %s26 = ssub.s32 %s20, 2
    %s33 = sadd.s32 1, %s28
    %p34 = scmp.ge.s32.totalorder %s33, 1
    %s35 = scalar_select %p34, 0, %s33
    %s36 = sadd.s32 1, %s27
    %s37 = scalar_select %p34, %s36, %s27
    %p38 = scmp.ge.s32.totalorder %s37, 2
    %s39 = scalar_select %p38, 0, %s37
    %s40 = ssub.s32 %s27, %s39
    %s41 = ssub.s32 %s28, %s35
    %s42 = sor.u32 %s40, %s41
    %p43 = scmp.eq.s32.totalorder %s42, 0
    %s45 = sadd.s32 %s44, 1
    %s46 = scalar_select %p43, %s44, %s45
    %p49 = pneg %p43
    %p50 = scmp.eq.s32.totalorder %s20, 1
    %p51 = por %p49, %p50
    %p52 = scmp.ne.s32.totalorder %s44, %s47
    %p53 = scmp.eq.s32.totalorder %s20, 0
    %p54 = por %p52, %p53
    %p55 = scmp.ne.s32.totalorder %s44, %s47
    %p56 = scmp.eq.s32.totalorder %s25, 1
    %p57 = por %p55, %p56
    %p58 = scmp.ne.s32.totalorder %s47, %s48
    %p59 = scmp.eq.s32.totalorder %s25, 0
    %p60 = por %p58, %p59
    %p61 = scmp.ne.s32.totalorder %s47, %s48
    %p62 = scmp.eq.s32.totalorder %s26, 1
    %p63 = por %p61, %p62
    %p65 = scmp.ne.s32.totalorder %s48, %s64
    %p66 = scmp.eq.s32.totalorder %s26, 0
    %p67 = por %p65, %p66
    %s68 = ssub.s32 %s27, %s39
    %s69 = ssub.s32 %s28, %s35
    %s70 = sor.u32 %s68, %s69
    %p71 = scmp.eq.s32.totalorder %s70, 0
    %s73 = sadd.s32 %s72, 1
    %s74 = scalar_select %p71, %s72, %s73
    %p77 = pneg %p71
    %p78 = scmp.eq.s32.totalorder %s20, 1
    %p79 = por %p77, %p78
    %p80 = scmp.ne.s32.totalorder %s72, %s75
    %p81 = scmp.eq.s32.totalorder %s20, 0
    %p82 = por %p80, %p81
    %p83 = scmp.ne.s32.totalorder %s72, %s75
    %p84 = scmp.eq.s32.totalorder %s25, 1
    %p85 = por %p83, %p84
    %p86 = scmp.ne.s32.totalorder %s75, %s76
    %p87 = scmp.eq.s32.totalorder %s25, 0
    %p88 = por %p86, %p87
    %p89 = scmp.ne.s32.totalorder %s75, %s76
    %p90 = scmp.eq.s32.totalorder %s26, 1
    %p91 = por %p89, %p90
    %p93 = scmp.ne.s32.totalorder %s76, %s92
    %p94 = scmp.eq.s32.totalorder %s26, 0
    %p95 = por %p93, %p94
    %s96 = ssub.s32 %s27, %s39
    %s97 = ssub.s32 %s28, %s35
    %s98 = sor.u32 %s96, %s97
    %p99 = scmp.eq.s32.totalorder %s98, 0
    %s101 = sadd.s32 %s100, 1
    %s102 = scalar_select %p99, %s100, %s101
    %p105 = pneg %p99
    %p106 = scmp.eq.s32.totalorder %s20, 1
    %p107 = por %p105, %p106
    %p108 = scmp.ne.s32.totalorder %s100, %s103
    %p109 = scmp.eq.s32.totalorder %s20, 0
    %p110 = por %p108, %p109
    %p111 = scmp.ne.s32.totalorder %s100, %s103
    %p112 = scmp.eq.s32.totalorder %s25, 1
    %p113 = por %p111, %p112
    %p114 = scmp.ne.s32.totalorder %s103, %s104
    %p115 = scmp.eq.s32.totalorder %s25, 0
    %p116 = por %p114, %p115
    %p117 = scmp.ne.s32.totalorder %s103, %s104
    %p118 = scmp.eq.s32.totalorder %s26, 1
    %p119 = por %p117, %p118
    %p121 = scmp.ne.s32.totalorder %s104, %s120
    %p122 = scmp.eq.s32.totalorder %s26, 0
    %p123 = por %p121, %p122
    %s125 = sadd.s32 %s124, 1
    %p128 = scmp.eq.s32.totalorder %s20, 1
    %p129 = scmp.ne.s32.totalorder %s124, %s126
    %p130 = scmp.eq.s32.totalorder %s20, 0
    %p131 = por %p129, %p130
    %p132 = scmp.ne.s32.totalorder %s124, %s126
    %p133 = scmp.eq.s32.totalorder %s25, 1
    %p134 = por %p132, %p133
    %p135 = scmp.ne.s32.totalorder %s126, %s127
    %p136 = scmp.eq.s32.totalorder %s25, 0
    %p137 = por %p135, %p136
    %p138 = scmp.ne.s32.totalorder %s126, %s127
    %p139 = scmp.eq.s32.totalorder %s26, 1
    %p140 = por %p138, %p139
    %p142 = scmp.ne.s32.totalorder %s127, %s141
    %p143 = scmp.eq.s32.totalorder %s26, 0
    %p144 = por %p142, %p143
    %s146 = sadd.s32 %s145, 1
    %p149 = scmp.eq.s32.totalorder %s20, 1
    %p150 = scmp.ne.s32.totalorder %s145, %s147
    %p151 = scmp.eq.s32.totalorder %s20, 0
    %p152 = por %p150, %p151
    %p153 = scmp.ne.s32.totalorder %s145, %s147
    %p154 = scmp.eq.s32.totalorder %s25, 1
    %p155 = por %p153, %p154
    %p156 = scmp.ne.s32.totalorder %s147, %s148
    %p157 = scmp.eq.s32.totalorder %s25, 0
    %p158 = por %p156, %p157
    %p159 = scmp.ne.s32.totalorder %s147, %s148
    %p160 = scmp.eq.s32.totalorder %s26, 1
    %p161 = por %p159, %p160
    %p163 = scmp.ne.s32.totalorder %s148, %s162
    %p164 = scmp.eq.s32.totalorder %s26, 0
    %p165 = por %p163, %p164
    %s167 = sadd.s32 %s166, 1
    %p170 = scmp.eq.s32.totalorder %s20, 1
    %p171 = scmp.ne.s32.totalorder %s166, %s168
    %p172 = scmp.eq.s32.totalorder %s20, 0
    %p173 = por %p171, %p172
    %p174 = scmp.ne.s32.totalorder %s166, %s168
    %p175 = scmp.eq.s32.totalorder %s25, 1
    %p176 = por %p174, %p175
    %p177 = scmp.ne.s32.totalorder %s168, %s169
    %p178 = scmp.eq.s32.totalorder %s25, 0
    %p179 = por %p177, %p178
    %p180 = scmp.ne.s32.totalorder %s168, %s169
    %p181 = scmp.eq.s32.totalorder %s26, 1
    %p182 = por %p180, %p181
    %p184 = scmp.ne.s32.totalorder %s169, %s183
    %p185 = scmp.eq.s32.totalorder %s26, 0
    %p186 = por %p184, %p185
    %s188 = sadd.s32 %s187, 1
    %p191 = scmp.eq.s32.totalorder %s20, 1
    %p192 = scmp.ne.s32.totalorder %s187, %s189
    %p193 = scmp.eq.s32.totalorder %s20, 0
    %p194 = por %p192, %p193
    %p195 = scmp.ne.s32.totalorder %s187, %s189
    %p196 = scmp.eq.s32.totalorder %s25, 1
    %p197 = por %p195, %p196
    %p198 = scmp.ne.s32.totalorder %s189, %s190
    %p199 = scmp.eq.s32.totalorder %s25, 0
    %p200 = por %p198, %p199
    %p201 = scmp.ne.s32.totalorder %s189, %s190
    %p202 = scmp.eq.s32.totalorder %s26, 1
    %p203 = por %p201, %p202
    %p205 = scmp.ne.s32.totalorder %s190, %s204
    %p206 = scmp.eq.s32.totalorder %s26, 0
    %p207 = por %p205, %p206
    %s209 = sadd.s32 %s208, 1
    %p212 = scmp.eq.s32.totalorder %s20, 1
    %p213 = scmp.ne.s32.totalorder %s208, %s210
    %p214 = scmp.eq.s32.totalorder %s20, 0
    %p215 = por %p213, %p214
    %p216 = scmp.ne.s32.totalorder %s208, %s210
    %p217 = scmp.eq.s32.totalorder %s25, 1
    %p218 = por %p216, %p217
    %p219 = scmp.ne.s32.totalorder %s210, %s211
    %p220 = scmp.eq.s32.totalorder %s25, 0
    %p221 = por %p219, %p220
    %p222 = scmp.ne.s32.totalorder %s210, %s211
    %p223 = scmp.eq.s32.totalorder %s26, 1
    %p224 = por %p222, %p223
    %p226 = scmp.ne.s32.totalorder %s211, %s225
    %p227 = scmp.eq.s32.totalorder %s26, 0
    %p228 = por %p226, %p227
    %s230 = sadd.s32 %s229, 1
    %p233 = scmp.eq.s32.totalorder %s20, 1
    %p234 = scmp.ne.s32.totalorder %s229, %s231
    %p235 = scmp.eq.s32.totalorder %s20, 0
    %p236 = por %p234, %p235
    %p237 = scmp.ne.s32.totalorder %s229, %s231
    %p238 = scmp.eq.s32.totalorder %s25, 1
    %p239 = por %p237, %p238
    %p240 = scmp.ne.s32.totalorder %s231, %s232
    %p241 = scmp.eq.s32.totalorder %s25, 0
    %p242 = por %p240, %p241
    %p243 = scmp.ne.s32.totalorder %s231, %s232
    %p244 = scmp.eq.s32.totalorder %s26, 1
    %p245 = por %p243, %p244
    %p247 = scmp.ne.s32.totalorder %s232, %s246
    %p248 = scmp.eq.s32.totalorder %s26, 0
    %p249 = por %p247, %p248
    %s251 = sadd.s32 %s250, 1
    %p254 = scmp.eq.s32.totalorder %s20, 1
    %p255 = scmp.ne.s32.totalorder %s250, %s252
    %p256 = scmp.eq.s32.totalorder %s20, 0
    %p257 = por %p255, %p256
    %p258 = scmp.ne.s32.totalorder %s250, %s252
    %p259 = scmp.eq.s32.totalorder %s25, 1
    %p260 = por %p258, %p259
    %p261 = scmp.ne.s32.totalorder %s252, %s253
    %p262 = scmp.eq.s32.totalorder %s25, 0
    %p263 = por %p261, %p262
    %p264 = scmp.ne.s32.totalorder %s252, %s253
    %p265 = scmp.eq.s32.totalorder %s26, 1
    %p266 = por %p264, %p265
    %p268 = scmp.ne.s32.totalorder %s253, %s267
    %p269 = scmp.eq.s32.totalorder %s26, 0
    %p270 = por %p268, %p269
    %s272 = sadd.s32 %s271, 1
    %p275 = scmp.eq.s32.totalorder %s20, 1
    %p276 = scmp.ne.s32.totalorder %s271, %s273
    %p277 = scmp.eq.s32.totalorder %s20, 0
    %p278 = por %p276, %p277
    %p279 = scmp.ne.s32.totalorder %s271, %s273
    %p280 = scmp.eq.s32.totalorder %s25, 1
    %p281 = por %p279, %p280
    %p282 = scmp.ne.s32.totalorder %s273, %s274
    %p283 = scmp.eq.s32.totalorder %s25, 0
    %p284 = por %p282, %p283
    %p285 = scmp.ne.s32.totalorder %s273, %s274
    %p286 = scmp.eq.s32.totalorder %s26, 1
    %p287 = por %p285, %p286
    %p289 = scmp.ne.s32.totalorder %s274, %s288
    %p290 = scmp.eq.s32.totalorder %s26, 0
    %p291 = por %p289, %p290
    %s293 = sadd.s32 %s292, 1
    %p296 = scmp.eq.s32.totalorder %s20, 1
    %p297 = scmp.ne.s32.totalorder %s292, %s294
    %p298 = scmp.eq.s32.totalorder %s20, 0
    %p299 = por %p297, %p298
    %p300 = scmp.ne.s32.totalorder %s292, %s294
    %p301 = scmp.eq.s32.totalorder %s25, 1
    %p302 = por %p300, %p301
    %p303 = scmp.ne.s32.totalorder %s294, %s295
    %p304 = scmp.eq.s32.totalorder %s25, 0
    %p305 = por %p303, %p304
    %p306 = scmp.ne.s32.totalorder %s294, %s295
    %p307 = scmp.eq.s32.totalorder %s26, 1
    %p308 = por %p306, %p307
    %p310 = scmp.ne.s32.totalorder %s295, %s309
    %p311 = scmp.eq.s32.totalorder %s26, 0
    %p312 = por %p310, %p311
    %s314 = sadd.s32 %s313, 1
    %p317 = scmp.eq.s32.totalorder %s20, 1
    %p318 = scmp.ne.s32.totalorder %s313, %s315
    %p319 = scmp.eq.s32.totalorder %s20, 0
    %p320 = por %p318, %p319
    %p321 = scmp.ne.s32.totalorder %s313, %s315
    %p322 = scmp.eq.s32.totalorder %s25, 1
    %p323 = por %p321, %p322
    %p324 = scmp.ne.s32.totalorder %s315, %s316
    %p325 = scmp.eq.s32.totalorder %s25, 0
    %p326 = por %p324, %p325
    %p327 = scmp.ne.s32.totalorder %s315, %s316
    %p328 = scmp.eq.s32.totalorder %s26, 1
    %p329 = por %p327, %p328
    %p331 = scmp.ne.s32.totalorder %s316, %s330
    %p332 = scmp.eq.s32.totalorder %s26, 0
    %p333 = por %p331, %p332
    %s335 = sadd.s32 %s334, 1
    %p338 = scmp.eq.s32.totalorder %s20, 1
    %p339 = scmp.ne.s32.totalorder %s334, %s336
    %p340 = scmp.eq.s32.totalorder %s20, 0
    %p341 = por %p339, %p340
    %p342 = scmp.ne.s32.totalorder %s334, %s336
    %p343 = scmp.eq.s32.totalorder %s25, 1
    %p344 = por %p342, %p343
    %p345 = scmp.ne.s32.totalorder %s336, %s337
    %p346 = scmp.eq.s32.totalorder %s25, 0
    %p347 = por %p345, %p346
    %p348 = scmp.ne.s32.totalorder %s336, %s337
    %p349 = scmp.eq.s32.totalorder %s26, 1
    %p350 = por %p348, %p349
    %p352 = scmp.ne.s32.totalorder %s337, %s351
    %p353 = scmp.eq.s32.totalorder %s26, 0
    %p354 = por %p352, %p353
    %s355 = ssub.s32 %s27, %s39
    %s356 = ssub.s32 %s28, %s35
    %s357 = sor.u32 %s355, %s356
    %p358 = scmp.eq.s32.totalorder %s357, 0
    %s360 = sadd.s32 %s359, 1
    %s361 = scalar_select %p358, %s359, %s360
    %p364 = pneg %p358
    %p365 = scmp.eq.s32.totalorder %s20, 1
    %p366 = por %p364, %p365
    %p367 = scmp.ne.s32.totalorder %s359, %s362
    %p368 = scmp.eq.s32.totalorder %s20, 0
    %p369 = por %p367, %p368
    %p370 = scmp.ne.s32.totalorder %s359, %s362
    %p371 = scmp.eq.s32.totalorder %s25, 1
    %p372 = por %p370, %p371
    %p373 = scmp.ne.s32.totalorder %s362, %s363
    %p374 = scmp.eq.s32.totalorder %s25, 0
    %p375 = por %p373, %p374
    %p376 = scmp.ne.s32.totalorder %s362, %s363
    %p377 = scmp.eq.s32.totalorder %s26, 1
    %p378 = por %p376, %p377
    %p380 = scmp.ne.s32.totalorder %s363, %s379
    %p381 = scmp.eq.s32.totalorder %s26, 0
    %p382 = por %p380, %p381
    %p383 = scmp.le.s32.totalorder 1, %s20
    %p384 = scmp.lt.s32.totalorder %s20, 3
    %p385 = pnand %p383, %p384
    %p386 = pneg %p385
    // Predicated region
    $region9: #{building_block_forward.3} parent=5 // pred_check
      _
    $region10: #{building_block_forward.3} parent=5 // pred_check_branch
      %388 = sbr.rel (%p385) target = $region12
    $region11: #{building_block_forward.3} parent=5 // pred_region
      %s389 = ssub.s32 %s20, 1
      // Predicated region
      $region13: #{building_block_forward.3} parent=11 // pred_check
        %p390 = pneg %p137
      $region14: #{building_block_forward.3} parent=11 // pred_check_branch
        %392 = sbr.rel (%p390) target = $region16
      $region15: #{building_block_forward.3} parent=11 // pred_region
        _
      $region16: #{building_block_forward.3} parent=11 // pred_fallthru
        _
      // Predicated region
      $region17: #{building_block_forward.3} parent=11 // pred_check
        %p393 = pneg %p158
      $region18: #{building_block_forward.3} parent=11 // pred_check_branch
        %395 = sbr.rel (%p393) target = $region20
      $region19: #{building_block_forward.3} parent=11 // pred_region
        _
      $region20: #{building_block_forward.3} parent=11 // pred_fallthru
        _
      // Predicated region
      $region21: #{building_block_forward.3} parent=11 // pred_check
        %p396 = pneg %p179
      $region22: #{building_block_forward.3} parent=11 // pred_check_branch
        %398 = sbr.rel (%p396) target = $region24
      $region23: #{building_block_forward.3} parent=11 // pred_region
        _
      $region24: #{building_block_forward.3} parent=11 // pred_fallthru
        _
      // Predicated region
      $region25: #{building_block_forward.3} parent=11 // pred_check
        %p399 = pneg %p200
      $region26: #{building_block_forward.3} parent=11 // pred_check_branch
        %401 = sbr.rel (%p399) target = $region28
      $region27: #{building_block_forward.3} parent=11 // pred_region
        _
      $region28: #{building_block_forward.3} parent=11 // pred_fallthru
        _
      // Predicated region
      $region29: #{building_block_forward.3} parent=11 // pred_check
        %p402 = pneg %p221
      $region30: #{building_block_forward.3} parent=11 // pred_check_branch
        %404 = sbr.rel (%p402) target = $region32
      $region31: #{building_block_forward.3} parent=11 // pred_region
        _
      $region32: #{building_block_forward.3} parent=11 // pred_fallthru
        _
      // Predicated region
      $region33: #{building_block_forward.3} parent=11 // pred_check
        %p405 = pneg %p242
      $region34: #{building_block_forward.3} parent=11 // pred_check_branch
        %407 = sbr.rel (%p405) target = $region36
      $region35: #{building_block_forward.3} parent=11 // pred_region
        _
      $region36: #{building_block_forward.3} parent=11 // pred_fallthru
        _
      // Predicated region
      $region37: #{building_block_forward.3} parent=11 // pred_check
        %p408 = pneg %p263
      $region38: #{building_block_forward.3} parent=11 // pred_check_branch
        %410 = sbr.rel (%p408) target = $region40
      $region39: #{building_block_forward.3} parent=11 // pred_region
        _
      $region40: #{building_block_forward.3} parent=11 // pred_fallthru
        _
      // Predicated region
      $region41: #{building_block_forward.3} parent=11 // pred_check
        %p411 = pneg %p284
      $region42: #{building_block_forward.3} parent=11 // pred_check_branch
        %413 = sbr.rel (%p411) target = $region44
      $region43: #{building_block_forward.3} parent=11 // pred_region
        _
      $region44: #{building_block_forward.3} parent=11 // pred_fallthru
        _
      // Predicated region
      $region45: #{building_block_forward.3} parent=11 // pred_check
        %p414 = pneg %p305
      $region46: #{building_block_forward.3} parent=11 // pred_check_branch
        %416 = sbr.rel (%p414) target = $region48
      $region47: #{building_block_forward.3} parent=11 // pred_region
        _
      $region48: #{building_block_forward.3} parent=11 // pred_fallthru
        _
      // Predicated region
      $region49: #{building_block_forward.3} parent=11 // pred_check
        %p417 = pneg %p326
      $region50: #{building_block_forward.3} parent=11 // pred_check_branch
        %419 = sbr.rel (%p417) target = $region52
      $region51: #{building_block_forward.3} parent=11 // pred_region
        _
      $region52: #{building_block_forward.3} parent=11 // pred_fallthru
        _
      // Predicated region
      $region53: #{building_block_forward.3} parent=11 // pred_check
        %p420 = pneg %p347
      $region54: #{building_block_forward.3} parent=11 // pred_check_branch
        %422 = sbr.rel (%p420) target = $region56
      $region55: #{building_block_forward.3} parent=11 // pred_region
        _
      $region56: #{building_block_forward.3} parent=11 // pred_fallthru
        _
    $region12: #{building_block_forward.3} parent=5 // pred_fallthru
      _
    %p423 = scmp.lt.s32.totalorder %s20, 2
    // Predicated region
    $region57: #{building_block_forward.3} parent=5 // pred_check
      %p424 = pneg %p423
    $region58: #{building_block_forward.3} parent=5 // pred_check_branch
      %426 = sbr.rel (%p424) target = $region60
    $region59: #{building_block_forward.3} parent=5 // pred_region
      // Predicated region
      $region61: #{building_block_forward.3} parent=59 // pred_check
        %p427 = pneg %p54
      $region62: #{building_block_forward.3} parent=59 // pred_check_branch
        %429 = sbr.rel (%p427) target = $region64
      $region63: #{building_block_forward.3} parent=59 // pred_region
        %p430 = scmp.lt.s32.totalorder %s27, 1
        %s431 = scalar_select %p430, %s27, 1
        %p432 = scmp.lt.s32.totalorder %s28, 0
        %s433 = scalar_select %p432, %s28, 0
        %s434 = sadd.s32 %s433, %s431
        %s435 = smul.addr %s434, 4
        %s436 = scalar_lea.vmem %s0, %s435
      $region64: #{building_block_forward.3} parent=59 // pred_fallthru
        _
      // Predicated region
      $region65: #{building_block_forward.3} parent=59 // pred_check
        %p437 = pneg %p82
      $region66: #{building_block_forward.3} parent=59 // pred_check_branch
        %439 = sbr.rel (%p437) target = $region68
      $region67: #{building_block_forward.3} parent=59 // pred_region
        %p440 = scmp.lt.s32.totalorder %s27, 1
        %s441 = scalar_select %p440, %s27, 1
        %p442 = scmp.lt.s32.totalorder %s28, 0
        %s443 = scalar_select %p442, %s28, 0
        %s444 = smul.addr %s441, 3
        %s445 = sadd.s32 %s443, %s444
        %s446 = smul.addr %s445, 8
        %s447 = scalar_lea.vmem %s1, %s446
      $region68: #{building_block_forward.3} parent=59 // pred_fallthru
        _
      // Predicated region
      $region69: #{building_block_forward.3} parent=59 // pred_check
        %p448 = pneg %p110
      $region70: #{building_block_forward.3} parent=59 // pred_check_branch
        %450 = sbr.rel (%p448) target = $region72
      $region71: #{building_block_forward.3} parent=59 // pred_region
        %p451 = scmp.lt.s32.totalorder %s27, 1
        %s452 = scalar_select %p451, %s27, 1
        %p453 = scmp.lt.s32.totalorder %s28, 0
        %s454 = scalar_select %p453, %s28, 0
        %s455 = smul.addr %s452, 16
        %s456 = sadd.s32 %s454, %s455
        %s457 = smul.addr %s456, 4
        %s458 = scalar_lea.vmem %s2, %s457
      $region72: #{building_block_forward.3} parent=59 // pred_fallthru
        _
    $region60: #{building_block_forward.3} parent=5 // pred_fallthru
      _
    %p459 = scmp.le.s32.totalorder 1, %s20
    %p460 = scmp.lt.s32.totalorder %s20, 3
    %p461 = pnand %p459, %p460
    %p462 = pneg %p461
    // Predicated region
    $region73: #{building_block_forward.3} parent=5 // pred_check
      _
    $region74: #{building_block_forward.3} parent=5 // pred_check_branch
      %464 = sbr.rel (%p461) target = $region76
    $region75: #{building_block_forward.3} parent=5 // pred_region
      %s465 = ssub.s32 %s20, 1
      %p466 = scmp.lt.s32.totalorder %s29, 1
      %s467 = scalar_select %p466, %s29, 1
      %p468 = scmp.lt.s32.totalorder %s30, 0
      %s469 = scalar_select %p468, %s30, 0
      %s470 = sadd.s32 %s469, %s467
      %s471 = smul.addr %s470, 4
      %s472 = scalar_lea.vmem %s0, %s471
      %p473 = pneg %p60
      %p474 = pneg %p57
      %p475 = scmp.lt.s32.totalorder %s29, 1
      %s476 = scalar_select %p475, %s29, 1
      %p477 = scmp.lt.s32.totalorder %s30, 0
      %s478 = scalar_select %p477, %s30, 0
      %s479 = smul.addr %s476, 3
      %s480 = sadd.s32 %s478, %s479
      %s481 = smul.addr %s480, 8
      %s482 = scalar_lea.vmem %s1, %s481
      %p483 = pneg %p88
      %p484 = pneg %p85
      %p485 = scmp.lt.s32.totalorder %s29, 1
      %s486 = scalar_select %p485, %s29, 1
      %p487 = scmp.lt.s32.totalorder %s30, 0
      %s488 = scalar_select %p487, %s30, 0
      %s489 = smul.addr %s486, 16
      %s490 = sadd.s32 %s488, %s489
      %s491 = smul.addr %s490, 4
      %s492 = scalar_lea.vmem %s2, %s491
      %p493 = pneg %p116
      %p494 = pneg %p113
      %p495 = pneg %p137
      %p496 = pneg %p134
      %p497 = pneg %p158
      %p498 = pneg %p155
      %p499 = pneg %p179
      %p500 = pneg %p176
      %p501 = pneg %p200
      %p502 = pneg %p197
      %p503 = pneg %p221
      %p504 = pneg %p218
      %p505 = pneg %p242
      %p506 = pneg %p239
      %p507 = pneg %p263
      %p508 = pneg %p260
      %p509 = pneg %p284
      %p510 = pneg %p281
      %p511 = pneg %p305
      %p512 = pneg %p302
      %p513 = pneg %p326
      %p514 = pneg %p323
      %p515 = pneg %p347
      %p516 = pneg %p344
      %p517 = pneg %p375
      %p518 = pneg %p372
      %p519 = scmp.lt.s32.totalorder %s29, 1
      %s520 = scalar_select %p519, %s29, 1
      %p521 = scmp.lt.s32.totalorder %s30, 0
      %s522 = scalar_select %p521, %s30, 0
      %s523 = smul.addr %s520, 4
      %s524 = sadd.s32 %s522, %s523
      %s525 = smul.addr %s524, 8
      %s526 = scalar_lea.vmem %s14, %s525
      %p527 = scmp.lt.s32.totalorder %s29, 1
      %s528 = scalar_select %p527, %s29, 1
      %p529 = scmp.lt.s32.totalorder %s30, 0
      %s530 = scalar_select %p529, %s30, 0
      %s531 = sadd.s32 %s530, %s528
      %s532 = smul.addr %s531, 4
      %s533 = scalar_lea.vmem %s0, %s532
      %p534 = scmp.lt.s32.totalorder %s29, 1
      %s535 = scalar_select %p534, %s29, 1
      %p536 = scmp.lt.s32.totalorder %s30, 0
      %s537 = scalar_select %p536, %s30, 0
      %s538 = smul.addr %s535, 3
      %s539 = sadd.s32 %s537, %s538
      %s540 = smul.addr %s539, 8
      %s541 = scalar_lea.vmem %s1, %s540
      %p542 = scmp.lt.s32.totalorder %s29, 1
      %s543 = scalar_select %p542, %s29, 1
      %p544 = scmp.lt.s32.totalorder %s30, 0
      %s545 = scalar_select %p544, %s30, 0
      %s546 = smul.addr %s543, 16
      %s547 = sadd.s32 %s545, %s546
      %s548 = smul.addr %s547, 4
      %s549 = scalar_lea.vmem %s2, %s548
      %p550 = scmp.lt.s32.totalorder %s29, 1
      %s551 = scalar_select %p550, %s29, 1
      %p552 = scmp.lt.s32.totalorder %s30, 0
      %s553 = scalar_select %p552, %s30, 0
      %s554 = smul.addr %s551, 4
      %s555 = sadd.s32 %s553, %s554
      %s556 = smul.addr %s555, 8
      %s557 = scalar_lea.vmem %s14, %s556
      %v559 = vld [vmem:[%s533] sm:$0x7]
      %v560 = vld [vmem:[%s4] sm:$0xf]
      %v561 = vld [vmem:[%s4 + $0x4] sm:$0xf]
      %v562 = vpack.c.bf16 %v559, %v559
      %v565 = vunpack.c.l.b16 %v560
      %v566 = vunpack.c.l.b16 %v561
      %v567 = vpack.c.b16 %v566, %v565
      %vm568 = vcmask 23552
      %v570 = vsel %vm568, %v567, 0
      %vm572 = vcmask 1040384
      %vm573 = vcmask 1041408
      %v574 = vsel %vm572, 4294967295, 65535
      %v575 = vsel %vm573, %v574, 0
      %v577 = vand.u32 %v562, %v575
      %579 = vmatprep.subr.bf16.mxu0 0
      %580 = vmatpush1.bf16.msra.mxu0 %v577
      %581 = vmatprep.subr.bf16.mxu0 0
      %582 = vmatpush1.bf16.msra.mxu0 0
      %583 = vmatprep.subr.bf16.mxu0 0
      %584 = vmatpush1.bf16.msra.mxu0 0
      %585 = vmatprep.subr.bf16.mxu0 0
      %586 = vmatpush1.bf16.msra.mxu0 0
      %587 = vmatprep.subr.bf16.mxu0 0
      %588 = vmatpush1.bf16.msra.mxu0 0
      %589 = vmatprep.subr.bf16.mxu0 0
      %590 = vmatpush1.bf16.msra.mxu0 0
      %591 = vmatprep.subr.bf16.mxu0 0
      %592 = vmatpush1.bf16.msra.mxu0 0
      %593 = vmatprep.subr.bf16.mxu0 0
      %594 = vmatpush1.bf16.msra.mxu0 0
      %595 = vmatprep.subr.bf16.mxu0 0
      %596 = vmatpush1.bf16.msra.mxu0 0
      %597 = vmatprep.subr.bf16.mxu0 0
      %598 = vmatpush1.bf16.msra.mxu0 0
      %599 = vmatprep.subr.bf16.mxu0 0
      %600 = vmatpush1.bf16.msra.mxu0 0
      %601 = vmatprep.subr.bf16.mxu0 0
      %602 = vmatpush1.bf16.msra.mxu0 0
      %603 = vmatprep.subr.bf16.mxu0 0
      %604 = vmatpush1.bf16.msra.mxu0 0
      %605 = vmatprep.subr.bf16.mxu0 0
      %606 = vmatpush1.bf16.msra.mxu0 0
      %607 = vmatprep.subr.bf16.mxu0 0
      %608 = vmatpush1.bf16.msra.mxu0 0
      %609 = vmatprep.subr.bf16.mxu0 0
      %610 = vmatpush1.bf16.msra.mxu0 0
      %611 = vmatprep.mubr.bf16.mxu0 0
      %612 = vmatmul.mubr.bf16.gmra.mrb[0].mxu0 %v570
      %v613 = vpop.f32.mrb[0].mxu0
      %v614 = vadd.f32 0.0, %v613
      %v615 = vpop.f32.mrb[0].mxu0
      %v616 = vpop.f32.mrb[0].mxu0
      %v617 = vadd.f32 0.0, %v616
      %v618 = vpop.f32.mrb[0].mxu0
      %619 = vdwg.mxu0
      %v620 = vld [vmem:[%s541] sm:$0x1]
      %v621 = vld [vmem:[%s541 + $0x8] sm:$0x1]
      %v622 = vld [vmem:[%s541 + $0x10] sm:$0x1]
      %v626 = vrot.slane %v621, 7
      %vm627 = vcmask 1041409
      %v628 = vsel %vm627, %v626, %v620
      %v629 = vrot.slane %v622, 6
      %vm630 = vcmask 1042434
      %v631 = vsel %vm630, %v629, %v628
      %v633 = vsub.f32 %v559, %v631
      %v634 = vmul.f32 %v633, %v633
      %vm635 = vcmask 1042432
      %v636 = vsel %vm635, %v634, 0.0
      %v637 = vrot.slane %v636, 4
      %v638 = vadd.f32 %v636, %v637
      %v639 = vrot.slane %v638, 2
      %v640 = vadd.f32 %v638, %v639
      %v641 = vrot.slane %v640, 1
      %v642 = vadd.f32 %v640, %v641
      %v643 = vrsqrt.pop %v642
      %v644 = vmul.f32 %v642, %v643
      %vm645 = vcmp.eq.f32.partialorder %v642, inf
      %v646 = vsel %vm645, %v642, %v644
      %vm647 = vcmp.eq.f32.partialorder %v642, 0.0
      %v648 = vand.u32 %v642, 2147483648
      %v649 = vsel %vm647, %v648, %v646
      %v651 = vrot.slane %v633, 7
      %v653 = vrot.slane %v620, 4
      %v654 = vrot.slane %v621, 3
      %vm655 = vcmask 1045509
      %v656 = vsel %vm655, %v654, %v653
      %v657 = vrot.slane %v622, 2
      %vm658 = vcmask 1046534
      %v659 = vsel %vm658, %v657, %v656
      %v661 = vsel %vm572, %v649, %v651
      %vm662 = vcmask 1043456
      %v663 = vsel %vm662, %v661, %v659
      %v664 = vpack.c.bf16 %v663, %v663
      %v665 = vld [vmem:[%s3] sm:$0xf]
      %v666 = vld [vmem:[%s3 + $0x4] sm:$0xf]
      %v669 = vunpack.c.l.b16 %v665
      %v670 = vunpack.c.l.b16 %v666
      %v671 = vpack.c.b16 %v670, %v669
      %vm672 = vcmask 56320
      %v674 = vsel %vm672, %v671, 0
      %v676 = vsel %vm635, 4294967295, 65535
      %v677 = vsel %vm662, %v676, 0
      %v679 = vand.u32 %v664, %v677
      %681 = vmatprep.subr.bf16.mxu0 0
      %682 = vmatpush1.bf16.msra.mxu0 %v679
      %683 = vmatprep.subr.bf16.mxu0 0
      %684 = vmatpush1.bf16.msra.mxu0 0
      %685 = vmatprep.subr.bf16.mxu0 0
      %686 = vmatpush1.bf16.msra.mxu0 0
      %687 = vmatprep.subr.bf16.mxu0 0
      %688 = vmatpush1.bf16.msra.mxu0 0
      %689 = vmatprep.subr.bf16.mxu0 0
      %690 = vmatpush1.bf16.msra.mxu0 0
      %691 = vmatprep.subr.bf16.mxu0 0
      %692 = vmatpush1.bf16.msra.mxu0 0
      %693 = vmatprep.subr.bf16.mxu0 0
      %694 = vmatpush1.bf16.msra.mxu0 0
      %695 = vmatprep.subr.bf16.mxu0 0
      %696 = vmatpush1.bf16.msra.mxu0 0
      %697 = vmatprep.subr.bf16.mxu0 0
      %698 = vmatpush1.bf16.msra.mxu0 0
      %699 = vmatprep.subr.bf16.mxu0 0
      %700 = vmatpush1.bf16.msra.mxu0 0
      %701 = vmatprep.subr.bf16.mxu0 0
      %702 = vmatpush1.bf16.msra.mxu0 0
      %703 = vmatprep.subr.bf16.mxu0 0
      %704 = vmatpush1.bf16.msra.mxu0 0
      %705 = vmatprep.subr.bf16.mxu0 0
      %706 = vmatpush1.bf16.msra.mxu0 0
      %707 = vmatprep.subr.bf16.mxu0 0
      %708 = vmatpush1.bf16.msra.mxu0 0
      %709 = vmatprep.subr.bf16.mxu0 0
      %710 = vmatpush1.bf16.msra.mxu0 0
      %711 = vmatprep.subr.bf16.mxu0 0
      %712 = vmatpush1.bf16.msra.mxu0 0
      %713 = vmatprep.mubr.bf16.mxu0 0
      %714 = vmatmul.mubr.bf16.gmra.mrb[0].mxu0 %v674
      %v715 = vpop.f32.mrb[0].mxu0
      %v716 = vadd.f32 %v614, %v715
      %v717 = vpop.f32.mrb[0].mxu0
      %v718 = vpop.f32.mrb[0].mxu0
      %v719 = vadd.f32 %v617, %v718
      %v720 = vpop.f32.mrb[0].mxu0
      %721 = vdwg.mxu0
      %v722 = vld [vmem:[%s5] sm:$0xff]
      %v723 = vld [vmem:[%s5 + $0x8] sm:$0xff]
      %725 = vset.pattern.permute.xlu0 0
      %726 = vperm.xlu0 %725, %v722
      %v727 = vpop.permute.xlu0 %726
      %730 = vset.pattern.permute.xlu0 0
      %731 = vperm.xlu0 %730, %v723
      %v732 = vpop.permute.xlu0 %731
      %v734 = vmul.f32 %v716, %v727
      %v735 = vmul.f32 %v719, %v732
      %v736 = vld [vmem:[%s6] sm:$0xff]
      %v737 = vld [vmem:[%s6 + $0x8] sm:$0xff]
      %739 = vset.pattern.permute.xlu0 0
      %740 = vperm.xlu0 %739, %v736
      %v741 = vpop.permute.xlu0 %740
      %744 = vset.pattern.permute.xlu0 0
      %745 = vperm.xlu0 %744, %v737
      %v746 = vpop.permute.xlu0 %745
      %v748 = vadd.f32 %v734, %v741
      %v749 = vadd.f32 %v735, %v746
      %v750 = vmax.f32 %v748, 0.0
      %v751 = vmax.f32 %v749, 0.0
      %v752 = vld [vmem:[%s7] sm:$0xf]
      %v753 = vld [vmem:[%s7 + $0x4] sm:$0xf]
      %v754 = vpack.c.bf16 %v751, %v750
      %v757 = vunpack.c.l.b16 %v752
      %v758 = vunpack.c.l.b16 %v753
      %v759 = vpack.c.b16 %v758, %v757
      %vm760 = vcmask 130048
      %v762 = vsel %vm760, %v759, 0
      %764 = vmatprep.subr.bf16.mxu0 0
      %765 = vmatpush1.bf16.msra.mxu0 %v754
      %766 = vmatprep.subr.bf16.mxu0 0
      %767 = vmatpush1.bf16.msra.mxu0 0
      %768 = vmatprep.subr.bf16.mxu0 0
      %769 = vmatpush1.bf16.msra.mxu0 0
      %770 = vmatprep.subr.bf16.mxu0 0
      %771 = vmatpush1.bf16.msra.mxu0 0
      %772 = vmatprep.subr.bf16.mxu0 0
      %773 = vmatpush1.bf16.msra.mxu0 0
      %774 = vmatprep.subr.bf16.mxu0 0
      %775 = vmatpush1.bf16.msra.mxu0 0
      %776 = vmatprep.subr.bf16.mxu0 0
      %777 = vmatpush1.bf16.msra.mxu0 0
      %778 = vmatprep.subr.bf16.mxu0 0
      %779 = vmatpush1.bf16.msra.mxu0 0
      %780 = vmatprep.subr.bf16.mxu0 0
      %781 = vmatpush1.bf16.msra.mxu0 0
      %782 = vmatprep.subr.bf16.mxu0 0
      %783 = vmatpush1.bf16.msra.mxu0 0
      %784 = vmatprep.subr.bf16.mxu0 0
      %785 = vmatpush1.bf16.msra.mxu0 0
      %786 = vmatprep.subr.bf16.mxu0 0
      %787 = vmatpush1.bf16.msra.mxu0 0
      %788 = vmatprep.subr.bf16.mxu0 0
      %789 = vmatpush1.bf16.msra.mxu0 0
      %790 = vmatprep.subr.bf16.mxu0 0
      %791 = vmatpush1.bf16.msra.mxu0 0
      %792 = vmatprep.subr.bf16.mxu0 0
      %793 = vmatpush1.bf16.msra.mxu0 0
      %794 = vmatprep.subr.bf16.mxu0 0
      %795 = vmatpush1.bf16.msra.mxu0 0
      %796 = vmatprep.mubr.bf16.mxu0 0
      %797 = vmatmul.mubr.bf16.gmra.mrb[0].mxu0 %v762
      %v798 = vpop.f32.mrb[0].mxu0
      %v799 = vadd.f32 0.0, %v798
      %v800 = vpop.f32.mrb[0].mxu0
      %v801 = vpop.f32.mrb[0].mxu0
      %v802 = vadd.f32 0.0, %v801
      %v803 = vpop.f32.mrb[0].mxu0
      %804 = vdwg.mxu0
      %v805 = vld [vmem:[%s8] sm:$0xff]
      %v806 = vld [vmem:[%s8 + $0x8] sm:$0xff]
      %808 = vset.pattern.permute.xlu0 0
      %809 = vperm.xlu0 %808, %v805
      %v810 = vpop.permute.xlu0 %809
      %813 = vset.pattern.permute.xlu0 0
      %814 = vperm.xlu0 %813, %v806
      %v815 = vpop.permute.xlu0 %814
      %v817 = vmul.f32 %v799, %v810
      %v818 = vmul.f32 %v802, %v815
      %v819 = vld [vmem:[%s9] sm:$0xff]
      %v820 = vld [vmem:[%s9 + $0x8] sm:$0xff]
      %822 = vset.pattern.permute.xlu0 0
      %823 = vperm.xlu0 %822, %v819
      %v824 = vpop.permute.xlu0 %823
      %827 = vset.pattern.permute.xlu0 0
      %828 = vperm.xlu0 %827, %v820
      %v829 = vpop.permute.xlu0 %828
      %v831 = vadd.f32 %v817, %v824
      %v832 = vadd.f32 %v818, %v829
      %v833 = vmax.f32 %v831, 0.0
      %v834 = vmax.f32 %v832, 0.0
      %v835 = vld [vmem:[%s541 + $0x1] sm:$0x1]
      %v836 = vld [vmem:[%s541 + $0x9] sm:$0x1]
      %v837 = vld [vmem:[%s541 + $0x11] sm:$0x1]
      %v841 = vrot.slane %v836, 7
      %v842 = vsel %vm627, %v841, %v835
      %v843 = vrot.slane %v837, 6
      %v844 = vsel %vm630, %v843, %v842
      %v846 = vsub.f32 %v559, %v844
      %v847 = vmul.f32 %v846, %v846
      %v848 = vsel %vm635, %v847, 0.0
      %v849 = vrot.slane %v848, 4
      %v850 = vadd.f32 %v848, %v849
      %v851 = vrot.slane %v850, 2
      %v852 = vadd.f32 %v850, %v851
      %v853 = vrot.slane %v852, 1
      %v854 = vadd.f32 %v852, %v853
      %v855 = vrsqrt.pop %v854
      %v856 = vmul.f32 %v854, %v855
      %vm857 = vcmp.eq.f32.partialorder %v854, inf
      %v858 = vsel %vm857, %v854, %v856
      %vm859 = vcmp.eq.f32.partialorder %v854, 0.0
      %v860 = vand.u32 %v854, 2147483648
      %v861 = vsel %vm859, %v860, %v858
      %v863 = vrot.slane %v846, 7
      %v865 = vrot.slane %v835, 4
      %v866 = vrot.slane %v836, 3
      %v867 = vsel %vm655, %v866, %v865
      %v868 = vrot.slane %v837, 2
      %v869 = vsel %vm658, %v868, %v867
      %v871 = vsel %vm572, %v861, %v863
      %v872 = vsel %vm662, %v871, %v869
      %v873 = vpack.c.bf16 %v872, %v872
      %v875 = vand.u32 %v873, %v677
      %877 = vmatprep.subr.bf16.mxu0 0
      %878 = vmatpush1.bf16.msra.mxu0 %v875
      %879 = vmatprep.subr.bf16.mxu0 0
      %880 = vmatpush1.bf16.msra.mxu0 0
      %881 = vmatprep.subr.bf16.mxu0 0
      %882 = vmatpush1.bf16.msra.mxu0 0
      %883 = vmatprep.subr.bf16.mxu0 0
      %884 = vmatpush1.bf16.msra.mxu0 0
      %885 = vmatprep.subr.bf16.mxu0 0
      %886 = vmatpush1.bf16.msra.mxu0 0
      %887 = vmatprep.subr.bf16.mxu0 0
      %888 = vmatpush1.bf16.msra.mxu0 0
      %889 = vmatprep.subr.bf16.mxu0 0
      %890 = vmatpush1.bf16.msra.mxu0 0
      %891 = vmatprep.subr.bf16.mxu0 0
      %892 = vmatpush1.bf16.msra.mxu0 0
      %893 = vmatprep.subr.bf16.mxu0 0
      %894 = vmatpush1.bf16.msra.mxu0 0
      %895 = vmatprep.subr.bf16.mxu0 0
      %896 = vmatpush1.bf16.msra.mxu0 0
      %897 = vmatprep.subr.bf16.mxu0 0
      %898 = vmatpush1.bf16.msra.mxu0 0
      %899 = vmatprep.subr.bf16.mxu0 0
      %900 = vmatpush1.bf16.msra.mxu0 0
      %901 = vmatprep.subr.bf16.mxu0 0
      %902 = vmatpush1.bf16.msra.mxu0 0
      %903 = vmatprep.subr.bf16.mxu0 0
      %904 = vmatpush1.bf16.msra.mxu0 0
      %905 = vmatprep.subr.bf16.mxu0 0
      %906 = vmatpush1.bf16.msra.mxu0 0
      %907 = vmatprep.subr.bf16.mxu0 0
      %908 = vmatpush1.bf16.msra.mxu0 0
      %909 = vmatprep.mubr.bf16.mxu0 0
      %910 = vmatmul.mubr.bf16.gmra.mrb[0].mxu0 %v674
      %v911 = vpop.f32.mrb[0].mxu0
      %v912 = vadd.f32 %v614, %v911
      %v913 = vpop.f32.mrb[0].mxu0
      %v914 = vpop.f32.mrb[0].mxu0
      %v915 = vadd.f32 %v617, %v914
      %v916 = vpop.f32.mrb[0].mxu0
      %917 = vdwg.mxu0
      %v918 = vmul.f32 %v912, %v727
      %v919 = vmul.f32 %v915, %v732
      %v920 = vadd.f32 %v918, %v741
      %v921 = vadd.f32 %v919, %v746
      %v922 = vmax.f32 %v920, 0.0
      %v923 = vmax.f32 %v921, 0.0
      %v924 = vpack.c.bf16 %v923, %v922
      %925 = vmatprep.subr.bf16.mxu0 0
      %926 = vmatpush1.bf16.msra.mxu0 %v924
      %927 = vmatprep.subr.bf16.mxu0 0
      %928 = vmatpush1.bf16.msra.mxu0 0
      %929 = vmatprep.subr.bf16.mxu0 0
      %930 = vmatpush1.bf16.msra.mxu0 0
      %931 = vmatprep.subr.bf16.mxu0 0
      %932 = vmatpush1.bf16.msra.mxu0 0
      %933 = vmatprep.subr.bf16.mxu0 0
      %934 = vmatpush1.bf16.msra.mxu0 0
      %935 = vmatprep.subr.bf16.mxu0 0
      %936 = vmatpush1.bf16.msra.mxu0 0
      %937 = vmatprep.subr.bf16.mxu0 0
      %938 = vmatpush1.bf16.msra.mxu0 0
      %939 = vmatprep.subr.bf16.mxu0 0
      %940 = vmatpush1.bf16.msra.mxu0 0
      %941 = vmatprep.subr.bf16.mxu0 0
      %942 = vmatpush1.bf16.msra.mxu0 0
      %943 = vmatprep.subr.bf16.mxu0 0
      %944 = vmatpush1.bf16.msra.mxu0 0
      %945 = vmatprep.subr.bf16.mxu0 0
      %946 = vmatpush1.bf16.msra.mxu0 0
      %947 = vmatprep.subr.bf16.mxu0 0
      %948 = vmatpush1.bf16.msra.mxu0 0
      %949 = vmatprep.subr.bf16.mxu0 0
      %950 = vmatpush1.bf16.msra.mxu0 0
      %951 = vmatprep.subr.bf16.mxu0 0
      %952 = vmatpush1.bf16.msra.mxu0 0
      %953 = vmatprep.subr.bf16.mxu0 0
      %954 = vmatpush1.bf16.msra.mxu0 0
      %955 = vmatprep.subr.bf16.mxu0 0
      %956 = vmatpush1.bf16.msra.mxu0 0
      %957 = vmatprep.mubr.bf16.mxu0 0
      %958 = vmatmul.mubr.bf16.gmra.mrb[0].mxu0 %v762
      %v959 = vpop.f32.mrb[0].mxu0
      %v960 = vadd.f32 0.0, %v959
      %v961 = vpop.f32.mrb[0].mxu0
      %v962 = vpop.f32.mrb[0].mxu0
      %v963 = vadd.f32 0.0, %v962
      %v964 = vpop.f32.mrb[0].mxu0
      %965 = vdwg.mxu0
      %v966 = vmul.f32 %v960, %v810
      %v967 = vmul.f32 %v963, %v815
      %v968 = vadd.f32 %v966, %v824
      %v969 = vadd.f32 %v967, %v829
      %v970 = vmax.f32 %v968, 0.0
      %v971 = vmax.f32 %v969, 0.0
      %v972 = vld [vmem:[%s541 + $0x2] sm:$0x1]
      %v973 = vld [vmem:[%s541 + $0xa] sm:$0x1]
      %v974 = vld [vmem:[%s541 + $0x12] sm:$0x1]
      %v978 = vrot.slane %v973, 7
      %v979 = vsel %vm627, %v978, %v972
      %v980 = vrot.slane %v974, 6
      %v981 = vsel %vm630, %v980, %v979
      %v983 = vsub.f32 %v559, %v981
      %v984 = vmul.f32 %v983, %v983
      %v985 = vsel %vm635, %v984, 0.0
      %v986 = vrot.slane %v985, 4
      %v987 = vadd.f32 %v985, %v986
      %v988 = vrot.slane %v987, 2
      %v989 = vadd.f32 %v987, %v988
      %v990 = vrot.slane %v989, 1
      %v991 = vadd.f32 %v989, %v990
      %v992 = vrsqrt.pop %v991
      %v993 = vmul.f32 %v991, %v992
      %vm994 = vcmp.eq.f32.partialorder %v991, inf
      %v995 = vsel %vm994, %v991, %v993
      %vm996 = vcmp.eq.f32.partialorder %v991, 0.0
      %v997 = vand.u32 %v991, 2147483648
      %v998 = vsel %vm996, %v997, %v995
      %v1000 = vrot.slane %v983, 7
      %v1002 = vrot.slane %v972, 4
      %v1003 = vrot.slane %v973, 3
      %v1004 = vsel %vm655, %v1003, %v1002
      %v1005 = vrot.slane %v974, 2
      %v1006 = vsel %vm658, %v1005, %v1004
      %v1008 = vsel %vm572, %v998, %v1000
      %v1009 = vsel %vm662, %v1008, %v1006
      %v1010 = vpack.c.bf16 %v1009, %v1009
      %v1012 = vand.u32 %v1010, %v677
      %1014 = vmatprep.subr.bf16.mxu0 0
      %1015 = vmatpush1.bf16.msra.mxu0 %v1012
      %1016 = vmatprep.subr.bf16.mxu0 0
      %1017 = vmatpush1.bf16.msra.mxu0 0
      %1018 = vmatprep.subr.bf16.mxu0 0
      %1019 = vmatpush1.bf16.msra.mxu0 0
      %1020 = vmatprep.subr.bf16.mxu0 0
      %1021 = vmatpush1.bf16.msra.mxu0 0
      %1022 = vmatprep.subr.bf16.mxu0 0
      %1023 = vmatpush1.bf16.msra.mxu0 0
      %1024 = vmatprep.subr.bf16.mxu0 0
      %1025 = vmatpush1.bf16.msra.mxu0 0
      %1026 = vmatprep.subr.bf16.mxu0 0
      %1027 = vmatpush1.bf16.msra.mxu0 0
      %1028 = vmatprep.subr.bf16.mxu0 0
      %1029 = vmatpush1.bf16.msra.mxu0 0
      %1030 = vmatprep.subr.bf16.mxu0 0
      %1031 = vmatpush1.bf16.msra.mxu0 0
      %1032 = vmatprep.subr.bf16.mxu0 0
      %1033 = vmatpush1.bf16.msra.mxu0 0
      %1034 = vmatprep.subr.bf16.mxu0 0
      %1035 = vmatpush1.bf16.msra.mxu0 0
      %1036 = vmatprep.subr.bf16.mxu0 0
      %1037 = vmatpush1.bf16.msra.mxu0 0
      %1038 = vmatprep.subr.bf16.mxu0 0
      %1039 = vmatpush1.bf16.msra.mxu0 0
      %1040 = vmatprep.subr.bf16.mxu0 0
      %1041 = vmatpush1.bf16.msra.mxu0 0
      %1042 = vmatprep.subr.bf16.mxu0 0
      %1043 = vmatpush1.bf16.msra.mxu0 0
      %1044 = vmatprep.subr.bf16.mxu0 0
      %1045 = vmatpush1.bf16.msra.mxu0 0
      %1046 = vmatprep.mubr.bf16.mxu0 0
      %1047 = vmatmul.mubr.bf16.gmra.mrb[0].mxu0 %v674
      %v1048 = vpop.f32.mrb[0].mxu0
      %v1049 = vadd.f32 %v614, %v1048
      %v1050 = vpop.f32.mrb[0].mxu0
      %v1051 = vpop.f32.mrb[0].mxu0
      %v1052 = vadd.f32 %v617, %v1051
      %v1053 = vpop.f32.mrb[0].mxu0
      %1054 = vdwg.mxu0
      %v1055 = vmul.f32 %v1049, %v727
      %v1056 = vmul.f32 %v1052, %v732
      %v1057 = vadd.f32 %v1055, %v741
      %v1058 = vadd.f32 %v1056, %v746
      %v1059 = vmax.f32 %v1057, 0.0
      %v1060 = vmax.f32 %v1058, 0.0
      %v1061 = vpack.c.bf16 %v1060, %v1059
      %1062 = vmatprep.subr.bf16.mxu0 0
      %1063 = vmatpush1.bf16.msra.mxu0 %v1061
      %1064 = vmatprep.subr.bf16.mxu0 0
      %1065 = vmatpush1.bf16.msra.mxu0 0
      %1066 = vmatprep.subr.bf16.mxu0 0
      %1067 = vmatpush1.bf16.msra.mxu0 0
      %1068 = vmatprep.subr.bf16.mxu0 0
      %1069 = vmatpush1.bf16.msra.mxu0 0
      %1070 = vmatprep.subr.bf16.mxu0 0
      %1071 = vmatpush1.bf16.msra.mxu0 0
      %1072 = vmatprep.subr.bf16.mxu0 0
      %1073 = vmatpush1.bf16.msra.mxu0 0
      %1074 = vmatprep.subr.bf16.mxu0 0
      %1075 = vmatpush1.bf16.msra.mxu0 0
      %1076 = vmatprep.subr.bf16.mxu0 0
      %1077 = vmatpush1.bf16.msra.mxu0 0
      %1078 = vmatprep.subr.bf16.mxu0 0
      %1079 = vmatpush1.bf16.msra.mxu0 0
      %1080 = vmatprep.subr.bf16.mxu0 0
      %1081 = vmatpush1.bf16.msra.mxu0 0
      %1082 = vmatprep.subr.bf16.mxu0 0
      %1083 = vmatpush1.bf16.msra.mxu0 0
      %1084 = vmatprep.subr.bf16.mxu0 0
      %1085 = vmatpush1.bf16.msra.mxu0 0
      %1086 = vmatprep.subr.bf16.mxu0 0
      %1087 = vmatpush1.bf16.msra.mxu0 0
      %1088 = vmatprep.subr.bf16.mxu0 0
      %1089 = vmatpush1.bf16.msra.mxu0 0
      %1090 = vmatprep.subr.bf16.mxu0 0
      %1091 = vmatpush1.bf16.msra.mxu0 0
      %1092 = vmatprep.subr.bf16.mxu0 0
      %1093 = vmatpush1.bf16.msra.mxu0 0
      %1094 = vmatprep.mubr.bf16.mxu0 0
      %1095 = vmatmul.mubr.bf16.gmra.mrb[0].mxu0 %v762
      %v1096 = vpop.f32.mrb[0].mxu0
      %v1097 = vadd.f32 0.0, %v1096
      %v1098 = vpop.f32.mrb[0].mxu0
      %v1099 = vpop.f32.mrb[0].mxu0
      %v1100 = vadd.f32 0.0, %v1099
      %v1101 = vpop.f32.mrb[0].mxu0
      %1102 = vdwg.mxu0
      %v1103 = vmul.f32 %v1097, %v810
      %v1104 = vmul.f32 %v1100, %v815
      %v1105 = vadd.f32 %v1103, %v824
      %v1106 = vadd.f32 %v1104, %v829
      %v1107 = vmax.f32 %v1105, 0.0
      %v1108 = vmax.f32 %v1106, 0.0
      %v1109 = vld [vmem:[%s541 + $0x3] sm:$0x1]
      %v1110 = vld [vmem:[%s541 + $0xb] sm:$0x1]
      %v1111 = vld [vmem:[%s541 + $0x13] sm:$0x1]
      %v1115 = vrot.slane %v1110, 7
      %v1116 = vsel %vm627, %v1115, %v1109
      %v1117 = vrot.slane %v1111, 6
      %v1118 = vsel %vm630, %v1117, %v1116
      %v1120 = vsub.f32 %v559, %v1118
      %v1121 = vmul.f32 %v1120, %v1120
      %v1122 = vsel %vm635, %v1121, 0.0
      %v1123 = vrot.slane %v1122, 4
      %v1124 = vadd.f32 %v1122, %v1123
      %v1125 = vrot.slane %v1124, 2
      %v1126 = vadd.f32 %v1124, %v1125
      %v1127 = vrot.slane %v1126, 1
      %v1128 = vadd.f32 %v1126, %v1127
      %v1129 = vrsqrt.pop %v1128
      %v1130 = vmul.f32 %v1128, %v1129
      %vm1131 = vcmp.eq.f32.partialorder %v1128, inf
      %v1132 = vsel %vm1131, %v1128, %v1130
      %vm1133 = vcmp.eq.f32.partialorder %v1128, 0.0
      %v1134 = vand.u32 %v1128, 2147483648
      %v1135 = vsel %vm1133, %v1134, %v1132
      %v1137 = vrot.slane %v1120, 7
      %v1139 = vrot.slane %v1109, 4
      %v1140 = vrot.slane %v1110, 3
      %v1141 = vsel %vm655, %v1140, %v1139
      %v1142 = vrot.slane %v1111, 2
      %v1143 = vsel %vm658, %v1142, %v1141
      %v1145 = vsel %vm572, %v1135, %v1137
      %v1146 = vsel %vm662, %v1145, %v1143
      %v1147 = vpack.c.bf16 %v1146, %v1146
      %v1149 = vand.u32 %v1147, %v677
      %1151 = vmatprep.subr.bf16.mxu0 0
      %1152 = vmatpush1.bf16.msra.mxu0 %v1149
      %1153 = vmatprep.subr.bf16.mxu0 0
      %1154 = vmatpush1.bf16.msra.mxu0 0
      %1155 = vmatprep.subr.bf16.mxu0 0
      %1156 = vmatpush1.bf16.msra.mxu0 0
      %1157 = vmatprep.subr.bf16.mxu0 0
      %1158 = vmatpush1.bf16.msra.mxu0 0
      %1159 = vmatprep.subr.bf16.mxu0 0
      %1160 = vmatpush1.bf16.msra.mxu0 0
      %1161 = vmatprep.subr.bf16.mxu0 0
      %1162 = vmatpush1.bf16.msra.mxu0 0
      %1163 = vmatprep.subr.bf16.mxu0 0
      %1164 = vmatpush1.bf16.msra.mxu0 0
      %1165 = vmatprep.subr.bf16.mxu0 0
      %1166 = vmatpush1.bf16.msra.mxu0 0
      %1167 = vmatprep.subr.bf16.mxu0 0
      %1168 = vmatpush1.bf16.msra.mxu0 0
      %1169 = vmatprep.subr.bf16.mxu0 0
      %1170 = vmatpush1.bf16.msra.mxu0 0
      %1171 = vmatprep.subr.bf16.mxu0 0
      %1172 = vmatpush1.bf16.msra.mxu0 0
      %1173 = vmatprep.subr.bf16.mxu0 0
      %1174 = vmatpush1.bf16.msra.mxu0 0
      %1175 = vmatprep.subr.bf16.mxu0 0
      %1176 = vmatpush1.bf16.msra.mxu0 0
      %1177 = vmatprep.subr.bf16.mxu0 0
      %1178 = vmatpush1.bf16.msra.mxu0 0
      %1179 = vmatprep.subr.bf16.mxu0 0
      %1180 = vmatpush1.bf16.msra.mxu0 0
      %1181 = vmatprep.subr.bf16.mxu0 0
      %1182 = vmatpush1.bf16.msra.mxu0 0
      %1183 = vmatprep.mubr.bf16.mxu0 0
      %1184 = vmatmul.mubr.bf16.gmra.mrb[0].mxu0 %v674
      %v1185 = vpop.f32.mrb[0].mxu0
      %v1186 = vadd.f32 %v614, %v1185
      %v1187 = vpop.f32.mrb[0].mxu0
      %v1188 = vpop.f32.mrb[0].mxu0
      %v1189 = vadd.f32 %v617, %v1188
      %v1190 = vpop.f32.mrb[0].mxu0
      %1191 = vdwg.mxu0
      %v1192 = vmul.f32 %v1186, %v727
      %v1193 = vmul.f32 %v1189, %v732
      %v1194 = vadd.f32 %v1192, %v741
      %v1195 = vadd.f32 %v1193, %v746
      %v1196 = vmax.f32 %v1194, 0.0
      %v1197 = vmax.f32 %v1195, 0.0
      %v1198 = vpack.c.bf16 %v1197, %v1196
      %1199 = vmatprep.subr.bf16.mxu0 0
      %1200 = vmatpush1.bf16.msra.mxu0 %v1198
      %1201 = vmatprep.subr.bf16.mxu0 0
      %1202 = vmatpush1.bf16.msra.mxu0 0
      %1203 = vmatprep.subr.bf16.mxu0 0
      %1204 = vmatpush1.bf16.msra.mxu0 0
      %1205 = vmatprep.subr.bf16.mxu0 0
      %1206 = vmatpush1.bf16.msra.mxu0 0
      %1207 = vmatprep.subr.bf16.mxu0 0
      %1208 = vmatpush1.bf16.msra.mxu0 0
      %1209 = vmatprep.subr.bf16.mxu0 0
      %1210 = vmatpush1.bf16.msra.mxu0 0
      %1211 = vmatprep.subr.bf16.mxu0 0
      %1212 = vmatpush1.bf16.msra.mxu0 0
      %1213 = vmatprep.subr.bf16.mxu0 0
      %1214 = vmatpush1.bf16.msra.mxu0 0
      %1215 = vmatprep.subr.bf16.mxu0 0
      %1216 = vmatpush1.bf16.msra.mxu0 0
      %1217 = vmatprep.subr.bf16.mxu0 0
      %1218 = vmatpush1.bf16.msra.mxu0 0
      %1219 = vmatprep.subr.bf16.mxu0 0
      %1220 = vmatpush1.bf16.msra.mxu0 0
      %1221 = vmatprep.subr.bf16.mxu0 0
      %1222 = vmatpush1.bf16.msra.mxu0 0
      %1223 = vmatprep.subr.bf16.mxu0 0
      %1224 = vmatpush1.bf16.msra.mxu0 0
      %1225 = vmatprep.subr.bf16.mxu0 0
      %1226 = vmatpush1.bf16.msra.mxu0 0
      %1227 = vmatprep.subr.bf16.mxu0 0
      %1228 = vmatpush1.bf16.msra.mxu0 0
      %1229 = vmatprep.subr.bf16.mxu0 0
      %1230 = vmatpush1.bf16.msra.mxu0 0
      %1231 = vmatprep.mubr.bf16.mxu0 0
      %1232 = vmatmul.mubr.bf16.gmra.mrb[0].mxu0 %v762
      %v1233 = vpop.f32.mrb[0].mxu0
      %v1234 = vadd.f32 0.0, %v1233
      %v1235 = vpop.f32.mrb[0].mxu0
      %v1236 = vpop.f32.mrb[0].mxu0
      %v1237 = vadd.f32 0.0, %v1236
      %v1238 = vpop.f32.mrb[0].mxu0
      %1239 = vdwg.mxu0
      %v1240 = vmul.f32 %v1234, %v810
      %v1241 = vmul.f32 %v1237, %v815
      %v1242 = vadd.f32 %v1240, %v824
      %v1243 = vadd.f32 %v1241, %v829
      %v1244 = vmax.f32 %v1242, 0.0
      %v1245 = vmax.f32 %v1243, 0.0
      %v1246 = vld [vmem:[%s541 + $0x4] sm:$0x1]
      %v1247 = vld [vmem:[%s541 + $0xc] sm:$0x1]
      %v1248 = vld [vmem:[%s541 + $0x14] sm:$0x1]
      %v1252 = vrot.slane %v1247, 7
      %v1253 = vsel %vm627, %v1252, %v1246
      %v1254 = vrot.slane %v1248, 6
      %v1255 = vsel %vm630, %v1254, %v1253
      %v1257 = vsub.f32 %v559, %v1255
      %v1258 = vmul.f32 %v1257, %v1257
      %v1259 = vsel %vm635, %v1258, 0.0
      %v1260 = vrot.slane %v1259, 4
      %v1261 = vadd.f32 %v1259, %v1260
      %v1262 = vrot.slane %v1261, 2
      %v1263 = vadd.f32 %v1261, %v1262
      %v1264 = vrot.slane %v1263, 1
      %v1265 = vadd.f32 %v1263, %v1264
      %v1266 = vrsqrt.pop %v1265
      %v1267 = vmul.f32 %v1265, %v1266
      %vm1268 = vcmp.eq.f32.partialorder %v1265, inf
      %v1269 = vsel %vm1268, %v1265, %v1267
      %vm1270 = vcmp.eq.f32.partialorder %v1265, 0.0
      %v1271 = vand.u32 %v1265, 2147483648
      %v1272 = vsel %vm1270, %v1271, %v1269
      %v1274 = vrot.slane %v1257, 7
      %v1276 = vrot.slane %v1246, 4
      %v1277 = vrot.slane %v1247, 3
      %v1278 = vsel %vm655, %v1277, %v1276
      %v1279 = vrot.slane %v1248, 2
      %v1280 = vsel %vm658, %v1279, %v1278
      %v1282 = vsel %vm572, %v1272, %v1274
      %v1283 = vsel %vm662, %v1282, %v1280
      %v1284 = vpack.c.bf16 %v1283, %v1283
      %v1286 = vand.u32 %v1284, %v677
      %1288 = vmatprep.subr.bf16.mxu0 0
      %1289 = vmatpush1.bf16.msra.mxu0 %v1286
      %1290 = vmatprep.subr.bf16.mxu0 0
      %1291 = vmatpush1.bf16.msra.mxu0 0
      %1292 = vmatprep.subr.bf16.mxu0 0
      %1293 = vmatpush1.bf16.msra.mxu0 0
      %1294 = vmatprep.subr.bf16.mxu0 0
      %1295 = vmatpush1.bf16.msra.mxu0 0
      %1296 = vmatprep.subr.bf16.mxu0 0
      %1297 = vmatpush1.bf16.msra.mxu0 0
      %1298 = vmatprep.subr.bf16.mxu0 0
      %1299 = vmatpush1.bf16.msra.mxu0 0
      %1300 = vmatprep.subr.bf16.mxu0 0
      %1301 = vmatpush1.bf16.msra.mxu0 0
      %1302 = vmatprep.subr.bf16.mxu0 0
      %1303 = vmatpush1.bf16.msra.mxu0 0
      %1304 = vmatprep.subr.bf16.mxu0 0
      %1305 = vmatpush1.bf16.msra.mxu0 0
      %1306 = vmatprep.subr.bf16.mxu0 0
      %1307 = vmatpush1.bf16.msra.mxu0 0
      %1308 = vmatprep.subr.bf16.mxu0 0
      %1309 = vmatpush1.bf16.msra.mxu0 0
      %1310 = vmatprep.subr.bf16.mxu0 0
      %1311 = vmatpush1.bf16.msra.mxu0 0
      %1312 = vmatprep.subr.bf16.mxu0 0
      %1313 = vmatpush1.bf16.msra.mxu0 0
      %1314 = vmatprep.subr.bf16.mxu0 0
      %1315 = vmatpush1.bf16.msra.mxu0 0
      %1316 = vmatprep.subr.bf16.mxu0 0
      %1317 = vmatpush1.bf16.msra.mxu0 0
      %1318 = vmatprep.subr.bf16.mxu0 0
      %1319 = vmatpush1.bf16.msra.mxu0 0
      %1320 = vmatprep.mubr.bf16.mxu0 0
      %1321 = vmatmul.mubr.bf16.gmra.mrb[0].mxu0 %v674
      %v1322 = vpop.f32.mrb[0].mxu0
      %v1323 = vadd.f32 %v614, %v1322
      %v1324 = vpop.f32.mrb[0].mxu0
      %v1325 = vpop.f32.mrb[0].mxu0
      %v1326 = vadd.f32 %v617, %v1325
      %v1327 = vpop.f32.mrb[0].mxu0
      %1328 = vdwg.mxu0
      %v1329 = vmul.f32 %v1323, %v727
      %v1330 = vmul.f32 %v1326, %v732
      %v1331 = vadd.f32 %v1329, %v741
      %v1332 = vadd.f32 %v1330, %v746
      %v1333 = vmax.f32 %v1331, 0.0
      %v1334 = vmax.f32 %v1332, 0.0
      %v1335 = vpack.c.bf16 %v1334, %v1333
      %1336 = vmatprep.subr.bf16.mxu0 0
      %1337 = vmatpush1.bf16.msra.mxu0 %v1335
      %1338 = vmatprep.subr.bf16.mxu0 0
      %1339 = vmatpush1.bf16.msra.mxu0 0
      %1340 = vmatprep.subr.bf16.mxu0 0
      %1341 = vmatpush1.bf16.msra.mxu0 0
      %1342 = vmatprep.subr.bf16.mxu0 0
      %1343 = vmatpush1.bf16.msra.mxu0 0
      %1344 = vmatprep.subr.bf16.mxu0 0
      %1345 = vmatpush1.bf16.msra.mxu0 0
      %1346 = vmatprep.subr.bf16.mxu0 0
      %1347 = vmatpush1.bf16.msra.mxu0 0
      %1348 = vmatprep.subr.bf16.mxu0 0
      %1349 = vmatpush1.bf16.msra.mxu0 0
      %1350 = vmatprep.subr.bf16.mxu0 0
      %1351 = vmatpush1.bf16.msra.mxu0 0
      %1352 = vmatprep.subr.bf16.mxu0 0
      %1353 = vmatpush1.bf16.msra.mxu0 0
      %1354 = vmatprep.subr.bf16.mxu0 0
      %1355 = vmatpush1.bf16.msra.mxu0 0
      %1356 = vmatprep.subr.bf16.mxu0 0
      %1357 = vmatpush1.bf16.msra.mxu0 0
      %1358 = vmatprep.subr.bf16.mxu0 0
      %1359 = vmatpush1.bf16.msra.mxu0 0
      %1360 = vmatprep.subr.bf16.mxu0 0
      %1361 = vmatpush1.bf16.msra.mxu0 0
      %1362 = vmatprep.subr.bf16.mxu0 0
      %1363 = vmatpush1.bf16.msra.mxu0 0
      %1364 = vmatprep.subr.bf16.mxu0 0
      %1365 = vmatpush1.bf16.msra.mxu0 0
      %1366 = vmatprep.subr.bf16.mxu0 0
      %1367 = vmatpush1.bf16.msra.mxu0 0
      %1368 = vmatprep.mubr.bf16.mxu0 0
      %1369 = vmatmul.mubr.bf16.gmra.mrb[0].mxu0 %v762
      %v1370 = vpop.f32.mrb[0].mxu0
      %v1371 = vadd.f32 0.0, %v1370
      %v1372 = vpop.f32.mrb[0].mxu0
      %v1373 = vpop.f32.mrb[0].mxu0
      %v1374 = vadd.f32 0.0, %v1373
      %v1375 = vpop.f32.mrb[0].mxu0
      %1376 = vdwg.mxu0
      %v1377 = vmul.f32 %v1371, %v810
      %v1378 = vmul.f32 %v1374, %v815
      %v1379 = vadd.f32 %v1377, %v824
      %v1380 = vadd.f32 %v1378, %v829
      %v1381 = vmax.f32 %v1379, 0.0
      %v1382 = vmax.f32 %v1380, 0.0
      %v1383 = vld [vmem:[%s541 + $0x5] sm:$0x1]
      %v1384 = vld [vmem:[%s541 + $0xd] sm:$0x1]
      %v1385 = vld [vmem:[%s541 + $0x15] sm:$0x1]
      %v1389 = vrot.slane %v1384, 7
      %v1390 = vsel %vm627, %v1389, %v1383
      %v1391 = vrot.slane %v1385, 6
      %v1392 = vsel %vm630, %v1391, %v1390
      %v1394 = vsub.f32 %v559, %v1392
      %v1395 = vmul.f32 %v1394, %v1394
      %v1396 = vsel %vm635, %v1395, 0.0
      %v1397 = vrot.slane %v1396, 4
      %v1398 = vadd.f32 %v1396, %v1397
      %v1399 = vrot.slane %v1398, 2
      %v1400 = vadd.f32 %v1398, %v1399
      %v1401 = vrot.slane %v1400, 1
      %v1402 = vadd.f32 %v1400, %v1401
      %v1403 = vrsqrt.pop %v1402
      %v1404 = vmul.f32 %v1402, %v1403
      %vm1405 = vcmp.eq.f32.partialorder %v1402, inf
      %v1406 = vsel %vm1405, %v1402, %v1404
      %vm1407 = vcmp.eq.f32.partialorder %v1402, 0.0
      %v1408 = vand.u32 %v1402, 2147483648
      %v1409 = vsel %vm1407, %v1408, %v1406
      %v1411 = vrot.slane %v1394, 7
      %v1413 = vrot.slane %v1383, 4
      %v1414 = vrot.slane %v1384, 3
      %v1415 = vsel %vm655, %v1414, %v1413
      %v1416 = vrot.slane %v1385, 2
      %v1417 = vsel %vm658, %v1416, %v1415
      %v1419 = vsel %vm572, %v1409, %v1411
      %v1420 = vsel %vm662, %v1419, %v1417
      %v1421 = vpack.c.bf16 %v1420, %v1420
      %v1423 = vand.u32 %v1421, %v677
      %1425 = vmatprep.subr.bf16.mxu0 0
      %1426 = vmatpush1.bf16.msra.mxu0 %v1423
      %1427 = vmatprep.subr.bf16.mxu0 0
      %1428 = vmatpush1.bf16.msra.mxu0 0
      %1429 = vmatprep.subr.bf16.mxu0 0
      %1430 = vmatpush1.bf16.msra.mxu0 0
      %1431 = vmatprep.subr.bf16.mxu0 0
      %1432 = vmatpush1.bf16.msra.mxu0 0
      %1433 = vmatprep.subr.bf16.mxu0 0
      %1434 = vmatpush1.bf16.msra.mxu0 0
      %1435 = vmatprep.subr.bf16.mxu0 0
      %1436 = vmatpush1.bf16.msra.mxu0 0
      %1437 = vmatprep.subr.bf16.mxu0 0
      %1438 = vmatpush1.bf16.msra.mxu0 0
      %1439 = vmatprep.subr.bf16.mxu0 0
      %1440 = vmatpush1.bf16.msra.mxu0 0
      %1441 = vmatprep.subr.bf16.mxu0 0
      %1442 = vmatpush1.bf16.msra.mxu0 0
      %1443 = vmatprep.subr.bf16.mxu0 0
      %1444 = vmatpush1.bf16.msra.mxu0 0
      %1445 = vmatprep.subr.bf16.mxu0 0
      %1446 = vmatpush1.bf16.msra.mxu0 0
      %1447 = vmatprep.subr.bf16.mxu0 0
      %1448 = vmatpush1.bf16.msra.mxu0 0
      %1449 = vmatprep.subr.bf16.mxu0 0
      %1450 = vmatpush1.bf16.msra.mxu0 0
      %1451 = vmatprep.subr.bf16.mxu0 0
      %1452 = vmatpush1.bf16.msra.mxu0 0
      %1453 = vmatprep.subr.bf16.mxu0 0
      %1454 = vmatpush1.bf16.msra.mxu0 0
      %1455 = vmatprep.subr.bf16.mxu0 0
      %1456 = vmatpush1.bf16.msra.mxu0 0
      %1457 = vmatprep.mubr.bf16.mxu0 0
      %1458 = vmatmul.mubr.bf16.gmra.mrb[0].mxu0 %v674
      %v1459 = vpop.f32.mrb[0].mxu0
      %v1460 = vadd.f32 %v614, %v1459
      %v1461 = vpop.f32.mrb[0].mxu0
      %v1462 = vpop.f32.mrb[0].mxu0
      %v1463 = vadd.f32 %v617, %v1462
      %v1464 = vpop.f32.mrb[0].mxu0
      %1465 = vdwg.mxu0
      %v1466 = vmul.f32 %v1460, %v727
      %v1467 = vmul.f32 %v1463, %v732
      %v1468 = vadd.f32 %v1466, %v741
      %v1469 = vadd.f32 %v1467, %v746
      %v1470 = vmax.f32 %v1468, 0.0
      %v1471 = vmax.f32 %v1469, 0.0
      %v1472 = vpack.c.bf16 %v1471, %v1470
      %1473 = vmatprep.subr.bf16.mxu0 0
      %1474 = vmatpush1.bf16.msra.mxu0 %v1472
      %1475 = vmatprep.subr.bf16.mxu0 0
      %1476 = vmatpush1.bf16.msra.mxu0 0
      %1477 = vmatprep.subr.bf16.mxu0 0
      %1478 = vmatpush1.bf16.msra.mxu0 0
      %1479 = vmatprep.subr.bf16.mxu0 0
      %1480 = vmatpush1.bf16.msra.mxu0 0
      %1481 = vmatprep.subr.bf16.mxu0 0
      %1482 = vmatpush1.bf16.msra.mxu0 0
      %1483 = vmatprep.subr.bf16.mxu0 0
      %1484 = vmatpush1.bf16.msra.mxu0 0
      %1485 = vmatprep.subr.bf16.mxu0 0
      %1486 = vmatpush1.bf16.msra.mxu0 0
      %1487 = vmatprep.subr.bf16.mxu0 0
      %1488 = vmatpush1.bf16.msra.mxu0 0
      %1489 = vmatprep.subr.bf16.mxu0 0
      %1490 = vmatpush1.bf16.msra.mxu0 0
      %1491 = vmatprep.subr.bf16.mxu0 0
      %1492 = vmatpush1.bf16.msra.mxu0 0
      %1493 = vmatprep.subr.bf16.mxu0 0
      %1494 = vmatpush1.bf16.msra.mxu0 0
      %1495 = vmatprep.subr.bf16.mxu0 0
      %1496 = vmatpush1.bf16.msra.mxu0 0
      %1497 = vmatprep.subr.bf16.mxu0 0
      %1498 = vmatpush1.bf16.msra.mxu0 0
      %1499 = vmatprep.subr.bf16.mxu0 0
      %1500 = vmatpush1.bf16.msra.mxu0 0
      %1501 = vmatprep.subr.bf16.mxu0 0
      %1502 = vmatpush1.bf16.msra.mxu0 0
      %1503 = vmatprep.subr.bf16.mxu0 0
      %1504 = vmatpush1.bf16.msra.mxu0 0
      %1505 = vmatprep.mubr.bf16.mxu0 0
      %1506 = vmatmul.mubr.bf16.gmra.mrb[0].mxu0 %v762
      %v1507 = vpop.f32.mrb[0].mxu0
      %v1508 = vadd.f32 0.0, %v1507
      %v1509 = vpop.f32.mrb[0].mxu0
      %v1510 = vpop.f32.mrb[0].mxu0
      %v1511 = vadd.f32 0.0, %v1510
      %v1512 = vpop.f32.mrb[0].mxu0
      %1513 = vdwg.mxu0
      %v1514 = vmul.f32 %v1508, %v810
      %v1515 = vmul.f32 %v1511, %v815
      %v1516 = vadd.f32 %v1514, %v824
      %v1517 = vadd.f32 %v1515, %v829
      %v1518 = vmax.f32 %v1516, 0.0
      %v1519 = vmax.f32 %v1517, 0.0
      %v1520 = vld [vmem:[%s541 + $0x6] sm:$0x1]
      %v1521 = vld [vmem:[%s541 + $0xe] sm:$0x1]
      %v1522 = vld [vmem:[%s541 + $0x16] sm:$0x1]
      %v1526 = vrot.slane %v1521, 7
      %v1527 = vsel %vm627, %v1526, %v1520
      %v1528 = vrot.slane %v1522, 6
      %v1529 = vsel %vm630, %v1528, %v1527
      %v1531 = vsub.f32 %v559, %v1529
      %v1532 = vmul.f32 %v1531, %v1531
      %v1533 = vsel %vm635, %v1532, 0.0
      %v1534 = vrot.slane %v1533, 4
      %v1535 = vadd.f32 %v1533, %v1534
      %v1536 = vrot.slane %v1535, 2
      %v1537 = vadd.f32 %v1535, %v1536
      %v1538 = vrot.slane %v1537, 1
      %v1539 = vadd.f32 %v1537, %v1538
      %v1540 = vrsqrt.pop %v1539
      %v1541 = vmul.f32 %v1539, %v1540
      %vm1542 = vcmp.eq.f32.partialorder %v1539, inf
      %v1543 = vsel %vm1542, %v1539, %v1541
      %vm1544 = vcmp.eq.f32.partialorder %v1539, 0.0
      %v1545 = vand.u32 %v1539, 2147483648
      %v1546 = vsel %vm1544, %v1545, %v1543
      %v1548 = vrot.slane %v1531, 7
      %v1550 = vrot.slane %v1520, 4
      %v1551 = vrot.slane %v1521, 3
      %v1552 = vsel %vm655, %v1551, %v1550
      %v1553 = vrot.slane %v1522, 2
      %v1554 = vsel %vm658, %v1553, %v1552
      %v1556 = vsel %vm572, %v1546, %v1548
      %v1557 = vsel %vm662, %v1556, %v1554
      %v1558 = vpack.c.bf16 %v1557, %v1557
      %v1560 = vand.u32 %v1558, %v677
      %1562 = vmatprep.subr.bf16.mxu0 0
      %1563 = vmatpush1.bf16.msra.mxu0 %v1560
      %1564 = vmatprep.subr.bf16.mxu0 0
      %1565 = vmatpush1.bf16.msra.mxu0 0
      %1566 = vmatprep.subr.bf16.mxu0 0
      %1567 = vmatpush1.bf16.msra.mxu0 0
      %1568 = vmatprep.subr.bf16.mxu0 0
      %1569 = vmatpush1.bf16.msra.mxu0 0
      %1570 = vmatprep.subr.bf16.mxu0 0
      %1571 = vmatpush1.bf16.msra.mxu0 0
      %1572 = vmatprep.subr.bf16.mxu0 0
      %1573 = vmatpush1.bf16.msra.mxu0 0
      %1574 = vmatprep.subr.bf16.mxu0 0
      %1575 = vmatpush1.bf16.msra.mxu0 0
      %1576 = vmatprep.subr.bf16.mxu0 0
      %1577 = vmatpush1.bf16.msra.mxu0 0
      %1578 = vmatprep.subr.bf16.mxu0 0
      %1579 = vmatpush1.bf16.msra.mxu0 0
      %1580 = vmatprep.subr.bf16.mxu0 0
      %1581 = vmatpush1.bf16.msra.mxu0 0
      %1582 = vmatprep.subr.bf16.mxu0 0
      %1583 = vmatpush1.bf16.msra.mxu0 0
      %1584 = vmatprep.subr.bf16.mxu0 0
      %1585 = vmatpush1.bf16.msra.mxu0 0
      %1586 = vmatprep.subr.bf16.mxu0 0
      %1587 = vmatpush1.bf16.msra.mxu0 0
      %1588 = vmatprep.subr.bf16.mxu0 0
      %1589 = vmatpush1.bf16.msra.mxu0 0
      %1590 = vmatprep.subr.bf16.mxu0 0
      %1591 = vmatpush1.bf16.msra.mxu0 0
      %1592 = vmatprep.subr.bf16.mxu0 0
      %1593 = vmatpush1.bf16.msra.mxu0 0
      %1594 = vmatprep.mubr.bf16.mxu0 0
      %1595 = vmatmul.mubr.bf16.gmra.mrb[0].mxu0 %v674
      %v1596 = vpop.f32.mrb[0].mxu0
      %v1597 = vadd.f32 %v614, %v1596
      %v1598 = vpop.f32.mrb[0].mxu0
      %v1599 = vpop.f32.mrb[0].mxu0
      %v1600 = vadd.f32 %v617, %v1599
      %v1601 = vpop.f32.mrb[0].mxu0
      %1602 = vdwg.mxu0
      %v1603 = vmul.f32 %v1597, %v727
      %v1604 = vmul.f32 %v1600, %v732
      %v1605 = vadd.f32 %v1603, %v741
      %v1606 = vadd.f32 %v1604, %v746
      %v1607 = vmax.f32 %v1605, 0.0
      %v1608 = vmax.f32 %v1606, 0.0
      %v1609 = vpack.c.bf16 %v1608, %v1607
      %1610 = vmatprep.subr.bf16.mxu0 0
      %1611 = vmatpush1.bf16.msra.mxu0 %v1609
      %1612 = vmatprep.subr.bf16.mxu0 0
      %1613 = vmatpush1.bf16.msra.mxu0 0
      %1614 = vmatprep.subr.bf16.mxu0 0
      %1615 = vmatpush1.bf16.msra.mxu0 0
      %1616 = vmatprep.subr.bf16.mxu0 0
      %1617 = vmatpush1.bf16.msra.mxu0 0
      %1618 = vmatprep.subr.bf16.mxu0 0
      %1619 = vmatpush1.bf16.msra.mxu0 0
      %1620 = vmatprep.subr.bf16.mxu0 0
      %1621 = vmatpush1.bf16.msra.mxu0 0
      %1622 = vmatprep.subr.bf16.mxu0 0
      %1623 = vmatpush1.bf16.msra.mxu0 0
      %1624 = vmatprep.subr.bf16.mxu0 0
      %1625 = vmatpush1.bf16.msra.mxu0 0
      %1626 = vmatprep.subr.bf16.mxu0 0
      %1627 = vmatpush1.bf16.msra.mxu0 0
      %1628 = vmatprep.subr.bf16.mxu0 0
      %1629 = vmatpush1.bf16.msra.mxu0 0
      %1630 = vmatprep.subr.bf16.mxu0 0
      %1631 = vmatpush1.bf16.msra.mxu0 0
      %1632 = vmatprep.subr.bf16.mxu0 0
      %1633 = vmatpush1.bf16.msra.mxu0 0
      %1634 = vmatprep.subr.bf16.mxu0 0
      %1635 = vmatpush1.bf16.msra.mxu0 0
      %1636 = vmatprep.subr.bf16.mxu0 0
      %1637 = vmatpush1.bf16.msra.mxu0 0
      %1638 = vmatprep.subr.bf16.mxu0 0
      %1639 = vmatpush1.bf16.msra.mxu0 0
      %1640 = vmatprep.subr.bf16.mxu0 0
      %1641 = vmatpush1.bf16.msra.mxu0 0
      %1642 = vmatprep.mubr.bf16.mxu0 0
      %1643 = vmatmul.mubr.bf16.gmra.mrb[0].mxu0 %v762
      %v1644 = vpop.f32.mrb[0].mxu0
      %v1645 = vadd.f32 0.0, %v1644
      %v1646 = vpop.f32.mrb[0].mxu0
      %v1647 = vpop.f32.mrb[0].mxu0
      %v1648 = vadd.f32 0.0, %v1647
      %v1649 = vpop.f32.mrb[0].mxu0
      %1650 = vdwg.mxu0
      %v1651 = vmul.f32 %v1645, %v810
      %v1652 = vmul.f32 %v1648, %v815
      %v1653 = vadd.f32 %v1651, %v824
      %v1654 = vadd.f32 %v1652, %v829
      %v1655 = vmax.f32 %v1653, 0.0
      %v1656 = vmax.f32 %v1654, 0.0
      %v1657 = vld [vmem:[%s541 + $0x7] sm:$0x1]
      %v1658 = vld [vmem:[%s541 + $0xf] sm:$0x1]
      %v1659 = vld [vmem:[%s541 + $0x17] sm:$0x1]
      %v1663 = vrot.slane %v1658, 7
      %v1664 = vsel %vm627, %v1663, %v1657
      %v1665 = vrot.slane %v1659, 6
      %v1666 = vsel %vm630, %v1665, %v1664
      %v1668 = vsub.f32 %v559, %v1666
      %v1669 = vmul.f32 %v1668, %v1668
      %v1670 = vsel %vm635, %v1669, 0.0
      %v1671 = vrot.slane %v1670, 4
      %v1672 = vadd.f32 %v1670, %v1671
      %v1673 = vrot.slane %v1672, 2
      %v1674 = vadd.f32 %v1672, %v1673
      %v1675 = vrot.slane %v1674, 1
      %v1676 = vadd.f32 %v1674, %v1675
      %v1677 = vrsqrt.pop %v1676
      %v1678 = vmul.f32 %v1676, %v1677
      %vm1679 = vcmp.eq.f32.partialorder %v1676, inf
      %v1680 = vsel %vm1679, %v1676, %v1678
      %vm1681 = vcmp.eq.f32.partialorder %v1676, 0.0
      %v1682 = vand.u32 %v1676, 2147483648
      %v1683 = vsel %vm1681, %v1682, %v1680
      %v1685 = vrot.slane %v1668, 7
      %v1687 = vrot.slane %v1657, 4
      %v1688 = vrot.slane %v1658, 3
      %v1689 = vsel %vm655, %v1688, %v1687
      %v1690 = vrot.slane %v1659, 2
      %v1691 = vsel %vm658, %v1690, %v1689
      %v1693 = vsel %vm572, %v1683, %v1685
      %v1694 = vsel %vm662, %v1693, %v1691
      %v1695 = vpack.c.bf16 %v1694, %v1694
      %v1697 = vand.u32 %v1695, %v677
      %1699 = vmatprep.subr.bf16.mxu0 0
      %1700 = vmatpush1.bf16.msra.mxu0 %v1697
      %1701 = vmatprep.subr.bf16.mxu0 0
      %1702 = vmatpush1.bf16.msra.mxu0 0
      %1703 = vmatprep.subr.bf16.mxu0 0
      %1704 = vmatpush1.bf16.msra.mxu0 0
      %1705 = vmatprep.subr.bf16.mxu0 0
      %1706 = vmatpush1.bf16.msra.mxu0 0
      %1707 = vmatprep.subr.bf16.mxu0 0
      %1708 = vmatpush1.bf16.msra.mxu0 0
      %1709 = vmatprep.subr.bf16.mxu0 0
      %1710 = vmatpush1.bf16.msra.mxu0 0
      %1711 = vmatprep.subr.bf16.mxu0 0
      %1712 = vmatpush1.bf16.msra.mxu0 0
      %1713 = vmatprep.subr.bf16.mxu0 0
      %1714 = vmatpush1.bf16.msra.mxu0 0
      %1715 = vmatprep.subr.bf16.mxu0 0
      %1716 = vmatpush1.bf16.msra.mxu0 0
      %1717 = vmatprep.subr.bf16.mxu0 0
      %1718 = vmatpush1.bf16.msra.mxu0 0
      %1719 = vmatprep.subr.bf16.mxu0 0
      %1720 = vmatpush1.bf16.msra.mxu0 0
      %1721 = vmatprep.subr.bf16.mxu0 0
      %1722 = vmatpush1.bf16.msra.mxu0 0
      %1723 = vmatprep.subr.bf16.mxu0 0
      %1724 = vmatpush1.bf16.msra.mxu0 0
      %1725 = vmatprep.subr.bf16.mxu0 0
      %1726 = vmatpush1.bf16.msra.mxu0 0
      %1727 = vmatprep.subr.bf16.mxu0 0
      %1728 = vmatpush1.bf16.msra.mxu0 0
      %1729 = vmatprep.subr.bf16.mxu0 0
      %1730 = vmatpush1.bf16.msra.mxu0 0
      %1731 = vmatprep.mubr.bf16.mxu0 0
      %1732 = vmatmul.mubr.bf16.gmra.mrb[0].mxu0 %v674
      %v1733 = vpop.f32.mrb[0].mxu0
      %v1734 = vadd.f32 %v614, %v1733
      %v1735 = vpop.f32.mrb[0].mxu0
      %v1736 = vpop.f32.mrb[0].mxu0
      %v1737 = vadd.f32 %v617, %v1736
      %v1738 = vpop.f32.mrb[0].mxu0
      %1739 = vdwg.mxu0
      %v1740 = vmul.f32 %v1734, %v727
      %v1741 = vmul.f32 %v1737, %v732
      %v1742 = vadd.f32 %v1740, %v741
      %v1743 = vadd.f32 %v1741, %v746
      %v1744 = vmax.f32 %v1742, 0.0
      %v1745 = vmax.f32 %v1743, 0.0
      %v1746 = vpack.c.bf16 %v1745, %v1744
      %1747 = vmatprep.subr.bf16.mxu0 0
      %1748 = vmatpush1.bf16.msra.mxu0 %v1746
      %1749 = vmatprep.subr.bf16.mxu0 0
      %1750 = vmatpush1.bf16.msra.mxu0 0
      %1751 = vmatprep.subr.bf16.mxu0 0
      %1752 = vmatpush1.bf16.msra.mxu0 0
      %1753 = vmatprep.subr.bf16.mxu0 0
      %1754 = vmatpush1.bf16.msra.mxu0 0
      %1755 = vmatprep.subr.bf16.mxu0 0
      %1756 = vmatpush1.bf16.msra.mxu0 0
      %1757 = vmatprep.subr.bf16.mxu0 0
      %1758 = vmatpush1.bf16.msra.mxu0 0
      %1759 = vmatprep.subr.bf16.mxu0 0
      %1760 = vmatpush1.bf16.msra.mxu0 0
      %1761 = vmatprep.subr.bf16.mxu0 0
      %1762 = vmatpush1.bf16.msra.mxu0 0
      %1763 = vmatprep.subr.bf16.mxu0 0
      %1764 = vmatpush1.bf16.msra.mxu0 0
      %1765 = vmatprep.subr.bf16.mxu0 0
      %1766 = vmatpush1.bf16.msra.mxu0 0
      %1767 = vmatprep.subr.bf16.mxu0 0
      %1768 = vmatpush1.bf16.msra.mxu0 0
      %1769 = vmatprep.subr.bf16.mxu0 0
      %1770 = vmatpush1.bf16.msra.mxu0 0
      %1771 = vmatprep.subr.bf16.mxu0 0
      %1772 = vmatpush1.bf16.msra.mxu0 0
      %1773 = vmatprep.subr.bf16.mxu0 0
      %1774 = vmatpush1.bf16.msra.mxu0 0
      %1775 = vmatprep.subr.bf16.mxu0 0
      %1776 = vmatpush1.bf16.msra.mxu0 0
      %1777 = vmatprep.subr.bf16.mxu0 0
      %1778 = vmatpush1.bf16.msra.mxu0 0
      %1779 = vmatprep.mubr.bf16.mxu0 0
      %1780 = vmatmul.mubr.bf16.gmra.mrb[0].mxu0 %v762
      %v1781 = vpop.f32.mrb[0].mxu0
      %v1782 = vadd.f32 0.0, %v1781
      %v1783 = vpop.f32.mrb[0].mxu0
      %v1784 = vpop.f32.mrb[0].mxu0
      %v1785 = vadd.f32 0.0, %v1784
      %v1786 = vpop.f32.mrb[0].mxu0
      %1787 = vdwg.mxu0
      %v1788 = vmul.f32 %v1782, %v810
      %v1789 = vmul.f32 %v1785, %v815
      %v1790 = vadd.f32 %v1788, %v824
      %v1791 = vadd.f32 %v1789, %v829
      %v1792 = vmax.f32 %v1790, 0.0
      %v1793 = vmax.f32 %v1791, 0.0
      %v1794 = vld [vmem:[%s549] sm:$0x1]
      %v1795 = vld [vmem:[%s549 + $0x4] sm:$0x1]
      %v1796 = vld [vmem:[%s549 + $0x8] sm:$0x1]
      %v1797 = vld [vmem:[%s549 + $0xc] sm:$0x1]
      %v1798 = vld [vmem:[%s549 + $0x10] sm:$0x1]
      %v1799 = vld [vmem:[%s549 + $0x14] sm:$0x1]
      %v1800 = vld [vmem:[%s549 + $0x18] sm:$0x1]
      %v1801 = vld [vmem:[%s549 + $0x1c] sm:$0x1]
      %v1802 = vld [vmem:[%s549 + $0x20] sm:$0x1]
      %v1803 = vld [vmem:[%s549 + $0x24] sm:$0x1]
      %v1804 = vld [vmem:[%s549 + $0x28] sm:$0x1]
      %v1805 = vld [vmem:[%s549 + $0x2c] sm:$0x1]
      %v1806 = vld [vmem:[%s549 + $0x30] sm:$0x1]
      %v1807 = vld [vmem:[%s549 + $0x34] sm:$0x1]
      %v1808 = vld [vmem:[%s549 + $0x38] sm:$0x1]
      %v1809 = vld [vmem:[%s549 + $0x3c] sm:$0x1]
      %v1810 = vpack.c.bf16 %v834, %v833
      %v1827 = vunpack.c.l.b16 %v1794
      %v1828 = vunpack.c.l.b16 %v1795
      %v1829 = vunpack.c.l.b16 %v1796
      %v1830 = vunpack.c.l.b16 %v1797
      %v1831 = vunpack.c.l.b16 %v1798
      %v1832 = vunpack.c.l.b16 %v1799
      %v1833 = vunpack.c.l.b16 %v1800
      %v1834 = vunpack.c.l.b16 %v1801
      %v1835 = vunpack.c.l.b16 %v1802
      %v1836 = vunpack.c.l.b16 %v1803
      %v1837 = vunpack.c.l.b16 %v1804
      %v1838 = vunpack.c.l.b16 %v1805
      %v1839 = vunpack.c.l.b16 %v1806
      %v1840 = vunpack.c.l.b16 %v1807
      %v1841 = vunpack.c.l.b16 %v1808
      %v1842 = vunpack.c.l.b16 %v1809
      %v1843 = vpack.c.b16 %v1827, %v1827
      %v1844 = vpack.c.b16 %v1828, %v1828
      %v1845 = vpack.c.b16 %v1829, %v1829
      %v1846 = vpack.c.b16 %v1830, %v1830
      %v1847 = vpack.c.b16 %v1831, %v1831
      %v1848 = vpack.c.b16 %v1832, %v1832
      %v1849 = vpack.c.b16 %v1833, %v1833
      %v1850 = vpack.c.b16 %v1834, %v1834
      %v1851 = vpack.c.b16 %v1835, %v1835
      %v1852 = vpack.c.b16 %v1836, %v1836
      %v1853 = vpack.c.b16 %v1837, %v1837
      %v1854 = vpack.c.b16 %v1838, %v1838
      %v1855 = vpack.c.b16 %v1839, %v1839
      %v1856 = vpack.c.b16 %v1840, %v1840
      %v1857 = vpack.c.b16 %v1841, %v1841
      %v1858 = vpack.c.b16 %v1842, %v1842
      %v1859 = vunpack.c.l.b16 %v1843
      %v1860 = vunpack.c.l.b16 %v1844
      %v1861 = vunpack.c.l.b16 %v1845
      %v1862 = vunpack.c.l.b16 %v1846
      %v1863 = vunpack.c.l.b16 %v1847
      %v1864 = vunpack.c.l.b16 %v1848
      %v1865 = vunpack.c.l.b16 %v1849
      %v1866 = vunpack.c.l.b16 %v1850
      %v1867 = vunpack.c.l.b16 %v1851
      %v1868 = vunpack.c.l.b16 %v1852
      %v1869 = vunpack.c.l.b16 %v1853
      %v1870 = vunpack.c.l.b16 %v1854
      %v1871 = vunpack.c.l.b16 %v1855
      %v1872 = vunpack.c.l.b16 %v1856
      %v1873 = vunpack.c.l.b16 %v1857
      %v1874 = vunpack.c.l.b16 %v1858
      %v1875 = vrot.slane %v1860, 7
      %v1876 = vsel %vm627, %v1875, %v1859
      %v1877 = vrot.slane %v1861, 6
      %v1878 = vsel %vm630, %v1877, %v1876
      %v1879 = vrot.slane %v1862, 5
      %vm1880 = vcmask 1043459
      %v1881 = vsel %vm1880, %v1879, %v1878
      %v1882 = vrot.slane %v1863, 4
      %vm1883 = vcmask 1044484
      %v1884 = vsel %vm1883, %v1882, %v1881
      %v1885 = vrot.slane %v1864, 3
      %v1886 = vsel %vm655, %v1885, %v1884
      %v1887 = vrot.slane %v1865, 2
      %v1888 = vsel %vm658, %v1887, %v1886
      %v1889 = vrot.slane %v1866, 1
      %vm1890 = vcmask 1047559
      %v1891 = vsel %vm1890, %v1889, %v1888
      %v1892 = vrot.slane %v1868, 7
      %v1893 = vsel %vm627, %v1892, %v1867
      %v1894 = vrot.slane %v1869, 6
      %v1895 = vsel %vm630, %v1894, %v1893
      %v1896 = vrot.slane %v1870, 5
      %v1897 = vsel %vm1880, %v1896, %v1895
      %v1898 = vrot.slane %v1871, 4
      %v1899 = vsel %vm1883, %v1898, %v1897
      %v1900 = vrot.slane %v1872, 3
      %v1901 = vsel %vm655, %v1900, %v1899
      %v1902 = vrot.slane %v1873, 2
      %v1903 = vsel %vm658, %v1902, %v1901
      %v1904 = vrot.slane %v1874, 1
      %v1905 = vsel %vm1890, %v1904, %v1903
      %v1906 = vpack.c.b16 %v1905, %v1891
      %v1908 = vld [vmem:[%s10] sm:$0xf]
      %v1909 = vld [vmem:[%s10 + $0x4] sm:$0xf]
      %v1910 = vld [vmem:[%s10 + $0x8] sm:$0xf]
      %v1911 = vld [vmem:[%s10 + $0xc] sm:$0xf]
      %v1916 = vunpack.c.l.b16 %v1908
      %v1917 = vunpack.c.l.b16 %v1909
      %v1918 = vunpack.c.l.b16 %v1910
      %v1919 = vunpack.c.l.b16 %v1911
      %v1920 = vpack.c.b16 %v1917, %v1916
      %v1921 = vpack.c.b16 %v1919, %v1918
      %vm1922 = vcmask 261120
      %v1924 = vsel %vm1922, %v1920, 0
      %v1927 = vsel %vm1922, %v1921, 0
      %1929 = vmatprep.subr.bf16.mxu0 0
      %1930 = vmatpush1.bf16.msra.mxu0 %v1906
      %1931 = vmatprep.subr.bf16.mxu0 0
      %1932 = vmatpush1.bf16.msra.mxu0 %v1810
      %1933 = vmatprep.subr.bf16.mxu0 0
      %1934 = vmatpush1.bf16.msra.mxu0 0
      %1935 = vmatprep.subr.bf16.mxu0 0
      %1936 = vmatpush1.bf16.msra.mxu0 0
      %1937 = vmatprep.subr.bf16.mxu0 0
      %1938 = vmatpush1.bf16.msra.mxu0 0
      %1939 = vmatprep.subr.bf16.mxu0 0
      %1940 = vmatpush1.bf16.msra.mxu0 0
      %1941 = vmatprep.subr.bf16.mxu0 0
      %1942 = vmatpush1.bf16.msra.mxu0 0
      %1943 = vmatprep.subr.bf16.mxu0 0
      %1944 = vmatpush1.bf16.msra.mxu0 0
      %1945 = vmatprep.subr.bf16.mxu0 0
      %1946 = vmatpush1.bf16.msra.mxu0 0
      %1947 = vmatprep.subr.bf16.mxu0 0
      %1948 = vmatpush1.bf16.msra.mxu0 0
      %1949 = vmatprep.subr.bf16.mxu0 0
      %1950 = vmatpush1.bf16.msra.mxu0 0
      %1951 = vmatprep.subr.bf16.mxu0 0
      %1952 = vmatpush1.bf16.msra.mxu0 0
      %1953 = vmatprep.subr.bf16.mxu0 0
      %1954 = vmatpush1.bf16.msra.mxu0 0
      %1955 = vmatprep.subr.bf16.mxu0 0
      %1956 = vmatpush1.bf16.msra.mxu0 0
      %1957 = vmatprep.subr.bf16.mxu0 0
      %1958 = vmatpush1.bf16.msra.mxu0 0
      %1959 = vmatprep.subr.bf16.mxu0 0
      %1960 = vmatpush1.bf16.msra.mxu0 0
      %1961 = vmatprep.mubr.bf16.mxu0 0
      %1962 = vmatmul.mubr.bf16.gmra.mrb[0].mxu0 %v1924
      %v1963 = vpop.f32.mrb[0].mxu0
      %v1964 = vadd.f32 0.0, %v1963
      %v1965 = vpop.f32.mrb[0].mxu0
      %v1966 = vpop.f32.mrb[0].mxu0
      %v1967 = vadd.f32 0.0, %v1966
      %v1968 = vpop.f32.mrb[0].mxu0
      %1969 = vmatprep.mubr.bf16.mxu0 0
      %1970 = vmatmul.mubr.bf16.gmra.mrb[0].mxu0 %v1927
      %v1971 = vpop.f32.mrb[0].mxu0
      %v1972 = vadd.f32 0.0, %v1971
      %v1973 = vpop.f32.mrb[0].mxu0
      %v1974 = vpop.f32.mrb[0].mxu0
      %v1975 = vadd.f32 0.0, %v1974
      %v1976 = vpop.f32.mrb[0].mxu0
      %1977 = vdwg.mxu0
      %v1978 = vpack.c.bf16 %v971, %v970
      %v1979 = vrot.slane %v1859, 1
      %v1980 = vsel %vm627, %v1860, %v1979
      %v1981 = vrot.slane %v1861, 7
      %v1982 = vsel %vm630, %v1981, %v1980
      %v1983 = vrot.slane %v1862, 6
      %v1984 = vsel %vm1880, %v1983, %v1982
      %v1985 = vrot.slane %v1863, 5
      %v1986 = vsel %vm1883, %v1985, %v1984
      %v1987 = vrot.slane %v1864, 4
      %v1988 = vsel %vm655, %v1987, %v1986
      %v1989 = vrot.slane %v1865, 3
      %v1990 = vsel %vm658, %v1989, %v1988
      %v1991 = vrot.slane %v1866, 2
      %v1992 = vsel %vm1890, %v1991, %v1990
      %v1993 = vrot.slane %v1867, 1
      %v1994 = vsel %vm627, %v1868, %v1993
      %v1995 = vrot.slane %v1869, 7
      %v1996 = vsel %vm630, %v1995, %v1994
      %v1997 = vrot.slane %v1870, 6
      %v1998 = vsel %vm1880, %v1997, %v1996
      %v1999 = vrot.slane %v1871, 5
      %v2000 = vsel %vm1883, %v1999, %v1998
      %v2001 = vrot.slane %v1872, 4
      %v2002 = vsel %vm655, %v2001, %v2000
      %v2003 = vrot.slane %v1873, 3
      %v2004 = vsel %vm658, %v2003, %v2002
      %v2005 = vrot.slane %v1874, 2
      %v2006 = vsel %vm1890, %v2005, %v2004
      %v2007 = vpack.c.b16 %v2006, %v1992
      %2009 = vmatprep.subr.bf16.mxu0 0
      %2010 = vmatpush1.bf16.msra.mxu0 %v2007
      %2011 = vmatprep.subr.bf16.mxu0 0
      %2012 = vmatpush1.bf16.msra.mxu0 %v1978
      %2013 = vmatprep.subr.bf16.mxu0 0
      %2014 = vmatpush1.bf16.msra.mxu0 0
      %2015 = vmatprep.subr.bf16.mxu0 0
      %2016 = vmatpush1.bf16.msra.mxu0 0
      %2017 = vmatprep.subr.bf16.mxu0 0
      %2018 = vmatpush1.bf16.msra.mxu0 0
      %2019 = vmatprep.subr.bf16.mxu0 0
      %2020 = vmatpush1.bf16.msra.mxu0 0
      %2021 = vmatprep.subr.bf16.mxu0 0
      %2022 = vmatpush1.bf16.msra.mxu0 0
      %2023 = vmatprep.subr.bf16.mxu0 0
      %2024 = vmatpush1.bf16.msra.mxu0 0
      %2025 = vmatprep.subr.bf16.mxu0 0
      %2026 = vmatpush1.bf16.msra.mxu0 0
      %2027 = vmatprep.subr.bf16.mxu0 0
      %2028 = vmatpush1.bf16.msra.mxu0 0
      %2029 = vmatprep.subr.bf16.mxu0 0
      %2030 = vmatpush1.bf16.msra.mxu0 0
      %2031 = vmatprep.subr.bf16.mxu0 0
      %2032 = vmatpush1.bf16.msra.mxu0 0
      %2033 = vmatprep.subr.bf16.mxu0 0
      %2034 = vmatpush1.bf16.msra.mxu0 0
      %2035 = vmatprep.subr.bf16.mxu0 0
      %2036 = vmatpush1.bf16.msra.mxu0 0
      %2037 = vmatprep.subr.bf16.mxu0 0
      %2038 = vmatpush1.bf16.msra.mxu0 0
      %2039 = vmatprep.subr.bf16.mxu0 0
      %2040 = vmatpush1.bf16.msra.mxu0 0
      %2041 = vmatprep.mubr.bf16.mxu0 0
      %2042 = vmatmul.mubr.bf16.gmra.mrb[0].mxu0 %v1924
      %v2043 = vpop.f32.mrb[0].mxu0
      %v2044 = vadd.f32 0.0, %v2043
      %v2045 = vpop.f32.mrb[0].mxu0
      %v2046 = vpop.f32.mrb[0].mxu0
      %v2047 = vadd.f32 0.0, %v2046
      %v2048 = vpop.f32.mrb[0].mxu0
      %2049 = vmatprep.mubr.bf16.mxu0 0
      %2050 = vmatmul.mubr.bf16.gmra.mrb[0].mxu0 %v1927
      %v2051 = vpop.f32.mrb[0].mxu0
      %v2052 = vadd.f32 0.0, %v2051
      %v2053 = vpop.f32.mrb[0].mxu0
      %v2054 = vpop.f32.mrb[0].mxu0
      %v2055 = vadd.f32 0.0, %v2054
      %v2056 = vpop.f32.mrb[0].mxu0
      %2057 = vdwg.mxu0
      %v2058 = vld [vmem:[%s549] sm:$0x2]
      %v2059 = vld [vmem:[%s549 + $0x4] sm:$0x2]
      %v2060 = vld [vmem:[%s549 + $0x8] sm:$0x2]
      %v2061 = vld [vmem:[%s549 + $0xc] sm:$0x2]
      %v2062 = vld [vmem:[%s549 + $0x10] sm:$0x2]
      %v2063 = vld [vmem:[%s549 + $0x14] sm:$0x2]
      %v2064 = vld [vmem:[%s549 + $0x18] sm:$0x2]
      %v2065 = vld [vmem:[%s549 + $0x1c] sm:$0x2]
      %v2066 = vld [vmem:[%s549 + $0x20] sm:$0x2]
      %v2067 = vld [vmem:[%s549 + $0x24] sm:$0x2]
      %v2068 = vld [vmem:[%s549 + $0x28] sm:$0x2]
      %v2069 = vld [vmem:[%s549 + $0x2c] sm:$0x2]
      %v2070 = vld [vmem:[%s549 + $0x30] sm:$0x2]
      %v2071 = vld [vmem:[%s549 + $0x34] sm:$0x2]
      %v2072 = vld [vmem:[%s549 + $0x38] sm:$0x2]
      %v2073 = vld [vmem:[%s549 + $0x3c] sm:$0x2]
      %v2074 = vpack.c.bf16 %v1108, %v1107
      %v2091 = vunpack.c.l.b16 %v2058
      %v2092 = vunpack.c.l.b16 %v2059
      %v2093 = vunpack.c.l.b16 %v2060
      %v2094 = vunpack.c.l.b16 %v2061
      %v2095 = vunpack.c.l.b16 %v2062
      %v2096 = vunpack.c.l.b16 %v2063
      %v2097 = vunpack.c.l.b16 %v2064
      %v2098 = vunpack.c.l.b16 %v2065
      %v2099 = vunpack.c.l.b16 %v2066
      %v2100 = vunpack.c.l.b16 %v2067
      %v2101 = vunpack.c.l.b16 %v2068
      %v2102 = vunpack.c.l.b16 %v2069
      %v2103 = vunpack.c.l.b16 %v2070
      %v2104 = vunpack.c.l.b16 %v2071
      %v2105 = vunpack.c.l.b16 %v2072
      %v2106 = vunpack.c.l.b16 %v2073
      %v2107 = vpack.c.b16 %v2091, %v2091
      %v2108 = vpack.c.b16 %v2092, %v2092
      %v2109 = vpack.c.b16 %v2093, %v2093
      %v2110 = vpack.c.b16 %v2094, %v2094
      %v2111 = vpack.c.b16 %v2095, %v2095
      %v2112 = vpack.c.b16 %v2096, %v2096
      %v2113 = vpack.c.b16 %v2097, %v2097
      %v2114 = vpack.c.b16 %v2098, %v2098
      %v2115 = vpack.c.b16 %v2099, %v2099
      %v2116 = vpack.c.b16 %v2100, %v2100
      %v2117 = vpack.c.b16 %v2101, %v2101
      %v2118 = vpack.c.b16 %v2102, %v2102
      %v2119 = vpack.c.b16 %v2103, %v2103
      %v2120 = vpack.c.b16 %v2104, %v2104
      %v2121 = vpack.c.b16 %v2105, %v2105
      %v2122 = vpack.c.b16 %v2106, %v2106
      %v2123 = vunpack.c.l.b16 %v2107
      %v2124 = vunpack.c.l.b16 %v2108
      %v2125 = vunpack.c.l.b16 %v2109
      %v2126 = vunpack.c.l.b16 %v2110
      %v2127 = vunpack.c.l.b16 %v2111
      %v2128 = vunpack.c.l.b16 %v2112
      %v2129 = vunpack.c.l.b16 %v2113
      %v2130 = vunpack.c.l.b16 %v2114
      %v2131 = vunpack.c.l.b16 %v2115
      %v2132 = vunpack.c.l.b16 %v2116
      %v2133 = vunpack.c.l.b16 %v2117
      %v2134 = vunpack.c.l.b16 %v2118
      %v2135 = vunpack.c.l.b16 %v2119
      %v2136 = vunpack.c.l.b16 %v2120
      %v2137 = vunpack.c.l.b16 %v2121
      %v2138 = vunpack.c.l.b16 %v2122
      %v2139 = vrot.slane %v2123, 2
      %v2140 = vrot.slane %v2124, 1
      %v2141 = vsel %vm627, %v2140, %v2139
      %v2142 = vsel %vm630, %v2125, %v2141
      %v2143 = vrot.slane %v2126, 7
      %v2144 = vsel %vm1880, %v2143, %v2142
      %v2145 = vrot.slane %v2127, 6
      %v2146 = vsel %vm1883, %v2145, %v2144
      %v2147 = vrot.slane %v2128, 5
      %v2148 = vsel %vm655, %v2147, %v2146
      %v2149 = vrot.slane %v2129, 4
      %v2150 = vsel %vm658, %v2149, %v2148
      %v2151 = vrot.slane %v2130, 3
      %v2152 = vsel %vm1890, %v2151, %v2150
      %v2153 = vrot.slane %v2131, 2
      %v2154 = vrot.slane %v2132, 1
      %v2155 = vsel %vm627, %v2154, %v2153
      %v2156 = vsel %vm630, %v2133, %v2155
      %v2157 = vrot.slane %v2134, 7
      %v2158 = vsel %vm1880, %v2157, %v2156
      %v2159 = vrot.slane %v2135, 6
      %v2160 = vsel %vm1883, %v2159, %v2158
      %v2161 = vrot.slane %v2136, 5
      %v2162 = vsel %vm655, %v2161, %v2160
      %v2163 = vrot.slane %v2137, 4
      %v2164 = vsel %vm658, %v2163, %v2162
      %v2165 = vrot.slane %v2138, 3
      %v2166 = vsel %vm1890, %v2165, %v2164
      %v2167 = vpack.c.b16 %v2166, %v2152
      %2169 = vmatprep.subr.bf16.mxu0 0
      %2170 = vmatpush1.bf16.msra.mxu0 %v2167
      %2171 = vmatprep.subr.bf16.mxu0 0
      %2172 = vmatpush1.bf16.msra.mxu0 %v2074
      %2173 = vmatprep.subr.bf16.mxu0 0
      %2174 = vmatpush1.bf16.msra.mxu0 0
      %2175 = vmatprep.subr.bf16.mxu0 0
      %2176 = vmatpush1.bf16.msra.mxu0 0
      %2177 = vmatprep.subr.bf16.mxu0 0
      %2178 = vmatpush1.bf16.msra.mxu0 0
      %2179 = vmatprep.subr.bf16.mxu0 0
      %2180 = vmatpush1.bf16.msra.mxu0 0
      %2181 = vmatprep.subr.bf16.mxu0 0
      %2182 = vmatpush1.bf16.msra.mxu0 0
      %2183 = vmatprep.subr.bf16.mxu0 0
      %2184 = vmatpush1.bf16.msra.mxu0 0
      %2185 = vmatprep.subr.bf16.mxu0 0
      %2186 = vmatpush1.bf16.msra.mxu0 0
      %2187 = vmatprep.subr.bf16.mxu0 0
      %2188 = vmatpush1.bf16.msra.mxu0 0
      %2189 = vmatprep.subr.bf16.mxu0 0
      %2190 = vmatpush1.bf16.msra.mxu0 0
      %2191 = vmatprep.subr.bf16.mxu0 0
      %2192 = vmatpush1.bf16.msra.mxu0 0
      %2193 = vmatprep.subr.bf16.mxu0 0
      %2194 = vmatpush1.bf16.msra.mxu0 0
      %2195 = vmatprep.subr.bf16.mxu0 0
      %2196 = vmatpush1.bf16.msra.mxu0 0
      %2197 = vmatprep.subr.bf16.mxu0 0
      %2198 = vmatpush1.bf16.msra.mxu0 0
      %2199 = vmatprep.subr.bf16.mxu0 0
      %2200 = vmatpush1.bf16.msra.mxu0 0
      %2201 = vmatprep.mubr.bf16.mxu0 0
      %2202 = vmatmul.mubr.bf16.gmra.mrb[0].mxu0 %v1924
      %v2203 = vpop.f32.mrb[0].mxu0
      %v2204 = vadd.f32 0.0, %v2203
      %v2205 = vpop.f32.mrb[0].mxu0
      %v2206 = vpop.f32.mrb[0].mxu0
      %v2207 = vadd.f32 0.0, %v2206
      %v2208 = vpop.f32.mrb[0].mxu0
      %2209 = vmatprep.mubr.bf16.mxu0 0
      %2210 = vmatmul.mubr.bf16.gmra.mrb[0].mxu0 %v1927
      %v2211 = vpop.f32.mrb[0].mxu0
      %v2212 = vadd.f32 0.0, %v2211
      %v2213 = vpop.f32.mrb[0].mxu0
      %v2214 = vpop.f32.mrb[0].mxu0
      %v2215 = vadd.f32 0.0, %v2214
      %v2216 = vpop.f32.mrb[0].mxu0
      %2217 = vdwg.mxu0
      %v2218 = vpack.c.bf16 %v1245, %v1244
      %v2219 = vrot.slane %v2123, 3
      %v2220 = vrot.slane %v2124, 2
      %v2221 = vsel %vm627, %v2220, %v2219
      %v2222 = vrot.slane %v2125, 1
      %v2223 = vsel %vm630, %v2222, %v2221
      %v2224 = vsel %vm1880, %v2126, %v2223
      %v2225 = vrot.slane %v2127, 7
      %v2226 = vsel %vm1883, %v2225, %v2224
      %v2227 = vrot.slane %v2128, 6
      %v2228 = vsel %vm655, %v2227, %v2226
      %v2229 = vrot.slane %v2129, 5
      %v2230 = vsel %vm658, %v2229, %v2228
      %v2231 = vrot.slane %v2130, 4
      %v2232 = vsel %vm1890, %v2231, %v2230
      %v2233 = vrot.slane %v2131, 3
      %v2234 = vrot.slane %v2132, 2
      %v2235 = vsel %vm627, %v2234, %v2233
      %v2236 = vrot.slane %v2133, 1
      %v2237 = vsel %vm630, %v2236, %v2235
      %v2238 = vsel %vm1880, %v2134, %v2237
      %v2239 = vrot.slane %v2135, 7
      %v2240 = vsel %vm1883, %v2239, %v2238
      %v2241 = vrot.slane %v2136, 6
      %v2242 = vsel %vm655, %v2241, %v2240
      %v2243 = vrot.slane %v2137, 5
      %v2244 = vsel %vm658, %v2243, %v2242
      %v2245 = vrot.slane %v2138, 4
      %v2246 = vsel %vm1890, %v2245, %v2244
      %v2247 = vpack.c.b16 %v2246, %v2232
      %2249 = vmatprep.subr.bf16.mxu0 0
      %2250 = vmatpush1.bf16.msra.mxu0 %v2247
      %2251 = vmatprep.subr.bf16.mxu0 0
      %2252 = vmatpush1.bf16.msra.mxu0 %v2218
      %2253 = vmatprep.subr.bf16.mxu0 0
      %2254 = vmatpush1.bf16.msra.mxu0 0
      %2255 = vmatprep.subr.bf16.mxu0 0
      %2256 = vmatpush1.bf16.msra.mxu0 0
      %2257 = vmatprep.subr.bf16.mxu0 0
      %2258 = vmatpush1.bf16.msra.mxu0 0
      %2259 = vmatprep.subr.bf16.mxu0 0
      %2260 = vmatpush1.bf16.msra.mxu0 0
      %2261 = vmatprep.subr.bf16.mxu0 0
      %2262 = vmatpush1.bf16.msra.mxu0 0
      %2263 = vmatprep.subr.bf16.mxu0 0
      %2264 = vmatpush1.bf16.msra.mxu0 0
      %2265 = vmatprep.subr.bf16.mxu0 0
      %2266 = vmatpush1.bf16.msra.mxu0 0
      %2267 = vmatprep.subr.bf16.mxu0 0
      %2268 = vmatpush1.bf16.msra.mxu0 0
      %2269 = vmatprep.subr.bf16.mxu0 0
      %2270 = vmatpush1.bf16.msra.mxu0 0
      %2271 = vmatprep.subr.bf16.mxu0 0
      %2272 = vmatpush1.bf16.msra.mxu0 0
      %2273 = vmatprep.subr.bf16.mxu0 0
      %2274 = vmatpush1.bf16.msra.mxu0 0
      %2275 = vmatprep.subr.bf16.mxu0 0
      %2276 = vmatpush1.bf16.msra.mxu0 0
      %2277 = vmatprep.subr.bf16.mxu0 0
      %2278 = vmatpush1.bf16.msra.mxu0 0
      %2279 = vmatprep.subr.bf16.mxu0 0
      %2280 = vmatpush1.bf16.msra.mxu0 0
      %2281 = vmatprep.mubr.bf16.mxu0 0
      %2282 = vmatmul.mubr.bf16.gmra.mrb[0].mxu0 %v1924
      %v2283 = vpop.f32.mrb[0].mxu0
      %v2284 = vadd.f32 0.0, %v2283
      %v2285 = vpop.f32.mrb[0].mxu0
      %v2286 = vpop.f32.mrb[0].mxu0
      %v2287 = vadd.f32 0.0, %v2286
      %v2288 = vpop.f32.mrb[0].mxu0
      %2289 = vmatprep.mubr.bf16.mxu0 0
      %2290 = vmatmul.mubr.bf16.gmra.mrb[0].mxu0 %v1927
      %v2291 = vpop.f32.mrb[0].mxu0
      %v2292 = vadd.f32 0.0, %v2291
      %v2293 = vpop.f32.mrb[0].mxu0
      %v2294 = vpop.f32.mrb[0].mxu0
      %v2295 = vadd.f32 0.0, %v2294
      %v2296 = vpop.f32.mrb[0].mxu0
      %2297 = vdwg.mxu0
      %v2298 = vld [vmem:[%s549] sm:$0x4]
      %v2299 = vld [vmem:[%s549 + $0x4] sm:$0x4]
      %v2300 = vld [vmem:[%s549 + $0x8] sm:$0x4]
      %v2301 = vld [vmem:[%s549 + $0xc] sm:$0x4]
      %v2302 = vld [vmem:[%s549 + $0x10] sm:$0x4]
      %v2303 = vld [vmem:[%s549 + $0x14] sm:$0x4]
      %v2304 = vld [vmem:[%s549 + $0x18] sm:$0x4]
      %v2305 = vld [vmem:[%s549 + $0x1c] sm:$0x4]
      %v2306 = vld [vmem:[%s549 + $0x20] sm:$0x4]
      %v2307 = vld [vmem:[%s549 + $0x24] sm:$0x4]
      %v2308 = vld [vmem:[%s549 + $0x28] sm:$0x4]
      %v2309 = vld [vmem:[%s549 + $0x2c] sm:$0x4]
      %v2310 = vld [vmem:[%s549 + $0x30] sm:$0x4]
      %v2311 = vld [vmem:[%s549 + $0x34] sm:$0x4]
      %v2312 = vld [vmem:[%s549 + $0x38] sm:$0x4]
      %v2313 = vld [vmem:[%s549 + $0x3c] sm:$0x4]
      %v2314 = vpack.c.bf16 %v1382, %v1381
      %v2331 = vunpack.c.l.b16 %v2298
      %v2332 = vunpack.c.l.b16 %v2299
      %v2333 = vunpack.c.l.b16 %v2300
      %v2334 = vunpack.c.l.b16 %v2301
      %v2335 = vunpack.c.l.b16 %v2302
      %v2336 = vunpack.c.l.b16 %v2303
      %v2337 = vunpack.c.l.b16 %v2304
      %v2338 = vunpack.c.l.b16 %v2305
      %v2339 = vunpack.c.l.b16 %v2306
      %v2340 = vunpack.c.l.b16 %v2307
      %v2341 = vunpack.c.l.b16 %v2308
      %v2342 = vunpack.c.l.b16 %v2309
      %v2343 = vunpack.c.l.b16 %v2310
      %v2344 = vunpack.c.l.b16 %v2311
      %v2345 = vunpack.c.l.b16 %v2312
      %v2346 = vunpack.c.l.b16 %v2313
      %v2347 = vpack.c.b16 %v2331, %v2331
      %v2348 = vpack.c.b16 %v2332, %v2332
      %v2349 = vpack.c.b16 %v2333, %v2333
      %v2350 = vpack.c.b16 %v2334, %v2334
      %v2351 = vpack.c.b16 %v2335, %v2335
      %v2352 = vpack.c.b16 %v2336, %v2336
      %v2353 = vpack.c.b16 %v2337, %v2337
      %v2354 = vpack.c.b16 %v2338, %v2338
      %v2355 = vpack.c.b16 %v2339, %v2339
      %v2356 = vpack.c.b16 %v2340, %v2340
      %v2357 = vpack.c.b16 %v2341, %v2341
      %v2358 = vpack.c.b16 %v2342, %v2342
      %v2359 = vpack.c.b16 %v2343, %v2343
      %v2360 = vpack.c.b16 %v2344, %v2344
      %v2361 = vpack.c.b16 %v2345, %v2345
      %v2362 = vpack.c.b16 %v2346, %v2346
      %v2363 = vunpack.c.l.b16 %v2347
      %v2364 = vunpack.c.l.b16 %v2348
      %v2365 = vunpack.c.l.b16 %v2349
      %v2366 = vunpack.c.l.b16 %v2350
      %v2367 = vunpack.c.l.b16 %v2351
      %v2368 = vunpack.c.l.b16 %v2352
      %v2369 = vunpack.c.l.b16 %v2353
      %v2370 = vunpack.c.l.b16 %v2354
      %v2371 = vunpack.c.l.b16 %v2355
      %v2372 = vunpack.c.l.b16 %v2356
      %v2373 = vunpack.c.l.b16 %v2357
      %v2374 = vunpack.c.l.b16 %v2358
      %v2375 = vunpack.c.l.b16 %v2359
      %v2376 = vunpack.c.l.b16 %v2360
      %v2377 = vunpack.c.l.b16 %v2361
      %v2378 = vunpack.c.l.b16 %v2362
      %v2379 = vrot.slane %v2363, 4
      %v2380 = vrot.slane %v2364, 3
      %v2381 = vsel %vm627, %v2380, %v2379
      %v2382 = vrot.slane %v2365, 2
      %v2383 = vsel %vm630, %v2382, %v2381
      %v2384 = vrot.slane %v2366, 1
      %v2385 = vsel %vm1880, %v2384, %v2383
      %v2386 = vsel %vm1883, %v2367, %v2385
      %v2387 = vrot.slane %v2368, 7
      %v2388 = vsel %vm655, %v2387, %v2386
      %v2389 = vrot.slane %v2369, 6
      %v2390 = vsel %vm658, %v2389, %v2388
      %v2391 = vrot.slane %v2370, 5
      %v2392 = vsel %vm1890, %v2391, %v2390
      %v2393 = vrot.slane %v2371, 4
      %v2394 = vrot.slane %v2372, 3
      %v2395 = vsel %vm627, %v2394, %v2393
      %v2396 = vrot.slane %v2373, 2
      %v2397 = vsel %vm630, %v2396, %v2395
      %v2398 = vrot.slane %v2374, 1
      %v2399 = vsel %vm1880, %v2398, %v2397
      %v2400 = vsel %vm1883, %v2375, %v2399
      %v2401 = vrot.slane %v2376, 7
      %v2402 = vsel %vm655, %v2401, %v2400
      %v2403 = vrot.slane %v2377, 6
      %v2404 = vsel %vm658, %v2403, %v2402
      %v2405 = vrot.slane %v2378, 5
      %v2406 = vsel %vm1890, %v2405, %v2404
      %v2407 = vpack.c.b16 %v2406, %v2392
      %2409 = vmatprep.subr.bf16.mxu0 0
      %2410 = vmatpush1.bf16.msra.mxu0 %v2407
      %2411 = vmatprep.subr.bf16.mxu0 0
      %2412 = vmatpush1.bf16.msra.mxu0 %v2314
      %2413 = vmatprep.subr.bf16.mxu0 0
      %2414 = vmatpush1.bf16.msra.mxu0 0
      %2415 = vmatprep.subr.bf16.mxu0 0
      %2416 = vmatpush1.bf16.msra.mxu0 0
      %2417 = vmatprep.subr.bf16.mxu0 0
      %2418 = vmatpush1.bf16.msra.mxu0 0
      %2419 = vmatprep.subr.bf16.mxu0 0
      %2420 = vmatpush1.bf16.msra.mxu0 0
      %2421 = vmatprep.subr.bf16.mxu0 0
      %2422 = vmatpush1.bf16.msra.mxu0 0
      %2423 = vmatprep.subr.bf16.mxu0 0
      %2424 = vmatpush1.bf16.msra.mxu0 0
      %2425 = vmatprep.subr.bf16.mxu0 0
      %2426 = vmatpush1.bf16.msra.mxu0 0
      %2427 = vmatprep.subr.bf16.mxu0 0
      %2428 = vmatpush1.bf16.msra.mxu0 0
      %2429 = vmatprep.subr.bf16.mxu0 0
      %2430 = vmatpush1.bf16.msra.mxu0 0
      %2431 = vmatprep.subr.bf16.mxu0 0
      %2432 = vmatpush1.bf16.msra.mxu0 0
      %2433 = vmatprep.subr.bf16.mxu0 0
      %2434 = vmatpush1.bf16.msra.mxu0 0
      %2435 = vmatprep.subr.bf16.mxu0 0
      %2436 = vmatpush1.bf16.msra.mxu0 0
      %2437 = vmatprep.subr.bf16.mxu0 0
      %2438 = vmatpush1.bf16.msra.mxu0 0
      %2439 = vmatprep.subr.bf16.mxu0 0
      %2440 = vmatpush1.bf16.msra.mxu0 0
      %2441 = vmatprep.mubr.bf16.mxu0 0
      %2442 = vmatmul.mubr.bf16.gmra.mrb[0].mxu0 %v1924
      %v2443 = vpop.f32.mrb[0].mxu0
      %v2444 = vadd.f32 0.0, %v2443
      %v2445 = vpop.f32.mrb[0].mxu0
      %v2446 = vpop.f32.mrb[0].mxu0
      %v2447 = vadd.f32 0.0, %v2446
      %v2448 = vpop.f32.mrb[0].mxu0
      %2449 = vmatprep.mubr.bf16.mxu0 0
      %2450 = vmatmul.mubr.bf16.gmra.mrb[0].mxu0 %v1927
      %v2451 = vpop.f32.mrb[0].mxu0
      %v2452 = vadd.f32 0.0, %v2451
      %v2453 = vpop.f32.mrb[0].mxu0
      %v2454 = vpop.f32.mrb[0].mxu0
      %v2455 = vadd.f32 0.0, %v2454
      %v2456 = vpop.f32.mrb[0].mxu0
      %2457 = vdwg.mxu0
      %v2458 = vpack.c.bf16 %v1519, %v1518
      %v2459 = vrot.slane %v2363, 5
      %v2460 = vrot.slane %v2364, 4
      %v2461 = vsel %vm627, %v2460, %v2459
      %v2462 = vrot.slane %v2365, 3
      %v2463 = vsel %vm630, %v2462, %v2461
      %v2464 = vrot.slane %v2366, 2
      %v2465 = vsel %vm1880, %v2464, %v2463
      %v2466 = vrot.slane %v2367, 1
      %v2467 = vsel %vm1883, %v2466, %v2465
      %v2468 = vsel %vm655, %v2368, %v2467
      %v2469 = vrot.slane %v2369, 7
      %v2470 = vsel %vm658, %v2469, %v2468
      %v2471 = vrot.slane %v2370, 6
      %v2472 = vsel %vm1890, %v2471, %v2470
      %v2473 = vrot.slane %v2371, 5
      %v2474 = vrot.slane %v2372, 4
      %v2475 = vsel %vm627, %v2474, %v2473
      %v2476 = vrot.slane %v2373, 3
      %v2477 = vsel %vm630, %v2476, %v2475
      %v2478 = vrot.slane %v2374, 2
      %v2479 = vsel %vm1880, %v2478, %v2477
      %v2480 = vrot.slane %v2375, 1
      %v2481 = vsel %vm1883, %v2480, %v2479
      %v2482 = vsel %vm655, %v2376, %v2481
      %v2483 = vrot.slane %v2377, 7
      %v2484 = vsel %vm658, %v2483, %v2482
      %v2485 = vrot.slane %v2378, 6
      %v2486 = vsel %vm1890, %v2485, %v2484
      %v2487 = vpack.c.b16 %v2486, %v2472
      %2489 = vmatprep.subr.bf16.mxu0 0
      %2490 = vmatpush1.bf16.msra.mxu0 %v2487
      %2491 = vmatprep.subr.bf16.mxu0 0
      %2492 = vmatpush1.bf16.msra.mxu0 %v2458
      %2493 = vmatprep.subr.bf16.mxu0 0
      %2494 = vmatpush1.bf16.msra.mxu0 0
      %2495 = vmatprep.subr.bf16.mxu0 0
      %2496 = vmatpush1.bf16.msra.mxu0 0
      %2497 = vmatprep.subr.bf16.mxu0 0
      %2498 = vmatpush1.bf16.msra.mxu0 0
      %2499 = vmatprep.subr.bf16.mxu0 0
      %2500 = vmatpush1.bf16.msra.mxu0 0
      %2501 = vmatprep.subr.bf16.mxu0 0
      %2502 = vmatpush1.bf16.msra.mxu0 0
      %2503 = vmatprep.subr.bf16.mxu0 0
      %2504 = vmatpush1.bf16.msra.mxu0 0
      %2505 = vmatprep.subr.bf16.mxu0 0
      %2506 = vmatpush1.bf16.msra.mxu0 0
      %2507 = vmatprep.subr.bf16.mxu0 0
      %2508 = vmatpush1.bf16.msra.mxu0 0
      %2509 = vmatprep.subr.bf16.mxu0 0
      %2510 = vmatpush1.bf16.msra.mxu0 0
      %2511 = vmatprep.subr.bf16.mxu0 0
      %2512 = vmatpush1.bf16.msra.mxu0 0
      %2513 = vmatprep.subr.bf16.mxu0 0
      %2514 = vmatpush1.bf16.msra.mxu0 0
      %2515 = vmatprep.subr.bf16.mxu0 0
      %2516 = vmatpush1.bf16.msra.mxu0 0
      %2517 = vmatprep.subr.bf16.mxu0 0
      %2518 = vmatpush1.bf16.msra.mxu0 0
      %2519 = vmatprep.subr.bf16.mxu0 0
      %2520 = vmatpush1.bf16.msra.mxu0 0
      %2521 = vmatprep.mubr.bf16.mxu0 0
      %2522 = vmatmul.mubr.bf16.gmra.mrb[0].mxu0 %v1924
      %v2523 = vpop.f32.mrb[0].mxu0
      %v2524 = vadd.f32 0.0, %v2523
      %v2525 = vpop.f32.mrb[0].mxu0
      %v2526 = vpop.f32.mrb[0].mxu0
      %v2527 = vadd.f32 0.0, %v2526
      %v2528 = vpop.f32.mrb[0].mxu0
      %2529 = vmatprep.mubr.bf16.mxu0 0
      %2530 = vmatmul.mubr.bf16.gmra.mrb[0].mxu0 %v1927
      %v2531 = vpop.f32.mrb[0].mxu0
      %v2532 = vadd.f32 0.0, %v2531
      %v2533 = vpop.f32.mrb[0].mxu0
      %v2534 = vpop.f32.mrb[0].mxu0
      %v2535 = vadd.f32 0.0, %v2534
      %v2536 = vpop.f32.mrb[0].mxu0
      %2537 = vdwg.mxu0
      %v2538 = vld [vmem:[%s549] sm:$0x8]
      %v2539 = vld [vmem:[%s549 + $0x4] sm:$0x8]
      %v2540 = vld [vmem:[%s549 + $0x8] sm:$0x8]
      %v2541 = vld [vmem:[%s549 + $0xc] sm:$0x8]
      %v2542 = vld [vmem:[%s549 + $0x10] sm:$0x8]
      %v2543 = vld [vmem:[%s549 + $0x14] sm:$0x8]
      %v2544 = vld [vmem:[%s549 + $0x18] sm:$0x8]
      %v2545 = vld [vmem:[%s549 + $0x1c] sm:$0x8]
      %v2546 = vld [vmem:[%s549 + $0x20] sm:$0x8]
      %v2547 = vld [vmem:[%s549 + $0x24] sm:$0x8]
      %v2548 = vld [vmem:[%s549 + $0x28] sm:$0x8]
      %v2549 = vld [vmem:[%s549 + $0x2c] sm:$0x8]
      %v2550 = vld [vmem:[%s549 + $0x30] sm:$0x8]
      %v2551 = vld [vmem:[%s549 + $0x34] sm:$0x8]
      %v2552 = vld [vmem:[%s549 + $0x38] sm:$0x8]
      %v2553 = vld [vmem:[%s549 + $0x3c] sm:$0x8]
      %v2554 = vpack.c.bf16 %v1656, %v1655
      %v2571 = vunpack.c.l.b16 %v2538
      %v2572 = vunpack.c.l.b16 %v2539
      %v2573 = vunpack.c.l.b16 %v2540
      %v2574 = vunpack.c.l.b16 %v2541
      %v2575 = vunpack.c.l.b16 %v2542
      %v2576 = vunpack.c.l.b16 %v2543
      %v2577 = vunpack.c.l.b16 %v2544
      %v2578 = vunpack.c.l.b16 %v2545
      %v2579 = vunpack.c.l.b16 %v2546
      %v2580 = vunpack.c.l.b16 %v2547
      %v2581 = vunpack.c.l.b16 %v2548
      %v2582 = vunpack.c.l.b16 %v2549
      %v2583 = vunpack.c.l.b16 %v2550
      %v2584 = vunpack.c.l.b16 %v2551
      %v2585 = vunpack.c.l.b16 %v2552
      %v2586 = vunpack.c.l.b16 %v2553
      %v2587 = vpack.c.b16 %v2571, %v2571
      %v2588 = vpack.c.b16 %v2572, %v2572
      %v2589 = vpack.c.b16 %v2573, %v2573
      %v2590 = vpack.c.b16 %v2574, %v2574
      %v2591 = vpack.c.b16 %v2575, %v2575
      %v2592 = vpack.c.b16 %v2576, %v2576
      %v2593 = vpack.c.b16 %v2577, %v2577
      %v2594 = vpack.c.b16 %v2578, %v2578
      %v2595 = vpack.c.b16 %v2579, %v2579
      %v2596 = vpack.c.b16 %v2580, %v2580
      %v2597 = vpack.c.b16 %v2581, %v2581
      %v2598 = vpack.c.b16 %v2582, %v2582
      %v2599 = vpack.c.b16 %v2583, %v2583
      %v2600 = vpack.c.b16 %v2584, %v2584
      %v2601 = vpack.c.b16 %v2585, %v2585
      %v2602 = vpack.c.b16 %v2586, %v2586
      %v2603 = vunpack.c.l.b16 %v2587
      %v2604 = vunpack.c.l.b16 %v2588
      %v2605 = vunpack.c.l.b16 %v2589
      %v2606 = vunpack.c.l.b16 %v2590
      %v2607 = vunpack.c.l.b16 %v2591
      %v2608 = vunpack.c.l.b16 %v2592
      %v2609 = vunpack.c.l.b16 %v2593
      %v2610 = vunpack.c.l.b16 %v2594
      %v2611 = vunpack.c.l.b16 %v2595
      %v2612 = vunpack.c.l.b16 %v2596
      %v2613 = vunpack.c.l.b16 %v2597
      %v2614 = vunpack.c.l.b16 %v2598
      %v2615 = vunpack.c.l.b16 %v2599
      %v2616 = vunpack.c.l.b16 %v2600
      %v2617 = vunpack.c.l.b16 %v2601
      %v2618 = vunpack.c.l.b16 %v2602
      %v2619 = vrot.slane %v2603, 6
      %v2620 = vrot.slane %v2604, 5
      %v2621 = vsel %vm627, %v2620, %v2619
      %v2622 = vrot.slane %v2605, 4
      %v2623 = vsel %vm630, %v2622, %v2621
      %v2624 = vrot.slane %v2606, 3
      %v2625 = vsel %vm1880, %v2624, %v2623
      %v2626 = vrot.slane %v2607, 2
      %v2627 = vsel %vm1883, %v2626, %v2625
      %v2628 = vrot.slane %v2608, 1
      %v2629 = vsel %vm655, %v2628, %v2627
      %v2630 = vsel %vm658, %v2609, %v2629
      %v2631 = vrot.slane %v2610, 7
      %v2632 = vsel %vm1890, %v2631, %v2630
      %v2633 = vrot.slane %v2611, 6
      %v2634 = vrot.slane %v2612, 5
      %v2635 = vsel %vm627, %v2634, %v2633
      %v2636 = vrot.slane %v2613, 4
      %v2637 = vsel %vm630, %v2636, %v2635
      %v2638 = vrot.slane %v2614, 3
      %v2639 = vsel %vm1880, %v2638, %v2637
      %v2640 = vrot.slane %v2615, 2
      %v2641 = vsel %vm1883, %v2640, %v2639
      %v2642 = vrot.slane %v2616, 1
      %v2643 = vsel %vm655, %v2642, %v2641
      %v2644 = vsel %vm658, %v2617, %v2643
      %v2645 = vrot.slane %v2618, 7
      %v2646 = vsel %vm1890, %v2645, %v2644
      %v2647 = vpack.c.b16 %v2646, %v2632
      %2649 = vmatprep.subr.bf16.mxu0 0
      %2650 = vmatpush1.bf16.msra.mxu0 %v2647
      %2651 = vmatprep.subr.bf16.mxu0 0
      %2652 = vmatpush1.bf16.msra.mxu0 %v2554
      %2653 = vmatprep.subr.bf16.mxu0 0
      %2654 = vmatpush1.bf16.msra.mxu0 0
      %2655 = vmatprep.subr.bf16.mxu0 0
      %2656 = vmatpush1.bf16.msra.mxu0 0
      %2657 = vmatprep.subr.bf16.mxu0 0
      %2658 = vmatpush1.bf16.msra.mxu0 0
      %2659 = vmatprep.subr.bf16.mxu0 0
      %2660 = vmatpush1.bf16.msra.mxu0 0
      %2661 = vmatprep.subr.bf16.mxu0 0
      %2662 = vmatpush1.bf16.msra.mxu0 0
      %2663 = vmatprep.subr.bf16.mxu0 0
      %2664 = vmatpush1.bf16.msra.mxu0 0
      %2665 = vmatprep.subr.bf16.mxu0 0
      %2666 = vmatpush1.bf16.msra.mxu0 0
      %2667 = vmatprep.subr.bf16.mxu0 0
      %2668 = vmatpush1.bf16.msra.mxu0 0
      %2669 = vmatprep.subr.bf16.mxu0 0
      %2670 = vmatpush1.bf16.msra.mxu0 0
      %2671 = vmatprep.subr.bf16.mxu0 0
      %2672 = vmatpush1.bf16.msra.mxu0 0
      %2673 = vmatprep.subr.bf16.mxu0 0
      %2674 = vmatpush1.bf16.msra.mxu0 0
      %2675 = vmatprep.subr.bf16.mxu0 0
      %2676 = vmatpush1.bf16.msra.mxu0 0
      %2677 = vmatprep.subr.bf16.mxu0 0
      %2678 = vmatpush1.bf16.msra.mxu0 0
      %2679 = vmatprep.subr.bf16.mxu0 0
      %2680 = vmatpush1.bf16.msra.mxu0 0
      %2681 = vmatprep.mubr.bf16.mxu0 0
      %2682 = vmatmul.mubr.bf16.gmra.mrb[0].mxu0 %v1924
      %v2683 = vpop.f32.mrb[0].mxu0
      %v2684 = vadd.f32 0.0, %v2683
      %v2685 = vpop.f32.mrb[0].mxu0
      %v2686 = vpop.f32.mrb[0].mxu0
      %v2687 = vadd.f32 0.0, %v2686
      %v2688 = vpop.f32.mrb[0].mxu0
      %2689 = vmatprep.mubr.bf16.mxu0 0
      %2690 = vmatmul.mubr.bf16.gmra.mrb[0].mxu0 %v1927
      %v2691 = vpop.f32.mrb[0].mxu0
      %v2692 = vadd.f32 0.0, %v2691
      %v2693 = vpop.f32.mrb[0].mxu0
      %v2694 = vpop.f32.mrb[0].mxu0
      %v2695 = vadd.f32 0.0, %v2694
      %v2696 = vpop.f32.mrb[0].mxu0
      %2697 = vdwg.mxu0
      %v2698 = vpack.c.bf16 %v1793, %v1792
      %v2699 = vrot.slane %v2603, 7
      %v2700 = vrot.slane %v2604, 6
      %v2701 = vsel %vm627, %v2700, %v2699
      %v2702 = vrot.slane %v2605, 5
      %v2703 = vsel %vm630, %v2702, %v2701
      %v2704 = vrot.slane %v2606, 4
      %v2705 = vsel %vm1880, %v2704, %v2703
      %v2706 = vrot.slane %v2607, 3
      %v2707 = vsel %vm1883, %v2706, %v2705
      %v2708 = vrot.slane %v2608, 2
      %v2709 = vsel %vm655, %v2708, %v2707
      %v2710 = vrot.slane %v2609, 1
      %v2711 = vsel %vm658, %v2710, %v2709
      %v2712 = vsel %vm1890, %v2610, %v2711
      %v2713 = vrot.slane %v2611, 7
      %v2714 = vrot.slane %v2612, 6
      %v2715 = vsel %vm627, %v2714, %v2713
      %v2716 = vrot.slane %v2613, 5
      %v2717 = vsel %vm630, %v2716, %v2715
      %v2718 = vrot.slane %v2614, 4
      %v2719 = vsel %vm1880, %v2718, %v2717
      %v2720 = vrot.slane %v2615, 3
      %v2721 = vsel %vm1883, %v2720, %v2719
      %v2722 = vrot.slane %v2616, 2
      %v2723 = vsel %vm655, %v2722, %v2721
      %v2724 = vrot.slane %v2617, 1
      %v2725 = vsel %vm658, %v2724, %v2723
      %v2726 = vsel %vm1890, %v2618, %v2725
      %v2727 = vpack.c.b16 %v2726, %v2712
      %2729 = vmatprep.subr.bf16.mxu0 0
      %2730 = vmatpush1.bf16.msra.mxu0 %v2727
      %2731 = vmatprep.subr.bf16.mxu0 0
      %2732 = vmatpush1.bf16.msra.mxu0 %v2698
      %2733 = vmatprep.subr.bf16.mxu0 0
      %2734 = vmatpush1.bf16.msra.mxu0 0
      %2735 = vmatprep.subr.bf16.mxu0 0
      %2736 = vmatpush1.bf16.msra.mxu0 0
      %2737 = vmatprep.subr.bf16.mxu0 0
      %2738 = vmatpush1.bf16.msra.mxu0 0
      %2739 = vmatprep.subr.bf16.mxu0 0
      %2740 = vmatpush1.bf16.msra.mxu0 0
      %2741 = vmatprep.subr.bf16.mxu0 0
      %2742 = vmatpush1.bf16.msra.mxu0 0
      %2743 = vmatprep.subr.bf16.mxu0 0
      %2744 = vmatpush1.bf16.msra.mxu0 0
      %2745 = vmatprep.subr.bf16.mxu0 0
      %2746 = vmatpush1.bf16.msra.mxu0 0
      %2747 = vmatprep.subr.bf16.mxu0 0
      %2748 = vmatpush1.bf16.msra.mxu0 0
      %2749 = vmatprep.subr.bf16.mxu0 0
      %2750 = vmatpush1.bf16.msra.mxu0 0
      %2751 = vmatprep.subr.bf16.mxu0 0
      %2752 = vmatpush1.bf16.msra.mxu0 0
      %2753 = vmatprep.subr.bf16.mxu0 0
      %2754 = vmatpush1.bf16.msra.mxu0 0
      %2755 = vmatprep.subr.bf16.mxu0 0
      %2756 = vmatpush1.bf16.msra.mxu0 0
      %2757 = vmatprep.subr.bf16.mxu0 0
      %2758 = vmatpush1.bf16.msra.mxu0 0
      %2759 = vmatprep.subr.bf16.mxu0 0
      %2760 = vmatpush1.bf16.msra.mxu0 0
      %2761 = vmatprep.mubr.bf16.mxu0 0
      %2762 = vmatmul.mubr.bf16.gmra.mrb[0].mxu0 %v1924
      %v2763 = vpop.f32.mrb[0].mxu0
      %v2764 = vadd.f32 0.0, %v2763
      %v2765 = vpop.f32.mrb[0].mxu0
      %v2766 = vpop.f32.mrb[0].mxu0
      %v2767 = vadd.f32 0.0, %v2766
      %v2768 = vpop.f32.mrb[0].mxu0
      %2769 = vmatprep.mubr.bf16.mxu0 0
      %2770 = vmatmul.mubr.bf16.gmra.mrb[0].mxu0 %v1927
      %v2771 = vpop.f32.mrb[0].mxu0
      %v2772 = vadd.f32 0.0, %v2771
      %v2773 = vpop.f32.mrb[0].mxu0
      %v2774 = vpop.f32.mrb[0].mxu0
      %v2775 = vadd.f32 0.0, %v2774
      %v2776 = vpop.f32.mrb[0].mxu0
      %2777 = vdwg.mxu0
      %v2778 = vmax.f32 %v1964, %v2044
      %v2779 = vmax.f32 %v1967, %v2047
      %v2780 = vmax.f32 %v1972, %v2052
      %v2781 = vmax.f32 %v1975, %v2055
      %v2782 = vmax.f32 %v2778, %v2204
      %v2783 = vmax.f32 %v2779, %v2207
      %v2784 = vmax.f32 %v2780, %v2212
      %v2785 = vmax.f32 %v2781, %v2215
      %v2786 = vmax.f32 %v2782, %v2284
      %v2787 = vmax.f32 %v2783, %v2287
      %v2788 = vmax.f32 %v2784, %v2292
      %v2789 = vmax.f32 %v2785, %v2295
      %v2790 = vmax.f32 %v2786, %v2444
      %v2791 = vmax.f32 %v2787, %v2447
      %v2792 = vmax.f32 %v2788, %v2452
      %v2793 = vmax.f32 %v2789, %v2455
      %v2794 = vmax.f32 %v2790, %v2524
      %v2795 = vmax.f32 %v2791, %v2527
      %v2796 = vmax.f32 %v2792, %v2532
      %v2797 = vmax.f32 %v2793, %v2535
      %v2798 = vmax.f32 %v2794, %v2684
      %v2799 = vmax.f32 %v2795, %v2687
      %v2800 = vmax.f32 %v2796, %v2692
      %v2801 = vmax.f32 %v2797, %v2695
      %v2802 = vmax.f32 %v2798, %v2764
      %v2803 = vmax.f32 %v2799, %v2767
      %v2804 = vmax.f32 %v2800, %v2772
      %v2805 = vmax.f32 %v2801, %v2775
      %v2806 = vsub.f32 %v1964, %v2802
      %v2807 = vsub.f32 %v1967, %v2803
      %v2808 = vsub.f32 %v1972, %v2804
      %v2809 = vsub.f32 %v1975, %v2805
      %v2810 = vmul.f32 %v2806, 1.442695
      %v2811 = vpow.pop %v2810
      %v2812 = vmul.f32 %v2807, 1.442695
      %v2813 = vpow.pop %v2812
      %v2814 = vmul.f32 %v2808, 1.442695
      %v2815 = vpow.pop %v2814
      %v2816 = vmul.f32 %v2809, 1.442695
      %v2817 = vpow.pop %v2816
      %v2818 = vsub.f32 %v2044, %v2802
      %v2819 = vsub.f32 %v2047, %v2803
      %v2820 = vsub.f32 %v2052, %v2804
      %v2821 = vsub.f32 %v2055, %v2805
      %v2822 = vmul.f32 %v2818, 1.442695
      %v2823 = vpow.pop %v2822
      %v2824 = vmul.f32 %v2819, 1.442695
      %v2825 = vpow.pop %v2824
      %v2826 = vmul.f32 %v2820, 1.442695
      %v2827 = vpow.pop %v2826
      %v2828 = vmul.f32 %v2821, 1.442695
      %v2829 = vpow.pop %v2828
      %v2830 = vsub.f32 %v2204, %v2802
      %v2831 = vsub.f32 %v2207, %v2803
      %v2832 = vsub.f32 %v2212, %v2804
      %v2833 = vsub.f32 %v2215, %v2805
      %v2834 = vmul.f32 %v2830, 1.442695
      %v2835 = vpow.pop %v2834
      %v2836 = vmul.f32 %v2831, 1.442695
      %v2837 = vpow.pop %v2836
      %v2838 = vmul.f32 %v2832, 1.442695
      %v2839 = vpow.pop %v2838
      %v2840 = vmul.f32 %v2833, 1.442695
      %v2841 = vpow.pop %v2840
      %v2842 = vsub.f32 %v2284, %v2802
      %v2843 = vsub.f32 %v2287, %v2803
      %v2844 = vsub.f32 %v2292, %v2804
      %v2845 = vsub.f32 %v2295, %v2805
      %v2846 = vmul.f32 %v2842, 1.442695
      %v2847 = vpow.pop %v2846
      %v2848 = vmul.f32 %v2843, 1.442695
      %v2849 = vpow.pop %v2848
      %v2850 = vmul.f32 %v2844, 1.442695
      %v2851 = vpow.pop %v2850
      %v2852 = vmul.f32 %v2845, 1.442695
      %v2853 = vpow.pop %v2852
      %v2854 = vsub.f32 %v2444, %v2802
      %v2855 = vsub.f32 %v2447, %v2803
      %v2856 = vsub.f32 %v2452, %v2804
      %v2857 = vsub.f32 %v2455, %v2805
      %v2858 = vmul.f32 %v2854, 1.442695
      %v2859 = vpow.pop %v2858
      %v2860 = vmul.f32 %v2855, 1.442695
      %v2861 = vpow.pop %v2860
      %v2862 = vmul.f32 %v2856, 1.442695
      %v2863 = vpow.pop %v2862
      %v2864 = vmul.f32 %v2857, 1.442695
      %v2865 = vpow.pop %v2864
      %v2866 = vsub.f32 %v2524, %v2802
      %v2867 = vsub.f32 %v2527, %v2803
      %v2868 = vsub.f32 %v2532, %v2804
      %v2869 = vsub.f32 %v2535, %v2805
      %v2870 = vmul.f32 %v2866, 1.442695
      %v2871 = vpow.pop %v2870
      %v2872 = vmul.f32 %v2867, 1.442695
      %v2873 = vpow.pop %v2872
      %v2874 = vmul.f32 %v2868, 1.442695
      %v2875 = vpow.pop %v2874
      %v2876 = vmul.f32 %v2869, 1.442695
      %v2877 = vpow.pop %v2876
      %v2878 = vsub.f32 %v2684, %v2802
      %v2879 = vsub.f32 %v2687, %v2803
      %v2880 = vsub.f32 %v2692, %v2804
      %v2881 = vsub.f32 %v2695, %v2805
      %v2882 = vmul.f32 %v2878, 1.442695
      %v2883 = vpow.pop %v2882
      %v2884 = vmul.f32 %v2879, 1.442695
      %v2885 = vpow.pop %v2884
      %v2886 = vmul.f32 %v2880, 1.442695
      %v2887 = vpow.pop %v2886
      %v2888 = vmul.f32 %v2881, 1.442695
      %v2889 = vpow.pop %v2888
      %v2890 = vsub.f32 %v2764, %v2802
      %v2891 = vsub.f32 %v2767, %v2803
      %v2892 = vsub.f32 %v2772, %v2804
      %v2893 = vsub.f32 %v2775, %v2805
      %v2894 = vmul.f32 %v2890, 1.442695
      %v2895 = vpow.pop %v2894
      %v2896 = vmul.f32 %v2891, 1.442695
      %v2897 = vpow.pop %v2896
      %v2898 = vmul.f32 %v2892, 1.442695
      %v2899 = vpow.pop %v2898
      %v2900 = vmul.f32 %v2893, 1.442695
      %v2901 = vpow.pop %v2900
      %v2902 = vadd.f32 %v2811, %v2823
      %v2903 = vadd.f32 %v2813, %v2825
      %v2904 = vadd.f32 %v2815, %v2827
      %v2905 = vadd.f32 %v2817, %v2829
      %v2906 = vadd.f32 %v2902, %v2835
      %v2907 = vadd.f32 %v2903, %v2837
      %v2908 = vadd.f32 %v2904, %v2839
      %v2909 = vadd.f32 %v2905, %v2841
      %v2910 = vadd.f32 %v2906, %v2847
      %v2911 = vadd.f32 %v2907, %v2849
      %v2912 = vadd.f32 %v2908, %v2851
      %v2913 = vadd.f32 %v2909, %v2853
      %v2914 = vadd.f32 %v2910, %v2859
      %v2915 = vadd.f32 %v2911, %v2861
      %v2916 = vadd.f32 %v2912, %v2863
      %v2917 = vadd.f32 %v2913, %v2865
      %v2918 = vadd.f32 %v2914, %v2871
      %v2919 = vadd.f32 %v2915, %v2873
      %v2920 = vadd.f32 %v2916, %v2875
      %v2921 = vadd.f32 %v2917, %v2877
      %v2922 = vadd.f32 %v2918, %v2883
      %v2923 = vadd.f32 %v2919, %v2885
      %v2924 = vadd.f32 %v2920, %v2887
      %v2925 = vadd.f32 %v2921, %v2889
      %v2926 = vadd.f32 %v2922, %v2895
      %v2927 = vadd.f32 %v2923, %v2897
      %v2928 = vadd.f32 %v2924, %v2899
      %v2929 = vadd.f32 %v2925, %v2901
      %v2930 = vrcp.pop %v2926
      %v2931 = vrcp.pop %v2927
      %v2932 = vrcp.pop %v2928
      %v2933 = vrcp.pop %v2929
      %v2934 = vmul.f32 %v2811, %v2930
      %v2935 = vmul.f32 %v2813, %v2931
      %v2936 = vmul.f32 %v2815, %v2932
      %v2937 = vmul.f32 %v2817, %v2933
      %v2938 = vunpack.c.l.bf16 %v1794
      %v2939 = vunpack.c.l.bf16 %v1795
      %v2940 = vunpack.c.l.bf16 %v1796
      %v2941 = vunpack.c.l.bf16 %v1797
      %v2942 = vunpack.c.l.bf16 %v1798
      %v2943 = vunpack.c.l.bf16 %v1799
      %v2944 = vunpack.c.l.bf16 %v1800
      %v2945 = vunpack.c.l.bf16 %v1801
      %v2946 = vunpack.c.l.bf16 %v1802
      %v2947 = vunpack.c.l.bf16 %v1803
      %v2948 = vunpack.c.l.bf16 %v1804
      %v2949 = vunpack.c.l.bf16 %v1805
      %v2950 = vunpack.c.l.bf16 %v1806
      %v2951 = vunpack.c.l.bf16 %v1807
      %v2952 = vunpack.c.l.bf16 %v1808
      %v2953 = vunpack.c.l.bf16 %v1809
      %v2956 = vrot.slane %v2934, 1
      %v2957 = vrot.slane %v2934, 2
      %v2958 = vrot.slane %v2934, 3
      %v2959 = vrot.slane %v2934, 4
      %v2960 = vrot.slane %v2934, 5
      %v2961 = vrot.slane %v2934, 6
      %v2962 = vrot.slane %v2934, 7
      %v2963 = vrot.slane %v2935, 1
      %v2964 = vrot.slane %v2935, 2
      %v2965 = vrot.slane %v2935, 3
      %v2966 = vrot.slane %v2935, 4
      %v2967 = vrot.slane %v2935, 5
      %v2968 = vrot.slane %v2935, 6
      %v2969 = vrot.slane %v2935, 7
      %v2986 = vmul.f32 %v2938, %v2934
      %v2987 = vmul.f32 %v2939, %v2956
      %v2988 = vmul.f32 %v2940, %v2957
      %v2989 = vmul.f32 %v2941, %v2958
      %v2990 = vmul.f32 %v2942, %v2959
      %v2991 = vmul.f32 %v2943, %v2960
      %v2992 = vmul.f32 %v2944, %v2961
      %v2993 = vmul.f32 %v2945, %v2962
      %v2994 = vmul.f32 %v2946, %v2935
      %v2995 = vmul.f32 %v2947, %v2963
      %v2996 = vmul.f32 %v2948, %v2964
      %v2997 = vmul.f32 %v2949, %v2965
      %v2998 = vmul.f32 %v2950, %v2966
      %v2999 = vmul.f32 %v2951, %v2967
      %v3000 = vmul.f32 %v2952, %v2968
      %v3001 = vmul.f32 %v2953, %v2969
      %v3002 = vadd.f32 %v2986, 0.0
      %v3003 = vadd.f32 %v2987, 0.0
      %v3004 = vadd.f32 %v2988, 0.0
      %v3005 = vadd.f32 %v2989, 0.0
      %v3006 = vadd.f32 %v2990, 0.0
      %v3007 = vadd.f32 %v2991, 0.0
      %v3008 = vadd.f32 %v2992, 0.0
      %v3009 = vadd.f32 %v2993, 0.0
      %v3010 = vadd.f32 %v2994, 0.0
      %v3011 = vadd.f32 %v2995, 0.0
      %v3012 = vadd.f32 %v2996, 0.0
      %v3013 = vadd.f32 %v2997, 0.0
      %v3014 = vadd.f32 %v2998, 0.0
      %v3015 = vadd.f32 %v2999, 0.0
      %v3016 = vadd.f32 %v3000, 0.0
      %v3017 = vadd.f32 %v3001, 0.0
      %v3018 = vmul.f32 %v833, %v2936
      %v3019 = vmul.f32 %v834, %v2937
      %v3020 = vadd.f32 %v3018, 0.0
      %v3021 = vadd.f32 %v3019, 0.0
      %v3022 = vmul.f32 %v2823, %v2930
      %v3023 = vmul.f32 %v2825, %v2931
      %v3024 = vmul.f32 %v2827, %v2932
      %v3025 = vmul.f32 %v2829, %v2933
      %v3028 = vrot.slane %v3022, 7
      %v3029 = vrot.slane %v3022, 1
      %v3030 = vrot.slane %v3022, 2
      %v3031 = vrot.slane %v3022, 3
      %v3032 = vrot.slane %v3022, 4
      %v3033 = vrot.slane %v3022, 5
      %v3034 = vrot.slane %v3022, 6
      %v3035 = vrot.slane %v3023, 7
      %v3036 = vrot.slane %v3023, 1
      %v3037 = vrot.slane %v3023, 2
      %v3038 = vrot.slane %v3023, 3
      %v3039 = vrot.slane %v3023, 4
      %v3040 = vrot.slane %v3023, 5
      %v3041 = vrot.slane %v3023, 6
      %v3058 = vmul.f32 %v2938, %v3028
      %v3059 = vmul.f32 %v2939, %v3022
      %v3060 = vmul.f32 %v2940, %v3029
      %v3061 = vmul.f32 %v2941, %v3030
      %v3062 = vmul.f32 %v2942, %v3031
      %v3063 = vmul.f32 %v2943, %v3032
      %v3064 = vmul.f32 %v2944, %v3033
      %v3065 = vmul.f32 %v2945, %v3034
      %v3066 = vmul.f32 %v2946, %v3035
      %v3067 = vmul.f32 %v2947, %v3023
      %v3068 = vmul.f32 %v2948, %v3036
      %v3069 = vmul.f32 %v2949, %v3037
      %v3070 = vmul.f32 %v2950, %v3038
      %v3071 = vmul.f32 %v2951, %v3039
      %v3072 = vmul.f32 %v2952, %v3040
      %v3073 = vmul.f32 %v2953, %v3041
      %v3090 = vrot.slane %v3058, 1
      %v3091 = vrot.slane %v3059, 1
      %v3092 = vrot.slane %v3060, 1
      %v3093 = vrot.slane %v3061, 1
      %v3094 = vrot.slane %v3062, 1
      %v3095 = vrot.slane %v3063, 1
      %v3096 = vrot.slane %v3064, 1
      %v3097 = vrot.slane %v3065, 1
      %v3098 = vrot.slane %v3066, 1
      %v3099 = vrot.slane %v3067, 1
      %v3100 = vrot.slane %v3068, 1
      %v3101 = vrot.slane %v3069, 1
      %v3102 = vrot.slane %v3070, 1
      %v3103 = vrot.slane %v3071, 1
      %v3104 = vrot.slane %v3072, 1
      %v3105 = vrot.slane %v3073, 1
      %v3122 = vadd.f32 %v3002, %v3090
      %v3123 = vadd.f32 %v3003, %v3091
      %v3124 = vadd.f32 %v3004, %v3092
      %v3125 = vadd.f32 %v3005, %v3093
      %v3126 = vadd.f32 %v3006, %v3094
      %v3127 = vadd.f32 %v3007, %v3095
      %v3128 = vadd.f32 %v3008, %v3096
      %v3129 = vadd.f32 %v3009, %v3097
      %v3130 = vadd.f32 %v3010, %v3098
      %v3131 = vadd.f32 %v3011, %v3099
      %v3132 = vadd.f32 %v3012, %v3100
      %v3133 = vadd.f32 %v3013, %v3101
      %v3134 = vadd.f32 %v3014, %v3102
      %v3135 = vadd.f32 %v3015, %v3103
      %v3136 = vadd.f32 %v3016, %v3104
      %v3137 = vadd.f32 %v3017, %v3105
      %v3138 = vmul.f32 %v970, %v3024
      %v3139 = vmul.f32 %v971, %v3025
      %v3140 = vadd.f32 %v3020, %v3138
      %v3141 = vadd.f32 %v3021, %v3139
      %v3142 = vmul.f32 %v2835, %v2930
      %v3143 = vmul.f32 %v2837, %v2931
      %v3144 = vmul.f32 %v2839, %v2932
      %v3145 = vmul.f32 %v2841, %v2933
      %v3146 = vunpack.c.l.bf16 %v2058
      %v3147 = vunpack.c.l.bf16 %v2059
      %v3148 = vunpack.c.l.bf16 %v2060
      %v3149 = vunpack.c.l.bf16 %v2061
      %v3150 = vunpack.c.l.bf16 %v2062
      %v3151 = vunpack.c.l.bf16 %v2063
      %v3152 = vunpack.c.l.bf16 %v2064
      %v3153 = vunpack.c.l.bf16 %v2065
      %v3154 = vunpack.c.l.bf16 %v2066
      %v3155 = vunpack.c.l.bf16 %v2067
      %v3156 = vunpack.c.l.bf16 %v2068
      %v3157 = vunpack.c.l.bf16 %v2069
      %v3158 = vunpack.c.l.bf16 %v2070
      %v3159 = vunpack.c.l.bf16 %v2071
      %v3160 = vunpack.c.l.bf16 %v2072
      %v3161 = vunpack.c.l.bf16 %v2073
      %v3164 = vrot.slane %v3142, 6
      %v3165 = vrot.slane %v3142, 7
      %v3166 = vrot.slane %v3142, 1
      %v3167 = vrot.slane %v3142, 2
      %v3168 = vrot.slane %v3142, 3
      %v3169 = vrot.slane %v3142, 4
      %v3170 = vrot.slane %v3142, 5
      %v3171 = vrot.slane %v3143, 6
      %v3172 = vrot.slane %v3143, 7
      %v3173 = vrot.slane %v3143, 1
      %v3174 = vrot.slane %v3143, 2
      %v3175 = vrot.slane %v3143, 3
      %v3176 = vrot.slane %v3143, 4
      %v3177 = vrot.slane %v3143, 5
      %v3194 = vmul.f32 %v3146, %v3164
      %v3195 = vmul.f32 %v3147, %v3165
      %v3196 = vmul.f32 %v3148, %v3142
      %v3197 = vmul.f32 %v3149, %v3166
      %v3198 = vmul.f32 %v3150, %v3167
      %v3199 = vmul.f32 %v3151, %v3168
      %v3200 = vmul.f32 %v3152, %v3169
      %v3201 = vmul.f32 %v3153, %v3170
      %v3202 = vmul.f32 %v3154, %v3171
      %v3203 = vmul.f32 %v3155, %v3172
      %v3204 = vmul.f32 %v3156, %v3143
      %v3205 = vmul.f32 %v3157, %v3173
      %v3206 = vmul.f32 %v3158, %v3174
      %v3207 = vmul.f32 %v3159, %v3175
      %v3208 = vmul.f32 %v3160, %v3176
      %v3209 = vmul.f32 %v3161, %v3177
      %v3226 = vrot.slane %v3194, 2
      %v3227 = vrot.slane %v3195, 2
      %v3228 = vrot.slane %v3196, 2
      %v3229 = vrot.slane %v3197, 2
      %v3230 = vrot.slane %v3198, 2
      %v3231 = vrot.slane %v3199, 2
      %v3232 = vrot.slane %v3200, 2
      %v3233 = vrot.slane %v3201, 2
      %v3234 = vrot.slane %v3202, 2
      %v3235 = vrot.slane %v3203, 2
      %v3236 = vrot.slane %v3204, 2
      %v3237 = vrot.slane %v3205, 2
      %v3238 = vrot.slane %v3206, 2
      %v3239 = vrot.slane %v3207, 2
      %v3240 = vrot.slane %v3208, 2
      %v3241 = vrot.slane %v3209, 2
      %v3258 = vadd.f32 %v3122, %v3226
      %v3259 = vadd.f32 %v3123, %v3227
      %v3260 = vadd.f32 %v3124, %v3228
      %v3261 = vadd.f32 %v3125, %v3229
      %v3262 = vadd.f32 %v3126, %v3230
      %v3263 = vadd.f32 %v3127, %v3231
      %v3264 = vadd.f32 %v3128, %v3232
      %v3265 = vadd.f32 %v3129, %v3233
      %v3266 = vadd.f32 %v3130, %v3234
      %v3267 = vadd.f32 %v3131, %v3235
      %v3268 = vadd.f32 %v3132, %v3236
      %v3269 = vadd.f32 %v3133, %v3237
      %v3270 = vadd.f32 %v3134, %v3238
      %v3271 = vadd.f32 %v3135, %v3239
      %v3272 = vadd.f32 %v3136, %v3240
      %v3273 = vadd.f32 %v3137, %v3241
      %v3274 = vmul.f32 %v1107, %v3144
      %v3275 = vmul.f32 %v1108, %v3145
      %v3276 = vadd.f32 %v3140, %v3274
      %v3277 = vadd.f32 %v3141, %v3275
      %v3278 = vmul.f32 %v2847, %v2930
      %v3279 = vmul.f32 %v2849, %v2931
      %v3280 = vmul.f32 %v2851, %v2932
      %v3281 = vmul.f32 %v2853, %v2933
      %v3284 = vrot.slane %v3278, 5
      %v3285 = vrot.slane %v3278, 6
      %v3286 = vrot.slane %v3278, 7
      %v3287 = vrot.slane %v3278, 1
      %v3288 = vrot.slane %v3278, 2
      %v3289 = vrot.slane %v3278, 3
      %v3290 = vrot.slane %v3278, 4
      %v3291 = vrot.slane %v3279, 5
      %v3292 = vrot.slane %v3279, 6
      %v3293 = vrot.slane %v3279, 7
      %v3294 = vrot.slane %v3279, 1
      %v3295 = vrot.slane %v3279, 2
      %v3296 = vrot.slane %v3279, 3
      %v3297 = vrot.slane %v3279, 4
      %v3314 = vmul.f32 %v3146, %v3284
      %v3315 = vmul.f32 %v3147, %v3285
      %v3316 = vmul.f32 %v3148, %v3286
      %v3317 = vmul.f32 %v3149, %v3278
      %v3318 = vmul.f32 %v3150, %v3287
      %v3319 = vmul.f32 %v3151, %v3288
      %v3320 = vmul.f32 %v3152, %v3289
      %v3321 = vmul.f32 %v3153, %v3290
      %v3322 = vmul.f32 %v3154, %v3291
      %v3323 = vmul.f32 %v3155, %v3292
      %v3324 = vmul.f32 %v3156, %v3293
      %v3325 = vmul.f32 %v3157, %v3279
      %v3326 = vmul.f32 %v3158, %v3294
      %v3327 = vmul.f32 %v3159, %v3295
      %v3328 = vmul.f32 %v3160, %v3296
      %v3329 = vmul.f32 %v3161, %v3297
      %v3346 = vrot.slane %v3314, 3
      %v3347 = vrot.slane %v3315, 3
      %v3348 = vrot.slane %v3316, 3
      %v3349 = vrot.slane %v3317, 3
      %v3350 = vrot.slane %v3318, 3
      %v3351 = vrot.slane %v3319, 3
      %v3352 = vrot.slane %v3320, 3
      %v3353 = vrot.slane %v3321, 3
      %v3354 = vrot.slane %v3322, 3
      %v3355 = vrot.slane %v3323, 3
      %v3356 = vrot.slane %v3324, 3
      %v3357 = vrot.slane %v3325, 3
      %v3358 = vrot.slane %v3326, 3
      %v3359 = vrot.slane %v3327, 3
      %v3360 = vrot.slane %v3328, 3
      %v3361 = vrot.slane %v3329, 3
      %v3378 = vadd.f32 %v3258, %v3346
      %v3379 = vadd.f32 %v3259, %v3347
      %v3380 = vadd.f32 %v3260, %v3348
      %v3381 = vadd.f32 %v3261, %v3349
      %v3382 = vadd.f32 %v3262, %v3350
      %v3383 = vadd.f32 %v3263, %v3351
      %v3384 = vadd.f32 %v3264, %v3352
      %v3385 = vadd.f32 %v3265, %v3353
      %v3386 = vadd.f32 %v3266, %v3354
      %v3387 = vadd.f32 %v3267, %v3355
      %v3388 = vadd.f32 %v3268, %v3356
      %v3389 = vadd.f32 %v3269, %v3357
      %v3390 = vadd.f32 %v3270, %v3358
      %v3391 = vadd.f32 %v3271, %v3359
      %v3392 = vadd.f32 %v3272, %v3360
      %v3393 = vadd.f32 %v3273, %v3361
      %v3394 = vmul.f32 %v1244, %v3280
      %v3395 = vmul.f32 %v1245, %v3281
      %v3396 = vadd.f32 %v3276, %v3394
      %v3397 = vadd.f32 %v3277, %v3395
      %v3398 = vmul.f32 %v2859, %v2930
      %v3399 = vmul.f32 %v2861, %v2931
      %v3400 = vmul.f32 %v2863, %v2932
      %v3401 = vmul.f32 %v2865, %v2933
      %v3402 = vunpack.c.l.bf16 %v2298
      %v3403 = vunpack.c.l.bf16 %v2299
      %v3404 = vunpack.c.l.bf16 %v2300
      %v3405 = vunpack.c.l.bf16 %v2301
      %v3406 = vunpack.c.l.bf16 %v2302
      %v3407 = vunpack.c.l.bf16 %v2303
      %v3408 = vunpack.c.l.bf16 %v2304
      %v3409 = vunpack.c.l.bf16 %v2305
      %v3410 = vunpack.c.l.bf16 %v2306
      %v3411 = vunpack.c.l.bf16 %v2307
      %v3412 = vunpack.c.l.bf16 %v2308
      %v3413 = vunpack.c.l.bf16 %v2309
      %v3414 = vunpack.c.l.bf16 %v2310
      %v3415 = vunpack.c.l.bf16 %v2311
      %v3416 = vunpack.c.l.bf16 %v2312
      %v3417 = vunpack.c.l.bf16 %v2313
      %v3420 = vrot.slane %v3398, 4
      %v3421 = vrot.slane %v3398, 5
      %v3422 = vrot.slane %v3398, 6
      %v3423 = vrot.slane %v3398, 7
      %v3424 = vrot.slane %v3398, 1
      %v3425 = vrot.slane %v3398, 2
      %v3426 = vrot.slane %v3398, 3
      %v3427 = vrot.slane %v3399, 4
      %v3428 = vrot.slane %v3399, 5
      %v3429 = vrot.slane %v3399, 6
      %v3430 = vrot.slane %v3399, 7
      %v3431 = vrot.slane %v3399, 1
      %v3432 = vrot.slane %v3399, 2
      %v3433 = vrot.slane %v3399, 3
      %v3450 = vmul.f32 %v3402, %v3420
      %v3451 = vmul.f32 %v3403, %v3421
      %v3452 = vmul.f32 %v3404, %v3422
      %v3453 = vmul.f32 %v3405, %v3423
      %v3454 = vmul.f32 %v3406, %v3398
      %v3455 = vmul.f32 %v3407, %v3424
      %v3456 = vmul.f32 %v3408, %v3425
      %v3457 = vmul.f32 %v3409, %v3426
      %v3458 = vmul.f32 %v3410, %v3427
      %v3459 = vmul.f32 %v3411, %v3428
      %v3460 = vmul.f32 %v3412, %v3429
      %v3461 = vmul.f32 %v3413, %v3430
      %v3462 = vmul.f32 %v3414, %v3399
      %v3463 = vmul.f32 %v3415, %v3431
      %v3464 = vmul.f32 %v3416, %v3432
      %v3465 = vmul.f32 %v3417, %v3433
      %v3482 = vrot.slane %v3450, 4
      %v3483 = vrot.slane %v3451, 4
      %v3484 = vrot.slane %v3452, 4
      %v3485 = vrot.slane %v3453, 4
      %v3486 = vrot.slane %v3454, 4
      %v3487 = vrot.slane %v3455, 4
      %v3488 = vrot.slane %v3456, 4
      %v3489 = vrot.slane %v3457, 4
      %v3490 = vrot.slane %v3458, 4
      %v3491 = vrot.slane %v3459, 4
      %v3492 = vrot.slane %v3460, 4
      %v3493 = vrot.slane %v3461, 4
      %v3494 = vrot.slane %v3462, 4
      %v3495 = vrot.slane %v3463, 4
      %v3496 = vrot.slane %v3464, 4
      %v3497 = vrot.slane %v3465, 4
      %v3514 = vadd.f32 %v3378, %v3482
      %v3515 = vadd.f32 %v3379, %v3483
      %v3516 = vadd.f32 %v3380, %v3484
      %v3517 = vadd.f32 %v3381, %v3485
      %v3518 = vadd.f32 %v3382, %v3486
      %v3519 = vadd.f32 %v3383, %v3487
      %v3520 = vadd.f32 %v3384, %v3488
      %v3521 = vadd.f32 %v3385, %v3489
      %v3522 = vadd.f32 %v3386, %v3490
      %v3523 = vadd.f32 %v3387, %v3491
      %v3524 = vadd.f32 %v3388, %v3492
      %v3525 = vadd.f32 %v3389, %v3493
      %v3526 = vadd.f32 %v3390, %v3494
      %v3527 = vadd.f32 %v3391, %v3495
      %v3528 = vadd.f32 %v3392, %v3496
      %v3529 = vadd.f32 %v3393, %v3497
      %v3530 = vmul.f32 %v1381, %v3400
      %v3531 = vmul.f32 %v1382, %v3401
      %v3532 = vadd.f32 %v3396, %v3530
      %v3533 = vadd.f32 %v3397, %v3531
      %v3534 = vmul.f32 %v2871, %v2930
      %v3535 = vmul.f32 %v2873, %v2931
      %v3536 = vmul.f32 %v2875, %v2932
      %v3537 = vmul.f32 %v2877, %v2933
      %v3540 = vrot.slane %v3534, 3
      %v3541 = vrot.slane %v3534, 4
      %v3542 = vrot.slane %v3534, 5
      %v3543 = vrot.slane %v3534, 6
      %v3544 = vrot.slane %v3534, 7
      %v3545 = vrot.slane %v3534, 1
      %v3546 = vrot.slane %v3534, 2
      %v3547 = vrot.slane %v3535, 3
      %v3548 = vrot.slane %v3535, 4
      %v3549 = vrot.slane %v3535, 5
      %v3550 = vrot.slane %v3535, 6
      %v3551 = vrot.slane %v3535, 7
      %v3552 = vrot.slane %v3535, 1
      %v3553 = vrot.slane %v3535, 2
      %v3570 = vmul.f32 %v3402, %v3540
      %v3571 = vmul.f32 %v3403, %v3541
      %v3572 = vmul.f32 %v3404, %v3542
      %v3573 = vmul.f32 %v3405, %v3543
      %v3574 = vmul.f32 %v3406, %v3544
      %v3575 = vmul.f32 %v3407, %v3534
      %v3576 = vmul.f32 %v3408, %v3545
      %v3577 = vmul.f32 %v3409, %v3546
      %v3578 = vmul.f32 %v3410, %v3547
      %v3579 = vmul.f32 %v3411, %v3548
      %v3580 = vmul.f32 %v3412, %v3549
      %v3581 = vmul.f32 %v3413, %v3550
      %v3582 = vmul.f32 %v3414, %v3551
      %v3583 = vmul.f32 %v3415, %v3535
      %v3584 = vmul.f32 %v3416, %v3552
      %v3585 = vmul.f32 %v3417, %v3553
      %v3602 = vrot.slane %v3570, 5
      %v3603 = vrot.slane %v3571, 5
      %v3604 = vrot.slane %v3572, 5
      %v3605 = vrot.slane %v3573, 5
      %v3606 = vrot.slane %v3574, 5
      %v3607 = vrot.slane %v3575, 5
      %v3608 = vrot.slane %v3576, 5
      %v3609 = vrot.slane %v3577, 5
      %v3610 = vrot.slane %v3578, 5
      %v3611 = vrot.slane %v3579, 5
      %v3612 = vrot.slane %v3580, 5
      %v3613 = vrot.slane %v3581, 5
      %v3614 = vrot.slane %v3582, 5
      %v3615 = vrot.slane %v3583, 5
      %v3616 = vrot.slane %v3584, 5
      %v3617 = vrot.slane %v3585, 5
      %v3634 = vadd.f32 %v3514, %v3602
      %v3635 = vadd.f32 %v3515, %v3603
      %v3636 = vadd.f32 %v3516, %v3604
      %v3637 = vadd.f32 %v3517, %v3605
      %v3638 = vadd.f32 %v3518, %v3606
      %v3639 = vadd.f32 %v3519, %v3607
      %v3640 = vadd.f32 %v3520, %v3608
      %v3641 = vadd.f32 %v3521, %v3609
      %v3642 = vadd.f32 %v3522, %v3610
      %v3643 = vadd.f32 %v3523, %v3611
      %v3644 = vadd.f32 %v3524, %v3612
      %v3645 = vadd.f32 %v3525, %v3613
      %v3646 = vadd.f32 %v3526, %v3614
      %v3647 = vadd.f32 %v3527, %v3615
      %v3648 = vadd.f32 %v3528, %v3616
      %v3649 = vadd.f32 %v3529, %v3617
      %v3650 = vmul.f32 %v1518, %v3536
      %v3651 = vmul.f32 %v1519, %v3537
      %v3652 = vadd.f32 %v3532, %v3650
      %v3653 = vadd.f32 %v3533, %v3651
      %v3654 = vmul.f32 %v2883, %v2930
      %v3655 = vmul.f32 %v2885, %v2931
      %v3656 = vmul.f32 %v2887, %v2932
      %v3657 = vmul.f32 %v2889, %v2933
      %v3658 = vunpack.c.l.bf16 %v2538
      %v3659 = vunpack.c.l.bf16 %v2539
      %v3660 = vunpack.c.l.bf16 %v2540
      %v3661 = vunpack.c.l.bf16 %v2541
      %v3662 = vunpack.c.l.bf16 %v2542
      %v3663 = vunpack.c.l.bf16 %v2543
      %v3664 = vunpack.c.l.bf16 %v2544
      %v3665 = vunpack.c.l.bf16 %v2545
      %v3666 = vunpack.c.l.bf16 %v2546
      %v3667 = vunpack.c.l.bf16 %v2547
      %v3668 = vunpack.c.l.bf16 %v2548
      %v3669 = vunpack.c.l.bf16 %v2549
      %v3670 = vunpack.c.l.bf16 %v2550
      %v3671 = vunpack.c.l.bf16 %v2551
      %v3672 = vunpack.c.l.bf16 %v2552
      %v3673 = vunpack.c.l.bf16 %v2553
      %v3676 = vrot.slane %v3654, 2
      %v3677 = vrot.slane %v3654, 3
      %v3678 = vrot.slane %v3654, 4
      %v3679 = vrot.slane %v3654, 5
      %v3680 = vrot.slane %v3654, 6
      %v3681 = vrot.slane %v3654, 7
      %v3682 = vrot.slane %v3654, 1
      %v3683 = vrot.slane %v3655, 2
      %v3684 = vrot.slane %v3655, 3
      %v3685 = vrot.slane %v3655, 4
      %v3686 = vrot.slane %v3655, 5
      %v3687 = vrot.slane %v3655, 6
      %v3688 = vrot.slane %v3655, 7
      %v3689 = vrot.slane %v3655, 1
      %v3706 = vmul.f32 %v3658, %v3676
      %v3707 = vmul.f32 %v3659, %v3677
      %v3708 = vmul.f32 %v3660, %v3678
      %v3709 = vmul.f32 %v3661, %v3679
      %v3710 = vmul.f32 %v3662, %v3680
      %v3711 = vmul.f32 %v3663, %v3681
      %v3712 = vmul.f32 %v3664, %v3654
      %v3713 = vmul.f32 %v3665, %v3682
      %v3714 = vmul.f32 %v3666, %v3683
      %v3715 = vmul.f32 %v3667, %v3684
      %v3716 = vmul.f32 %v3668, %v3685
      %v3717 = vmul.f32 %v3669, %v3686
      %v3718 = vmul.f32 %v3670, %v3687
      %v3719 = vmul.f32 %v3671, %v3688
      %v3720 = vmul.f32 %v3672, %v3655
      %v3721 = vmul.f32 %v3673, %v3689
      %v3738 = vrot.slane %v3706, 6
      %v3739 = vrot.slane %v3707, 6
      %v3740 = vrot.slane %v3708, 6
      %v3741 = vrot.slane %v3709, 6
      %v3742 = vrot.slane %v3710, 6
      %v3743 = vrot.slane %v3711, 6
      %v3744 = vrot.slane %v3712, 6
      %v3745 = vrot.slane %v3713, 6
      %v3746 = vrot.slane %v3714, 6
      %v3747 = vrot.slane %v3715, 6
      %v3748 = vrot.slane %v3716, 6
      %v3749 = vrot.slane %v3717, 6
      %v3750 = vrot.slane %v3718, 6
      %v3751 = vrot.slane %v3719, 6
      %v3752 = vrot.slane %v3720, 6
      %v3753 = vrot.slane %v3721, 6
      %v3770 = vadd.f32 %v3634, %v3738
      %v3771 = vadd.f32 %v3635, %v3739
      %v3772 = vadd.f32 %v3636, %v3740
      %v3773 = vadd.f32 %v3637, %v3741
      %v3774 = vadd.f32 %v3638, %v3742
      %v3775 = vadd.f32 %v3639, %v3743
      %v3776 = vadd.f32 %v3640, %v3744
      %v3777 = vadd.f32 %v3641, %v3745
      %v3778 = vadd.f32 %v3642, %v3746
      %v3779 = vadd.f32 %v3643, %v3747
      %v3780 = vadd.f32 %v3644, %v3748
      %v3781 = vadd.f32 %v3645, %v3749
      %v3782 = vadd.f32 %v3646, %v3750
      %v3783 = vadd.f32 %v3647, %v3751
      %v3784 = vadd.f32 %v3648, %v3752
      %v3785 = vadd.f32 %v3649, %v3753
      %v3786 = vmul.f32 %v1655, %v3656
      %v3787 = vmul.f32 %v1656, %v3657
      %v3788 = vadd.f32 %v3652, %v3786
      %v3789 = vadd.f32 %v3653, %v3787
      %v3790 = vmul.f32 %v2895, %v2930
      %v3791 = vmul.f32 %v2897, %v2931
      %v3792 = vmul.f32 %v2899, %v2932
      %v3793 = vmul.f32 %v2901, %v2933
      %v3796 = vrot.slane %v3790, 1
      %v3797 = vrot.slane %v3790, 2
      %v3798 = vrot.slane %v3790, 3
      %v3799 = vrot.slane %v3790, 4
      %v3800 = vrot.slane %v3790, 5
      %v3801 = vrot.slane %v3790, 6
      %v3802 = vrot.slane %v3790, 7
      %v3803 = vrot.slane %v3791, 1
      %v3804 = vrot.slane %v3791, 2
      %v3805 = vrot.slane %v3791, 3
      %v3806 = vrot.slane %v3791, 4
      %v3807 = vrot.slane %v3791, 5
      %v3808 = vrot.slane %v3791, 6
      %v3809 = vrot.slane %v3791, 7
      %v3826 = vmul.f32 %v3658, %v3796
      %v3827 = vmul.f32 %v3659, %v3797
      %v3828 = vmul.f32 %v3660, %v3798
      %v3829 = vmul.f32 %v3661, %v3799
      %v3830 = vmul.f32 %v3662, %v3800
      %v3831 = vmul.f32 %v3663, %v3801
      %v3832 = vmul.f32 %v3664, %v3802
      %v3833 = vmul.f32 %v3665, %v3790
      %v3834 = vmul.f32 %v3666, %v3803
      %v3835 = vmul.f32 %v3667, %v3804
      %v3836 = vmul.f32 %v3668, %v3805
      %v3837 = vmul.f32 %v3669, %v3806
      %v3838 = vmul.f32 %v3670, %v3807
      %v3839 = vmul.f32 %v3671, %v3808
      %v3840 = vmul.f32 %v3672, %v3809
      %v3841 = vmul.f32 %v3673, %v3791
      %v3858 = vrot.slane %v3826, 7
      %v3859 = vrot.slane %v3827, 7
      %v3860 = vrot.slane %v3828, 7
      %v3861 = vrot.slane %v3829, 7
      %v3862 = vrot.slane %v3830, 7
      %v3863 = vrot.slane %v3831, 7
      %v3864 = vrot.slane %v3832, 7
      %v3865 = vrot.slane %v3833, 7
      %v3866 = vrot.slane %v3834, 7
      %v3867 = vrot.slane %v3835, 7
      %v3868 = vrot.slane %v3836, 7
      %v3869 = vrot.slane %v3837, 7
      %v3870 = vrot.slane %v3838, 7
      %v3871 = vrot.slane %v3839, 7
      %v3872 = vrot.slane %v3840, 7
      %v3873 = vrot.slane %v3841, 7
      %v3890 = vadd.f32 %v3770, %v3858
      %v3891 = vadd.f32 %v3771, %v3859
      %v3892 = vadd.f32 %v3772, %v3860
      %v3893 = vadd.f32 %v3773, %v3861
      %v3894 = vadd.f32 %v3774, %v3862
      %v3895 = vadd.f32 %v3775, %v3863
      %v3896 = vadd.f32 %v3776, %v3864
      %v3897 = vadd.f32 %v3777, %v3865
      %v3898 = vadd.f32 %v3778, %v3866
      %v3899 = vadd.f32 %v3779, %v3867
      %v3900 = vadd.f32 %v3780, %v3868
      %v3901 = vadd.f32 %v3781, %v3869
      %v3902 = vadd.f32 %v3782, %v3870
      %v3903 = vadd.f32 %v3783, %v3871
      %v3904 = vadd.f32 %v3784, %v3872
      %v3905 = vadd.f32 %v3785, %v3873
      %v3906 = vmul.f32 %v1792, %v3792
      %v3907 = vmul.f32 %v1793, %v3793
      %v3908 = vadd.f32 %v3788, %v3906
      %v3909 = vadd.f32 %v3789, %v3907
      %v3926 = vrot.slane %v3891, 7
      %v3927 = vsel %vm627, %v3926, %v3890
      %v3928 = vrot.slane %v3892, 6
      %v3929 = vsel %vm630, %v3928, %v3927
      %v3930 = vrot.slane %v3893, 5
      %v3931 = vsel %vm1880, %v3930, %v3929
      %v3932 = vrot.slane %v3894, 4
      %v3933 = vsel %vm1883, %v3932, %v3931
      %v3934 = vrot.slane %v3895, 3
      %v3935 = vsel %vm655, %v3934, %v3933
      %v3936 = vrot.slane %v3896, 2
      %v3937 = vsel %vm658, %v3936, %v3935
      %v3938 = vrot.slane %v3897, 1
      %v3939 = vsel %vm1890, %v3938, %v3937
      %v3940 = vrot.slane %v3899, 7
      %v3941 = vsel %vm627, %v3940, %v3898
      %v3942 = vrot.slane %v3900, 6
      %v3943 = vsel %vm630, %v3942, %v3941
      %v3944 = vrot.slane %v3901, 5
      %v3945 = vsel %vm1880, %v3944, %v3943
      %v3946 = vrot.slane %v3902, 4
      %v3947 = vsel %vm1883, %v3946, %v3945
      %v3948 = vrot.slane %v3903, 3
      %v3949 = vsel %vm655, %v3948, %v3947
      %v3950 = vrot.slane %v3904, 2
      %v3951 = vsel %vm658, %v3950, %v3949
      %v3952 = vrot.slane %v3905, 1
      %v3953 = vsel %vm1890, %v3952, %v3951
      %v3956 = vpack.c.bf16 %v3953, %v3939
      %v3957 = vpack.c.bf16 %v3909, %v3908
      %v3958 = vld [vmem:[%s11] sm:$0xf]
      %v3959 = vld [vmem:[%s11 + $0x4] sm:$0xf]
      %v3960 = vld [vmem:[%s11 + $0x8] sm:$0xf]
      %v3961 = vld [vmem:[%s11 + $0xc] sm:$0xf]
      %v3966 = vunpack.c.l.b16 %v3958
      %v3967 = vunpack.c.l.b16 %v3959
      %v3968 = vunpack.c.l.b16 %v3960
      %v3969 = vunpack.c.l.b16 %v3961
      %v3970 = vpack.c.b16 %v3967, %v3966
      %v3971 = vpack.c.b16 %v3969, %v3968
      %v3973 = vsel %vm1922, %v3970, 0
      %v3976 = vsel %vm1922, %v3971, 0
      %3978 = vmatprep.subr.bf16.mxu0 0
      %3979 = vmatpush1.bf16.msra.mxu0 %v3956
      %3980 = vmatprep.subr.bf16.mxu0 0
      %3981 = vmatpush1.bf16.msra.mxu0 %v3957
      %3982 = vmatprep.subr.bf16.mxu0 0
      %3983 = vmatpush1.bf16.msra.mxu0 0
      %3984 = vmatprep.subr.bf16.mxu0 0
      %3985 = vmatpush1.bf16.msra.mxu0 0
      %3986 = vmatprep.subr.bf16.mxu0 0
      %3987 = vmatpush1.bf16.msra.mxu0 0
      %3988 = vmatprep.subr.bf16.mxu0 0
      %3989 = vmatpush1.bf16.msra.mxu0 0
      %3990 = vmatprep.subr.bf16.mxu0 0
      %3991 = vmatpush1.bf16.msra.mxu0 0
      %3992 = vmatprep.subr.bf16.mxu0 0
      %3993 = vmatpush1.bf16.msra.mxu0 0
      %3994 = vmatprep.subr.bf16.mxu0 0
      %3995 = vmatpush1.bf16.msra.mxu0 0
      %3996 = vmatprep.subr.bf16.mxu0 0
      %3997 = vmatpush1.bf16.msra.mxu0 0
      %3998 = vmatprep.subr.bf16.mxu0 0
      %3999 = vmatpush1.bf16.msra.mxu0 0
      %4000 = vmatprep.subr.bf16.mxu0 0
      %4001 = vmatpush1.bf16.msra.mxu0 0
      %4002 = vmatprep.subr.bf16.mxu0 0
      %4003 = vmatpush1.bf16.msra.mxu0 0
      %4004 = vmatprep.subr.bf16.mxu0 0
      %4005 = vmatpush1.bf16.msra.mxu0 0
      %4006 = vmatprep.subr.bf16.mxu0 0
      %4007 = vmatpush1.bf16.msra.mxu0 0
      %4008 = vmatprep.subr.bf16.mxu0 0
      %4009 = vmatpush1.bf16.msra.mxu0 0
      %4010 = vmatprep.mubr.bf16.mxu0 0
      %4011 = vmatmul.mubr.bf16.gmra.mrb[0].mxu0 %v3973
      %v4012 = vpop.f32.mrb[0].mxu0
      %v4013 = vadd.f32 0.0, %v4012
      %v4014 = vpop.f32.mrb[0].mxu0
      %v4015 = vpop.f32.mrb[0].mxu0
      %v4016 = vadd.f32 0.0, %v4015
      %v4017 = vpop.f32.mrb[0].mxu0
      %4018 = vmatprep.mubr.bf16.mxu0 0
      %4019 = vmatmul.mubr.bf16.gmra.mrb[0].mxu0 %v3976
      %v4020 = vpop.f32.mrb[0].mxu0
      %v4021 = vadd.f32 0.0, %v4020
      %v4022 = vpop.f32.mrb[0].mxu0
      %v4023 = vpop.f32.mrb[0].mxu0
      %v4024 = vadd.f32 0.0, %v4023
      %v4025 = vpop.f32.mrb[0].mxu0
      %4026 = vdwg.mxu0
      %v4027 = vld [vmem:[%s12] sm:$0xff]
      %v4028 = vld [vmem:[%s12 + $0x8] sm:$0xff]
      %v4029 = vld [vmem:[%s12 + $0x10] sm:$0xff]
      %v4030 = vld [vmem:[%s12 + $0x18] sm:$0xff]
      %4032 = vset.pattern.permute.xlu0 0
      %4033 = vperm.xlu0 %4032, %v4027
      %v4034 = vpop.permute.xlu0 %4033
      %4037 = vset.pattern.permute.xlu0 0
      %4038 = vperm.xlu0 %4037, %v4028
      %v4039 = vpop.permute.xlu0 %4038
      %4042 = vset.pattern.permute.xlu0 0
      %4043 = vperm.xlu0 %4042, %v4029
      %v4044 = vpop.permute.xlu0 %4043
      %4047 = vset.pattern.permute.xlu0 0
      %4048 = vperm.xlu0 %4047, %v4030
      %v4049 = vpop.permute.xlu0 %4048
      %v4051 = vmul.f32 %v4013, %v4034
      %v4052 = vmul.f32 %v4016, %v4039
      %v4053 = vmul.f32 %v4021, %v4044
      %v4054 = vmul.f32 %v4024, %v4049
      %v4055 = vld [vmem:[%s13] sm:$0xff]
      %v4056 = vld [vmem:[%s13 + $0x8] sm:$0xff]
      %v4057 = vld [vmem:[%s13 + $0x10] sm:$0xff]
      %v4058 = vld [vmem:[%s13 + $0x18] sm:$0xff]
      %4060 = vset.pattern.permute.xlu0 0
      %4061 = vperm.xlu0 %4060, %v4055
      %v4062 = vpop.permute.xlu0 %4061
      %4065 = vset.pattern.permute.xlu0 0
      %4066 = vperm.xlu0 %4065, %v4056
      %v4067 = vpop.permute.xlu0 %4066
      %4070 = vset.pattern.permute.xlu0 0
      %4071 = vperm.xlu0 %4070, %v4057
      %v4072 = vpop.permute.xlu0 %4071
      %4075 = vset.pattern.permute.xlu0 0
      %4076 = vperm.xlu0 %4075, %v4058
      %v4077 = vpop.permute.xlu0 %4076
      %v4079 = vadd.f32 %v4051, %v4062
      %v4080 = vadd.f32 %v4052, %v4067
      %v4081 = vadd.f32 %v4053, %v4072
      %v4082 = vadd.f32 %v4054, %v4077
      %v4083 = vmax.f32 %v4079, 0.0
      %v4084 = vmax.f32 %v4080, 0.0
      %v4085 = vmax.f32 %v4081, 0.0
      %v4086 = vmax.f32 %v4082, 0.0
      %4087 = vst [vmem:[%s557] sm:$0xff] %v4083
      %4088 = vst [vmem:[%s557 + $0x8] sm:$0xff] %v4084
      %4089 = vst [vmem:[%s557 + $0x10] sm:$0xff] %v4085
      %4090 = vst [vmem:[%s557 + $0x18] sm:$0xff] %v4086
      %p4091 = scmp.lt.s32.totalorder %s29, 1
      %s4092 = scalar_select %p4091, %s29, 1
      %p4093 = scmp.lt.s32.totalorder %s30, 0
      %s4094 = scalar_select %p4093, %s30, 0
      %s4095 = smul.addr %s4092, 4
      %s4096 = sadd.s32 %s4094, %s4095
      %s4097 = smul.addr %s4096, 8
      %s4098 = scalar_lea.vmem %s14, %s4097
      // Predicated region
      $region77: #{building_block_forward.3} parent=75 // pred_check
        %p4099 = pneg %p372
      $region78: #{building_block_forward.3} parent=75 // pred_check_branch
        %4101 = sbr.rel (%p4099) target = $region80
      $region79: #{building_block_forward.3} parent=75 // pred_region
        _
      $region80: #{building_block_forward.3} parent=75 // pred_fallthru
        _
    $region76: #{building_block_forward.3} parent=5 // pred_fallthru
      _
    %p4102 = scmp.le.s32.totalorder 2, %s20
    // Predicated region
    $region81: #{building_block_forward.3} parent=5 // pred_check
      %p4103 = pneg %p4102
    $region82: #{building_block_forward.3} parent=5 // pred_check_branch
      %4105 = sbr.rel (%p4103) target = $region84
    $region83: #{building_block_forward.3} parent=5 // pred_region
      %s4106 = ssub.s32 %s20, 2
      // Predicated region
      $region85: #{building_block_forward.3} parent=83 // pred_check
        %p4107 = pneg %p378
      $region86: #{building_block_forward.3} parent=83 // pred_check_branch
        %4109 = sbr.rel (%p4107) target = $region88
      $region87: #{building_block_forward.3} parent=83 // pred_region
        %p4110 = scmp.lt.s32.totalorder %s31, 1
        %s4111 = scalar_select %p4110, %s31, 1
        %p4112 = scmp.lt.s32.totalorder %s32, 0
        %s4113 = scalar_select %p4112, %s32, 0
        %s4114 = smul.addr %s4111, 4
        %s4115 = sadd.s32 %s4113, %s4114
        %s4116 = smul.addr %s4115, 8
        %s4117 = scalar_lea.vmem %s14, %s4116
      $region88: #{building_block_forward.3} parent=83 // pred_fallthru
        _
    $region84: #{building_block_forward.3} parent=5 // pred_fallthru
      _
  $region6: #{building_block_forward.3} parent=0 // loop_footer
    %s24 = sadd.s32 1, %s20
  $region7: #{building_block_forward.3} parent=0 // loop_footer_branch
    %19 = sbr.rel target = $region3
  $region8: #{building_block_forward.3} parent=0 // loop_exit
    _

</llo_original>
